<compile_context>
chip_gen: v7x
topology: tpu7x:2x2x1
jax: 0.10.0
libtpu: 0.0.40
codegen_flags: <defaults>
</compile_context>

<pallas_src>
import math

import jax
import jax.numpy as jnp
from jax.experimental import pallas as pl
from jax.experimental.pallas import tpu as pltpu

EPS = 1e-5
NEG_SLOPE = 0.1
KSIZE = 5
PAD = 2
LANES = 128


def _round_up(x, m):
    return ((x + m - 1) // m) * m


def _make_conv_stats_kernel(H, W, Cin, Cout, Ktaps, Kpad, fuse_input_act):
    """Per-image conv(5x5, replicate pad) + BN partials kernel factory.

    refs (fuse_input_act=True):
      x_ref     (1, H, W, Cin)   bf16  pre-BN output of the previous layer
      w_ref     (Kpad, Coutp)    bf16  packed ((ky,kx,cin), cout) weights
      b_ref     (1, Cout)        f32
      scale_ref (1, Cin)         f32   folded BN scale of the previous layer
      shift_ref (1, Cin)         f32   folded BN shift of the previous layer
      y_ref     (1, H, W, Cout)  bf16  pre-BN conv output of this layer
      psum_ref  (1, 8, Cout)     f32   sublane-partial per-channel sums
      psq_ref   (1, 8, Cout)     f32   sublane-partial per-channel sum-of-sq.
    """
    hw = H * W

    def kernel(*refs):
        if fuse_input_act:
            (x_ref, w_ref, b_ref, scale_ref, shift_ref,
             y_ref, psum_ref, psq_ref) = refs
        else:
            x_ref, w_ref, b_ref, y_ref, psum_ref, psq_ref = refs

        x = x_ref[0]                                          # (H, W, Cin) bf16
        if fuse_input_act:
            # Previous layer's folded BatchNorm + LeakyReLU(0.1), fused into
            # this conv's input path (applied once to the whole tile).
            z = x.astype(jnp.float32) * scale_ref[...] + shift_ref[...]
            x = jnp.where(z > 0, z, NEG_SLOPE * z).astype(jnp.bfloat16)

        # ReplicatePad2d((2, 2, 2, 2)) in-kernel via edge-slice concatenation.
        top, bot = x[0:1], x[H - 1:H]
        xp = jnp.concatenate([top, top, x, bot, bot], axis=0)          # (H+4, W, Cin)
        left, right = xp[:, 0:1, :], xp[:, W - 1:W, :]
        xp = jnp.concatenate([left, left, xp, right, right], axis=1)   # (H+4, W+4, Cin)

        # Mini im2col in registers: pack 25 taps x real Cin channels into the
        # contraction dim -> a single lane-dense MXU matmul.
        pieces = [xp[ky:ky + H, kx:kx + W, :]
                  for ky in range(KSIZE) for kx in range(KSIZE)]
        if Kpad > Ktaps:
            pieces.append(jnp.zeros((H, W, Kpad - Ktaps), jnp.bfloat16))
        col = jnp.concatenate(pieces, axis=-1).reshape(hw, Kpad)       # (hw, Kpad)

        acc = jnp.dot(col, w_ref[...],
                      preferred_element_type=jnp.float32)              # (hw, Coutp)
        y = acc[:, :Cout] + b_ref[...]                                 # (hw, Cout) f32

        # Single-pass BN statistics partials; folding rows into 8 sublane
        # partials keeps the reduction on the VPU (tiny outputs, wrapper
        # finishes the reduction).
        y3 = y.reshape(hw // 8, 8, Cout)
        psum_ref[0] = jnp.sum(y3, axis=0)
        psq_ref[0] = jnp.sum(y3 * y3, axis=0)

        # Pre-BN conv output: bf16, real channels only (minimal HBM traffic).
        y_ref[...] = y.astype(jnp.bfloat16).reshape(1, H, W, Cout)

    return kernel


def _conv_stats_pass(x_nhwc, weight, bias, scale=None, shift=None):
    """One 5x5 replicate-padded conv over a bf16 NHWC input (real channels
    only), optionally fusing a folded-BN + LeakyReLU input activation.
    Returns (pre-BN conv output bf16 (N,H,W,Cout), psum (N,8,Cout), psq)."""
    N, H, W, Cin = x_nhwc.shape
    Cout = int(weight.shape[0])
    assert int(weight.shape[1]) == Cin
    assert (H * W) % 8 == 0, "H*W must be a multiple of 8"

    Ktaps = KSIZE * KSIZE * Cin
    Kpad = _round_up(Ktaps, LANES)        # 128 for Cin=4, 256 for Cin=8
    Coutp = _round_up(Cout, LANES)

    # Packed weights: (cout,cin,ky,kx) -> ((ky,kx,cin), cout), zero-padded to
    # (Kpad, Coutp), bf16 MXU operand resident across grid steps.
    w = jnp.transpose(weight.astype(jnp.float32), (2, 3, 1, 0)).reshape(Ktaps, Cout)
    w = jnp.pad(w, ((0, Kpad - Ktaps), (0, Coutp - Cout))).astype(jnp.bfloat16)
    b_row = bias.astype(jnp.float32).reshape(1, Cout)

    fuse_input_act = scale is not None
    kernel = _make_conv_stats_kernel(H, W, Cin, Cout, Ktaps, Kpad, fuse_input_act)

    in_specs = [
        pl.BlockSpec((1, H, W, Cin), lambda n: (n, 0, 0, 0)),
        pl.BlockSpec((Kpad, Coutp), lambda n: (0, 0)),
        pl.BlockSpec((1, Cout), lambda n: (0, 0)),
    ]
    operands = [x_nhwc.astype(jnp.bfloat16), w, b_row]
    if fuse_input_act:
        in_specs += [pl.BlockSpec((1, Cin), lambda n: (0, 0)),
                     pl.BlockSpec((1, Cin), lambda n: (0, 0))]
        operands += [scale.reshape(1, Cin).astype(jnp.float32),
                     shift.reshape(1, Cin).astype(jnp.float32)]

    # Cost estimate with REAL channel counts.
    flops = 2 * N * H * W * KSIZE * KSIZE * Cin * Cout
    bytes_accessed = (N * H * W * Cin * 2 + Kpad * Coutp * 2
                      + N * H * W * Cout * 2 + 2 * N * 8 * Cout * 4)

    y, psum, psq = pl.pallas_call(
        kernel,
        grid=(N,),
        in_specs=in_specs,
        out_specs=[
            pl.BlockSpec((1, H, W, Cout), lambda n: (n, 0, 0, 0)),
            pl.BlockSpec((1, 8, Cout), lambda n: (n, 0, 0)),
            pl.BlockSpec((1, 8, Cout), lambda n: (n, 0, 0)),
        ],
        out_shape=[
            jax.ShapeDtypeStruct((N, H, W, Cout), jnp.bfloat16),
            jax.ShapeDtypeStruct((N, 8, Cout), jnp.float32),
            jax.ShapeDtypeStruct((N, 8, Cout), jnp.float32),
        ],
        compiler_params=pltpu.CompilerParams(
            dimension_semantics=("parallel",)),
        cost_estimate=pl.CostEstimate(flops=flops, transcendentals=0,
                                      bytes_accessed=bytes_accessed),
    )(*operands)
    return y, psum, psq


def _finalize_bn(psum, psq, gamma, beta, m_count):
    """Fold training-mode BatchNorm (batch mean, biased variance, eps=1e-5,
    gamma, beta) into a per-channel scale/shift from the kernel partials."""
    tot = jnp.sum(psum, axis=(0, 1))
    tot_sq = jnp.sum(psq, axis=(0, 1))
    mean = tot / m_count
    # TODO(synk): single-pass E[y^2]-E[y]^2 is cancellation-prone for conv
    # outputs with very large mean/std ratio; fine at Xavier-init scales.
    var = jnp.maximum(tot_sq / m_count - mean * mean, 0.0)
    inv_std = jax.lax.rsqrt(var + EPS)
    scale = gamma.astype(jnp.float32) * inv_std
    shift = beta.astype(jnp.float32) - mean * scale
    return scale, shift


def _bn_lrelu_kernel(y_ref, scale_ref, shift_ref, o_ref):
    """Trailing elementwise pass: folded BatchNorm (scale/shift) + LeakyReLU."""
    z = y_ref[...].astype(jnp.float32) * scale_ref[...] + shift_ref[...]
    o_ref[...] = jnp.where(z > 0, z, NEG_SLOPE * z)


def _bn_lrelu_pass(y_nhwc, scale, shift):
    N, H, W, C = y_nhwc.shape
    M = N * H * W
    y2 = y_nhwc.reshape(M, C)
    tile_m = min(M, 2048)
    out = pl.pallas_call(
        _bn_lrelu_kernel,
        grid=(pl.cdiv(M, tile_m),),
        in_specs=[
            pl.BlockSpec((tile_m, C), lambda i: (i, 0)),
            pl.BlockSpec((1, C), lambda i: (0, 0)),
            pl.BlockSpec((1, C), lambda i: (0, 0)),
        ],
        out_specs=pl.BlockSpec((tile_m, C), lambda i: (i, 0)),
        out_shape=jax.ShapeDtypeStruct((M, C), jnp.float32),
        compiler_params=pltpu.CompilerParams(
            dimension_semantics=("parallel",)),
    )(y2, scale.reshape(1, C), shift.reshape(1, C))
    return out.reshape(N, H, W, C)


def make_inconv_params(key, in_ch, out_ch):
    """Deterministic init matching the PyTorch module: conv weights
    xavier_uniform_, conv bias 0.01, BN gamma=1 / beta=0."""
    k1, k2 = jax.random.split(key)

    def xavier_uniform(k, cout, cin):
        fan_in = cin * KSIZE * KSIZE
        fan_out = cout * KSIZE * KSIZE
        bound = math.sqrt(6.0 / (fan_in + fan_out))
        return jax.random.uniform(
            k, (cout, cin, KSIZE, KSIZE), jnp.float32, minval=-bound, maxval=bound)

    return {
        "w1": xavier_uniform(k1, out_ch, in_ch),
        "b1": jnp.full((out_ch,), 0.01, jnp.float32),
        "g1": jnp.ones((out_ch,), jnp.float32),
        "be1": jnp.zeros((out_ch,), jnp.float32),
        "w2": xavier_uniform(k2, out_ch, out_ch),
        "b2": jnp.full((out_ch,), 0.01, jnp.float32),
        "g2": jnp.ones((out_ch,), jnp.float32),
        "be2": jnp.zeros((out_ch,), jnp.float32),
    }


def inconv_forward(x_nchw, params):
    """inconv forward: (N, Cin, H, W) -> (N, Cout, H, W) float32."""
    N, _, H, W = x_nchw.shape
    m_count = N * H * W

    # NCHW -> NHWC, single bf16 cast; channels stay at their real width.
    x = jnp.transpose(x_nchw, (0, 2, 3, 1)).astype(jnp.bfloat16)

    # Layer 1: conv + BN partials (pre-BN output stays bf16 in HBM).
    y1, ps1, pq1 = _conv_stats_pass(x, params["w1"], params["b1"])
    scale1, shift1 = _finalize_bn(ps1, pq1, params["g1"], params["be1"], m_count)

    # Layer 2: fused (BN1 + LeakyReLU on the input tile) + conv + BN partials.
    y2, ps2, pq2 = _conv_stats_pass(y1, params["w2"], params["b2"],
                                    scale=scale1, shift=shift1)
    scale2, shift2 = _finalize_bn(ps2, pq2, params["g2"], params["be2"], m_count)

    # Single trailing elementwise pass: BN2 + LeakyReLU.
    out = _bn_lrelu_pass(y2, scale2, shift2)                 # (N, H, W, Cout) f32
    return jnp.transpose(out, (0, 3, 1, 2))                  # NHWC -> NCHW


if __name__ == "__main__":
    key = jax.random.PRNGKey(0)
    k_x, k_p = jax.random.split(key)

    N, Cin, Cout, H, W = 2, 4, 8, 16, 16
    x = jax.random.normal(k_x, (N, Cin, H, W), jnp.float32)
    params = make_inconv_params(k_p, Cin, Cout)

    y = jax.jit(inconv_forward)(x, params)
    y = jax.block_until_ready(y)

    assert y.shape == (N, Cout, H, W), y.shape
    assert bool(jnp.all(jnp.isfinite(y)))
    print("KERNEL_OK")
</pallas_src>

<mosaic_0001>
module attributes {stable_mosaic.version = 11 : i64} {
  func.func @kernel(%arg0: i32, %arg1: memref<1x16x16x8xbf16, #tpu.memory_space<vmem>>, %arg2: memref<256x128xbf16, #tpu.memory_space<vmem>>, %arg3: memref<1x8xf32, #tpu.memory_space<vmem>>, %arg4: memref<1x8xf32, #tpu.memory_space<vmem>>, %arg5: memref<1x8xf32, #tpu.memory_space<vmem>>, %arg6: memref<1x16x16x8xbf16, #tpu.memory_space<vmem>>, %arg7: memref<1x8x8xf32, #tpu.memory_space<vmem>>, %arg8: memref<1x8x8xf32, #tpu.memory_space<vmem>>) attributes {dimension_semantics = [#tpu.dimension_semantics<parallel>], iteration_bounds = array<i64: 2>, scalar_prefetch = 0 : i64, scratch_operands = 0 : i64, tpu.core_type = #tpu.core_type<tc>, window_params = [{transform_indices = @transform_0, window_bounds = array<i64: 1, 16, 16, 8>}, {pipeline_mode = #tpu.pipeline_mode<synchronous>, transform_indices = @transform_1, window_bounds = array<i64: 256, 128>}, {pipeline_mode = #tpu.pipeline_mode<synchronous>, transform_indices = @transform_2, window_bounds = array<i64: 1, 8>}, {pipeline_mode = #tpu.pipeline_mode<synchronous>, transform_indices = @transform_3, window_bounds = array<i64: 1, 8>}, {pipeline_mode = #tpu.pipeline_mode<synchronous>, transform_indices = @transform_4, window_bounds = array<i64: 1, 8>}, {transform_indices = @transform_5, window_bounds = array<i64: 1, 16, 16, 8>}, {transform_indices = @transform_6, window_bounds = array<i64: 1, 8, 8>}, {transform_indices = @transform_7, window_bounds = array<i64: 1, 8, 8>}]} {
    %c0 = arith.constant 0 : index
    %c0_0 = arith.constant 0 : index
    %c0_1 = arith.constant 0 : index
    %c0_2 = arith.constant 0 : index
    %0 = vector.load %arg1[%c0, %c0_0, %c0_1, %c0_2] : memref<1x16x16x8xbf16, #tpu.memory_space<vmem>>, vector<1x16x16x8xbf16>
    %1 = vector.shape_cast %0 : vector<1x16x16x8xbf16> to vector<16x16x8xbf16>
    %2 = arith.extf %1 : vector<16x16x8xbf16> to vector<16x16x8xf32>
    %c0_3 = arith.constant 0 : index
    %c0_4 = arith.constant 0 : index
    %3 = vector.load %arg4[%c0_3, %c0_4] : memref<1x8xf32, #tpu.memory_space<vmem>>, vector<1x8xf32>
    %4 = vector.shape_cast %3 : vector<1x8xf32> to vector<1x1x8xf32>
    %5 = vector.broadcast %4 : vector<1x1x8xf32> to vector<16x16x8xf32>
    %6 = arith.mulf %2, %5 : vector<16x16x8xf32>
    %c0_5 = arith.constant 0 : index
    %c0_6 = arith.constant 0 : index
    %7 = vector.load %arg5[%c0_5, %c0_6] : memref<1x8xf32, #tpu.memory_space<vmem>>, vector<1x8xf32>
    %8 = vector.shape_cast %7 : vector<1x8xf32> to vector<1x1x8xf32>
    %9 = vector.broadcast %8 : vector<1x1x8xf32> to vector<16x16x8xf32>
    %10 = arith.addf %6, %9 : vector<16x16x8xf32>
    %cst = arith.constant 0.000000e+00 : f32
    %11 = vector.broadcast %cst : f32 to vector<16x16x8xf32>
    %12 = arith.cmpf ogt, %10, %11 : vector<16x16x8xf32>
    %cst_7 = arith.constant 1.000000e-01 : f32
    %13 = vector.broadcast %cst_7 : f32 to vector<16x16x8xf32>
    %14 = arith.mulf %13, %10 : vector<16x16x8xf32>
    %15 = arith.select %12, %10, %14 : vector<16x16x8xi1>, vector<16x16x8xf32>
    %16 = arith.truncf %15 : vector<16x16x8xf32> to vector<16x16x8xbf16>
    %17 = vector.extract_strided_slice %16 {offsets = [0, 0, 0], sizes = [1, 16, 8], strides = [1, 1, 1]} : vector<16x16x8xbf16> to vector<1x16x8xbf16>
    %18 = vector.extract_strided_slice %16 {offsets = [15, 0, 0], sizes = [1, 16, 8], strides = [1, 1, 1]} : vector<16x16x8xbf16> to vector<1x16x8xbf16>
    %19 = tpu.concatenate %17, %17, %16, %18, %18 in 0 : vector<1x16x8xbf16>, vector<1x16x8xbf16>, vector<16x16x8xbf16>, vector<1x16x8xbf16>, vector<1x16x8xbf16> -> vector<20x16x8xbf16>
    %20 = vector.extract_strided_slice %19 {offsets = [0, 0, 0], sizes = [20, 1, 8], strides = [1, 1, 1]} : vector<20x16x8xbf16> to vector<20x1x8xbf16>
    %21 = vector.extract_strided_slice %19 {offsets = [0, 15, 0], sizes = [20, 1, 8], strides = [1, 1, 1]} : vector<20x16x8xbf16> to vector<20x1x8xbf16>
    %22 = tpu.concatenate %20, %20, %19, %21, %21 in 1 : vector<20x1x8xbf16>, vector<20x1x8xbf16>, vector<20x16x8xbf16>, vector<20x1x8xbf16>, vector<20x1x8xbf16> -> vector<20x20x8xbf16>
    %23 = vector.extract_strided_slice %22 {offsets = [0, 0, 0], sizes = [16, 16, 8], strides = [1, 1, 1]} : vector<20x20x8xbf16> to vector<16x16x8xbf16>
    %24 = vector.extract_strided_slice %22 {offsets = [0, 1, 0], sizes = [16, 16, 8], strides = [1, 1, 1]} : vector<20x20x8xbf16> to vector<16x16x8xbf16>
    %25 = vector.extract_strided_slice %22 {offsets = [0, 2, 0], sizes = [16, 16, 8], strides = [1, 1, 1]} : vector<20x20x8xbf16> to vector<16x16x8xbf16>
    %26 = vector.extract_strided_slice %22 {offsets = [0, 3, 0], sizes = [16, 16, 8], strides = [1, 1, 1]} : vector<20x20x8xbf16> to vector<16x16x8xbf16>
    %27 = vector.extract_strided_slice %22 {offsets = [0, 4, 0], sizes = [16, 16, 8], strides = [1, 1, 1]} : vector<20x20x8xbf16> to vector<16x16x8xbf16>
    %28 = vector.extract_strided_slice %22 {offsets = [1, 0, 0], sizes = [16, 16, 8], strides = [1, 1, 1]} : vector<20x20x8xbf16> to vector<16x16x8xbf16>
    %29 = vector.extract_strided_slice %22 {offsets = [1, 1, 0], sizes = [16, 16, 8], strides = [1, 1, 1]} : vector<20x20x8xbf16> to vector<16x16x8xbf16>
    %30 = vector.extract_strided_slice %22 {offsets = [1, 2, 0], sizes = [16, 16, 8], strides = [1, 1, 1]} : vector<20x20x8xbf16> to vector<16x16x8xbf16>
    %31 = vector.extract_strided_slice %22 {offsets = [1, 3, 0], sizes = [16, 16, 8], strides = [1, 1, 1]} : vector<20x20x8xbf16> to vector<16x16x8xbf16>
    %32 = vector.extract_strided_slice %22 {offsets = [1, 4, 0], sizes = [16, 16, 8], strides = [1, 1, 1]} : vector<20x20x8xbf16> to vector<16x16x8xbf16>
    %33 = vector.extract_strided_slice %22 {offsets = [2, 0, 0], sizes = [16, 16, 8], strides = [1, 1, 1]} : vector<20x20x8xbf16> to vector<16x16x8xbf16>
    %34 = vector.extract_strided_slice %22 {offsets = [2, 1, 0], sizes = [16, 16, 8], strides = [1, 1, 1]} : vector<20x20x8xbf16> to vector<16x16x8xbf16>
    %35 = vector.extract_strided_slice %22 {offsets = [2, 2, 0], sizes = [16, 16, 8], strides = [1, 1, 1]} : vector<20x20x8xbf16> to vector<16x16x8xbf16>
    %36 = vector.extract_strided_slice %22 {offsets = [2, 3, 0], sizes = [16, 16, 8], strides = [1, 1, 1]} : vector<20x20x8xbf16> to vector<16x16x8xbf16>
    %37 = vector.extract_strided_slice %22 {offsets = [2, 4, 0], sizes = [16, 16, 8], strides = [1, 1, 1]} : vector<20x20x8xbf16> to vector<16x16x8xbf16>
    %38 = vector.extract_strided_slice %22 {offsets = [3, 0, 0], sizes = [16, 16, 8], strides = [1, 1, 1]} : vector<20x20x8xbf16> to vector<16x16x8xbf16>
    %39 = vector.extract_strided_slice %22 {offsets = [3, 1, 0], sizes = [16, 16, 8], strides = [1, 1, 1]} : vector<20x20x8xbf16> to vector<16x16x8xbf16>
    %40 = vector.extract_strided_slice %22 {offsets = [3, 2, 0], sizes = [16, 16, 8], strides = [1, 1, 1]} : vector<20x20x8xbf16> to vector<16x16x8xbf16>
    %41 = vector.extract_strided_slice %22 {offsets = [3, 3, 0], sizes = [16, 16, 8], strides = [1, 1, 1]} : vector<20x20x8xbf16> to vector<16x16x8xbf16>
    %42 = vector.extract_strided_slice %22 {offsets = [3, 4, 0], sizes = [16, 16, 8], strides = [1, 1, 1]} : vector<20x20x8xbf16> to vector<16x16x8xbf16>
    %43 = vector.extract_strided_slice %22 {offsets = [4, 0, 0], sizes = [16, 16, 8], strides = [1, 1, 1]} : vector<20x20x8xbf16> to vector<16x16x8xbf16>
    %44 = vector.extract_strided_slice %22 {offsets = [4, 1, 0], sizes = [16, 16, 8], strides = [1, 1, 1]} : vector<20x20x8xbf16> to vector<16x16x8xbf16>
    %45 = vector.extract_strided_slice %22 {offsets = [4, 2, 0], sizes = [16, 16, 8], strides = [1, 1, 1]} : vector<20x20x8xbf16> to vector<16x16x8xbf16>
    %46 = vector.extract_strided_slice %22 {offsets = [4, 3, 0], sizes = [16, 16, 8], strides = [1, 1, 1]} : vector<20x20x8xbf16> to vector<16x16x8xbf16>
    %47 = vector.extract_strided_slice %22 {offsets = [4, 4, 0], sizes = [16, 16, 8], strides = [1, 1, 1]} : vector<20x20x8xbf16> to vector<16x16x8xbf16>
    %cst_8 = arith.constant 0.000000e+00 : bf16
    %48 = vector.broadcast %cst_8 : bf16 to vector<16x16x56xbf16>
    %49 = tpu.concatenate %23, %24, %25, %26, %27, %28, %29, %30, %31, %32, %33, %34, %35, %36, %37, %38 in 2 : vector<16x16x8xbf16>, vector<16x16x8xbf16>, vector<16x16x8xbf16>, vector<16x16x8xbf16>, vector<16x16x8xbf16>, vector<16x16x8xbf16>, vector<16x16x8xbf16>, vector<16x16x8xbf16>, vector<16x16x8xbf16>, vector<16x16x8xbf16>, vector<16x16x8xbf16>, vector<16x16x8xbf16>, vector<16x16x8xbf16>, vector<16x16x8xbf16>, vector<16x16x8xbf16>, vector<16x16x8xbf16> -> vector<16x16x128xbf16>
    %50 = tpu.concatenate %39, %40, %41, %42, %43, %44, %45, %46, %47, %48 in 2 : vector<16x16x8xbf16>, vector<16x16x8xbf16>, vector<16x16x8xbf16>, vector<16x16x8xbf16>, vector<16x16x8xbf16>, vector<16x16x8xbf16>, vector<16x16x8xbf16>, vector<16x16x8xbf16>, vector<16x16x8xbf16>, vector<16x16x56xbf16> -> vector<16x16x128xbf16>
    %51 = tpu.concatenate %49, %50 in 2 : vector<16x16x128xbf16>, vector<16x16x128xbf16> -> vector<16x16x256xbf16>
    %52 = vector.shape_cast %51 : vector<16x16x256xbf16> to vector<256x256xbf16>
    %c0_9 = arith.constant 0 : index
    %c0_10 = arith.constant 0 : index
    %53 = vector.load %arg2[%c0_9, %c0_10] : memref<256x128xbf16, #tpu.memory_space<vmem>>, vector<256x128xbf16>
    %cst_11 = arith.constant dense<0.000000e+00> : vector<256x128xf32>
    %54 = tpu.matmul %52, %53, %cst_11 {dimension_numbers = #tpu.dot_dimension_numbers<[1], [0], [0], [1], [0, 0, 1, 1], [], []>} : vector<256x256xbf16>, vector<256x128xbf16>, vector<256x128xf32> -> vector<256x128xf32>
    %55 = vector.extract_strided_slice %54 {offsets = [0, 0], sizes = [256, 8], strides = [1, 1]} : vector<256x128xf32> to vector<256x8xf32>
    %c0_12 = arith.constant 0 : index
    %c0_13 = arith.constant 0 : index
    %56 = vector.load %arg3[%c0_12, %c0_13] : memref<1x8xf32, #tpu.memory_space<vmem>>, vector<1x8xf32>
    %57 = vector.broadcast %56 : vector<1x8xf32> to vector<256x8xf32>
    %58 = arith.addf %55, %57 : vector<256x8xf32>
    %59 = vector.shape_cast %58 : vector<256x8xf32> to vector<32x8x8xf32>
    %cst_14 = arith.constant dense<0.000000e+00> : vector<8x8xf32>
    %60 = vector.multi_reduction <add>, %59, %cst_14 [0] : vector<32x8x8xf32> to vector<8x8xf32>
    %c0_15 = arith.constant 0 : index
    %c0_16 = arith.constant 0 : index
    %c0_17 = arith.constant 0 : index
    %61 = vector.load %arg7[%c0_15, %c0_16, %c0_17] : memref<1x8x8xf32, #tpu.memory_space<vmem>>, vector<1x8x8xf32>
    %62 = vector.shape_cast %61 : vector<1x8x8xf32> to vector<8x8xf32>
    %63 = vector.shape_cast %60 : vector<8x8xf32> to vector<1x8x8xf32>
    tpu.vector_store %arg7[%c0_15, %c0_16, %c0_17], %63 {strides = array<i32>} : memref<1x8x8xf32, #tpu.memory_space<vmem>>, vector<1x8x8xf32>,
    %64 = arith.mulf %59, %59 : vector<32x8x8xf32>
    %cst_18 = arith.constant dense<0.000000e+00> : vector<8x8xf32>
    %65 = vector.multi_reduction <add>, %64, %cst_18 [0] : vector<32x8x8xf32> to vector<8x8xf32>
    %c0_19 = arith.constant 0 : index
    %c0_20 = arith.constant 0 : index
    %c0_21 = arith.constant 0 : index
    %66 = vector.load %arg8[%c0_19, %c0_20, %c0_21] : memref<1x8x8xf32, #tpu.memory_space<vmem>>, vector<1x8x8xf32>
    %67 = vector.shape_cast %66 : vector<1x8x8xf32> to vector<8x8xf32>
    %68 = vector.shape_cast %65 : vector<8x8xf32> to vector<1x8x8xf32>
    tpu.vector_store %arg8[%c0_19, %c0_20, %c0_21], %68 {strides = array<i32>} : memref<1x8x8xf32, #tpu.memory_space<vmem>>, vector<1x8x8xf32>,
    %69 = arith.truncf %58 : vector<256x8xf32> to vector<256x8xbf16>
    %70 = vector.shape_cast %69 : vector<256x8xbf16> to vector<1x16x16x8xbf16>
    %c0_22 = arith.constant 0 : index
    %c0_23 = arith.constant 0 : index
    %c0_24 = arith.constant 0 : index
    %c0_25 = arith.constant 0 : index
    %71 = vector.load %arg6[%c0_22, %c0_23, %c0_24, %c0_25] : memref<1x16x16x8xbf16, #tpu.memory_space<vmem>>, vector<1x16x16x8xbf16>
    tpu.vector_store %arg6[%c0_22, %c0_23, %c0_24, %c0_25], %70 {strides = array<i32>} : memref<1x16x16x8xbf16, #tpu.memory_space<vmem>>, vector<1x16x16x8xbf16>,
    return
  }
  func.func @transform_0(%arg0: i32) -> (i32, i32, i32, i32) {
    %c0_i32 = arith.constant 0 : i32
    %c0_i32_0 = arith.constant 0 : i32
    %c0_i32_1 = arith.constant 0 : i32
    %c0_i32_2 = arith.constant 0 : i32
    return %arg0, %c0_i32, %c0_i32_0, %c0_i32_1 : i32, i32, i32, i32
  }
  func.func @transform_1(%arg0: i32) -> (i32, i32) {
    %c0_i32 = arith.constant 0 : i32
    %c0_i32_0 = arith.constant 0 : i32
    %c0_i32_1 = arith.constant 0 : i32
    return %c0_i32, %c0_i32_0 : i32, i32
  }
  func.func @transform_2(%arg0: i32) -> (i32, i32) {
    %c0_i32 = arith.constant 0 : i32
    %c0_i32_0 = arith.constant 0 : i32
    %c0_i32_1 = arith.constant 0 : i32
    return %c0_i32, %c0_i32_0 : i32, i32
  }
  func.func @transform_3(%arg0: i32) -> (i32, i32) {
    %c0_i32 = arith.constant 0 : i32
    %c0_i32_0 = arith.constant 0 : i32
    %c0_i32_1 = arith.constant 0 : i32
    return %c0_i32, %c0_i32_0 : i32, i32
  }
  func.func @transform_4(%arg0: i32) -> (i32, i32) {
    %c0_i32 = arith.constant 0 : i32
    %c0_i32_0 = arith.constant 0 : i32
    %c0_i32_1 = arith.constant 0 : i32
    return %c0_i32, %c0_i32_0 : i32, i32
  }
  func.func @transform_5(%arg0: i32) -> (i32, i32, i32, i32) {
    %c0_i32 = arith.constant 0 : i32
    %c0_i32_0 = arith.constant 0 : i32
    %c0_i32_1 = arith.constant 0 : i32
    %c0_i32_2 = arith.constant 0 : i32
    return %arg0, %c0_i32, %c0_i32_0, %c0_i32_1 : i32, i32, i32, i32
  }
  func.func @transform_6(%arg0: i32) -> (i32, i32, i32) {
    %c0_i32 = arith.constant 0 : i32
    %c0_i32_0 = arith.constant 0 : i32
    %c0_i32_1 = arith.constant 0 : i32
    return %arg0, %c0_i32, %c0_i32_0 : i32, i32, i32
  }
  func.func @transform_7(%arg0: i32) -> (i32, i32, i32) {
    %c0_i32 = arith.constant 0 : i32
    %c0_i32_0 = arith.constant 0 : i32
    %c0_i32_1 = arith.constant 0 : i32
    return %arg0, %c0_i32, %c0_i32_0 : i32, i32, i32
  }
}

module attributes {stable_mosaic.version = 11 : i64} {
  func.func @_bn_lrelu_kernel(%arg0: i32, %arg1: memref<512x8xbf16, #tpu.memory_space<vmem>>, %arg2: memref<1x8xf32, #tpu.memory_space<vmem>>, %arg3: memref<1x8xf32, #tpu.memory_space<vmem>>, %arg4: memref<512x8xf32, #tpu.memory_space<vmem>>) attributes {dimension_semantics = [#tpu.dimension_semantics<parallel>], iteration_bounds = array<i64: 1>, scalar_prefetch = 0 : i64, scratch_operands = 0 : i64, tpu.core_type = #tpu.core_type<tc>, window_params = [{transform_indices = @transform_0, window_bounds = array<i64: 512, 8>}, {pipeline_mode = #tpu.pipeline_mode<synchronous>, transform_indices = @transform_1, window_bounds = array<i64: 1, 8>}, {pipeline_mode = #tpu.pipeline_mode<synchronous>, transform_indices = @transform_2, window_bounds = array<i64: 1, 8>}, {transform_indices = @transform_3, window_bounds = array<i64: 512, 8>}]} {
    %c0 = arith.constant 0 : index
    %c0_0 = arith.constant 0 : index
    %0 = vector.load %arg1[%c0, %c0_0] : memref<512x8xbf16, #tpu.memory_space<vmem>>, vector<512x8xbf16>
    %1 = arith.extf %0 : vector<512x8xbf16> to vector<512x8xf32>
    %c0_1 = arith.constant 0 : index
    %c0_2 = arith.constant 0 : index
    %2 = vector.load %arg2[%c0_1, %c0_2] : memref<1x8xf32, #tpu.memory_space<vmem>>, vector<1x8xf32>
    %3 = vector.broadcast %2 : vector<1x8xf32> to vector<512x8xf32>
    %4 = arith.mulf %1, %3 : vector<512x8xf32>
    %c0_3 = arith.constant 0 : index
    %c0_4 = arith.constant 0 : index
    %5 = vector.load %arg3[%c0_3, %c0_4] : memref<1x8xf32, #tpu.memory_space<vmem>>, vector<1x8xf32>
    %6 = vector.broadcast %5 : vector<1x8xf32> to vector<512x8xf32>
    %7 = arith.addf %4, %6 : vector<512x8xf32>
    %cst = arith.constant 0.000000e+00 : f32
    %8 = vector.broadcast %cst : f32 to vector<512x8xf32>
    %9 = arith.cmpf ogt, %7, %8 : vector<512x8xf32>
    %cst_5 = arith.constant 1.000000e-01 : f32
    %10 = vector.broadcast %cst_5 : f32 to vector<512x8xf32>
    %11 = arith.mulf %10, %7 : vector<512x8xf32>
    %12 = arith.select %9, %7, %11 : vector<512x8xi1>, vector<512x8xf32>
    %c0_6 = arith.constant 0 : index
    %c0_7 = arith.constant 0 : index
    %13 = vector.load %arg4[%c0_6, %c0_7] : memref<512x8xf32, #tpu.memory_space<vmem>>, vector<512x8xf32>
    tpu.vector_store %arg4[%c0_6, %c0_7], %12 {strides = array<i32>} : memref<512x8xf32, #tpu.memory_space<vmem>>, vector<512x8xf32>,
    return
  }
  func.func @transform_0(%arg0: i32) -> (i32, i32) {
    %c0_i32 = arith.constant 0 : i32
    %c0_i32_0 = arith.constant 0 : i32
    return %arg0, %c0_i32 : i32, i32
  }
  func.func @transform_1(%arg0: i32) -> (i32, i32) {
    %c0_i32 = arith.constant 0 : i32
    %c0_i32_0 = arith.constant 0 : i32
    %c0_i32_1 = arith.constant 0 : i32
    return %c0_i32, %c0_i32_0 : i32, i32
  }
  func.func @transform_2(%arg0: i32) -> (i32, i32) {
    %c0_i32 = arith.constant 0 : i32
    %c0_i32_0 = arith.constant 0 : i32
    %c0_i32_1 = arith.constant 0 : i32
    return %c0_i32, %c0_i32_0 : i32, i32
  }
  func.func @transform_3(%arg0: i32) -> (i32, i32) {
    %c0_i32 = arith.constant 0 : i32
    %c0_i32_0 = arith.constant 0 : i32
    return %arg0, %c0_i32 : i32, i32
  }
}

module attributes {stable_mosaic.version = 11 : i64} {
  func.func @kernel(%arg0: i32, %arg1: memref<1x16x16x4xbf16, #tpu.memory_space<vmem>>, %arg2: memref<128x128xbf16, #tpu.memory_space<vmem>>, %arg3: memref<1x8xf32, #tpu.memory_space<vmem>>, %arg4: memref<1x16x16x8xbf16, #tpu.memory_space<vmem>>, %arg5: memref<1x8x8xf32, #tpu.memory_space<vmem>>, %arg6: memref<1x8x8xf32, #tpu.memory_space<vmem>>) attributes {dimension_semantics = [#tpu.dimension_semantics<parallel>], iteration_bounds = array<i64: 2>, scalar_prefetch = 0 : i64, scratch_operands = 0 : i64, tpu.core_type = #tpu.core_type<tc>, window_params = [{transform_indices = @transform_0, window_bounds = array<i64: 1, 16, 16, 4>}, {pipeline_mode = #tpu.pipeline_mode<synchronous>, transform_indices = @transform_1, window_bounds = array<i64: 128, 128>}, {pipeline_mode = #tpu.pipeline_mode<synchronous>, transform_indices = @transform_2, window_bounds = array<i64: 1, 8>}, {transform_indices = @transform_3, window_bounds = array<i64: 1, 16, 16, 8>}, {transform_indices = @transform_4, window_bounds = array<i64: 1, 8, 8>}, {transform_indices = @transform_5, window_bounds = array<i64: 1, 8, 8>}]} {
    %c0 = arith.constant 0 : index
    %c0_0 = arith.constant 0 : index
    %c0_1 = arith.constant 0 : index
    %c0_2 = arith.constant 0 : index
    %0 = vector.load %arg1[%c0, %c0_0, %c0_1, %c0_2] : memref<1x16x16x4xbf16, #tpu.memory_space<vmem>>, vector<1x16x16x4xbf16>
    %1 = vector.shape_cast %0 : vector<1x16x16x4xbf16> to vector<16x16x4xbf16>
    %2 = vector.extract_strided_slice %1 {offsets = [0, 0, 0], sizes = [1, 16, 4], strides = [1, 1, 1]} : vector<16x16x4xbf16> to vector<1x16x4xbf16>
    %3 = vector.extract_strided_slice %1 {offsets = [15, 0, 0], sizes = [1, 16, 4], strides = [1, 1, 1]} : vector<16x16x4xbf16> to vector<1x16x4xbf16>
    %4 = tpu.concatenate %2, %2, %1, %3, %3 in 0 : vector<1x16x4xbf16>, vector<1x16x4xbf16>, vector<16x16x4xbf16>, vector<1x16x4xbf16>, vector<1x16x4xbf16> -> vector<20x16x4xbf16>
    %5 = vector.extract_strided_slice %4 {offsets = [0, 0, 0], sizes = [20, 1, 4], strides = [1, 1, 1]} : vector<20x16x4xbf16> to vector<20x1x4xbf16>
    %6 = vector.extract_strided_slice %4 {offsets = [0, 15, 0], sizes = [20, 1, 4], strides = [1, 1, 1]} : vector<20x16x4xbf16> to vector<20x1x4xbf16>
    %7 = tpu.concatenate %5, %5, %4, %6, %6 in 1 : vector<20x1x4xbf16>, vector<20x1x4xbf16>, vector<20x16x4xbf16>, vector<20x1x4xbf16>, vector<20x1x4xbf16> -> vector<20x20x4xbf16>
    %8 = vector.extract_strided_slice %7 {offsets = [0, 0, 0], sizes = [16, 16, 4], strides = [1, 1, 1]} : vector<20x20x4xbf16> to vector<16x16x4xbf16>
    %9 = vector.extract_strided_slice %7 {offsets = [0, 1, 0], sizes = [16, 16, 4], strides = [1, 1, 1]} : vector<20x20x4xbf16> to vector<16x16x4xbf16>
    %10 = vector.extract_strided_slice %7 {offsets = [0, 2, 0], sizes = [16, 16, 4], strides = [1, 1, 1]} : vector<20x20x4xbf16> to vector<16x16x4xbf16>
    %11 = vector.extract_strided_slice %7 {offsets = [0, 3, 0], sizes = [16, 16, 4], strides = [1, 1, 1]} : vector<20x20x4xbf16> to vector<16x16x4xbf16>
    %12 = vector.extract_strided_slice %7 {offsets = [0, 4, 0], sizes = [16, 16, 4], strides = [1, 1, 1]} : vector<20x20x4xbf16> to vector<16x16x4xbf16>
    %13 = vector.extract_strided_slice %7 {offsets = [1, 0, 0], sizes = [16, 16, 4], strides = [1, 1, 1]} : vector<20x20x4xbf16> to vector<16x16x4xbf16>
    %14 = vector.extract_strided_slice %7 {offsets = [1, 1, 0], sizes = [16, 16, 4], strides = [1, 1, 1]} : vector<20x20x4xbf16> to vector<16x16x4xbf16>
    %15 = vector.extract_strided_slice %7 {offsets = [1, 2, 0], sizes = [16, 16, 4], strides = [1, 1, 1]} : vector<20x20x4xbf16> to vector<16x16x4xbf16>
    %16 = vector.extract_strided_slice %7 {offsets = [1, 3, 0], sizes = [16, 16, 4], strides = [1, 1, 1]} : vector<20x20x4xbf16> to vector<16x16x4xbf16>
    %17 = vector.extract_strided_slice %7 {offsets = [1, 4, 0], sizes = [16, 16, 4], strides = [1, 1, 1]} : vector<20x20x4xbf16> to vector<16x16x4xbf16>
    %18 = vector.extract_strided_slice %7 {offsets = [2, 0, 0], sizes = [16, 16, 4], strides = [1, 1, 1]} : vector<20x20x4xbf16> to vector<16x16x4xbf16>
    %19 = vector.extract_strided_slice %7 {offsets = [2, 1, 0], sizes = [16, 16, 4], strides = [1, 1, 1]} : vector<20x20x4xbf16> to vector<16x16x4xbf16>
    %20 = vector.extract_strided_slice %7 {offsets = [2, 2, 0], sizes = [16, 16, 4], strides = [1, 1, 1]} : vector<20x20x4xbf16> to vector<16x16x4xbf16>
    %21 = vector.extract_strided_slice %7 {offsets = [2, 3, 0], sizes = [16, 16, 4], strides = [1, 1, 1]} : vector<20x20x4xbf16> to vector<16x16x4xbf16>
    %22 = vector.extract_strided_slice %7 {offsets = [2, 4, 0], sizes = [16, 16, 4], strides = [1, 1, 1]} : vector<20x20x4xbf16> to vector<16x16x4xbf16>
    %23 = vector.extract_strided_slice %7 {offsets = [3, 0, 0], sizes = [16, 16, 4], strides = [1, 1, 1]} : vector<20x20x4xbf16> to vector<16x16x4xbf16>
    %24 = vector.extract_strided_slice %7 {offsets = [3, 1, 0], sizes = [16, 16, 4], strides = [1, 1, 1]} : vector<20x20x4xbf16> to vector<16x16x4xbf16>
    %25 = vector.extract_strided_slice %7 {offsets = [3, 2, 0], sizes = [16, 16, 4], strides = [1, 1, 1]} : vector<20x20x4xbf16> to vector<16x16x4xbf16>
    %26 = vector.extract_strided_slice %7 {offsets = [3, 3, 0], sizes = [16, 16, 4], strides = [1, 1, 1]} : vector<20x20x4xbf16> to vector<16x16x4xbf16>
    %27 = vector.extract_strided_slice %7 {offsets = [3, 4, 0], sizes = [16, 16, 4], strides = [1, 1, 1]} : vector<20x20x4xbf16> to vector<16x16x4xbf16>
    %28 = vector.extract_strided_slice %7 {offsets = [4, 0, 0], sizes = [16, 16, 4], strides = [1, 1, 1]} : vector<20x20x4xbf16> to vector<16x16x4xbf16>
    %29 = vector.extract_strided_slice %7 {offsets = [4, 1, 0], sizes = [16, 16, 4], strides = [1, 1, 1]} : vector<20x20x4xbf16> to vector<16x16x4xbf16>
    %30 = vector.extract_strided_slice %7 {offsets = [4, 2, 0], sizes = [16, 16, 4], strides = [1, 1, 1]} : vector<20x20x4xbf16> to vector<16x16x4xbf16>
    %31 = vector.extract_strided_slice %7 {offsets = [4, 3, 0], sizes = [16, 16, 4], strides = [1, 1, 1]} : vector<20x20x4xbf16> to vector<16x16x4xbf16>
    %32 = vector.extract_strided_slice %7 {offsets = [4, 4, 0], sizes = [16, 16, 4], strides = [1, 1, 1]} : vector<20x20x4xbf16> to vector<16x16x4xbf16>
    %cst = arith.constant 0.000000e+00 : bf16
    %33 = vector.broadcast %cst : bf16 to vector<16x16x28xbf16>
    %34 = tpu.concatenate %8, %9, %10, %11, %12, %13, %14, %15, %16, %17, %18, %19, %20, %21, %22, %23 in 2 : vector<16x16x4xbf16>, vector<16x16x4xbf16>, vector<16x16x4xbf16>, vector<16x16x4xbf16>, vector<16x16x4xbf16>, vector<16x16x4xbf16>, vector<16x16x4xbf16>, vector<16x16x4xbf16>, vector<16x16x4xbf16>, vector<16x16x4xbf16>, vector<16x16x4xbf16>, vector<16x16x4xbf16>, vector<16x16x4xbf16>, vector<16x16x4xbf16>, vector<16x16x4xbf16>, vector<16x16x4xbf16> -> vector<16x16x64xbf16>
    %35 = tpu.concatenate %24, %25, %26, %27, %28, %29, %30, %31, %32, %33 in 2 : vector<16x16x4xbf16>, vector<16x16x4xbf16>, vector<16x16x4xbf16>, vector<16x16x4xbf16>, vector<16x16x4xbf16>, vector<16x16x4xbf16>, vector<16x16x4xbf16>, vector<16x16x4xbf16>, vector<16x16x4xbf16>, vector<16x16x28xbf16> -> vector<16x16x64xbf16>
    %36 = tpu.concatenate %34, %35 in 2 : vector<16x16x64xbf16>, vector<16x16x64xbf16> -> vector<16x16x128xbf16>
    %37 = vector.shape_cast %36 : vector<16x16x128xbf16> to vector<256x128xbf16>
    %c0_3 = arith.constant 0 : index
    %c0_4 = arith.constant 0 : index
    %38 = vector.load %arg2[%c0_3, %c0_4] : memref<128x128xbf16, #tpu.memory_space<vmem>>, vector<128x128xbf16>
    %cst_5 = arith.constant dense<0.000000e+00> : vector<256x128xf32>
    %39 = tpu.matmul %37, %38, %cst_5 {dimension_numbers = #tpu.dot_dimension_numbers<[1], [0], [0], [1], [0, 0, 1, 1], [], []>} : vector<256x128xbf16>, vector<128x128xbf16>, vector<256x128xf32> -> vector<256x128xf32>
    %40 = vector.extract_strided_slice %39 {offsets = [0, 0], sizes = [256, 8], strides = [1, 1]} : vector<256x128xf32> to vector<256x8xf32>
    %c0_6 = arith.constant 0 : index
    %c0_7 = arith.constant 0 : index
    %41 = vector.load %arg3[%c0_6, %c0_7] : memref<1x8xf32, #tpu.memory_space<vmem>>, vector<1x8xf32>
    %42 = vector.broadcast %41 : vector<1x8xf32> to vector<256x8xf32>
    %43 = arith.addf %40, %42 : vector<256x8xf32>
    %44 = vector.shape_cast %43 : vector<256x8xf32> to vector<32x8x8xf32>
    %cst_8 = arith.constant dense<0.000000e+00> : vector<8x8xf32>
    %45 = vector.multi_reduction <add>, %44, %cst_8 [0] : vector<32x8x8xf32> to vector<8x8xf32>
    %c0_9 = arith.constant 0 : index
    %c0_10 = arith.constant 0 : index
    %c0_11 = arith.constant 0 : index
    %46 = vector.load %arg5[%c0_9, %c0_10, %c0_11] : memref<1x8x8xf32, #tpu.memory_space<vmem>>, vector<1x8x8xf32>
    %47 = vector.shape_cast %46 : vector<1x8x8xf32> to vector<8x8xf32>
    %48 = vector.shape_cast %45 : vector<8x8xf32> to vector<1x8x8xf32>
    tpu.vector_store %arg5[%c0_9, %c0_10, %c0_11], %48 {strides = array<i32>} : memref<1x8x8xf32, #tpu.memory_space<vmem>>, vector<1x8x8xf32>,
    %49 = arith.mulf %44, %44 : vector<32x8x8xf32>
    %cst_12 = arith.constant dense<0.000000e+00> : vector<8x8xf32>
    %50 = vector.multi_reduction <add>, %49, %cst_12 [0] : vector<32x8x8xf32> to vector<8x8xf32>
    %c0_13 = arith.constant 0 : index
    %c0_14 = arith.constant 0 : index
    %c0_15 = arith.constant 0 : index
    %51 = vector.load %arg6[%c0_13, %c0_14, %c0_15] : memref<1x8x8xf32, #tpu.memory_space<vmem>>, vector<1x8x8xf32>
    %52 = vector.shape_cast %51 : vector<1x8x8xf32> to vector<8x8xf32>
    %53 = vector.shape_cast %50 : vector<8x8xf32> to vector<1x8x8xf32>
    tpu.vector_store %arg6[%c0_13, %c0_14, %c0_15], %53 {strides = array<i32>} : memref<1x8x8xf32, #tpu.memory_space<vmem>>, vector<1x8x8xf32>,
    %54 = arith.truncf %43 : vector<256x8xf32> to vector<256x8xbf16>
    %55 = vector.shape_cast %54 : vector<256x8xbf16> to vector<1x16x16x8xbf16>
    %c0_16 = arith.constant 0 : index
    %c0_17 = arith.constant 0 : index
    %c0_18 = arith.constant 0 : index
    %c0_19 = arith.constant 0 : index
    %56 = vector.load %arg4[%c0_16, %c0_17, %c0_18, %c0_19] : memref<1x16x16x8xbf16, #tpu.memory_space<vmem>>, vector<1x16x16x8xbf16>
    tpu.vector_store %arg4[%c0_16, %c0_17, %c0_18, %c0_19], %55 {strides = array<i32>} : memref<1x16x16x8xbf16, #tpu.memory_space<vmem>>, vector<1x16x16x8xbf16>,
    return
  }
  func.func @transform_0(%arg0: i32) -> (i32, i32, i32, i32) {
    %c0_i32 = arith.constant 0 : i32
    %c0_i32_0 = arith.constant 0 : i32
    %c0_i32_1 = arith.constant 0 : i32
    %c0_i32_2 = arith.constant 0 : i32
    return %arg0, %c0_i32, %c0_i32_0, %c0_i32_1 : i32, i32, i32, i32
  }
  func.func @transform_1(%arg0: i32) -> (i32, i32) {
    %c0_i32 = arith.constant 0 : i32
    %c0_i32_0 = arith.constant 0 : i32
    %c0_i32_1 = arith.constant 0 : i32
    return %c0_i32, %c0_i32_0 : i32, i32
  }
  func.func @transform_2(%arg0: i32) -> (i32, i32) {
    %c0_i32 = arith.constant 0 : i32
    %c0_i32_0 = arith.constant 0 : i32
    %c0_i32_1 = arith.constant 0 : i32
    return %c0_i32, %c0_i32_0 : i32, i32
  }
  func.func @transform_3(%arg0: i32) -> (i32, i32, i32, i32) {
    %c0_i32 = arith.constant 0 : i32
    %c0_i32_0 = arith.constant 0 : i32
    %c0_i32_1 = arith.constant 0 : i32
    %c0_i32_2 = arith.constant 0 : i32
    return %arg0, %c0_i32, %c0_i32_0, %c0_i32_1 : i32, i32, i32, i32
  }
  func.func @transform_4(%arg0: i32) -> (i32, i32, i32) {
    %c0_i32 = arith.constant 0 : i32
    %c0_i32_0 = arith.constant 0 : i32
    %c0_i32_1 = arith.constant 0 : i32
    return %arg0, %c0_i32, %c0_i32_0 : i32, i32, i32
  }
  func.func @transform_5(%arg0: i32) -> (i32, i32, i32) {
    %c0_i32 = arith.constant 0 : i32
    %c0_i32_0 = arith.constant 0 : i32
    %c0_i32_1 = arith.constant 0 : i32
    return %arg0, %c0_i32, %c0_i32_0 : i32, i32, i32
  }
}

</mosaic_0001>

<llo_original>
// kernel: inconv_forward.5
$region0: #{inconv_forward.5}
  #allocation0 [shape = 'u32[]', space=smem, size = 0x4, offset = 0x4, fixed_abs, tag = 'smem constant byte address 0x4 - core index']
  #allocation1 [shape = 'u32[144,128]{1,0:T(1,128)}', space=vmem, size = 0x12000, scoped, tag = 'internal scratch']
  %s0 = inlined_call_operand.vmem [shape: bf16[512,8], index: 0, kind: input, shape index: {}]
  %s1 = inlined_call_operand.vmem [shape: f32[1,8], index: 1, kind: input, shape index: {}]
  %s2 = inlined_call_operand.vmem [shape: f32[1,8], index: 2, kind: input, shape index: {}]
  %s3 = inlined_call_operand.vmem [shape: f32[512,8], index: 3, kind: output, shape index: {}]
  %s4 = sld [smem:[#allocation0]]
  $region22: #{inconv_forward.5} parent=0
    _
  %s6 = ssub.s32 1, %s4
  %s7 = scalar_select 0, %s6, %s4
  // Predicated region
  $region2: #{inconv_forward.5} parent=0 // pred_check
    _
  $region3: #{inconv_forward.5} parent=0 // pred_check_branch
    %9 = sbr.rel (0) target = $region5
  $region4: #{inconv_forward.5} parent=0 // pred_region
    _
  $region5: #{inconv_forward.5} parent=0 // pred_fallthru
    _
  // Predicated region
  $region6: #{inconv_forward.5} parent=0 // pred_check
    _
  $region7: #{inconv_forward.5} parent=0 // pred_check_branch
    %11 = sbr.rel (0) target = $region9
  $region8: #{inconv_forward.5} parent=0 // pred_region
    _
  $region9: #{inconv_forward.5} parent=0 // pred_fallthru
    _
  // Predicated region
  $region10: #{inconv_forward.5} parent=0 // pred_check
    _
  $region11: #{inconv_forward.5} parent=0 // pred_check_branch
    %13 = sbr.rel (0) target = $region13
  $region12: #{inconv_forward.5} parent=0 // pred_region
    _
  $region13: #{inconv_forward.5} parent=0 // pred_fallthru
    _
  %v14 = vld [vmem:[%s0] sm:$0xf]
  %v15 = vld [vmem:[%s0 + $0x4] sm:$0xf]
  %v16 = vld [vmem:[%s0 + $0x8] sm:$0xf]
  %v17 = vld [vmem:[%s0 + $0xc] sm:$0xf]
  %v18 = vld [vmem:[%s0 + $0x10] sm:$0xf]
  %v19 = vld [vmem:[%s0 + $0x14] sm:$0xf]
  %v20 = vld [vmem:[%s0 + $0x18] sm:$0xf]
  %v21 = vld [vmem:[%s0 + $0x1c] sm:$0xf]
  %v22 = vld [vmem:[%s0 + $0x20] sm:$0xf]
  %v23 = vld [vmem:[%s0 + $0x24] sm:$0xf]
  %v24 = vld [vmem:[%s0 + $0x28] sm:$0xf]
  %v25 = vld [vmem:[%s0 + $0x2c] sm:$0xf]
  %v26 = vld [vmem:[%s0 + $0x30] sm:$0xf]
  %v27 = vld [vmem:[%s0 + $0x34] sm:$0xf]
  %v28 = vld [vmem:[%s0 + $0x38] sm:$0xf]
  %v29 = vld [vmem:[%s0 + $0x3c] sm:$0xf]
  %v30 = vld [vmem:[%s0 + $0x40] sm:$0xf]
  %v31 = vld [vmem:[%s0 + $0x44] sm:$0xf]
  %v32 = vld [vmem:[%s0 + $0x48] sm:$0xf]
  %v33 = vld [vmem:[%s0 + $0x4c] sm:$0xf]
  %v34 = vld [vmem:[%s0 + $0x50] sm:$0xf]
  %v35 = vld [vmem:[%s0 + $0x54] sm:$0xf]
  %v36 = vld [vmem:[%s0 + $0x58] sm:$0xf]
  %v37 = vld [vmem:[%s0 + $0x5c] sm:$0xf]
  %v38 = vld [vmem:[%s0 + $0x60] sm:$0xf]
  %v39 = vld [vmem:[%s0 + $0x64] sm:$0xf]
  %v40 = vld [vmem:[%s0 + $0x68] sm:$0xf]
  %v41 = vld [vmem:[%s0 + $0x6c] sm:$0xf]
  %v42 = vld [vmem:[%s0 + $0x70] sm:$0xf]
  %v43 = vld [vmem:[%s0 + $0x74] sm:$0xf]
  %v44 = vld [vmem:[%s0 + $0x78] sm:$0xf]
  %v45 = vld [vmem:[%s0 + $0x7c] sm:$0xf]
  %v46 = vld [vmem:[%s0 + $0x80] sm:$0xf]
  %v47 = vld [vmem:[%s0 + $0x84] sm:$0xf]
  %v48 = vld [vmem:[%s0 + $0x88] sm:$0xf]
  %v49 = vld [vmem:[%s0 + $0x8c] sm:$0xf]
  %v50 = vld [vmem:[%s0 + $0x90] sm:$0xf]
  %v51 = vld [vmem:[%s0 + $0x94] sm:$0xf]
  %v52 = vld [vmem:[%s0 + $0x98] sm:$0xf]
  %v53 = vld [vmem:[%s0 + $0x9c] sm:$0xf]
  %v54 = vld [vmem:[%s0 + $0xa0] sm:$0xf]
  %v55 = vld [vmem:[%s0 + $0xa4] sm:$0xf]
  %v56 = vld [vmem:[%s0 + $0xa8] sm:$0xf]
  %v57 = vld [vmem:[%s0 + $0xac] sm:$0xf]
  %v58 = vld [vmem:[%s0 + $0xb0] sm:$0xf]
  %v59 = vld [vmem:[%s0 + $0xb4] sm:$0xf]
  %v60 = vld [vmem:[%s0 + $0xb8] sm:$0xf]
  %v61 = vld [vmem:[%s0 + $0xbc] sm:$0xf]
  %v62 = vld [vmem:[%s0 + $0xc0] sm:$0xf]
  %v63 = vld [vmem:[%s0 + $0xc4] sm:$0xf]
  %v64 = vld [vmem:[%s0 + $0xc8] sm:$0xf]
  %v65 = vld [vmem:[%s0 + $0xcc] sm:$0xf]
  %v66 = vld [vmem:[%s0 + $0xd0] sm:$0xf]
  %v67 = vld [vmem:[%s0 + $0xd4] sm:$0xf]
  %v68 = vld [vmem:[%s0 + $0xd8] sm:$0xf]
  %v69 = vld [vmem:[%s0 + $0xdc] sm:$0xf]
  %v70 = vld [vmem:[%s0 + $0xe0] sm:$0xf]
  %v71 = vld [vmem:[%s0 + $0xe4] sm:$0xf]
  %v72 = vld [vmem:[%s0 + $0xe8] sm:$0xf]
  %v73 = vld [vmem:[%s0 + $0xec] sm:$0xf]
  %v74 = vld [vmem:[%s0 + $0xf0] sm:$0xf]
  %v75 = vld [vmem:[%s0 + $0xf4] sm:$0xf]
  %v76 = vld [vmem:[%s0 + $0xf8] sm:$0xf]
  %v77 = vld [vmem:[%s0 + $0xfc] sm:$0xf]
  %v78 = vunpack.c.l.bf16 %v14
  %v79 = vunpack.c.l.bf16 %v15
  %v80 = vunpack.c.l.bf16 %v16
  %v81 = vunpack.c.l.bf16 %v17
  %v82 = vunpack.c.l.bf16 %v18
  %v83 = vunpack.c.l.bf16 %v19
  %v84 = vunpack.c.l.bf16 %v20
  %v85 = vunpack.c.l.bf16 %v21
  %v86 = vunpack.c.l.bf16 %v22
  %v87 = vunpack.c.l.bf16 %v23
  %v88 = vunpack.c.l.bf16 %v24
  %v89 = vunpack.c.l.bf16 %v25
  %v90 = vunpack.c.l.bf16 %v26
  %v91 = vunpack.c.l.bf16 %v27
  %v92 = vunpack.c.l.bf16 %v28
  %v93 = vunpack.c.l.bf16 %v29
  %v94 = vunpack.c.l.bf16 %v30
  %v95 = vunpack.c.l.bf16 %v31
  %v96 = vunpack.c.l.bf16 %v32
  %v97 = vunpack.c.l.bf16 %v33
  %v98 = vunpack.c.l.bf16 %v34
  %v99 = vunpack.c.l.bf16 %v35
  %v100 = vunpack.c.l.bf16 %v36
  %v101 = vunpack.c.l.bf16 %v37
  %v102 = vunpack.c.l.bf16 %v38
  %v103 = vunpack.c.l.bf16 %v39
  %v104 = vunpack.c.l.bf16 %v40
  %v105 = vunpack.c.l.bf16 %v41
  %v106 = vunpack.c.l.bf16 %v42
  %v107 = vunpack.c.l.bf16 %v43
  %v108 = vunpack.c.l.bf16 %v44
  %v109 = vunpack.c.l.bf16 %v45
  %v110 = vunpack.c.l.bf16 %v46
  %v111 = vunpack.c.l.bf16 %v47
  %v112 = vunpack.c.l.bf16 %v48
  %v113 = vunpack.c.l.bf16 %v49
  %v114 = vunpack.c.l.bf16 %v50
  %v115 = vunpack.c.l.bf16 %v51
  %v116 = vunpack.c.l.bf16 %v52
  %v117 = vunpack.c.l.bf16 %v53
  %v118 = vunpack.c.l.bf16 %v54
  %v119 = vunpack.c.l.bf16 %v55
  %v120 = vunpack.c.l.bf16 %v56
  %v121 = vunpack.c.l.bf16 %v57
  %v122 = vunpack.c.l.bf16 %v58
  %v123 = vunpack.c.l.bf16 %v59
  %v124 = vunpack.c.l.bf16 %v60
  %v125 = vunpack.c.l.bf16 %v61
  %v126 = vunpack.c.l.bf16 %v62
  %v127 = vunpack.c.l.bf16 %v63
  %v128 = vunpack.c.l.bf16 %v64
  %v129 = vunpack.c.l.bf16 %v65
  %v130 = vunpack.c.l.bf16 %v66
  %v131 = vunpack.c.l.bf16 %v67
  %v132 = vunpack.c.l.bf16 %v68
  %v133 = vunpack.c.l.bf16 %v69
  %v134 = vunpack.c.l.bf16 %v70
  %v135 = vunpack.c.l.bf16 %v71
  %v136 = vunpack.c.l.bf16 %v72
  %v137 = vunpack.c.l.bf16 %v73
  %v138 = vunpack.c.l.bf16 %v74
  %v139 = vunpack.c.l.bf16 %v75
  %v140 = vunpack.c.l.bf16 %v76
  %v141 = vunpack.c.l.bf16 %v77
  %v142 = vld [vmem:[%s1] sm:$0x1]
  %v144 = vlaneseq
  %v145 = vshrl.u32 %v144, 7
  %v146 = vsub.s32 0, %v145
  %v147 = vrot.slane %v142, %v146
  %v149 = vmul.f32 %v78, %v147
  %v150 = vmul.f32 %v79, %v147
  %v151 = vmul.f32 %v80, %v147
  %v152 = vmul.f32 %v81, %v147
  %v153 = vmul.f32 %v82, %v147
  %v154 = vmul.f32 %v83, %v147
  %v155 = vmul.f32 %v84, %v147
  %v156 = vmul.f32 %v85, %v147
  %v157 = vmul.f32 %v86, %v147
  %v158 = vmul.f32 %v87, %v147
  %v159 = vmul.f32 %v88, %v147
  %v160 = vmul.f32 %v89, %v147
  %v161 = vmul.f32 %v90, %v147
  %v162 = vmul.f32 %v91, %v147
  %v163 = vmul.f32 %v92, %v147
  %v164 = vmul.f32 %v93, %v147
  %v165 = vmul.f32 %v94, %v147
  %v166 = vmul.f32 %v95, %v147
  %v167 = vmul.f32 %v96, %v147
  %v168 = vmul.f32 %v97, %v147
  %v169 = vmul.f32 %v98, %v147
  %v170 = vmul.f32 %v99, %v147
  %v171 = vmul.f32 %v100, %v147
  %v172 = vmul.f32 %v101, %v147
  %v173 = vmul.f32 %v102, %v147
  %v174 = vmul.f32 %v103, %v147
  %v175 = vmul.f32 %v104, %v147
  %v176 = vmul.f32 %v105, %v147
  %v177 = vmul.f32 %v106, %v147
  %v178 = vmul.f32 %v107, %v147
  %v179 = vmul.f32 %v108, %v147
  %v180 = vmul.f32 %v109, %v147
  %v181 = vmul.f32 %v110, %v147
  %v182 = vmul.f32 %v111, %v147
  %v183 = vmul.f32 %v112, %v147
  %v184 = vmul.f32 %v113, %v147
  %v185 = vmul.f32 %v114, %v147
  %v186 = vmul.f32 %v115, %v147
  %v187 = vmul.f32 %v116, %v147
  %v188 = vmul.f32 %v117, %v147
  %v189 = vmul.f32 %v118, %v147
  %v190 = vmul.f32 %v119, %v147
  %v191 = vmul.f32 %v120, %v147
  %v192 = vmul.f32 %v121, %v147
  %v193 = vmul.f32 %v122, %v147
  %v194 = vmul.f32 %v123, %v147
  %v195 = vmul.f32 %v124, %v147
  %v196 = vmul.f32 %v125, %v147
  %v197 = vmul.f32 %v126, %v147
  %v198 = vmul.f32 %v127, %v147
  %v199 = vmul.f32 %v128, %v147
  %v200 = vmul.f32 %v129, %v147
  %v201 = vmul.f32 %v130, %v147
  %v202 = vmul.f32 %v131, %v147
  %v203 = vmul.f32 %v132, %v147
  %v204 = vmul.f32 %v133, %v147
  %v205 = vmul.f32 %v134, %v147
  %v206 = vmul.f32 %v135, %v147
  %v207 = vmul.f32 %v136, %v147
  %v208 = vmul.f32 %v137, %v147
  %v209 = vmul.f32 %v138, %v147
  %v210 = vmul.f32 %v139, %v147
  %v211 = vmul.f32 %v140, %v147
  %v212 = vmul.f32 %v141, %v147
  %v213 = vld [vmem:[%s2] sm:$0x1]
  %v215 = vlaneseq
  %v216 = vshrl.u32 %v215, 7
  %v217 = vsub.s32 0, %v216
  %v218 = vrot.slane %v213, %v217
  %v220 = vadd.f32 %v149, %v218
  %v221 = vadd.f32 %v150, %v218
  %v222 = vadd.f32 %v151, %v218
  %v223 = vadd.f32 %v152, %v218
  %v224 = vadd.f32 %v153, %v218
  %v225 = vadd.f32 %v154, %v218
  %v226 = vadd.f32 %v155, %v218
  %v227 = vadd.f32 %v156, %v218
  %v228 = vadd.f32 %v157, %v218
  %v229 = vadd.f32 %v158, %v218
  %v230 = vadd.f32 %v159, %v218
  %v231 = vadd.f32 %v160, %v218
  %v232 = vadd.f32 %v161, %v218
  %v233 = vadd.f32 %v162, %v218
  %v234 = vadd.f32 %v163, %v218
  %v235 = vadd.f32 %v164, %v218
  %v236 = vadd.f32 %v165, %v218
  %v237 = vadd.f32 %v166, %v218
  %v238 = vadd.f32 %v167, %v218
  %v239 = vadd.f32 %v168, %v218
  %v240 = vadd.f32 %v169, %v218
  %v241 = vadd.f32 %v170, %v218
  %v242 = vadd.f32 %v171, %v218
  %v243 = vadd.f32 %v172, %v218
  %v244 = vadd.f32 %v173, %v218
  %v245 = vadd.f32 %v174, %v218
  %v246 = vadd.f32 %v175, %v218
  %v247 = vadd.f32 %v176, %v218
  %v248 = vadd.f32 %v177, %v218
  %v249 = vadd.f32 %v178, %v218
  %v250 = vadd.f32 %v179, %v218
  %v251 = vadd.f32 %v180, %v218
  %v252 = vadd.f32 %v181, %v218
  %v253 = vadd.f32 %v182, %v218
  %v254 = vadd.f32 %v183, %v218
  %v255 = vadd.f32 %v184, %v218
  %v256 = vadd.f32 %v185, %v218
  %v257 = vadd.f32 %v186, %v218
  %v258 = vadd.f32 %v187, %v218
  %v259 = vadd.f32 %v188, %v218
  %v260 = vadd.f32 %v189, %v218
  %v261 = vadd.f32 %v190, %v218
  %v262 = vadd.f32 %v191, %v218
  %v263 = vadd.f32 %v192, %v218
  %v264 = vadd.f32 %v193, %v218
  %v265 = vadd.f32 %v194, %v218
  %v266 = vadd.f32 %v195, %v218
  %v267 = vadd.f32 %v196, %v218
  %v268 = vadd.f32 %v197, %v218
  %v269 = vadd.f32 %v198, %v218
  %v270 = vadd.f32 %v199, %v218
  %v271 = vadd.f32 %v200, %v218
  %v272 = vadd.f32 %v201, %v218
  %v273 = vadd.f32 %v202, %v218
  %v274 = vadd.f32 %v203, %v218
  %v275 = vadd.f32 %v204, %v218
  %v276 = vadd.f32 %v205, %v218
  %v277 = vadd.f32 %v206, %v218
  %v278 = vadd.f32 %v207, %v218
  %v279 = vadd.f32 %v208, %v218
  %v280 = vadd.f32 %v209, %v218
  %v281 = vadd.f32 %v210, %v218
  %v282 = vadd.f32 %v211, %v218
  %v283 = vadd.f32 %v212, %v218
  %vm284 = vcmp.gt.f32.partialorder %v220, 0.0
  %vm285 = vcmp.gt.f32.partialorder %v221, 0.0
  %vm286 = vcmp.gt.f32.partialorder %v222, 0.0
  %vm287 = vcmp.gt.f32.partialorder %v223, 0.0
  %vm288 = vcmp.gt.f32.partialorder %v224, 0.0
  %vm289 = vcmp.gt.f32.partialorder %v225, 0.0
  %vm290 = vcmp.gt.f32.partialorder %v226, 0.0
  %vm291 = vcmp.gt.f32.partialorder %v227, 0.0
  %vm292 = vcmp.gt.f32.partialorder %v228, 0.0
  %vm293 = vcmp.gt.f32.partialorder %v229, 0.0
  %vm294 = vcmp.gt.f32.partialorder %v230, 0.0
  %vm295 = vcmp.gt.f32.partialorder %v231, 0.0
  %vm296 = vcmp.gt.f32.partialorder %v232, 0.0
  %vm297 = vcmp.gt.f32.partialorder %v233, 0.0
  %vm298 = vcmp.gt.f32.partialorder %v234, 0.0
  %vm299 = vcmp.gt.f32.partialorder %v235, 0.0
  %vm300 = vcmp.gt.f32.partialorder %v236, 0.0
  %vm301 = vcmp.gt.f32.partialorder %v237, 0.0
  %vm302 = vcmp.gt.f32.partialorder %v238, 0.0
  %vm303 = vcmp.gt.f32.partialorder %v239, 0.0
  %vm304 = vcmp.gt.f32.partialorder %v240, 0.0
  %vm305 = vcmp.gt.f32.partialorder %v241, 0.0
  %vm306 = vcmp.gt.f32.partialorder %v242, 0.0
  %vm307 = vcmp.gt.f32.partialorder %v243, 0.0
  %vm308 = vcmp.gt.f32.partialorder %v244, 0.0
  %vm309 = vcmp.gt.f32.partialorder %v245, 0.0
  %vm310 = vcmp.gt.f32.partialorder %v246, 0.0
  %vm311 = vcmp.gt.f32.partialorder %v247, 0.0
  %vm312 = vcmp.gt.f32.partialorder %v248, 0.0
  %vm313 = vcmp.gt.f32.partialorder %v249, 0.0
  %vm314 = vcmp.gt.f32.partialorder %v250, 0.0
  %vm315 = vcmp.gt.f32.partialorder %v251, 0.0
  %vm316 = vcmp.gt.f32.partialorder %v252, 0.0
  %vm317 = vcmp.gt.f32.partialorder %v253, 0.0
  %vm318 = vcmp.gt.f32.partialorder %v254, 0.0
  %vm319 = vcmp.gt.f32.partialorder %v255, 0.0
  %vm320 = vcmp.gt.f32.partialorder %v256, 0.0
  %vm321 = vcmp.gt.f32.partialorder %v257, 0.0
  %vm322 = vcmp.gt.f32.partialorder %v258, 0.0
  %vm323 = vcmp.gt.f32.partialorder %v259, 0.0
  %vm324 = vcmp.gt.f32.partialorder %v260, 0.0
  %vm325 = vcmp.gt.f32.partialorder %v261, 0.0
  %vm326 = vcmp.gt.f32.partialorder %v262, 0.0
  %vm327 = vcmp.gt.f32.partialorder %v263, 0.0
  %vm328 = vcmp.gt.f32.partialorder %v264, 0.0
  %vm329 = vcmp.gt.f32.partialorder %v265, 0.0
  %vm330 = vcmp.gt.f32.partialorder %v266, 0.0
  %vm331 = vcmp.gt.f32.partialorder %v267, 0.0
  %vm332 = vcmp.gt.f32.partialorder %v268, 0.0
  %vm333 = vcmp.gt.f32.partialorder %v269, 0.0
  %vm334 = vcmp.gt.f32.partialorder %v270, 0.0
  %vm335 = vcmp.gt.f32.partialorder %v271, 0.0
  %vm336 = vcmp.gt.f32.partialorder %v272, 0.0
  %vm337 = vcmp.gt.f32.partialorder %v273, 0.0
  %vm338 = vcmp.gt.f32.partialorder %v274, 0.0
  %vm339 = vcmp.gt.f32.partialorder %v275, 0.0
  %vm340 = vcmp.gt.f32.partialorder %v276, 0.0
  %vm341 = vcmp.gt.f32.partialorder %v277, 0.0
  %vm342 = vcmp.gt.f32.partialorder %v278, 0.0
  %vm343 = vcmp.gt.f32.partialorder %v279, 0.0
  %vm344 = vcmp.gt.f32.partialorder %v280, 0.0
  %vm345 = vcmp.gt.f32.partialorder %v281, 0.0
  %vm346 = vcmp.gt.f32.partialorder %v282, 0.0
  %vm347 = vcmp.gt.f32.partialorder %v283, 0.0
  %v348 = vmul.f32 %v220, 0.1
  %v349 = vmul.f32 %v221, 0.1
  %v350 = vmul.f32 %v222, 0.1
  %v351 = vmul.f32 %v223, 0.1
  %v352 = vmul.f32 %v224, 0.1
  %v353 = vmul.f32 %v225, 0.1
  %v354 = vmul.f32 %v226, 0.1
  %v355 = vmul.f32 %v227, 0.1
  %v356 = vmul.f32 %v228, 0.1
  %v357 = vmul.f32 %v229, 0.1
  %v358 = vmul.f32 %v230, 0.1
  %v359 = vmul.f32 %v231, 0.1
  %v360 = vmul.f32 %v232, 0.1
  %v361 = vmul.f32 %v233, 0.1
  %v362 = vmul.f32 %v234, 0.1
  %v363 = vmul.f32 %v235, 0.1
  %v364 = vmul.f32 %v236, 0.1
  %v365 = vmul.f32 %v237, 0.1
  %v366 = vmul.f32 %v238, 0.1
  %v367 = vmul.f32 %v239, 0.1
  %v368 = vmul.f32 %v240, 0.1
  %v369 = vmul.f32 %v241, 0.1
  %v370 = vmul.f32 %v242, 0.1
  %v371 = vmul.f32 %v243, 0.1
  %v372 = vmul.f32 %v244, 0.1
  %v373 = vmul.f32 %v245, 0.1
  %v374 = vmul.f32 %v246, 0.1
  %v375 = vmul.f32 %v247, 0.1
  %v376 = vmul.f32 %v248, 0.1
  %v377 = vmul.f32 %v249, 0.1
  %v378 = vmul.f32 %v250, 0.1
  %v379 = vmul.f32 %v251, 0.1
  %v380 = vmul.f32 %v252, 0.1
  %v381 = vmul.f32 %v253, 0.1
  %v382 = vmul.f32 %v254, 0.1
  %v383 = vmul.f32 %v255, 0.1
  %v384 = vmul.f32 %v256, 0.1
  %v385 = vmul.f32 %v257, 0.1
  %v386 = vmul.f32 %v258, 0.1
  %v387 = vmul.f32 %v259, 0.1
  %v388 = vmul.f32 %v260, 0.1
  %v389 = vmul.f32 %v261, 0.1
  %v390 = vmul.f32 %v262, 0.1
  %v391 = vmul.f32 %v263, 0.1
  %v392 = vmul.f32 %v264, 0.1
  %v393 = vmul.f32 %v265, 0.1
  %v394 = vmul.f32 %v266, 0.1
  %v395 = vmul.f32 %v267, 0.1
  %v396 = vmul.f32 %v268, 0.1
  %v397 = vmul.f32 %v269, 0.1
  %v398 = vmul.f32 %v270, 0.1
  %v399 = vmul.f32 %v271, 0.1
  %v400 = vmul.f32 %v272, 0.1
  %v401 = vmul.f32 %v273, 0.1
  %v402 = vmul.f32 %v274, 0.1
  %v403 = vmul.f32 %v275, 0.1
  %v404 = vmul.f32 %v276, 0.1
  %v405 = vmul.f32 %v277, 0.1
  %v406 = vmul.f32 %v278, 0.1
  %v407 = vmul.f32 %v279, 0.1
  %v408 = vmul.f32 %v280, 0.1
  %v409 = vmul.f32 %v281, 0.1
  %v410 = vmul.f32 %v282, 0.1
  %v411 = vmul.f32 %v283, 0.1
  %v412 = vsel %vm284, %v220, %v348
  %v413 = vsel %vm285, %v221, %v349
  %v414 = vsel %vm286, %v222, %v350
  %v415 = vsel %vm287, %v223, %v351
  %v416 = vsel %vm288, %v224, %v352
  %v417 = vsel %vm289, %v225, %v353
  %v418 = vsel %vm290, %v226, %v354
  %v419 = vsel %vm291, %v227, %v355
  %v420 = vsel %vm292, %v228, %v356
  %v421 = vsel %vm293, %v229, %v357
  %v422 = vsel %vm294, %v230, %v358
  %v423 = vsel %vm295, %v231, %v359
  %v424 = vsel %vm296, %v232, %v360
  %v425 = vsel %vm297, %v233, %v361
  %v426 = vsel %vm298, %v234, %v362
  %v427 = vsel %vm299, %v235, %v363
  %v428 = vsel %vm300, %v236, %v364
  %v429 = vsel %vm301, %v237, %v365
  %v430 = vsel %vm302, %v238, %v366
  %v431 = vsel %vm303, %v239, %v367
  %v432 = vsel %vm304, %v240, %v368
  %v433 = vsel %vm305, %v241, %v369
  %v434 = vsel %vm306, %v242, %v370
  %v435 = vsel %vm307, %v243, %v371
  %v436 = vsel %vm308, %v244, %v372
  %v437 = vsel %vm309, %v245, %v373
  %v438 = vsel %vm310, %v246, %v374
  %v439 = vsel %vm311, %v247, %v375
  %v440 = vsel %vm312, %v248, %v376
  %v441 = vsel %vm313, %v249, %v377
  %v442 = vsel %vm314, %v250, %v378
  %v443 = vsel %vm315, %v251, %v379
  %v444 = vsel %vm316, %v252, %v380
  %v445 = vsel %vm317, %v253, %v381
  %v446 = vsel %vm318, %v254, %v382
  %v447 = vsel %vm319, %v255, %v383
  %v448 = vsel %vm320, %v256, %v384
  %v449 = vsel %vm321, %v257, %v385
  %v450 = vsel %vm322, %v258, %v386
  %v451 = vsel %vm323, %v259, %v387
  %v452 = vsel %vm324, %v260, %v388
  %v453 = vsel %vm325, %v261, %v389
  %v454 = vsel %vm326, %v262, %v390
  %v455 = vsel %vm327, %v263, %v391
  %v456 = vsel %vm328, %v264, %v392
  %v457 = vsel %vm329, %v265, %v393
  %v458 = vsel %vm330, %v266, %v394
  %v459 = vsel %vm331, %v267, %v395
  %v460 = vsel %vm332, %v268, %v396
  %v461 = vsel %vm333, %v269, %v397
  %v462 = vsel %vm334, %v270, %v398
  %v463 = vsel %vm335, %v271, %v399
  %v464 = vsel %vm336, %v272, %v400
  %v465 = vsel %vm337, %v273, %v401
  %v466 = vsel %vm338, %v274, %v402
  %v467 = vsel %vm339, %v275, %v403
  %v468 = vsel %vm340, %v276, %v404
  %v469 = vsel %vm341, %v277, %v405
  %v470 = vsel %vm342, %v278, %v406
  %v471 = vsel %vm343, %v279, %v407
  %v472 = vsel %vm344, %v280, %v408
  %v473 = vsel %vm345, %v281, %v409
  %v474 = vsel %vm346, %v282, %v410
  %v475 = vsel %vm347, %v283, %v411
  %vm476 = vcmask 64512
  %477 = vst.msk [vmem:[%s3] sm:$0xff] %vm476, %v412
  %478 = vst.msk [vmem:[%s3 + $0x8] sm:$0xff] %vm476, %v413
  %479 = vst.msk [vmem:[%s3 + $0x10] sm:$0xff] %vm476, %v414
  %480 = vst.msk [vmem:[%s3 + $0x18] sm:$0xff] %vm476, %v415
  %481 = vst.msk [vmem:[%s3 + $0x20] sm:$0xff] %vm476, %v416
  %482 = vst.msk [vmem:[%s3 + $0x28] sm:$0xff] %vm476, %v417
  %483 = vst.msk [vmem:[%s3 + $0x30] sm:$0xff] %vm476, %v418
  %484 = vst.msk [vmem:[%s3 + $0x38] sm:$0xff] %vm476, %v419
  %485 = vst.msk [vmem:[%s3 + $0x40] sm:$0xff] %vm476, %v420
  %486 = vst.msk [vmem:[%s3 + $0x48] sm:$0xff] %vm476, %v421
  %487 = vst.msk [vmem:[%s3 + $0x50] sm:$0xff] %vm476, %v422
  %488 = vst.msk [vmem:[%s3 + $0x58] sm:$0xff] %vm476, %v423
  %489 = vst.msk [vmem:[%s3 + $0x60] sm:$0xff] %vm476, %v424
  %490 = vst.msk [vmem:[%s3 + $0x68] sm:$0xff] %vm476, %v425
  %491 = vst.msk [vmem:[%s3 + $0x70] sm:$0xff] %vm476, %v426
  %492 = vst.msk [vmem:[%s3 + $0x78] sm:$0xff] %vm476, %v427
  %493 = vst.msk [vmem:[%s3 + $0x80] sm:$0xff] %vm476, %v428
  %494 = vst.msk [vmem:[%s3 + $0x88] sm:$0xff] %vm476, %v429
  %495 = vst.msk [vmem:[%s3 + $0x90] sm:$0xff] %vm476, %v430
  %496 = vst.msk [vmem:[%s3 + $0x98] sm:$0xff] %vm476, %v431
  %497 = vst.msk [vmem:[%s3 + $0xa0] sm:$0xff] %vm476, %v432
  %498 = vst.msk [vmem:[%s3 + $0xa8] sm:$0xff] %vm476, %v433
  %499 = vst.msk [vmem:[%s3 + $0xb0] sm:$0xff] %vm476, %v434
  %500 = vst.msk [vmem:[%s3 + $0xb8] sm:$0xff] %vm476, %v435
  %501 = vst.msk [vmem:[%s3 + $0xc0] sm:$0xff] %vm476, %v436
  %502 = vst.msk [vmem:[%s3 + $0xc8] sm:$0xff] %vm476, %v437
  %503 = vst.msk [vmem:[%s3 + $0xd0] sm:$0xff] %vm476, %v438
  %504 = vst.msk [vmem:[%s3 + $0xd8] sm:$0xff] %vm476, %v439
  %505 = vst.msk [vmem:[%s3 + $0xe0] sm:$0xff] %vm476, %v440
  %506 = vst.msk [vmem:[%s3 + $0xe8] sm:$0xff] %vm476, %v441
  %507 = vst.msk [vmem:[%s3 + $0xf0] sm:$0xff] %vm476, %v442
  %508 = vst.msk [vmem:[%s3 + $0xf8] sm:$0xff] %vm476, %v443
  %509 = vst.msk [vmem:[%s3 + $0x100] sm:$0xff] %vm476, %v444
  %510 = vst.msk [vmem:[%s3 + $0x108] sm:$0xff] %vm476, %v445
  %511 = vst.msk [vmem:[%s3 + $0x110] sm:$0xff] %vm476, %v446
  %512 = vst.msk [vmem:[%s3 + $0x118] sm:$0xff] %vm476, %v447
  %513 = vst.msk [vmem:[%s3 + $0x120] sm:$0xff] %vm476, %v448
  %514 = vst.msk [vmem:[%s3 + $0x128] sm:$0xff] %vm476, %v449
  %515 = vst.msk [vmem:[%s3 + $0x130] sm:$0xff] %vm476, %v450
  %516 = vst.msk [vmem:[%s3 + $0x138] sm:$0xff] %vm476, %v451
  %517 = vst.msk [vmem:[%s3 + $0x140] sm:$0xff] %vm476, %v452
  %518 = vst.msk [vmem:[%s3 + $0x148] sm:$0xff] %vm476, %v453
  %519 = vst.msk [vmem:[%s3 + $0x150] sm:$0xff] %vm476, %v454
  %520 = vst.msk [vmem:[%s3 + $0x158] sm:$0xff] %vm476, %v455
  %521 = vst.msk [vmem:[%s3 + $0x160] sm:$0xff] %vm476, %v456
  %522 = vst.msk [vmem:[%s3 + $0x168] sm:$0xff] %vm476, %v457
  %523 = vst.msk [vmem:[%s3 + $0x170] sm:$0xff] %vm476, %v458
  %524 = vst.msk [vmem:[%s3 + $0x178] sm:$0xff] %vm476, %v459
  %525 = vst.msk [vmem:[%s3 + $0x180] sm:$0xff] %vm476, %v460
  %526 = vst.msk [vmem:[%s3 + $0x188] sm:$0xff] %vm476, %v461
  %527 = vst.msk [vmem:[%s3 + $0x190] sm:$0xff] %vm476, %v462
  %528 = vst.msk [vmem:[%s3 + $0x198] sm:$0xff] %vm476, %v463
  %529 = vst.msk [vmem:[%s3 + $0x1a0] sm:$0xff] %vm476, %v464
  %530 = vst.msk [vmem:[%s3 + $0x1a8] sm:$0xff] %vm476, %v465
  %531 = vst.msk [vmem:[%s3 + $0x1b0] sm:$0xff] %vm476, %v466
  %532 = vst.msk [vmem:[%s3 + $0x1b8] sm:$0xff] %vm476, %v467
  %533 = vst.msk [vmem:[%s3 + $0x1c0] sm:$0xff] %vm476, %v468
  %534 = vst.msk [vmem:[%s3 + $0x1c8] sm:$0xff] %vm476, %v469
  %535 = vst.msk [vmem:[%s3 + $0x1d0] sm:$0xff] %vm476, %v470
  %536 = vst.msk [vmem:[%s3 + $0x1d8] sm:$0xff] %vm476, %v471
  %537 = vst.msk [vmem:[%s3 + $0x1e0] sm:$0xff] %vm476, %v472
  %538 = vst.msk [vmem:[%s3 + $0x1e8] sm:$0xff] %vm476, %v473
  %539 = vst.msk [vmem:[%s3 + $0x1f0] sm:$0xff] %vm476, %v474
  %540 = vst.msk [vmem:[%s3 + $0x1f8] sm:$0xff] %vm476, %v475
  // Predicated region
  $region14: #{inconv_forward.5} parent=0 // pred_check
    _
  $region15: #{inconv_forward.5} parent=0 // pred_check_branch
    %542 = sbr.rel (0) target = $region17
  $region16: #{inconv_forward.5} parent=0 // pred_region
    _
  $region17: #{inconv_forward.5} parent=0 // pred_fallthru
    _
  // Predicated region
  $region18: #{inconv_forward.5} parent=0 // pred_check
    _
  $region19: #{inconv_forward.5} parent=0 // pred_check_branch
    %544 = sbr.rel (0) target = $region21
  $region20: #{inconv_forward.5} parent=0 // pred_region
    _
  $region21: #{inconv_forward.5} parent=0 // pred_fallthru
    _

// kernel: inconv_forward.4
$region0: #{inconv_forward.4}
  #allocation0 [shape = 'u32[]', space=smem, size = 0x4, offset = 0x4, fixed_abs, tag = 'smem constant byte address 0x4 - core index']
  #allocation1 [shape = 'u32[144,128]{1,0:T(1,128)}', space=vmem, size = 0x12000, scoped, tag = 'internal scratch']
  %s0 = inlined_call_operand.vmem [shape: bf16[2,16,16,8], index: 0, kind: input, shape index: {}]
  %s1 = inlined_call_operand.vmem [shape: bf16[256,128], index: 1, kind: input, shape index: {}]
  %s2 = inlined_call_operand.vmem [shape: f32[1,8], index: 2, kind: input, shape index: {}]
  %s3 = inlined_call_operand.vmem [shape: f32[1,8], index: 3, kind: input, shape index: {}]
  %s4 = inlined_call_operand.vmem [shape: f32[1,8], index: 4, kind: input, shape index: {}]
  %s5 = inlined_call_operand.vmem [shape: bf16[2,16,16,8], index: 5, kind: output, shape index: {0}]
  %s6 = inlined_call_operand.vmem [shape: f32[2,8,8], index: 6, kind: output, shape index: {1}]
  %s7 = inlined_call_operand.vmem [shape: f32[2,8,8], index: 7, kind: output, shape index: {2}]
  %8 = xla_tuple %s5, %s6, %s7
  %s9 = sld [smem:[#allocation0]]
  $region69: #{inconv_forward.4} parent=0
    _
  %s11 = ssub.s32 1, %s9
  %s12 = scalar_select 0, %s11, %s9
  loop: start=0, step=1, limit=4
  $region2: #{inconv_forward.4} parent=0 // loop_pre_header
    _
  $region3: #{inconv_forward.4} parent=0 // loop_header
    %s14 = sphi 0, %s18
    %p15 = scmp.ge.s32.totalorder %s14, 4
    %s24 = sphi 0, %s26
    %s27 = sphi 0, %s24
    %s28 = sphi 0, %s27
    %s44 = sphi 0, %s28
    %s48 = sphi 0, %s48
    %s50 = sphi 0, %s48
    %s51 = sphi 0, %s50
    %s65 = sphi 0, %s51
    %s69 = sphi 0, %s69
    %s71 = sphi 0, %s69
    %s72 = sphi 0, %s71
    %s86 = sphi 0, %s72
    %s90 = sphi 0, %s90
    %s92 = sphi 0, %s90
    %s93 = sphi 0, %s92
    %s107 = sphi 0, %s93
    %s111 = sphi 0, %s111
    %s113 = sphi 0, %s111
    %s114 = sphi 0, %s113
    %s128 = sphi 0, %s114
    %s134 = sphi 0, %s136
    %s137 = sphi 0, %s134
    %s138 = sphi 0, %s137
    %s154 = sphi 0, %s138
    %s160 = sphi 0, %s162
    %s163 = sphi 0, %s160
    %s164 = sphi 0, %s163
    %s180 = sphi 0, %s164
    %s186 = sphi 0, %s188
    %s189 = sphi 0, %s186
    %s190 = sphi 0, %s189
    %s206 = sphi 0, %s190
  $region4: #{inconv_forward.4} parent=0 // loop_header_branch
    %17 = sbr.rel (%p15) target = $region8
  $region5: #{inconv_forward.4} parent=0 // loop_body
    %s19 = ssub.s32 %s14, 1
    %s20 = ssub.s32 %s14, 2
    %s21 = sadd.s32 %s14, 1
    %s22 = ssub.s32 %s14, %s21
    %p23 = scmp.eq.s32.totalorder %s22, 0
    %s25 = sadd.s32 %s24, 1
    %s26 = scalar_select %p23, %s24, %s25
    %p29 = pneg %p23
    %p30 = scmp.eq.s32.totalorder %s14, 1
    %p31 = por %p29, %p30
    %p32 = scmp.ne.s32.totalorder %s24, %s27
    %p33 = scmp.eq.s32.totalorder %s14, 0
    %p34 = por %p32, %p33
    %p35 = scmp.ne.s32.totalorder %s24, %s27
    %p36 = scmp.eq.s32.totalorder %s19, 1
    %p37 = por %p35, %p36
    %p38 = scmp.ne.s32.totalorder %s27, %s28
    %p39 = scmp.eq.s32.totalorder %s19, 0
    %p40 = por %p38, %p39
    %p41 = scmp.ne.s32.totalorder %s27, %s28
    %p42 = scmp.eq.s32.totalorder %s20, 1
    %p43 = por %p41, %p42
    %p45 = scmp.ne.s32.totalorder %s28, %s44
    %p46 = scmp.eq.s32.totalorder %s20, 0
    %p47 = por %p45, %p46
    %s49 = sadd.s32 %s48, 1
    %p52 = scmp.eq.s32.totalorder %s14, 1
    %p53 = scmp.ne.s32.totalorder %s48, %s50
    %p54 = scmp.eq.s32.totalorder %s14, 0
    %p55 = por %p53, %p54
    %p56 = scmp.ne.s32.totalorder %s48, %s50
    %p57 = scmp.eq.s32.totalorder %s19, 1
    %p58 = por %p56, %p57
    %p59 = scmp.ne.s32.totalorder %s50, %s51
    %p60 = scmp.eq.s32.totalorder %s19, 0
    %p61 = por %p59, %p60
    %p62 = scmp.ne.s32.totalorder %s50, %s51
    %p63 = scmp.eq.s32.totalorder %s20, 1
    %p64 = por %p62, %p63
    %p66 = scmp.ne.s32.totalorder %s51, %s65
    %p67 = scmp.eq.s32.totalorder %s20, 0
    %p68 = por %p66, %p67
    %s70 = sadd.s32 %s69, 1
    %p73 = scmp.eq.s32.totalorder %s14, 1
    %p74 = scmp.ne.s32.totalorder %s69, %s71
    %p75 = scmp.eq.s32.totalorder %s14, 0
    %p76 = por %p74, %p75
    %p77 = scmp.ne.s32.totalorder %s69, %s71
    %p78 = scmp.eq.s32.totalorder %s19, 1
    %p79 = por %p77, %p78
    %p80 = scmp.ne.s32.totalorder %s71, %s72
    %p81 = scmp.eq.s32.totalorder %s19, 0
    %p82 = por %p80, %p81
    %p83 = scmp.ne.s32.totalorder %s71, %s72
    %p84 = scmp.eq.s32.totalorder %s20, 1
    %p85 = por %p83, %p84
    %p87 = scmp.ne.s32.totalorder %s72, %s86
    %p88 = scmp.eq.s32.totalorder %s20, 0
    %p89 = por %p87, %p88
    %s91 = sadd.s32 %s90, 1
    %p94 = scmp.eq.s32.totalorder %s14, 1
    %p95 = scmp.ne.s32.totalorder %s90, %s92
    %p96 = scmp.eq.s32.totalorder %s14, 0
    %p97 = por %p95, %p96
    %p98 = scmp.ne.s32.totalorder %s90, %s92
    %p99 = scmp.eq.s32.totalorder %s19, 1
    %p100 = por %p98, %p99
    %p101 = scmp.ne.s32.totalorder %s92, %s93
    %p102 = scmp.eq.s32.totalorder %s19, 0
    %p103 = por %p101, %p102
    %p104 = scmp.ne.s32.totalorder %s92, %s93
    %p105 = scmp.eq.s32.totalorder %s20, 1
    %p106 = por %p104, %p105
    %p108 = scmp.ne.s32.totalorder %s93, %s107
    %p109 = scmp.eq.s32.totalorder %s20, 0
    %p110 = por %p108, %p109
    %s112 = sadd.s32 %s111, 1
    %p115 = scmp.eq.s32.totalorder %s14, 1
    %p116 = scmp.ne.s32.totalorder %s111, %s113
    %p117 = scmp.eq.s32.totalorder %s14, 0
    %p118 = por %p116, %p117
    %p119 = scmp.ne.s32.totalorder %s111, %s113
    %p120 = scmp.eq.s32.totalorder %s19, 1
    %p121 = por %p119, %p120
    %p122 = scmp.ne.s32.totalorder %s113, %s114
    %p123 = scmp.eq.s32.totalorder %s19, 0
    %p124 = por %p122, %p123
    %p125 = scmp.ne.s32.totalorder %s113, %s114
    %p126 = scmp.eq.s32.totalorder %s20, 1
    %p127 = por %p125, %p126
    %p129 = scmp.ne.s32.totalorder %s114, %s128
    %p130 = scmp.eq.s32.totalorder %s20, 0
    %p131 = por %p129, %p130
    %s132 = ssub.s32 %s14, %s21
    %p133 = scmp.eq.s32.totalorder %s132, 0
    %s135 = sadd.s32 %s134, 1
    %s136 = scalar_select %p133, %s134, %s135
    %p139 = pneg %p133
    %p140 = scmp.eq.s32.totalorder %s14, 1
    %p141 = por %p139, %p140
    %p142 = scmp.ne.s32.totalorder %s134, %s137
    %p143 = scmp.eq.s32.totalorder %s14, 0
    %p144 = por %p142, %p143
    %p145 = scmp.ne.s32.totalorder %s134, %s137
    %p146 = scmp.eq.s32.totalorder %s19, 1
    %p147 = por %p145, %p146
    %p148 = scmp.ne.s32.totalorder %s137, %s138
    %p149 = scmp.eq.s32.totalorder %s19, 0
    %p150 = por %p148, %p149
    %p151 = scmp.ne.s32.totalorder %s137, %s138
    %p152 = scmp.eq.s32.totalorder %s20, 1
    %p153 = por %p151, %p152
    %p155 = scmp.ne.s32.totalorder %s138, %s154
    %p156 = scmp.eq.s32.totalorder %s20, 0
    %p157 = por %p155, %p156
    %s158 = ssub.s32 %s14, %s21
    %p159 = scmp.eq.s32.totalorder %s158, 0
    %s161 = sadd.s32 %s160, 1
    %s162 = scalar_select %p159, %s160, %s161
    %p165 = pneg %p159
    %p166 = scmp.eq.s32.totalorder %s14, 1
    %p167 = por %p165, %p166
    %p168 = scmp.ne.s32.totalorder %s160, %s163
    %p169 = scmp.eq.s32.totalorder %s14, 0
    %p170 = por %p168, %p169
    %p171 = scmp.ne.s32.totalorder %s160, %s163
    %p172 = scmp.eq.s32.totalorder %s19, 1
    %p173 = por %p171, %p172
    %p174 = scmp.ne.s32.totalorder %s163, %s164
    %p175 = scmp.eq.s32.totalorder %s19, 0
    %p176 = por %p174, %p175
    %p177 = scmp.ne.s32.totalorder %s163, %s164
    %p178 = scmp.eq.s32.totalorder %s20, 1
    %p179 = por %p177, %p178
    %p181 = scmp.ne.s32.totalorder %s164, %s180
    %p182 = scmp.eq.s32.totalorder %s20, 0
    %p183 = por %p181, %p182
    %s184 = ssub.s32 %s14, %s21
    %p185 = scmp.eq.s32.totalorder %s184, 0
    %s187 = sadd.s32 %s186, 1
    %s188 = scalar_select %p185, %s186, %s187
    %p191 = pneg %p185
    %p192 = scmp.eq.s32.totalorder %s14, 1
    %p193 = por %p191, %p192
    %p194 = scmp.ne.s32.totalorder %s186, %s189
    %p195 = scmp.eq.s32.totalorder %s14, 0
    %p196 = por %p194, %p195
    %p197 = scmp.ne.s32.totalorder %s186, %s189
    %p198 = scmp.eq.s32.totalorder %s19, 1
    %p199 = por %p197, %p198
    %p200 = scmp.ne.s32.totalorder %s189, %s190
    %p201 = scmp.eq.s32.totalorder %s19, 0
    %p202 = por %p200, %p201
    %p203 = scmp.ne.s32.totalorder %s189, %s190
    %p204 = scmp.eq.s32.totalorder %s20, 1
    %p205 = por %p203, %p204
    %p207 = scmp.ne.s32.totalorder %s190, %s206
    %p208 = scmp.eq.s32.totalorder %s20, 0
    %p209 = por %p207, %p208
    %p210 = scmp.le.s32.totalorder 1, %s14
    %p211 = scmp.lt.s32.totalorder %s14, 3
    %p212 = pnand %p210, %p211
    %p213 = pneg %p212
    // Predicated region
    $region9: #{inconv_forward.4} parent=5 // pred_check
      _
    $region10: #{inconv_forward.4} parent=5 // pred_check_branch
      %215 = sbr.rel (%p212) target = $region12
    $region11: #{inconv_forward.4} parent=5 // pred_region
      %s216 = ssub.s32 %s14, 1
      // Predicated region
      $region13: #{inconv_forward.4} parent=11 // pred_check
        %p217 = pneg %p61
      $region14: #{inconv_forward.4} parent=11 // pred_check_branch
        %219 = sbr.rel (%p217) target = $region16
      $region15: #{inconv_forward.4} parent=11 // pred_region
        _
      $region16: #{inconv_forward.4} parent=11 // pred_fallthru
        _
      // Predicated region
      $region17: #{inconv_forward.4} parent=11 // pred_check
        %p220 = pneg %p82
      $region18: #{inconv_forward.4} parent=11 // pred_check_branch
        %222 = sbr.rel (%p220) target = $region20
      $region19: #{inconv_forward.4} parent=11 // pred_region
        _
      $region20: #{inconv_forward.4} parent=11 // pred_fallthru
        _
      // Predicated region
      $region21: #{inconv_forward.4} parent=11 // pred_check
        %p223 = pneg %p103
      $region22: #{inconv_forward.4} parent=11 // pred_check_branch
        %225 = sbr.rel (%p223) target = $region24
      $region23: #{inconv_forward.4} parent=11 // pred_region
        _
      $region24: #{inconv_forward.4} parent=11 // pred_fallthru
        _
      // Predicated region
      $region25: #{inconv_forward.4} parent=11 // pred_check
        %p226 = pneg %p124
      $region26: #{inconv_forward.4} parent=11 // pred_check_branch
        %228 = sbr.rel (%p226) target = $region28
      $region27: #{inconv_forward.4} parent=11 // pred_region
        _
      $region28: #{inconv_forward.4} parent=11 // pred_fallthru
        _
    $region12: #{inconv_forward.4} parent=5 // pred_fallthru
      _
    %p229 = scmp.lt.s32.totalorder %s14, 2
    // Predicated region
    $region29: #{inconv_forward.4} parent=5 // pred_check
      %p230 = pneg %p229
    $region30: #{inconv_forward.4} parent=5 // pred_check_branch
      %232 = sbr.rel (%p230) target = $region32
    $region31: #{inconv_forward.4} parent=5 // pred_region
      // Predicated region
      $region33: #{inconv_forward.4} parent=31 // pred_check
        %p233 = pneg %p34
      $region34: #{inconv_forward.4} parent=31 // pred_check_branch
        %235 = sbr.rel (%p233) target = $region36
      $region35: #{inconv_forward.4} parent=31 // pred_region
        %p236 = scmp.lt.s32.totalorder %s14, 1
        %s237 = scalar_select %p236, %s14, 1
        %s238 = smul.addr %s237, 32
        %s239 = smul.addr %s238, 4
        %s240 = scalar_lea.vmem %s0, %s239
      $region36: #{inconv_forward.4} parent=31 // pred_fallthru
        _
    $region32: #{inconv_forward.4} parent=5 // pred_fallthru
      _
    %p241 = scmp.le.s32.totalorder 1, %s14
    %p242 = scmp.lt.s32.totalorder %s14, 3
    %p243 = pnand %p241, %p242
    %p244 = pneg %p243
    // Predicated region
    $region37: #{inconv_forward.4} parent=5 // pred_check
      _
    $region38: #{inconv_forward.4} parent=5 // pred_check_branch
      %246 = sbr.rel (%p243) target = $region40
    $region39: #{inconv_forward.4} parent=5 // pred_region
      %s247 = ssub.s32 %s14, 1
      %p248 = scmp.lt.s32.totalorder %s19, 1
      %s249 = scalar_select %p248, %s19, 1
      %s250 = smul.addr %s249, 32
      %s251 = smul.addr %s250, 4
      %s252 = scalar_lea.vmem %s0, %s251
      %p253 = pneg %p40
      %p254 = pneg %p37
      %p255 = pneg %p61
      %p256 = pneg %p58
      %p257 = pneg %p82
      %p258 = pneg %p79
      %p259 = pneg %p103
      %p260 = pneg %p100
      %p261 = pneg %p124
      %p262 = pneg %p121
      %p263 = pneg %p150
      %p264 = pneg %p147
      %p265 = scmp.lt.s32.totalorder %s19, 1
      %s266 = scalar_select %p265, %s19, 1
      %s267 = smul.addr %s266, 32
      %s268 = smul.addr %s267, 4
      %s269 = scalar_lea.vmem %s5, %s268
      %p270 = pneg %p176
      %p271 = pneg %p173
      %p272 = scmp.lt.s32.totalorder %s19, 1
      %s273 = scalar_select %p272, %s19, 1
      %s274 = smul.addr %s273, 8
      %s275 = scalar_lea.vmem %s6, %s274
      %p276 = pneg %p202
      %p277 = pneg %p199
      %p278 = scmp.lt.s32.totalorder %s19, 1
      %s279 = scalar_select %p278, %s19, 1
      %s280 = smul.addr %s279, 8
      %s281 = scalar_lea.vmem %s7, %s280
      %p282 = scmp.lt.s32.totalorder %s19, 1
      %s283 = scalar_select %p282, %s19, 1
      %s284 = smul.addr %s283, 32
      %s285 = smul.addr %s284, 4
      %s286 = scalar_lea.vmem %s0, %s285
      %p287 = scmp.lt.s32.totalorder %s19, 1
      %s288 = scalar_select %p287, %s19, 1
      %s289 = smul.addr %s288, 32
      %s290 = smul.addr %s289, 4
      %s291 = scalar_lea.vmem %s5, %s290
      %p292 = scmp.lt.s32.totalorder %s19, 1
      %s293 = scalar_select %p292, %s19, 1
      %s294 = smul.addr %s293, 8
      %s295 = scalar_lea.vmem %s6, %s294
      %p296 = scmp.lt.s32.totalorder %s19, 1
      %s297 = scalar_select %p296, %s19, 1
      %s298 = smul.addr %s297, 8
      %s299 = scalar_lea.vmem %s7, %s298
      %v301 = vld [vmem:[%s286] sm:$0xf]
      %v302 = vld [vmem:[%s286 + $0x4] sm:$0xf]
      %v303 = vld [vmem:[%s286 + $0x8] sm:$0xf]
      %v304 = vld [vmem:[%s286 + $0xc] sm:$0xf]
      %v305 = vld [vmem:[%s286 + $0x10] sm:$0xf]
      %v306 = vld [vmem:[%s286 + $0x14] sm:$0xf]
      %v307 = vld [vmem:[%s286 + $0x18] sm:$0xf]
      %v308 = vld [vmem:[%s286 + $0x1c] sm:$0xf]
      %v309 = vld [vmem:[%s286 + $0x20] sm:$0xf]
      %v310 = vld [vmem:[%s286 + $0x24] sm:$0xf]
      %v311 = vld [vmem:[%s286 + $0x28] sm:$0xf]
      %v312 = vld [vmem:[%s286 + $0x2c] sm:$0xf]
      %v313 = vld [vmem:[%s286 + $0x30] sm:$0xf]
      %v314 = vld [vmem:[%s286 + $0x34] sm:$0xf]
      %v315 = vld [vmem:[%s286 + $0x38] sm:$0xf]
      %v316 = vld [vmem:[%s286 + $0x3c] sm:$0xf]
      %v317 = vld [vmem:[%s286 + $0x40] sm:$0xf]
      %v318 = vld [vmem:[%s286 + $0x44] sm:$0xf]
      %v319 = vld [vmem:[%s286 + $0x48] sm:$0xf]
      %v320 = vld [vmem:[%s286 + $0x4c] sm:$0xf]
      %v321 = vld [vmem:[%s286 + $0x50] sm:$0xf]
      %v322 = vld [vmem:[%s286 + $0x54] sm:$0xf]
      %v323 = vld [vmem:[%s286 + $0x58] sm:$0xf]
      %v324 = vld [vmem:[%s286 + $0x5c] sm:$0xf]
      %v325 = vld [vmem:[%s286 + $0x60] sm:$0xf]
      %v326 = vld [vmem:[%s286 + $0x64] sm:$0xf]
      %v327 = vld [vmem:[%s286 + $0x68] sm:$0xf]
      %v328 = vld [vmem:[%s286 + $0x6c] sm:$0xf]
      %v329 = vld [vmem:[%s286 + $0x70] sm:$0xf]
      %v330 = vld [vmem:[%s286 + $0x74] sm:$0xf]
      %v331 = vld [vmem:[%s286 + $0x78] sm:$0xf]
      %v332 = vld [vmem:[%s286 + $0x7c] sm:$0xf]
      %v333 = vunpack.c.l.bf16 %v301
      %v334 = vunpack.c.l.bf16 %v302
      %v335 = vunpack.c.l.bf16 %v303
      %v336 = vunpack.c.l.bf16 %v304
      %v337 = vunpack.c.l.bf16 %v305
      %v338 = vunpack.c.l.bf16 %v306
      %v339 = vunpack.c.l.bf16 %v307
      %v340 = vunpack.c.l.bf16 %v308
      %v341 = vunpack.c.l.bf16 %v309
      %v342 = vunpack.c.l.bf16 %v310
      %v343 = vunpack.c.l.bf16 %v311
      %v344 = vunpack.c.l.bf16 %v312
      %v345 = vunpack.c.l.bf16 %v313
      %v346 = vunpack.c.l.bf16 %v314
      %v347 = vunpack.c.l.bf16 %v315
      %v348 = vunpack.c.l.bf16 %v316
      %v349 = vunpack.c.l.bf16 %v317
      %v350 = vunpack.c.l.bf16 %v318
      %v351 = vunpack.c.l.bf16 %v319
      %v352 = vunpack.c.l.bf16 %v320
      %v353 = vunpack.c.l.bf16 %v321
      %v354 = vunpack.c.l.bf16 %v322
      %v355 = vunpack.c.l.bf16 %v323
      %v356 = vunpack.c.l.bf16 %v324
      %v357 = vunpack.c.l.bf16 %v325
      %v358 = vunpack.c.l.bf16 %v326
      %v359 = vunpack.c.l.bf16 %v327
      %v360 = vunpack.c.l.bf16 %v328
      %v361 = vunpack.c.l.bf16 %v329
      %v362 = vunpack.c.l.bf16 %v330
      %v363 = vunpack.c.l.bf16 %v331
      %v364 = vunpack.c.l.bf16 %v332
      %v365 = vld [vmem:[%s3] sm:$0x1]
      %v367 = vlaneseq
      %v368 = vshrl.u32 %v367, 7
      %v369 = vsub.s32 0, %v368
      %v370 = vrot.slane %v365, %v369
      %v372 = vmul.f32 %v333, %v370
      %v373 = vmul.f32 %v334, %v370
      %v374 = vmul.f32 %v335, %v370
      %v375 = vmul.f32 %v336, %v370
      %v376 = vmul.f32 %v337, %v370
      %v377 = vmul.f32 %v338, %v370
      %v378 = vmul.f32 %v339, %v370
      %v379 = vmul.f32 %v340, %v370
      %v380 = vmul.f32 %v341, %v370
      %v381 = vmul.f32 %v342, %v370
      %v382 = vmul.f32 %v343, %v370
      %v383 = vmul.f32 %v344, %v370
      %v384 = vmul.f32 %v345, %v370
      %v385 = vmul.f32 %v346, %v370
      %v386 = vmul.f32 %v347, %v370
      %v387 = vmul.f32 %v348, %v370
      %v388 = vmul.f32 %v349, %v370
      %v389 = vmul.f32 %v350, %v370
      %v390 = vmul.f32 %v351, %v370
      %v391 = vmul.f32 %v352, %v370
      %v392 = vmul.f32 %v353, %v370
      %v393 = vmul.f32 %v354, %v370
      %v394 = vmul.f32 %v355, %v370
      %v395 = vmul.f32 %v356, %v370
      %v396 = vmul.f32 %v357, %v370
      %v397 = vmul.f32 %v358, %v370
      %v398 = vmul.f32 %v359, %v370
      %v399 = vmul.f32 %v360, %v370
      %v400 = vmul.f32 %v361, %v370
      %v401 = vmul.f32 %v362, %v370
      %v402 = vmul.f32 %v363, %v370
      %v403 = vmul.f32 %v364, %v370
      %v404 = vld [vmem:[%s4] sm:$0x1]
      %v406 = vlaneseq
      %v407 = vshrl.u32 %v406, 7
      %v408 = vsub.s32 0, %v407
      %v409 = vrot.slane %v404, %v408
      %v411 = vadd.f32 %v372, %v409
      %v412 = vadd.f32 %v373, %v409
      %v413 = vadd.f32 %v374, %v409
      %v414 = vadd.f32 %v375, %v409
      %v415 = vadd.f32 %v376, %v409
      %v416 = vadd.f32 %v377, %v409
      %v417 = vadd.f32 %v378, %v409
      %v418 = vadd.f32 %v379, %v409
      %v419 = vadd.f32 %v380, %v409
      %v420 = vadd.f32 %v381, %v409
      %v421 = vadd.f32 %v382, %v409
      %v422 = vadd.f32 %v383, %v409
      %v423 = vadd.f32 %v384, %v409
      %v424 = vadd.f32 %v385, %v409
      %v425 = vadd.f32 %v386, %v409
      %v426 = vadd.f32 %v387, %v409
      %v427 = vadd.f32 %v388, %v409
      %v428 = vadd.f32 %v389, %v409
      %v429 = vadd.f32 %v390, %v409
      %v430 = vadd.f32 %v391, %v409
      %v431 = vadd.f32 %v392, %v409
      %v432 = vadd.f32 %v393, %v409
      %v433 = vadd.f32 %v394, %v409
      %v434 = vadd.f32 %v395, %v409
      %v435 = vadd.f32 %v396, %v409
      %v436 = vadd.f32 %v397, %v409
      %v437 = vadd.f32 %v398, %v409
      %v438 = vadd.f32 %v399, %v409
      %v439 = vadd.f32 %v400, %v409
      %v440 = vadd.f32 %v401, %v409
      %v441 = vadd.f32 %v402, %v409
      %v442 = vadd.f32 %v403, %v409
      %vm443 = vcmp.gt.f32.partialorder %v411, 0.0
      %vm444 = vcmp.gt.f32.partialorder %v412, 0.0
      %vm445 = vcmp.gt.f32.partialorder %v413, 0.0
      %vm446 = vcmp.gt.f32.partialorder %v414, 0.0
      %vm447 = vcmp.gt.f32.partialorder %v415, 0.0
      %vm448 = vcmp.gt.f32.partialorder %v416, 0.0
      %vm449 = vcmp.gt.f32.partialorder %v417, 0.0
      %vm450 = vcmp.gt.f32.partialorder %v418, 0.0
      %vm451 = vcmp.gt.f32.partialorder %v419, 0.0
      %vm452 = vcmp.gt.f32.partialorder %v420, 0.0
      %vm453 = vcmp.gt.f32.partialorder %v421, 0.0
      %vm454 = vcmp.gt.f32.partialorder %v422, 0.0
      %vm455 = vcmp.gt.f32.partialorder %v423, 0.0
      %vm456 = vcmp.gt.f32.partialorder %v424, 0.0
      %vm457 = vcmp.gt.f32.partialorder %v425, 0.0
      %vm458 = vcmp.gt.f32.partialorder %v426, 0.0
      %vm459 = vcmp.gt.f32.partialorder %v427, 0.0
      %vm460 = vcmp.gt.f32.partialorder %v428, 0.0
      %vm461 = vcmp.gt.f32.partialorder %v429, 0.0
      %vm462 = vcmp.gt.f32.partialorder %v430, 0.0
      %vm463 = vcmp.gt.f32.partialorder %v431, 0.0
      %vm464 = vcmp.gt.f32.partialorder %v432, 0.0
      %vm465 = vcmp.gt.f32.partialorder %v433, 0.0
      %vm466 = vcmp.gt.f32.partialorder %v434, 0.0
      %vm467 = vcmp.gt.f32.partialorder %v435, 0.0
      %vm468 = vcmp.gt.f32.partialorder %v436, 0.0
      %vm469 = vcmp.gt.f32.partialorder %v437, 0.0
      %vm470 = vcmp.gt.f32.partialorder %v438, 0.0
      %vm471 = vcmp.gt.f32.partialorder %v439, 0.0
      %vm472 = vcmp.gt.f32.partialorder %v440, 0.0
      %vm473 = vcmp.gt.f32.partialorder %v441, 0.0
      %vm474 = vcmp.gt.f32.partialorder %v442, 0.0
      %v475 = vmul.f32 %v411, 0.1
      %v476 = vmul.f32 %v412, 0.1
      %v477 = vmul.f32 %v413, 0.1
      %v478 = vmul.f32 %v414, 0.1
      %v479 = vmul.f32 %v415, 0.1
      %v480 = vmul.f32 %v416, 0.1
      %v481 = vmul.f32 %v417, 0.1
      %v482 = vmul.f32 %v418, 0.1
      %v483 = vmul.f32 %v419, 0.1
      %v484 = vmul.f32 %v420, 0.1
      %v485 = vmul.f32 %v421, 0.1
      %v486 = vmul.f32 %v422, 0.1
      %v487 = vmul.f32 %v423, 0.1
      %v488 = vmul.f32 %v424, 0.1
      %v489 = vmul.f32 %v425, 0.1
      %v490 = vmul.f32 %v426, 0.1
      %v491 = vmul.f32 %v427, 0.1
      %v492 = vmul.f32 %v428, 0.1
      %v493 = vmul.f32 %v429, 0.1
      %v494 = vmul.f32 %v430, 0.1
      %v495 = vmul.f32 %v431, 0.1
      %v496 = vmul.f32 %v432, 0.1
      %v497 = vmul.f32 %v433, 0.1
      %v498 = vmul.f32 %v434, 0.1
      %v499 = vmul.f32 %v435, 0.1
      %v500 = vmul.f32 %v436, 0.1
      %v501 = vmul.f32 %v437, 0.1
      %v502 = vmul.f32 %v438, 0.1
      %v503 = vmul.f32 %v439, 0.1
      %v504 = vmul.f32 %v440, 0.1
      %v505 = vmul.f32 %v441, 0.1
      %v506 = vmul.f32 %v442, 0.1
      %v507 = vsel %vm443, %v411, %v475
      %v508 = vsel %vm444, %v412, %v476
      %v509 = vsel %vm445, %v413, %v477
      %v510 = vsel %vm446, %v414, %v478
      %v511 = vsel %vm447, %v415, %v479
      %v512 = vsel %vm448, %v416, %v480
      %v513 = vsel %vm449, %v417, %v481
      %v514 = vsel %vm450, %v418, %v482
      %v515 = vsel %vm451, %v419, %v483
      %v516 = vsel %vm452, %v420, %v484
      %v517 = vsel %vm453, %v421, %v485
      %v518 = vsel %vm454, %v422, %v486
      %v519 = vsel %vm455, %v423, %v487
      %v520 = vsel %vm456, %v424, %v488
      %v521 = vsel %vm457, %v425, %v489
      %v522 = vsel %vm458, %v426, %v490
      %v523 = vsel %vm459, %v427, %v491
      %v524 = vsel %vm460, %v428, %v492
      %v525 = vsel %vm461, %v429, %v493
      %v526 = vsel %vm462, %v430, %v494
      %v527 = vsel %vm463, %v431, %v495
      %v528 = vsel %vm464, %v432, %v496
      %v529 = vsel %vm465, %v433, %v497
      %v530 = vsel %vm466, %v434, %v498
      %v531 = vsel %vm467, %v435, %v499
      %v532 = vsel %vm468, %v436, %v500
      %v533 = vsel %vm469, %v437, %v501
      %v534 = vsel %vm470, %v438, %v502
      %v535 = vsel %vm471, %v439, %v503
      %v536 = vsel %vm472, %v440, %v504
      %v537 = vsel %vm473, %v441, %v505
      %v538 = vsel %vm474, %v442, %v506
      %v539 = vpack.c.bf16 %v508, %v507
      %v540 = vpack.c.bf16 %v510, %v509
      %v541 = vpack.c.bf16 %v512, %v511
      %v542 = vpack.c.bf16 %v514, %v513
      %v543 = vpack.c.bf16 %v516, %v515
      %v544 = vpack.c.bf16 %v518, %v517
      %v545 = vpack.c.bf16 %v520, %v519
      %v546 = vpack.c.bf16 %v522, %v521
      %v547 = vpack.c.bf16 %v524, %v523
      %v548 = vpack.c.bf16 %v526, %v525
      %v549 = vpack.c.bf16 %v528, %v527
      %v550 = vpack.c.bf16 %v530, %v529
      %v551 = vpack.c.bf16 %v532, %v531
      %v552 = vpack.c.bf16 %v534, %v533
      %v553 = vpack.c.bf16 %v536, %v535
      %v554 = vpack.c.bf16 %v538, %v537
      %v556 = vshll.u32 %v539, 16
      %v559 = vshll.u32 %v540, 16
      %v562 = vshll.u32 %v541, 16
      %v565 = vshll.u32 %v542, 16
      %v568 = vshll.u32 %v543, 16
      %v571 = vshll.u32 %v544, 16
      %v574 = vshll.u32 %v545, 16
      %v577 = vshll.u32 %v546, 16
      %v580 = vshll.u32 %v547, 16
      %v583 = vshll.u32 %v548, 16
      %v586 = vshll.u32 %v549, 16
      %v589 = vshll.u32 %v550, 16
      %v592 = vshll.u32 %v551, 16
      %v595 = vshll.u32 %v552, 16
      %v598 = vshll.u32 %v553, 16
      %v601 = vshll.u32 %v554, 16
      %v635 = vrot.slane %v539, 7
      %v636 = vrot.slane %v540, 7
      %v637 = vrot.slane %v541, 7
      %v638 = vrot.slane %v542, 7
      %v639 = vrot.slane %v543, 7
      %v640 = vrot.slane %v544, 7
      %v641 = vrot.slane %v545, 7
      %v642 = vrot.slane %v546, 7
      %v643 = vrot.slane %v547, 7
      %v644 = vrot.slane %v548, 7
      %v645 = vrot.slane %v549, 7
      %v646 = vrot.slane %v550, 7
      %v647 = vrot.slane %v551, 7
      %v648 = vrot.slane %v552, 7
      %v649 = vrot.slane %v553, 7
      %v650 = vrot.slane %v554, 7
      %v651 = vshrl.u32 %v539, 16
      %v653 = vrot.slane %v651, 6
      %v654 = vshrl.u32 %v540, 16
      %v656 = vrot.slane %v654, 6
      %v657 = vshrl.u32 %v541, 16
      %v659 = vrot.slane %v657, 6
      %v660 = vshrl.u32 %v542, 16
      %v662 = vrot.slane %v660, 6
      %v663 = vshrl.u32 %v543, 16
      %v665 = vrot.slane %v663, 6
      %v666 = vshrl.u32 %v544, 16
      %v668 = vrot.slane %v666, 6
      %v669 = vshrl.u32 %v545, 16
      %v671 = vrot.slane %v669, 6
      %v672 = vshrl.u32 %v546, 16
      %v674 = vrot.slane %v672, 6
      %v675 = vshrl.u32 %v547, 16
      %v677 = vrot.slane %v675, 6
      %v678 = vshrl.u32 %v548, 16
      %v680 = vrot.slane %v678, 6
      %v681 = vshrl.u32 %v549, 16
      %v683 = vrot.slane %v681, 6
      %v684 = vshrl.u32 %v550, 16
      %v686 = vrot.slane %v684, 6
      %v687 = vshrl.u32 %v551, 16
      %v689 = vrot.slane %v687, 6
      %v690 = vshrl.u32 %v552, 16
      %v692 = vrot.slane %v690, 6
      %v693 = vshrl.u32 %v553, 16
      %v695 = vrot.slane %v693, 6
      %v696 = vshrl.u32 %v554, 16
      %v698 = vrot.slane %v696, 6
      %v699 = vrot.slane %v539, 6
      %v700 = vrot.slane %v540, 6
      %v701 = vrot.slane %v541, 6
      %v702 = vrot.slane %v542, 6
      %v703 = vrot.slane %v543, 6
      %v704 = vrot.slane %v544, 6
      %v705 = vrot.slane %v545, 6
      %v706 = vrot.slane %v546, 6
      %v707 = vrot.slane %v547, 6
      %v708 = vrot.slane %v548, 6
      %v709 = vrot.slane %v549, 6
      %v710 = vrot.slane %v550, 6
      %v711 = vrot.slane %v551, 6
      %v712 = vrot.slane %v552, 6
      %v713 = vrot.slane %v553, 6
      %v714 = vrot.slane %v554, 6
      %vm731 = vcmask 1040384
      %vm732 = vsmask.f32 256
      %vm733 = vmand %vm731, %vm732
      %v734 = vsel %vm733, %v539, %v556
      %v735 = vsel %vm733, %v540, %v559
      %v736 = vsel %vm733, %v541, %v562
      %v737 = vsel %vm733, %v542, %v565
      %v738 = vsel %vm733, %v543, %v568
      %v739 = vsel %vm733, %v544, %v571
      %v740 = vsel %vm733, %v545, %v574
      %v741 = vsel %vm733, %v546, %v577
      %v742 = vsel %vm733, %v547, %v580
      %v743 = vsel %vm733, %v548, %v583
      %v744 = vsel %vm733, %v549, %v586
      %v745 = vsel %vm733, %v550, %v589
      %v746 = vsel %vm733, %v551, %v592
      %v747 = vsel %vm733, %v552, %v595
      %v748 = vsel %vm733, %v553, %v598
      %v749 = vsel %vm733, %v554, %v601
      %vm750 = vcmask 1040384
      %v753 = vsel %vm750, %v734, %v635
      %v756 = vsel %vm750, %v735, %v636
      %v759 = vsel %vm750, %v736, %v637
      %v762 = vsel %vm750, %v737, %v638
      %v765 = vsel %vm750, %v738, %v639
      %v768 = vsel %vm750, %v739, %v640
      %v771 = vsel %vm750, %v740, %v641
      %v774 = vsel %vm750, %v741, %v642
      %v777 = vsel %vm750, %v742, %v643
      %v780 = vsel %vm750, %v743, %v644
      %v783 = vsel %vm750, %v744, %v645
      %v786 = vsel %vm750, %v745, %v646
      %v789 = vsel %vm750, %v746, %v647
      %v792 = vsel %vm750, %v747, %v648
      %v795 = vsel %vm750, %v748, %v649
      %v798 = vsel %vm750, %v749, %v650
      %v800 = vsel %vm750, %v635, %v653
      %v803 = vsel %vm750, %v636, %v656
      %v806 = vsel %vm750, %v637, %v659
      %v809 = vsel %vm750, %v638, %v662
      %v812 = vsel %vm750, %v639, %v665
      %v815 = vsel %vm750, %v640, %v668
      %v818 = vsel %vm750, %v641, %v671
      %v821 = vsel %vm750, %v642, %v674
      %v824 = vsel %vm750, %v643, %v677
      %v827 = vsel %vm750, %v644, %v680
      %v830 = vsel %vm750, %v645, %v683
      %v833 = vsel %vm750, %v646, %v686
      %v836 = vsel %vm750, %v647, %v689
      %v839 = vsel %vm750, %v648, %v692
      %v842 = vsel %vm750, %v649, %v695
      %v845 = vsel %vm750, %v650, %v698
      %vm847 = vcmask 1041408
      %vm848 = vsmask.f32 1280
      %vm849 = vmand %vm847, %vm848
      %v850 = vsel %vm849, %v800, %v699
      %v851 = vsel %vm849, %v803, %v700
      %v852 = vsel %vm849, %v806, %v701
      %v853 = vsel %vm849, %v809, %v702
      %v854 = vsel %vm849, %v812, %v703
      %v855 = vsel %vm849, %v815, %v704
      %v856 = vsel %vm849, %v818, %v705
      %v857 = vsel %vm849, %v821, %v706
      %v858 = vsel %vm849, %v824, %v707
      %v859 = vsel %vm849, %v827, %v708
      %v860 = vsel %vm849, %v830, %v709
      %v861 = vsel %vm849, %v833, %v710
      %v862 = vsel %vm849, %v836, %v711
      %v863 = vsel %vm849, %v839, %v712
      %v864 = vsel %vm849, %v842, %v713
      %v865 = vsel %vm849, %v845, %v714
      %vm866 = vsmask.f32 7424
      %v867 = vshrl.u32 %v753, 16
      %v869 = vshll.u32 %v753, 16
      %v871 = vrot.slane %v869, 1
      %v872 = vor.u32 %v867, %v871
      %v874 = vshll.u32 %v850, 16
      %v876 = vrot.slane %v874, 1
      %v877 = vsel %vm866, %v872, %v876
      %v878 = vshrl.u32 %v756, 16
      %v880 = vshll.u32 %v756, 16
      %v882 = vrot.slane %v880, 1
      %v883 = vor.u32 %v878, %v882
      %v885 = vshll.u32 %v851, 16
      %v887 = vrot.slane %v885, 1
      %v888 = vsel %vm866, %v883, %v887
      %v889 = vshrl.u32 %v759, 16
      %v891 = vshll.u32 %v759, 16
      %v893 = vrot.slane %v891, 1
      %v894 = vor.u32 %v889, %v893
      %v896 = vshll.u32 %v852, 16
      %v898 = vrot.slane %v896, 1
      %v899 = vsel %vm866, %v894, %v898
      %v900 = vshrl.u32 %v762, 16
      %v902 = vshll.u32 %v762, 16
      %v904 = vrot.slane %v902, 1
      %v905 = vor.u32 %v900, %v904
      %v907 = vshll.u32 %v853, 16
      %v909 = vrot.slane %v907, 1
      %v910 = vsel %vm866, %v905, %v909
      %v911 = vshrl.u32 %v765, 16
      %v913 = vshll.u32 %v765, 16
      %v915 = vrot.slane %v913, 1
      %v916 = vor.u32 %v911, %v915
      %v918 = vshll.u32 %v854, 16
      %v920 = vrot.slane %v918, 1
      %v921 = vsel %vm866, %v916, %v920
      %v922 = vshrl.u32 %v768, 16
      %v924 = vshll.u32 %v768, 16
      %v926 = vrot.slane %v924, 1
      %v927 = vor.u32 %v922, %v926
      %v929 = vshll.u32 %v855, 16
      %v931 = vrot.slane %v929, 1
      %v932 = vsel %vm866, %v927, %v931
      %v933 = vshrl.u32 %v771, 16
      %v935 = vshll.u32 %v771, 16
      %v937 = vrot.slane %v935, 1
      %v938 = vor.u32 %v933, %v937
      %v940 = vshll.u32 %v856, 16
      %v942 = vrot.slane %v940, 1
      %v943 = vsel %vm866, %v938, %v942
      %v944 = vshrl.u32 %v774, 16
      %v946 = vshll.u32 %v774, 16
      %v948 = vrot.slane %v946, 1
      %v949 = vor.u32 %v944, %v948
      %v951 = vshll.u32 %v857, 16
      %v953 = vrot.slane %v951, 1
      %v954 = vsel %vm866, %v949, %v953
      %v955 = vshrl.u32 %v777, 16
      %v957 = vshll.u32 %v777, 16
      %v959 = vrot.slane %v957, 1
      %v960 = vor.u32 %v955, %v959
      %v962 = vshll.u32 %v858, 16
      %v964 = vrot.slane %v962, 1
      %v965 = vsel %vm866, %v960, %v964
      %v966 = vshrl.u32 %v780, 16
      %v968 = vshll.u32 %v780, 16
      %v970 = vrot.slane %v968, 1
      %v971 = vor.u32 %v966, %v970
      %v973 = vshll.u32 %v859, 16
      %v975 = vrot.slane %v973, 1
      %v976 = vsel %vm866, %v971, %v975
      %v977 = vshrl.u32 %v783, 16
      %v979 = vshll.u32 %v783, 16
      %v981 = vrot.slane %v979, 1
      %v982 = vor.u32 %v977, %v981
      %v984 = vshll.u32 %v860, 16
      %v986 = vrot.slane %v984, 1
      %v987 = vsel %vm866, %v982, %v986
      %v988 = vshrl.u32 %v786, 16
      %v990 = vshll.u32 %v786, 16
      %v992 = vrot.slane %v990, 1
      %v993 = vor.u32 %v988, %v992
      %v995 = vshll.u32 %v861, 16
      %v997 = vrot.slane %v995, 1
      %v998 = vsel %vm866, %v993, %v997
      %v999 = vshrl.u32 %v789, 16
      %v1001 = vshll.u32 %v789, 16
      %v1003 = vrot.slane %v1001, 1
      %v1004 = vor.u32 %v999, %v1003
      %v1006 = vshll.u32 %v862, 16
      %v1008 = vrot.slane %v1006, 1
      %v1009 = vsel %vm866, %v1004, %v1008
      %v1010 = vshrl.u32 %v792, 16
      %v1012 = vshll.u32 %v792, 16
      %v1014 = vrot.slane %v1012, 1
      %v1015 = vor.u32 %v1010, %v1014
      %v1017 = vshll.u32 %v863, 16
      %v1019 = vrot.slane %v1017, 1
      %v1020 = vsel %vm866, %v1015, %v1019
      %1021 = vrot.lane.b32.xlu0 %v877, 8
      %v1022 = vpop.permute.xlu0 %1021
      %1023 = vrot.lane.b32.xlu0 %v888, 8
      %v1024 = vpop.permute.xlu0 %1023
      %1025 = vrot.lane.b32.xlu0 %v899, 8
      %v1026 = vpop.permute.xlu0 %1025
      %1027 = vrot.lane.b32.xlu0 %v910, 8
      %v1028 = vpop.permute.xlu0 %1027
      %1029 = vrot.lane.b32.xlu0 %v921, 8
      %v1030 = vpop.permute.xlu0 %1029
      %1031 = vrot.lane.b32.xlu0 %v932, 8
      %v1032 = vpop.permute.xlu0 %1031
      %1033 = vrot.lane.b32.xlu0 %v943, 8
      %v1034 = vpop.permute.xlu0 %1033
      %1035 = vrot.lane.b32.xlu0 %v954, 8
      %v1036 = vpop.permute.xlu0 %1035
      %1037 = vrot.lane.b32.xlu0 %v965, 8
      %v1038 = vpop.permute.xlu0 %1037
      %1039 = vrot.lane.b32.xlu0 %v976, 8
      %v1040 = vpop.permute.xlu0 %1039
      %1041 = vrot.lane.b32.xlu0 %v987, 8
      %v1042 = vpop.permute.xlu0 %1041
      %1043 = vrot.lane.b32.xlu0 %v998, 8
      %v1044 = vpop.permute.xlu0 %1043
      %1045 = vrot.lane.b32.xlu0 %v1009, 8
      %v1046 = vpop.permute.xlu0 %1045
      %1047 = vrot.lane.b32.xlu0 %v1020, 8
      %v1048 = vpop.permute.xlu0 %1047
      %vm1077 = vcmask 1046528
      %v1078 = vrot.slane %v753, 1
      %v1079 = vrot.slane %v850, 1
      %v1080 = vsel %vm1077, %v1078, %v1079
      %v1081 = vrot.slane %v756, 1
      %v1082 = vrot.slane %v851, 1
      %v1083 = vsel %vm1077, %v1081, %v1082
      %v1084 = vrot.slane %v759, 1
      %v1085 = vrot.slane %v852, 1
      %v1086 = vsel %vm1077, %v1084, %v1085
      %v1087 = vrot.slane %v762, 1
      %v1088 = vrot.slane %v853, 1
      %v1089 = vsel %vm1077, %v1087, %v1088
      %v1090 = vrot.slane %v765, 1
      %v1091 = vrot.slane %v854, 1
      %v1092 = vsel %vm1077, %v1090, %v1091
      %v1093 = vrot.slane %v768, 1
      %v1094 = vrot.slane %v855, 1
      %v1095 = vsel %vm1077, %v1093, %v1094
      %v1096 = vrot.slane %v771, 1
      %v1097 = vrot.slane %v856, 1
      %v1098 = vsel %vm1077, %v1096, %v1097
      %v1099 = vrot.slane %v774, 1
      %v1100 = vrot.slane %v857, 1
      %v1101 = vsel %vm1077, %v1099, %v1100
      %v1102 = vrot.slane %v777, 1
      %v1103 = vrot.slane %v858, 1
      %v1104 = vsel %vm1077, %v1102, %v1103
      %v1105 = vrot.slane %v780, 1
      %v1106 = vrot.slane %v859, 1
      %v1107 = vsel %vm1077, %v1105, %v1106
      %v1108 = vrot.slane %v783, 1
      %v1109 = vrot.slane %v860, 1
      %v1110 = vsel %vm1077, %v1108, %v1109
      %v1111 = vrot.slane %v786, 1
      %v1112 = vrot.slane %v861, 1
      %v1113 = vsel %vm1077, %v1111, %v1112
      %v1114 = vrot.slane %v789, 1
      %v1115 = vrot.slane %v862, 1
      %v1116 = vsel %vm1077, %v1114, %v1115
      %v1117 = vrot.slane %v792, 1
      %v1118 = vrot.slane %v863, 1
      %v1119 = vsel %vm1077, %v1117, %v1118
      %1120 = vrot.lane.b32.xlu0 %v1080, 16
      %v1121 = vpop.permute.xlu0 %1120
      %1122 = vrot.lane.b32.xlu0 %v1083, 16
      %v1123 = vpop.permute.xlu0 %1122
      %1124 = vrot.lane.b32.xlu0 %v1086, 16
      %v1125 = vpop.permute.xlu0 %1124
      %1126 = vrot.lane.b32.xlu0 %v1089, 16
      %v1127 = vpop.permute.xlu0 %1126
      %1128 = vrot.lane.b32.xlu0 %v1092, 16
      %v1129 = vpop.permute.xlu0 %1128
      %1130 = vrot.lane.b32.xlu0 %v1095, 16
      %v1131 = vpop.permute.xlu0 %1130
      %1132 = vrot.lane.b32.xlu0 %v1098, 16
      %v1133 = vpop.permute.xlu0 %1132
      %1134 = vrot.lane.b32.xlu0 %v1101, 16
      %v1135 = vpop.permute.xlu0 %1134
      %1136 = vrot.lane.b32.xlu0 %v1104, 16
      %v1137 = vpop.permute.xlu0 %1136
      %1138 = vrot.lane.b32.xlu0 %v1107, 16
      %v1139 = vpop.permute.xlu0 %1138
      %1140 = vrot.lane.b32.xlu0 %v1110, 16
      %v1141 = vpop.permute.xlu0 %1140
      %1142 = vrot.lane.b32.xlu0 %v1113, 16
      %v1143 = vpop.permute.xlu0 %1142
      %1144 = vrot.lane.b32.xlu0 %v1116, 16
      %v1145 = vpop.permute.xlu0 %1144
      %1146 = vrot.lane.b32.xlu0 %v1119, 16
      %v1147 = vpop.permute.xlu0 %1146
      %vm1148 = vsmask.f32 6400
      %v1149 = vrot.slane %v867, 1
      %v1150 = vrot.slane %v869, 2
      %v1151 = vor.u32 %v1149, %v1150
      %v1152 = vshrl.u32 %v850, 16
      %v1154 = vrot.slane %v1152, 1
      %v1155 = vrot.slane %v874, 2
      %v1156 = vor.u32 %v1154, %v1155
      %v1157 = vsel %vm1148, %v1151, %v1156
      %v1158 = vrot.slane %v878, 1
      %v1159 = vrot.slane %v880, 2
      %v1160 = vor.u32 %v1158, %v1159
      %v1161 = vshrl.u32 %v851, 16
      %v1163 = vrot.slane %v1161, 1
      %v1164 = vrot.slane %v885, 2
      %v1165 = vor.u32 %v1163, %v1164
      %v1166 = vsel %vm1148, %v1160, %v1165
      %v1167 = vrot.slane %v889, 1
      %v1168 = vrot.slane %v891, 2
      %v1169 = vor.u32 %v1167, %v1168
      %v1170 = vshrl.u32 %v852, 16
      %v1172 = vrot.slane %v1170, 1
      %v1173 = vrot.slane %v896, 2
      %v1174 = vor.u32 %v1172, %v1173
      %v1175 = vsel %vm1148, %v1169, %v1174
      %v1176 = vrot.slane %v900, 1
      %v1177 = vrot.slane %v902, 2
      %v1178 = vor.u32 %v1176, %v1177
      %v1179 = vshrl.u32 %v853, 16
      %v1181 = vrot.slane %v1179, 1
      %v1182 = vrot.slane %v907, 2
      %v1183 = vor.u32 %v1181, %v1182
      %v1184 = vsel %vm1148, %v1178, %v1183
      %v1185 = vrot.slane %v911, 1
      %v1186 = vrot.slane %v913, 2
      %v1187 = vor.u32 %v1185, %v1186
      %v1188 = vshrl.u32 %v854, 16
      %v1190 = vrot.slane %v1188, 1
      %v1191 = vrot.slane %v918, 2
      %v1192 = vor.u32 %v1190, %v1191
      %v1193 = vsel %vm1148, %v1187, %v1192
      %v1194 = vrot.slane %v922, 1
      %v1195 = vrot.slane %v924, 2
      %v1196 = vor.u32 %v1194, %v1195
      %v1197 = vshrl.u32 %v855, 16
      %v1199 = vrot.slane %v1197, 1
      %v1200 = vrot.slane %v929, 2
      %v1201 = vor.u32 %v1199, %v1200
      %v1202 = vsel %vm1148, %v1196, %v1201
      %v1203 = vrot.slane %v933, 1
      %v1204 = vrot.slane %v935, 2
      %v1205 = vor.u32 %v1203, %v1204
      %v1206 = vshrl.u32 %v856, 16
      %v1208 = vrot.slane %v1206, 1
      %v1209 = vrot.slane %v940, 2
      %v1210 = vor.u32 %v1208, %v1209
      %v1211 = vsel %vm1148, %v1205, %v1210
      %v1212 = vrot.slane %v944, 1
      %v1213 = vrot.slane %v946, 2
      %v1214 = vor.u32 %v1212, %v1213
      %v1215 = vshrl.u32 %v857, 16
      %v1217 = vrot.slane %v1215, 1
      %v1218 = vrot.slane %v951, 2
      %v1219 = vor.u32 %v1217, %v1218
      %v1220 = vsel %vm1148, %v1214, %v1219
      %v1221 = vrot.slane %v955, 1
      %v1222 = vrot.slane %v957, 2
      %v1223 = vor.u32 %v1221, %v1222
      %v1224 = vshrl.u32 %v858, 16
      %v1226 = vrot.slane %v1224, 1
      %v1227 = vrot.slane %v962, 2
      %v1228 = vor.u32 %v1226, %v1227
      %v1229 = vsel %vm1148, %v1223, %v1228
      %v1230 = vrot.slane %v966, 1
      %v1231 = vrot.slane %v968, 2
      %v1232 = vor.u32 %v1230, %v1231
      %v1233 = vshrl.u32 %v859, 16
      %v1235 = vrot.slane %v1233, 1
      %v1236 = vrot.slane %v973, 2
      %v1237 = vor.u32 %v1235, %v1236
      %v1238 = vsel %vm1148, %v1232, %v1237
      %v1239 = vrot.slane %v977, 1
      %v1240 = vrot.slane %v979, 2
      %v1241 = vor.u32 %v1239, %v1240
      %v1242 = vshrl.u32 %v860, 16
      %v1244 = vrot.slane %v1242, 1
      %v1245 = vrot.slane %v984, 2
      %v1246 = vor.u32 %v1244, %v1245
      %v1247 = vsel %vm1148, %v1241, %v1246
      %v1248 = vrot.slane %v988, 1
      %v1249 = vrot.slane %v990, 2
      %v1250 = vor.u32 %v1248, %v1249
      %v1251 = vshrl.u32 %v861, 16
      %v1253 = vrot.slane %v1251, 1
      %v1254 = vrot.slane %v995, 2
      %v1255 = vor.u32 %v1253, %v1254
      %v1256 = vsel %vm1148, %v1250, %v1255
      %v1257 = vrot.slane %v999, 1
      %v1258 = vrot.slane %v1001, 2
      %v1259 = vor.u32 %v1257, %v1258
      %v1260 = vshrl.u32 %v862, 16
      %v1262 = vrot.slane %v1260, 1
      %v1263 = vrot.slane %v1006, 2
      %v1264 = vor.u32 %v1262, %v1263
      %v1265 = vsel %vm1148, %v1259, %v1264
      %v1266 = vrot.slane %v1010, 1
      %v1267 = vrot.slane %v1012, 2
      %v1268 = vor.u32 %v1266, %v1267
      %v1269 = vshrl.u32 %v863, 16
      %v1271 = vrot.slane %v1269, 1
      %v1272 = vrot.slane %v1017, 2
      %v1273 = vor.u32 %v1271, %v1272
      %v1274 = vsel %vm1148, %v1268, %v1273
      %1275 = vrot.lane.b32.xlu0 %v1157, 24
      %v1276 = vpop.permute.xlu0 %1275
      %1277 = vrot.lane.b32.xlu0 %v1166, 24
      %v1278 = vpop.permute.xlu0 %1277
      %1279 = vrot.lane.b32.xlu0 %v1175, 24
      %v1280 = vpop.permute.xlu0 %1279
      %1281 = vrot.lane.b32.xlu0 %v1184, 24
      %v1282 = vpop.permute.xlu0 %1281
      %1283 = vrot.lane.b32.xlu0 %v1193, 24
      %v1284 = vpop.permute.xlu0 %1283
      %1285 = vrot.lane.b32.xlu0 %v1202, 24
      %v1286 = vpop.permute.xlu0 %1285
      %1287 = vrot.lane.b32.xlu0 %v1211, 24
      %v1288 = vpop.permute.xlu0 %1287
      %1289 = vrot.lane.b32.xlu0 %v1220, 24
      %v1290 = vpop.permute.xlu0 %1289
      %1291 = vrot.lane.b32.xlu0 %v1229, 24
      %v1292 = vpop.permute.xlu0 %1291
      %1293 = vrot.lane.b32.xlu0 %v1238, 24
      %v1294 = vpop.permute.xlu0 %1293
      %1295 = vrot.lane.b32.xlu0 %v1247, 24
      %v1296 = vpop.permute.xlu0 %1295
      %1297 = vrot.lane.b32.xlu0 %v1256, 24
      %v1298 = vpop.permute.xlu0 %1297
      %1299 = vrot.lane.b32.xlu0 %v1265, 24
      %v1300 = vpop.permute.xlu0 %1299
      %1301 = vrot.lane.b32.xlu0 %v1274, 24
      %v1302 = vpop.permute.xlu0 %1301
      %vm1303 = vcmask 1045504
      %v1304 = vrot.slane %v753, 2
      %v1305 = vrot.slane %v850, 2
      %v1306 = vsel %vm1303, %v1304, %v1305
      %v1307 = vrot.slane %v756, 2
      %v1308 = vrot.slane %v851, 2
      %v1309 = vsel %vm1303, %v1307, %v1308
      %v1310 = vrot.slane %v759, 2
      %v1311 = vrot.slane %v852, 2
      %v1312 = vsel %vm1303, %v1310, %v1311
      %v1313 = vrot.slane %v762, 2
      %v1314 = vrot.slane %v853, 2
      %v1315 = vsel %vm1303, %v1313, %v1314
      %v1316 = vrot.slane %v765, 2
      %v1317 = vrot.slane %v854, 2
      %v1318 = vsel %vm1303, %v1316, %v1317
      %v1319 = vrot.slane %v768, 2
      %v1320 = vrot.slane %v855, 2
      %v1321 = vsel %vm1303, %v1319, %v1320
      %v1322 = vrot.slane %v771, 2
      %v1323 = vrot.slane %v856, 2
      %v1324 = vsel %vm1303, %v1322, %v1323
      %v1325 = vrot.slane %v774, 2
      %v1326 = vrot.slane %v857, 2
      %v1327 = vsel %vm1303, %v1325, %v1326
      %v1328 = vrot.slane %v777, 2
      %v1329 = vrot.slane %v858, 2
      %v1330 = vsel %vm1303, %v1328, %v1329
      %v1331 = vrot.slane %v780, 2
      %v1332 = vrot.slane %v859, 2
      %v1333 = vsel %vm1303, %v1331, %v1332
      %v1334 = vrot.slane %v783, 2
      %v1335 = vrot.slane %v860, 2
      %v1336 = vsel %vm1303, %v1334, %v1335
      %v1337 = vrot.slane %v786, 2
      %v1338 = vrot.slane %v861, 2
      %v1339 = vsel %vm1303, %v1337, %v1338
      %v1340 = vrot.slane %v789, 2
      %v1341 = vrot.slane %v862, 2
      %v1342 = vsel %vm1303, %v1340, %v1341
      %v1343 = vrot.slane %v792, 2
      %v1344 = vrot.slane %v863, 2
      %v1345 = vsel %vm1303, %v1343, %v1344
      %1346 = vrot.lane.b32.xlu0 %v1306, 32
      %v1347 = vpop.permute.xlu0 %1346
      %1348 = vrot.lane.b32.xlu0 %v1309, 32
      %v1349 = vpop.permute.xlu0 %1348
      %1350 = vrot.lane.b32.xlu0 %v1312, 32
      %v1351 = vpop.permute.xlu0 %1350
      %1352 = vrot.lane.b32.xlu0 %v1315, 32
      %v1353 = vpop.permute.xlu0 %1352
      %1354 = vrot.lane.b32.xlu0 %v1318, 32
      %v1355 = vpop.permute.xlu0 %1354
      %1356 = vrot.lane.b32.xlu0 %v1321, 32
      %v1357 = vpop.permute.xlu0 %1356
      %1358 = vrot.lane.b32.xlu0 %v1324, 32
      %v1359 = vpop.permute.xlu0 %1358
      %1360 = vrot.lane.b32.xlu0 %v1327, 32
      %v1361 = vpop.permute.xlu0 %1360
      %1362 = vrot.lane.b32.xlu0 %v1330, 32
      %v1363 = vpop.permute.xlu0 %1362
      %1364 = vrot.lane.b32.xlu0 %v1333, 32
      %v1365 = vpop.permute.xlu0 %1364
      %1366 = vrot.lane.b32.xlu0 %v1336, 32
      %v1367 = vpop.permute.xlu0 %1366
      %1368 = vrot.lane.b32.xlu0 %v1339, 32
      %v1369 = vpop.permute.xlu0 %1368
      %1370 = vrot.lane.b32.xlu0 %v1342, 32
      %v1371 = vpop.permute.xlu0 %1370
      %1372 = vrot.lane.b32.xlu0 %v1345, 32
      %v1373 = vpop.permute.xlu0 %1372
      %1375 = vrot.lane.b32.xlu0 %v753, 40
      %v1376 = vpop.permute.xlu0 %1375
      %1377 = vrot.lane.b32.xlu0 %v756, 40
      %v1378 = vpop.permute.xlu0 %1377
      %1379 = vrot.lane.b32.xlu0 %v759, 40
      %v1380 = vpop.permute.xlu0 %1379
      %1381 = vrot.lane.b32.xlu0 %v762, 40
      %v1382 = vpop.permute.xlu0 %1381
      %1383 = vrot.lane.b32.xlu0 %v765, 40
      %v1384 = vpop.permute.xlu0 %1383
      %1385 = vrot.lane.b32.xlu0 %v768, 40
      %v1386 = vpop.permute.xlu0 %1385
      %1387 = vrot.lane.b32.xlu0 %v771, 40
      %v1388 = vpop.permute.xlu0 %1387
      %1389 = vrot.lane.b32.xlu0 %v774, 40
      %v1390 = vpop.permute.xlu0 %1389
      %1391 = vrot.lane.b32.xlu0 %v777, 40
      %v1392 = vpop.permute.xlu0 %1391
      %1393 = vrot.lane.b32.xlu0 %v780, 40
      %v1394 = vpop.permute.xlu0 %1393
      %1395 = vrot.lane.b32.xlu0 %v783, 40
      %v1396 = vpop.permute.xlu0 %1395
      %1397 = vrot.lane.b32.xlu0 %v786, 40
      %v1398 = vpop.permute.xlu0 %1397
      %1399 = vrot.lane.b32.xlu0 %v789, 40
      %v1400 = vpop.permute.xlu0 %1399
      %1401 = vrot.lane.b32.xlu0 %v792, 40
      %v1402 = vpop.permute.xlu0 %1401
      %1403 = vrot.lane.b32.xlu0 %v795, 40
      %v1404 = vpop.permute.xlu0 %1403
      %v1405 = vshrl.u32 %v795, 16
      %v1407 = vshll.u32 %v795, 16
      %v1409 = vrot.slane %v1407, 1
      %v1410 = vor.u32 %v1405, %v1409
      %v1412 = vshll.u32 %v864, 16
      %v1414 = vrot.slane %v1412, 1
      %v1415 = vsel %vm866, %v1410, %v1414
      %1416 = vrot.lane.b32.xlu0 %v877, 48
      %v1417 = vpop.permute.xlu0 %1416
      %1418 = vrot.lane.b32.xlu0 %v888, 48
      %v1419 = vpop.permute.xlu0 %1418
      %1420 = vrot.lane.b32.xlu0 %v899, 48
      %v1421 = vpop.permute.xlu0 %1420
      %1422 = vrot.lane.b32.xlu0 %v910, 48
      %v1423 = vpop.permute.xlu0 %1422
      %1424 = vrot.lane.b32.xlu0 %v921, 48
      %v1425 = vpop.permute.xlu0 %1424
      %1426 = vrot.lane.b32.xlu0 %v932, 48
      %v1427 = vpop.permute.xlu0 %1426
      %1428 = vrot.lane.b32.xlu0 %v943, 48
      %v1429 = vpop.permute.xlu0 %1428
      %1430 = vrot.lane.b32.xlu0 %v954, 48
      %v1431 = vpop.permute.xlu0 %1430
      %1432 = vrot.lane.b32.xlu0 %v965, 48
      %v1433 = vpop.permute.xlu0 %1432
      %1434 = vrot.lane.b32.xlu0 %v976, 48
      %v1435 = vpop.permute.xlu0 %1434
      %1436 = vrot.lane.b32.xlu0 %v987, 48
      %v1437 = vpop.permute.xlu0 %1436
      %1438 = vrot.lane.b32.xlu0 %v998, 48
      %v1439 = vpop.permute.xlu0 %1438
      %1440 = vrot.lane.b32.xlu0 %v1009, 48
      %v1441 = vpop.permute.xlu0 %1440
      %1442 = vrot.lane.b32.xlu0 %v1020, 48
      %v1443 = vpop.permute.xlu0 %1442
      %1444 = vrot.lane.b32.xlu0 %v1415, 48
      %v1445 = vpop.permute.xlu0 %1444
      %v1447 = vrot.slane %v795, 1
      %v1448 = vrot.slane %v864, 1
      %v1449 = vsel %vm1077, %v1447, %v1448
      %1450 = vrot.lane.b32.xlu0 %v1080, 56
      %v1451 = vpop.permute.xlu0 %1450
      %1452 = vrot.lane.b32.xlu0 %v1083, 56
      %v1453 = vpop.permute.xlu0 %1452
      %1454 = vrot.lane.b32.xlu0 %v1086, 56
      %v1455 = vpop.permute.xlu0 %1454
      %1456 = vrot.lane.b32.xlu0 %v1089, 56
      %v1457 = vpop.permute.xlu0 %1456
      %1458 = vrot.lane.b32.xlu0 %v1092, 56
      %v1459 = vpop.permute.xlu0 %1458
      %1460 = vrot.lane.b32.xlu0 %v1095, 56
      %v1461 = vpop.permute.xlu0 %1460
      %1462 = vrot.lane.b32.xlu0 %v1098, 56
      %v1463 = vpop.permute.xlu0 %1462
      %1464 = vrot.lane.b32.xlu0 %v1101, 56
      %v1465 = vpop.permute.xlu0 %1464
      %1466 = vrot.lane.b32.xlu0 %v1104, 56
      %v1467 = vpop.permute.xlu0 %1466
      %1468 = vrot.lane.b32.xlu0 %v1107, 56
      %v1469 = vpop.permute.xlu0 %1468
      %1470 = vrot.lane.b32.xlu0 %v1110, 56
      %v1471 = vpop.permute.xlu0 %1470
      %1472 = vrot.lane.b32.xlu0 %v1113, 56
      %v1473 = vpop.permute.xlu0 %1472
      %1474 = vrot.lane.b32.xlu0 %v1116, 56
      %v1475 = vpop.permute.xlu0 %1474
      %1476 = vrot.lane.b32.xlu0 %v1119, 56
      %v1477 = vpop.permute.xlu0 %1476
      %1478 = vrot.lane.b32.xlu0 %v1449, 56
      %v1479 = vpop.permute.xlu0 %1478
      %v1480 = vrot.slane %v1405, 1
      %v1481 = vrot.slane %v1407, 2
      %v1482 = vor.u32 %v1480, %v1481
      %v1483 = vshrl.u32 %v864, 16
      %v1485 = vrot.slane %v1483, 1
      %v1486 = vrot.slane %v1412, 2
      %v1487 = vor.u32 %v1485, %v1486
      %v1488 = vsel %vm1148, %v1482, %v1487
      %1489 = vrot.lane.b32.xlu0 %v1157, 64
      %v1490 = vpop.permute.xlu0 %1489
      %1491 = vrot.lane.b32.xlu0 %v1166, 64
      %v1492 = vpop.permute.xlu0 %1491
      %1493 = vrot.lane.b32.xlu0 %v1175, 64
      %v1494 = vpop.permute.xlu0 %1493
      %1495 = vrot.lane.b32.xlu0 %v1184, 64
      %v1496 = vpop.permute.xlu0 %1495
      %1497 = vrot.lane.b32.xlu0 %v1193, 64
      %v1498 = vpop.permute.xlu0 %1497
      %1499 = vrot.lane.b32.xlu0 %v1202, 64
      %v1500 = vpop.permute.xlu0 %1499
      %1501 = vrot.lane.b32.xlu0 %v1211, 64
      %v1502 = vpop.permute.xlu0 %1501
      %1503 = vrot.lane.b32.xlu0 %v1220, 64
      %v1504 = vpop.permute.xlu0 %1503
      %1505 = vrot.lane.b32.xlu0 %v1229, 64
      %v1506 = vpop.permute.xlu0 %1505
      %1507 = vrot.lane.b32.xlu0 %v1238, 64
      %v1508 = vpop.permute.xlu0 %1507
      %1509 = vrot.lane.b32.xlu0 %v1247, 64
      %v1510 = vpop.permute.xlu0 %1509
      %1511 = vrot.lane.b32.xlu0 %v1256, 64
      %v1512 = vpop.permute.xlu0 %1511
      %1513 = vrot.lane.b32.xlu0 %v1265, 64
      %v1514 = vpop.permute.xlu0 %1513
      %1515 = vrot.lane.b32.xlu0 %v1274, 64
      %v1516 = vpop.permute.xlu0 %1515
      %1517 = vrot.lane.b32.xlu0 %v1488, 64
      %v1518 = vpop.permute.xlu0 %1517
      %v1519 = vrot.slane %v795, 2
      %v1520 = vrot.slane %v864, 2
      %v1521 = vsel %vm1303, %v1519, %v1520
      %1522 = vrot.lane.b32.xlu0 %v1306, 72
      %v1523 = vpop.permute.xlu0 %1522
      %1524 = vrot.lane.b32.xlu0 %v1309, 72
      %v1525 = vpop.permute.xlu0 %1524
      %1526 = vrot.lane.b32.xlu0 %v1312, 72
      %v1527 = vpop.permute.xlu0 %1526
      %1528 = vrot.lane.b32.xlu0 %v1315, 72
      %v1529 = vpop.permute.xlu0 %1528
      %1530 = vrot.lane.b32.xlu0 %v1318, 72
      %v1531 = vpop.permute.xlu0 %1530
      %1532 = vrot.lane.b32.xlu0 %v1321, 72
      %v1533 = vpop.permute.xlu0 %1532
      %1534 = vrot.lane.b32.xlu0 %v1324, 72
      %v1535 = vpop.permute.xlu0 %1534
      %1536 = vrot.lane.b32.xlu0 %v1327, 72
      %v1537 = vpop.permute.xlu0 %1536
      %1538 = vrot.lane.b32.xlu0 %v1330, 72
      %v1539 = vpop.permute.xlu0 %1538
      %1540 = vrot.lane.b32.xlu0 %v1333, 72
      %v1541 = vpop.permute.xlu0 %1540
      %1542 = vrot.lane.b32.xlu0 %v1336, 72
      %v1543 = vpop.permute.xlu0 %1542
      %1544 = vrot.lane.b32.xlu0 %v1339, 72
      %v1545 = vpop.permute.xlu0 %1544
      %1546 = vrot.lane.b32.xlu0 %v1342, 72
      %v1547 = vpop.permute.xlu0 %1546
      %1548 = vrot.lane.b32.xlu0 %v1345, 72
      %v1549 = vpop.permute.xlu0 %1548
      %1550 = vrot.lane.b32.xlu0 %v1521, 72
      %v1551 = vpop.permute.xlu0 %1550
      %1553 = vrot.lane.b32.xlu0 %v753, 80
      %v1554 = vpop.permute.xlu0 %1553
      %1555 = vrot.lane.b32.xlu0 %v756, 80
      %v1556 = vpop.permute.xlu0 %1555
      %1557 = vrot.lane.b32.xlu0 %v759, 80
      %v1558 = vpop.permute.xlu0 %1557
      %1559 = vrot.lane.b32.xlu0 %v762, 80
      %v1560 = vpop.permute.xlu0 %1559
      %1561 = vrot.lane.b32.xlu0 %v765, 80
      %v1562 = vpop.permute.xlu0 %1561
      %1563 = vrot.lane.b32.xlu0 %v768, 80
      %v1564 = vpop.permute.xlu0 %1563
      %1565 = vrot.lane.b32.xlu0 %v771, 80
      %v1566 = vpop.permute.xlu0 %1565
      %1567 = vrot.lane.b32.xlu0 %v774, 80
      %v1568 = vpop.permute.xlu0 %1567
      %1569 = vrot.lane.b32.xlu0 %v777, 80
      %v1570 = vpop.permute.xlu0 %1569
      %1571 = vrot.lane.b32.xlu0 %v780, 80
      %v1572 = vpop.permute.xlu0 %1571
      %1573 = vrot.lane.b32.xlu0 %v783, 80
      %v1574 = vpop.permute.xlu0 %1573
      %1575 = vrot.lane.b32.xlu0 %v786, 80
      %v1576 = vpop.permute.xlu0 %1575
      %1577 = vrot.lane.b32.xlu0 %v789, 80
      %v1578 = vpop.permute.xlu0 %1577
      %1579 = vrot.lane.b32.xlu0 %v792, 80
      %v1580 = vpop.permute.xlu0 %1579
      %1581 = vrot.lane.b32.xlu0 %v795, 80
      %v1582 = vpop.permute.xlu0 %1581
      %1583 = vrot.lane.b32.xlu0 %v798, 80
      %v1584 = vpop.permute.xlu0 %1583
      %v1585 = vshrl.u32 %v798, 16
      %v1587 = vshll.u32 %v798, 16
      %v1589 = vrot.slane %v1587, 1
      %v1590 = vor.u32 %v1585, %v1589
      %v1592 = vshll.u32 %v865, 16
      %v1594 = vrot.slane %v1592, 1
      %v1595 = vsel %vm866, %v1590, %v1594
      %1596 = vrot.lane.b32.xlu0 %v877, 88
      %v1597 = vpop.permute.xlu0 %1596
      %1598 = vrot.lane.b32.xlu0 %v888, 88
      %v1599 = vpop.permute.xlu0 %1598
      %1600 = vrot.lane.b32.xlu0 %v899, 88
      %v1601 = vpop.permute.xlu0 %1600
      %1602 = vrot.lane.b32.xlu0 %v910, 88
      %v1603 = vpop.permute.xlu0 %1602
      %1604 = vrot.lane.b32.xlu0 %v921, 88
      %v1605 = vpop.permute.xlu0 %1604
      %1606 = vrot.lane.b32.xlu0 %v932, 88
      %v1607 = vpop.permute.xlu0 %1606
      %1608 = vrot.lane.b32.xlu0 %v943, 88
      %v1609 = vpop.permute.xlu0 %1608
      %1610 = vrot.lane.b32.xlu0 %v954, 88
      %v1611 = vpop.permute.xlu0 %1610
      %1612 = vrot.lane.b32.xlu0 %v965, 88
      %v1613 = vpop.permute.xlu0 %1612
      %1614 = vrot.lane.b32.xlu0 %v976, 88
      %v1615 = vpop.permute.xlu0 %1614
      %1616 = vrot.lane.b32.xlu0 %v987, 88
      %v1617 = vpop.permute.xlu0 %1616
      %1618 = vrot.lane.b32.xlu0 %v998, 88
      %v1619 = vpop.permute.xlu0 %1618
      %1620 = vrot.lane.b32.xlu0 %v1009, 88
      %v1621 = vpop.permute.xlu0 %1620
      %1622 = vrot.lane.b32.xlu0 %v1020, 88
      %v1623 = vpop.permute.xlu0 %1622
      %1624 = vrot.lane.b32.xlu0 %v1415, 88
      %v1625 = vpop.permute.xlu0 %1624
      %1626 = vrot.lane.b32.xlu0 %v1595, 88
      %v1627 = vpop.permute.xlu0 %1626
      %v1629 = vrot.slane %v798, 1
      %v1630 = vrot.slane %v865, 1
      %v1631 = vsel %vm1077, %v1629, %v1630
      %1632 = vrot.lane.b32.xlu0 %v1080, 96
      %v1633 = vpop.permute.xlu0 %1632
      %1634 = vrot.lane.b32.xlu0 %v1083, 96
      %v1635 = vpop.permute.xlu0 %1634
      %1636 = vrot.lane.b32.xlu0 %v1086, 96
      %v1637 = vpop.permute.xlu0 %1636
      %1638 = vrot.lane.b32.xlu0 %v1089, 96
      %v1639 = vpop.permute.xlu0 %1638
      %1640 = vrot.lane.b32.xlu0 %v1092, 96
      %v1641 = vpop.permute.xlu0 %1640
      %1642 = vrot.lane.b32.xlu0 %v1095, 96
      %v1643 = vpop.permute.xlu0 %1642
      %1644 = vrot.lane.b32.xlu0 %v1098, 96
      %v1645 = vpop.permute.xlu0 %1644
      %1646 = vrot.lane.b32.xlu0 %v1101, 96
      %v1647 = vpop.permute.xlu0 %1646
      %1648 = vrot.lane.b32.xlu0 %v1104, 96
      %v1649 = vpop.permute.xlu0 %1648
      %1650 = vrot.lane.b32.xlu0 %v1107, 96
      %v1651 = vpop.permute.xlu0 %1650
      %1652 = vrot.lane.b32.xlu0 %v1110, 96
      %v1653 = vpop.permute.xlu0 %1652
      %1654 = vrot.lane.b32.xlu0 %v1113, 96
      %v1655 = vpop.permute.xlu0 %1654
      %1656 = vrot.lane.b32.xlu0 %v1116, 96
      %v1657 = vpop.permute.xlu0 %1656
      %1658 = vrot.lane.b32.xlu0 %v1119, 96
      %v1659 = vpop.permute.xlu0 %1658
      %1660 = vrot.lane.b32.xlu0 %v1449, 96
      %v1661 = vpop.permute.xlu0 %1660
      %1662 = vrot.lane.b32.xlu0 %v1631, 96
      %v1663 = vpop.permute.xlu0 %1662
      %v1664 = vrot.slane %v1585, 1
      %v1665 = vrot.slane %v1587, 2
      %v1666 = vor.u32 %v1664, %v1665
      %v1667 = vshrl.u32 %v865, 16
      %v1669 = vrot.slane %v1667, 1
      %v1670 = vrot.slane %v1592, 2
      %v1671 = vor.u32 %v1669, %v1670
      %v1672 = vsel %vm1148, %v1666, %v1671
      %1673 = vrot.lane.b32.xlu0 %v1157, 104
      %v1674 = vpop.permute.xlu0 %1673
      %1675 = vrot.lane.b32.xlu0 %v1166, 104
      %v1676 = vpop.permute.xlu0 %1675
      %1677 = vrot.lane.b32.xlu0 %v1175, 104
      %v1678 = vpop.permute.xlu0 %1677
      %1679 = vrot.lane.b32.xlu0 %v1184, 104
      %v1680 = vpop.permute.xlu0 %1679
      %1681 = vrot.lane.b32.xlu0 %v1193, 104
      %v1682 = vpop.permute.xlu0 %1681
      %1683 = vrot.lane.b32.xlu0 %v1202, 104
      %v1684 = vpop.permute.xlu0 %1683
      %1685 = vrot.lane.b32.xlu0 %v1211, 104
      %v1686 = vpop.permute.xlu0 %1685
      %1687 = vrot.lane.b32.xlu0 %v1220, 104
      %v1688 = vpop.permute.xlu0 %1687
      %1689 = vrot.lane.b32.xlu0 %v1229, 104
      %v1690 = vpop.permute.xlu0 %1689
      %1691 = vrot.lane.b32.xlu0 %v1238, 104
      %v1692 = vpop.permute.xlu0 %1691
      %1693 = vrot.lane.b32.xlu0 %v1247, 104
      %v1694 = vpop.permute.xlu0 %1693
      %1695 = vrot.lane.b32.xlu0 %v1256, 104
      %v1696 = vpop.permute.xlu0 %1695
      %1697 = vrot.lane.b32.xlu0 %v1265, 104
      %v1698 = vpop.permute.xlu0 %1697
      %1699 = vrot.lane.b32.xlu0 %v1274, 104
      %v1700 = vpop.permute.xlu0 %1699
      %1701 = vrot.lane.b32.xlu0 %v1488, 104
      %v1702 = vpop.permute.xlu0 %1701
      %1703 = vrot.lane.b32.xlu0 %v1672, 104
      %v1704 = vpop.permute.xlu0 %1703
      %v1705 = vrot.slane %v798, 2
      %v1706 = vrot.slane %v865, 2
      %v1707 = vsel %vm1303, %v1705, %v1706
      %1708 = vrot.lane.b32.xlu0 %v1306, 112
      %v1709 = vpop.permute.xlu0 %1708
      %1710 = vrot.lane.b32.xlu0 %v1309, 112
      %v1711 = vpop.permute.xlu0 %1710
      %1712 = vrot.lane.b32.xlu0 %v1312, 112
      %v1713 = vpop.permute.xlu0 %1712
      %1714 = vrot.lane.b32.xlu0 %v1315, 112
      %v1715 = vpop.permute.xlu0 %1714
      %1716 = vrot.lane.b32.xlu0 %v1318, 112
      %v1717 = vpop.permute.xlu0 %1716
      %1718 = vrot.lane.b32.xlu0 %v1321, 112
      %v1719 = vpop.permute.xlu0 %1718
      %1720 = vrot.lane.b32.xlu0 %v1324, 112
      %v1721 = vpop.permute.xlu0 %1720
      %1722 = vrot.lane.b32.xlu0 %v1327, 112
      %v1723 = vpop.permute.xlu0 %1722
      %1724 = vrot.lane.b32.xlu0 %v1330, 112
      %v1725 = vpop.permute.xlu0 %1724
      %1726 = vrot.lane.b32.xlu0 %v1333, 112
      %v1727 = vpop.permute.xlu0 %1726
      %1728 = vrot.lane.b32.xlu0 %v1336, 112
      %v1729 = vpop.permute.xlu0 %1728
      %1730 = vrot.lane.b32.xlu0 %v1339, 112
      %v1731 = vpop.permute.xlu0 %1730
      %1732 = vrot.lane.b32.xlu0 %v1342, 112
      %v1733 = vpop.permute.xlu0 %1732
      %1734 = vrot.lane.b32.xlu0 %v1345, 112
      %v1735 = vpop.permute.xlu0 %1734
      %1736 = vrot.lane.b32.xlu0 %v1521, 112
      %v1737 = vpop.permute.xlu0 %1736
      %1738 = vrot.lane.b32.xlu0 %v1707, 112
      %v1739 = vpop.permute.xlu0 %1738
      %1740 = vrot.lane.b32.xlu0 %v756, 120
      %v1741 = vpop.permute.xlu0 %1740
      %1742 = vrot.lane.b32.xlu0 %v759, 120
      %v1743 = vpop.permute.xlu0 %1742
      %1744 = vrot.lane.b32.xlu0 %v762, 120
      %v1745 = vpop.permute.xlu0 %1744
      %1746 = vrot.lane.b32.xlu0 %v765, 120
      %v1747 = vpop.permute.xlu0 %1746
      %1748 = vrot.lane.b32.xlu0 %v768, 120
      %v1749 = vpop.permute.xlu0 %1748
      %1750 = vrot.lane.b32.xlu0 %v771, 120
      %v1751 = vpop.permute.xlu0 %1750
      %1752 = vrot.lane.b32.xlu0 %v774, 120
      %v1753 = vpop.permute.xlu0 %1752
      %1754 = vrot.lane.b32.xlu0 %v777, 120
      %v1755 = vpop.permute.xlu0 %1754
      %1756 = vrot.lane.b32.xlu0 %v780, 120
      %v1757 = vpop.permute.xlu0 %1756
      %1758 = vrot.lane.b32.xlu0 %v783, 120
      %v1759 = vpop.permute.xlu0 %1758
      %1760 = vrot.lane.b32.xlu0 %v786, 120
      %v1761 = vpop.permute.xlu0 %1760
      %1762 = vrot.lane.b32.xlu0 %v789, 120
      %v1763 = vpop.permute.xlu0 %1762
      %1764 = vrot.lane.b32.xlu0 %v792, 120
      %v1765 = vpop.permute.xlu0 %1764
      %1766 = vrot.lane.b32.xlu0 %v795, 120
      %v1767 = vpop.permute.xlu0 %1766
      %1768 = vrot.lane.b32.xlu0 %v798, 120
      %v1769 = vpop.permute.xlu0 %1768
      %vm1770 = vcmask 64512
      %v1772 = vsel %vm1770, %v753, %v1022
      %v1774 = vsel %vm1770, %v756, %v1024
      %v1776 = vsel %vm1770, %v759, %v1026
      %v1778 = vsel %vm1770, %v762, %v1028
      %v1780 = vsel %vm1770, %v765, %v1030
      %v1782 = vsel %vm1770, %v768, %v1032
      %v1784 = vsel %vm1770, %v771, %v1034
      %v1786 = vsel %vm1770, %v774, %v1036
      %v1788 = vsel %vm1770, %v777, %v1038
      %v1790 = vsel %vm1770, %v780, %v1040
      %v1792 = vsel %vm1770, %v783, %v1042
      %v1794 = vsel %vm1770, %v786, %v1044
      %v1796 = vsel %vm1770, %v789, %v1046
      %v1798 = vsel %vm1770, %v792, %v1048
      %vm1799 = vcmask 130048
      %v1801 = vsel %vm1799, %v1772, %v1121
      %v1803 = vsel %vm1799, %v1774, %v1123
      %v1805 = vsel %vm1799, %v1776, %v1125
      %v1807 = vsel %vm1799, %v1778, %v1127
      %v1809 = vsel %vm1799, %v1780, %v1129
      %v1811 = vsel %vm1799, %v1782, %v1131
      %v1813 = vsel %vm1799, %v1784, %v1133
      %v1815 = vsel %vm1799, %v1786, %v1135
      %v1817 = vsel %vm1799, %v1788, %v1137
      %v1819 = vsel %vm1799, %v1790, %v1139
      %v1821 = vsel %vm1799, %v1792, %v1141
      %v1823 = vsel %vm1799, %v1794, %v1143
      %v1825 = vsel %vm1799, %v1796, %v1145
      %v1827 = vsel %vm1799, %v1798, %v1147
      %vm1828 = vcmask 195584
      %v1830 = vsel %vm1828, %v1801, %v1276
      %v1832 = vsel %vm1828, %v1803, %v1278
      %v1834 = vsel %vm1828, %v1805, %v1280
      %v1836 = vsel %vm1828, %v1807, %v1282
      %v1838 = vsel %vm1828, %v1809, %v1284
      %v1840 = vsel %vm1828, %v1811, %v1286
      %v1842 = vsel %vm1828, %v1813, %v1288
      %v1844 = vsel %vm1828, %v1815, %v1290
      %v1846 = vsel %vm1828, %v1817, %v1292
      %v1848 = vsel %vm1828, %v1819, %v1294
      %v1850 = vsel %vm1828, %v1821, %v1296
      %v1852 = vsel %vm1828, %v1823, %v1298
      %v1854 = vsel %vm1828, %v1825, %v1300
      %v1856 = vsel %vm1828, %v1827, %v1302
      %vm1857 = vcmask 261120
      %v1859 = vsel %vm1857, %v1830, %v1347
      %v1861 = vsel %vm1857, %v1832, %v1349
      %v1863 = vsel %vm1857, %v1834, %v1351
      %v1865 = vsel %vm1857, %v1836, %v1353
      %v1867 = vsel %vm1857, %v1838, %v1355
      %v1869 = vsel %vm1857, %v1840, %v1357
      %v1871 = vsel %vm1857, %v1842, %v1359
      %v1873 = vsel %vm1857, %v1844, %v1361
      %v1875 = vsel %vm1857, %v1846, %v1363
      %v1877 = vsel %vm1857, %v1848, %v1365
      %v1879 = vsel %vm1857, %v1850, %v1367
      %v1881 = vsel %vm1857, %v1852, %v1369
      %v1883 = vsel %vm1857, %v1854, %v1371
      %v1885 = vsel %vm1857, %v1856, %v1373
      %vm1886 = vcmask 326656
      %v1888 = vsel %vm1886, %v1859, %v1376
      %v1890 = vsel %vm1886, %v1859, %v1378
      %v1892 = vsel %vm1886, %v1861, %v1380
      %v1894 = vsel %vm1886, %v1863, %v1382
      %v1896 = vsel %vm1886, %v1865, %v1384
      %v1898 = vsel %vm1886, %v1867, %v1386
      %v1900 = vsel %vm1886, %v1869, %v1388
      %v1902 = vsel %vm1886, %v1871, %v1390
      %v1904 = vsel %vm1886, %v1873, %v1392
      %v1906 = vsel %vm1886, %v1875, %v1394
      %v1908 = vsel %vm1886, %v1877, %v1396
      %v1910 = vsel %vm1886, %v1879, %v1398
      %v1912 = vsel %vm1886, %v1881, %v1400
      %v1914 = vsel %vm1886, %v1883, %v1402
      %v1916 = vsel %vm1886, %v1885, %v1404
      %vm1917 = vcmask 392192
      %v1919 = vsel %vm1917, %v1888, %v1417
      %v1921 = vsel %vm1917, %v1890, %v1419
      %v1923 = vsel %vm1917, %v1892, %v1421
      %v1925 = vsel %vm1917, %v1894, %v1423
      %v1927 = vsel %vm1917, %v1896, %v1425
      %v1929 = vsel %vm1917, %v1898, %v1427
      %v1931 = vsel %vm1917, %v1900, %v1429
      %v1933 = vsel %vm1917, %v1902, %v1431
      %v1935 = vsel %vm1917, %v1904, %v1433
      %v1937 = vsel %vm1917, %v1906, %v1435
      %v1939 = vsel %vm1917, %v1908, %v1437
      %v1941 = vsel %vm1917, %v1910, %v1439
      %v1943 = vsel %vm1917, %v1912, %v1441
      %v1945 = vsel %vm1917, %v1914, %v1443
      %v1947 = vsel %vm1917, %v1916, %v1445
      %vm1948 = vcmask 457728
      %v1950 = vsel %vm1948, %v1919, %v1451
      %v1952 = vsel %vm1948, %v1921, %v1453
      %v1954 = vsel %vm1948, %v1923, %v1455
      %v1956 = vsel %vm1948, %v1925, %v1457
      %v1958 = vsel %vm1948, %v1927, %v1459
      %v1960 = vsel %vm1948, %v1929, %v1461
      %v1962 = vsel %vm1948, %v1931, %v1463
      %v1964 = vsel %vm1948, %v1933, %v1465
      %v1966 = vsel %vm1948, %v1935, %v1467
      %v1968 = vsel %vm1948, %v1937, %v1469
      %v1970 = vsel %vm1948, %v1939, %v1471
      %v1972 = vsel %vm1948, %v1941, %v1473
      %v1974 = vsel %vm1948, %v1943, %v1475
      %v1976 = vsel %vm1948, %v1945, %v1477
      %v1978 = vsel %vm1948, %v1947, %v1479
      %vm1979 = vcmask 523264
      %v1981 = vsel %vm1979, %v1950, %v1490
      %v1983 = vsel %vm1979, %v1952, %v1492
      %v1985 = vsel %vm1979, %v1954, %v1494
      %v1987 = vsel %vm1979, %v1956, %v1496
      %v1989 = vsel %vm1979, %v1958, %v1498
      %v1991 = vsel %vm1979, %v1960, %v1500
      %v1993 = vsel %vm1979, %v1962, %v1502
      %v1995 = vsel %vm1979, %v1964, %v1504
      %v1997 = vsel %vm1979, %v1966, %v1506
      %v1999 = vsel %vm1979, %v1968, %v1508
      %v2001 = vsel %vm1979, %v1970, %v1510
      %v2003 = vsel %vm1979, %v1972, %v1512
      %v2005 = vsel %vm1979, %v1974, %v1514
      %v2007 = vsel %vm1979, %v1976, %v1516
      %v2009 = vsel %vm1979, %v1978, %v1518
      %vm2010 = vcmask 588800
      %v2012 = vsel %vm2010, %v1981, %v1523
      %v2014 = vsel %vm2010, %v1983, %v1525
      %v2016 = vsel %vm2010, %v1985, %v1527
      %v2018 = vsel %vm2010, %v1987, %v1529
      %v2020 = vsel %vm2010, %v1989, %v1531
      %v2022 = vsel %vm2010, %v1991, %v1533
      %v2024 = vsel %vm2010, %v1993, %v1535
      %v2026 = vsel %vm2010, %v1995, %v1537
      %v2028 = vsel %vm2010, %v1997, %v1539
      %v2030 = vsel %vm2010, %v1999, %v1541
      %v2032 = vsel %vm2010, %v2001, %v1543
      %v2034 = vsel %vm2010, %v2003, %v1545
      %v2036 = vsel %vm2010, %v2005, %v1547
      %v2038 = vsel %vm2010, %v2007, %v1549
      %v2040 = vsel %vm2010, %v2009, %v1551
      %vm2041 = vcmask 654336
      %v2043 = vsel %vm2041, %v2012, %v1554
      %v2045 = vsel %vm2041, %v2012, %v1556
      %v2047 = vsel %vm2041, %v2014, %v1558
      %v2049 = vsel %vm2041, %v2016, %v1560
      %v2051 = vsel %vm2041, %v2018, %v1562
      %v2053 = vsel %vm2041, %v2020, %v1564
      %v2055 = vsel %vm2041, %v2022, %v1566
      %v2057 = vsel %vm2041, %v2024, %v1568
      %v2059 = vsel %vm2041, %v2026, %v1570
      %v2061 = vsel %vm2041, %v2028, %v1572
      %v2063 = vsel %vm2041, %v2030, %v1574
      %v2065 = vsel %vm2041, %v2032, %v1576
      %v2067 = vsel %vm2041, %v2034, %v1578
      %v2069 = vsel %vm2041, %v2036, %v1580
      %v2071 = vsel %vm2041, %v2038, %v1582
      %v2073 = vsel %vm2041, %v2040, %v1584
      %vm2074 = vcmask 719872
      %v2076 = vsel %vm2074, %v2043, %v1597
      %v2078 = vsel %vm2074, %v2045, %v1599
      %v2080 = vsel %vm2074, %v2047, %v1601
      %v2082 = vsel %vm2074, %v2049, %v1603
      %v2084 = vsel %vm2074, %v2051, %v1605
      %v2086 = vsel %vm2074, %v2053, %v1607
      %v2088 = vsel %vm2074, %v2055, %v1609
      %v2090 = vsel %vm2074, %v2057, %v1611
      %v2092 = vsel %vm2074, %v2059, %v1613
      %v2094 = vsel %vm2074, %v2061, %v1615
      %v2096 = vsel %vm2074, %v2063, %v1617
      %v2098 = vsel %vm2074, %v2065, %v1619
      %v2100 = vsel %vm2074, %v2067, %v1621
      %v2102 = vsel %vm2074, %v2069, %v1623
      %v2104 = vsel %vm2074, %v2071, %v1625
      %v2106 = vsel %vm2074, %v2073, %v1627
      %vm2107 = vcmask 785408
      %v2109 = vsel %vm2107, %v2076, %v1633
      %v2111 = vsel %vm2107, %v2078, %v1635
      %v2113 = vsel %vm2107, %v2080, %v1637
      %v2115 = vsel %vm2107, %v2082, %v1639
      %v2117 = vsel %vm2107, %v2084, %v1641
      %v2119 = vsel %vm2107, %v2086, %v1643
      %v2121 = vsel %vm2107, %v2088, %v1645
      %v2123 = vsel %vm2107, %v2090, %v1647
      %v2125 = vsel %vm2107, %v2092, %v1649
      %v2127 = vsel %vm2107, %v2094, %v1651
      %v2129 = vsel %vm2107, %v2096, %v1653
      %v2131 = vsel %vm2107, %v2098, %v1655
      %v2133 = vsel %vm2107, %v2100, %v1657
      %v2135 = vsel %vm2107, %v2102, %v1659
      %v2137 = vsel %vm2107, %v2104, %v1661
      %v2139 = vsel %vm2107, %v2106, %v1663
      %vm2140 = vcmask 850944
      %v2142 = vsel %vm2140, %v2109, %v1674
      %v2144 = vsel %vm2140, %v2111, %v1676
      %v2146 = vsel %vm2140, %v2113, %v1678
      %v2148 = vsel %vm2140, %v2115, %v1680
      %v2150 = vsel %vm2140, %v2117, %v1682
      %v2152 = vsel %vm2140, %v2119, %v1684
      %v2154 = vsel %vm2140, %v2121, %v1686
      %v2156 = vsel %vm2140, %v2123, %v1688
      %v2158 = vsel %vm2140, %v2125, %v1690
      %v2160 = vsel %vm2140, %v2127, %v1692
      %v2162 = vsel %vm2140, %v2129, %v1694
      %v2164 = vsel %vm2140, %v2131, %v1696
      %v2166 = vsel %vm2140, %v2133, %v1698
      %v2168 = vsel %vm2140, %v2135, %v1700
      %v2170 = vsel %vm2140, %v2137, %v1702
      %v2172 = vsel %vm2140, %v2139, %v1704
      %vm2173 = vcmask 916480
      %v2175 = vsel %vm2173, %v2142, %v1709
      %v2177 = vsel %vm2173, %v2144, %v1711
      %v2179 = vsel %vm2173, %v2146, %v1713
      %v2181 = vsel %vm2173, %v2148, %v1715
      %v2183 = vsel %vm2173, %v2150, %v1717
      %v2185 = vsel %vm2173, %v2152, %v1719
      %v2187 = vsel %vm2173, %v2154, %v1721
      %v2189 = vsel %vm2173, %v2156, %v1723
      %v2191 = vsel %vm2173, %v2158, %v1725
      %v2193 = vsel %vm2173, %v2160, %v1727
      %v2195 = vsel %vm2173, %v2162, %v1729
      %v2197 = vsel %vm2173, %v2164, %v1731
      %v2199 = vsel %vm2173, %v2166, %v1733
      %v2201 = vsel %vm2173, %v2168, %v1735
      %v2203 = vsel %vm2173, %v2170, %v1737
      %v2205 = vsel %vm2173, %v2172, %v1739
      %vm2206 = vcmask 982016
      %v2208 = vsel %vm2206, %v2175, %v1741
      %v2211 = vsel %vm2206, %v2177, %v1743
      %v2214 = vsel %vm2206, %v2179, %v1745
      %v2217 = vsel %vm2206, %v2181, %v1747
      %v2220 = vsel %vm2206, %v2183, %v1749
      %v2223 = vsel %vm2206, %v2185, %v1751
      %v2226 = vsel %vm2206, %v2187, %v1753
      %v2229 = vsel %vm2206, %v2189, %v1755
      %v2232 = vsel %vm2206, %v2191, %v1757
      %v2235 = vsel %vm2206, %v2193, %v1759
      %v2238 = vsel %vm2206, %v2195, %v1761
      %v2241 = vsel %vm2206, %v2197, %v1763
      %v2244 = vsel %vm2206, %v2199, %v1765
      %v2247 = vsel %vm2206, %v2201, %v1767
      %v2250 = vsel %vm2206, %v2203, %v1769
      %v2252 = vsel %vm2206, %v2205, %v1769
      %2254 = vrot.lane.b32.xlu0 %v1161, 8
      %v2255 = vpop.permute.xlu0 %2254
      %2256 = vrot.lane.b32.xlu0 %v1170, 8
      %v2257 = vpop.permute.xlu0 %2256
      %2258 = vrot.lane.b32.xlu0 %v1179, 8
      %v2259 = vpop.permute.xlu0 %2258
      %2260 = vrot.lane.b32.xlu0 %v1188, 8
      %v2261 = vpop.permute.xlu0 %2260
      %2262 = vrot.lane.b32.xlu0 %v1197, 8
      %v2263 = vpop.permute.xlu0 %2262
      %2264 = vrot.lane.b32.xlu0 %v1206, 8
      %v2265 = vpop.permute.xlu0 %2264
      %2266 = vrot.lane.b32.xlu0 %v1215, 8
      %v2267 = vpop.permute.xlu0 %2266
      %2268 = vrot.lane.b32.xlu0 %v1224, 8
      %v2269 = vpop.permute.xlu0 %2268
      %2270 = vrot.lane.b32.xlu0 %v1233, 8
      %v2271 = vpop.permute.xlu0 %2270
      %2272 = vrot.lane.b32.xlu0 %v1242, 8
      %v2273 = vpop.permute.xlu0 %2272
      %2274 = vrot.lane.b32.xlu0 %v1251, 8
      %v2275 = vpop.permute.xlu0 %2274
      %2276 = vrot.lane.b32.xlu0 %v1260, 8
      %v2277 = vpop.permute.xlu0 %2276
      %2278 = vrot.lane.b32.xlu0 %v1269, 8
      %v2279 = vpop.permute.xlu0 %2278
      %2280 = vrot.lane.b32.xlu0 %v1415, 8
      %v2281 = vpop.permute.xlu0 %2280
      %2282 = vrot.lane.b32.xlu0 %v1483, 8
      %v2283 = vpop.permute.xlu0 %2282
      %2284 = vrot.lane.b32.xlu0 %v1595, 8
      %v2285 = vpop.permute.xlu0 %2284
      %2286 = vrot.lane.b32.xlu0 %v1667, 8
      %v2287 = vpop.permute.xlu0 %2286
      %2288 = vrot.lane.b32.xlu0 %v1082, 16
      %v2289 = vpop.permute.xlu0 %2288
      %2290 = vrot.lane.b32.xlu0 %v1085, 16
      %v2291 = vpop.permute.xlu0 %2290
      %2292 = vrot.lane.b32.xlu0 %v1088, 16
      %v2293 = vpop.permute.xlu0 %2292
      %2294 = vrot.lane.b32.xlu0 %v1091, 16
      %v2295 = vpop.permute.xlu0 %2294
      %2296 = vrot.lane.b32.xlu0 %v1094, 16
      %v2297 = vpop.permute.xlu0 %2296
      %2298 = vrot.lane.b32.xlu0 %v1097, 16
      %v2299 = vpop.permute.xlu0 %2298
      %2300 = vrot.lane.b32.xlu0 %v1100, 16
      %v2301 = vpop.permute.xlu0 %2300
      %2302 = vrot.lane.b32.xlu0 %v1103, 16
      %v2303 = vpop.permute.xlu0 %2302
      %2304 = vrot.lane.b32.xlu0 %v1106, 16
      %v2305 = vpop.permute.xlu0 %2304
      %2306 = vrot.lane.b32.xlu0 %v1109, 16
      %v2307 = vpop.permute.xlu0 %2306
      %2308 = vrot.lane.b32.xlu0 %v1112, 16
      %v2309 = vpop.permute.xlu0 %2308
      %2310 = vrot.lane.b32.xlu0 %v1115, 16
      %v2311 = vpop.permute.xlu0 %2310
      %2312 = vrot.lane.b32.xlu0 %v1118, 16
      %v2313 = vpop.permute.xlu0 %2312
      %2314 = vrot.lane.b32.xlu0 %v1449, 16
      %v2315 = vpop.permute.xlu0 %2314
      %2316 = vrot.lane.b32.xlu0 %v1448, 16
      %v2317 = vpop.permute.xlu0 %2316
      %2318 = vrot.lane.b32.xlu0 %v1631, 16
      %v2319 = vpop.permute.xlu0 %2318
      %2320 = vrot.lane.b32.xlu0 %v1630, 16
      %v2321 = vpop.permute.xlu0 %2320
      %2322 = vrot.lane.b32.xlu0 %v1163, 24
      %v2323 = vpop.permute.xlu0 %2322
      %2324 = vrot.lane.b32.xlu0 %v1172, 24
      %v2325 = vpop.permute.xlu0 %2324
      %2326 = vrot.lane.b32.xlu0 %v1181, 24
      %v2327 = vpop.permute.xlu0 %2326
      %2328 = vrot.lane.b32.xlu0 %v1190, 24
      %v2329 = vpop.permute.xlu0 %2328
      %2330 = vrot.lane.b32.xlu0 %v1199, 24
      %v2331 = vpop.permute.xlu0 %2330
      %2332 = vrot.lane.b32.xlu0 %v1208, 24
      %v2333 = vpop.permute.xlu0 %2332
      %2334 = vrot.lane.b32.xlu0 %v1217, 24
      %v2335 = vpop.permute.xlu0 %2334
      %2336 = vrot.lane.b32.xlu0 %v1226, 24
      %v2337 = vpop.permute.xlu0 %2336
      %2338 = vrot.lane.b32.xlu0 %v1235, 24
      %v2339 = vpop.permute.xlu0 %2338
      %2340 = vrot.lane.b32.xlu0 %v1244, 24
      %v2341 = vpop.permute.xlu0 %2340
      %2342 = vrot.lane.b32.xlu0 %v1253, 24
      %v2343 = vpop.permute.xlu0 %2342
      %2344 = vrot.lane.b32.xlu0 %v1262, 24
      %v2345 = vpop.permute.xlu0 %2344
      %2346 = vrot.lane.b32.xlu0 %v1271, 24
      %v2347 = vpop.permute.xlu0 %2346
      %2348 = vrot.lane.b32.xlu0 %v1488, 24
      %v2349 = vpop.permute.xlu0 %2348
      %2350 = vrot.lane.b32.xlu0 %v1485, 24
      %v2351 = vpop.permute.xlu0 %2350
      %2352 = vrot.lane.b32.xlu0 %v1672, 24
      %v2353 = vpop.permute.xlu0 %2352
      %2354 = vrot.lane.b32.xlu0 %v1669, 24
      %v2355 = vpop.permute.xlu0 %2354
      %v2356 = vrot.slane %v889, 7
      %v2357 = vor.u32 %v2356, %v891
      %v2358 = vrot.slane %v900, 7
      %v2359 = vor.u32 %v2358, %v902
      %v2360 = vrot.slane %v911, 7
      %v2361 = vor.u32 %v2360, %v913
      %v2362 = vrot.slane %v922, 7
      %v2363 = vor.u32 %v2362, %v924
      %v2364 = vrot.slane %v933, 7
      %v2365 = vor.u32 %v2364, %v935
      %v2366 = vrot.slane %v944, 7
      %v2367 = vor.u32 %v2366, %v946
      %v2368 = vrot.slane %v955, 7
      %v2369 = vor.u32 %v2368, %v957
      %v2370 = vrot.slane %v966, 7
      %v2371 = vor.u32 %v2370, %v968
      %v2372 = vrot.slane %v977, 7
      %v2373 = vor.u32 %v2372, %v979
      %v2374 = vrot.slane %v988, 7
      %v2375 = vor.u32 %v2374, %v990
      %v2376 = vrot.slane %v999, 7
      %v2377 = vor.u32 %v2376, %v1001
      %v2378 = vrot.slane %v1010, 7
      %v2379 = vor.u32 %v2378, %v1012
      %v2380 = vrot.slane %v1405, 7
      %v2381 = vor.u32 %v2380, %v1407
      %v2382 = vrot.slane %v1585, 7
      %v2383 = vor.u32 %v2382, %v1587
      %2384 = vrot.lane.b32.xlu0 %v2357, 32
      %v2385 = vpop.permute.xlu0 %2384
      %2386 = vrot.lane.b32.xlu0 %v2356, 32
      %v2387 = vpop.permute.xlu0 %2386
      %2388 = vrot.lane.b32.xlu0 %v2359, 32
      %v2389 = vpop.permute.xlu0 %2388
      %2390 = vrot.lane.b32.xlu0 %v2358, 32
      %v2391 = vpop.permute.xlu0 %2390
      %2392 = vrot.lane.b32.xlu0 %v2361, 32
      %v2393 = vpop.permute.xlu0 %2392
      %2394 = vrot.lane.b32.xlu0 %v2360, 32
      %v2395 = vpop.permute.xlu0 %2394
      %2396 = vrot.lane.b32.xlu0 %v2363, 32
      %v2397 = vpop.permute.xlu0 %2396
      %2398 = vrot.lane.b32.xlu0 %v2362, 32
      %v2399 = vpop.permute.xlu0 %2398
      %2400 = vrot.lane.b32.xlu0 %v2365, 32
      %v2401 = vpop.permute.xlu0 %2400
      %2402 = vrot.lane.b32.xlu0 %v2364, 32
      %v2403 = vpop.permute.xlu0 %2402
      %2404 = vrot.lane.b32.xlu0 %v2367, 32
      %v2405 = vpop.permute.xlu0 %2404
      %2406 = vrot.lane.b32.xlu0 %v2366, 32
      %v2407 = vpop.permute.xlu0 %2406
      %2408 = vrot.lane.b32.xlu0 %v2369, 32
      %v2409 = vpop.permute.xlu0 %2408
      %2410 = vrot.lane.b32.xlu0 %v2368, 32
      %v2411 = vpop.permute.xlu0 %2410
      %2412 = vrot.lane.b32.xlu0 %v2371, 32
      %v2413 = vpop.permute.xlu0 %2412
      %2414 = vrot.lane.b32.xlu0 %v2370, 32
      %v2415 = vpop.permute.xlu0 %2414
      %2416 = vrot.lane.b32.xlu0 %v2373, 32
      %v2417 = vpop.permute.xlu0 %2416
      %2418 = vrot.lane.b32.xlu0 %v2372, 32
      %v2419 = vpop.permute.xlu0 %2418
      %2420 = vrot.lane.b32.xlu0 %v2375, 32
      %v2421 = vpop.permute.xlu0 %2420
      %2422 = vrot.lane.b32.xlu0 %v2374, 32
      %v2423 = vpop.permute.xlu0 %2422
      %2424 = vrot.lane.b32.xlu0 %v2377, 32
      %v2425 = vpop.permute.xlu0 %2424
      %2426 = vrot.lane.b32.xlu0 %v2376, 32
      %v2427 = vpop.permute.xlu0 %2426
      %2428 = vrot.lane.b32.xlu0 %v2379, 32
      %v2429 = vpop.permute.xlu0 %2428
      %2430 = vrot.lane.b32.xlu0 %v2378, 32
      %v2431 = vpop.permute.xlu0 %2430
      %2432 = vrot.lane.b32.xlu0 %v2381, 32
      %v2433 = vpop.permute.xlu0 %2432
      %2434 = vrot.lane.b32.xlu0 %v2380, 32
      %v2435 = vpop.permute.xlu0 %2434
      %2436 = vrot.lane.b32.xlu0 %v2383, 32
      %v2437 = vpop.permute.xlu0 %2436
      %2438 = vrot.lane.b32.xlu0 %v2382, 32
      %v2439 = vpop.permute.xlu0 %2438
      %2440 = vrot.lane.b32.xlu0 %v852, 40
      %v2441 = vpop.permute.xlu0 %2440
      %2442 = vrot.lane.b32.xlu0 %v853, 40
      %v2443 = vpop.permute.xlu0 %2442
      %2444 = vrot.lane.b32.xlu0 %v854, 40
      %v2445 = vpop.permute.xlu0 %2444
      %2446 = vrot.lane.b32.xlu0 %v855, 40
      %v2447 = vpop.permute.xlu0 %2446
      %2448 = vrot.lane.b32.xlu0 %v856, 40
      %v2449 = vpop.permute.xlu0 %2448
      %2450 = vrot.lane.b32.xlu0 %v857, 40
      %v2451 = vpop.permute.xlu0 %2450
      %2452 = vrot.lane.b32.xlu0 %v858, 40
      %v2453 = vpop.permute.xlu0 %2452
      %2454 = vrot.lane.b32.xlu0 %v859, 40
      %v2455 = vpop.permute.xlu0 %2454
      %2456 = vrot.lane.b32.xlu0 %v860, 40
      %v2457 = vpop.permute.xlu0 %2456
      %2458 = vrot.lane.b32.xlu0 %v861, 40
      %v2459 = vpop.permute.xlu0 %2458
      %2460 = vrot.lane.b32.xlu0 %v862, 40
      %v2461 = vpop.permute.xlu0 %2460
      %2462 = vrot.lane.b32.xlu0 %v863, 40
      %v2463 = vpop.permute.xlu0 %2462
      %2464 = vrot.lane.b32.xlu0 %v864, 40
      %v2465 = vpop.permute.xlu0 %2464
      %2466 = vrot.lane.b32.xlu0 %v798, 40
      %v2467 = vpop.permute.xlu0 %2466
      %2468 = vrot.lane.b32.xlu0 %v865, 40
      %v2469 = vpop.permute.xlu0 %2468
      %2470 = vrot.lane.b32.xlu0 %v1170, 48
      %v2471 = vpop.permute.xlu0 %2470
      %2472 = vrot.lane.b32.xlu0 %v1179, 48
      %v2473 = vpop.permute.xlu0 %2472
      %2474 = vrot.lane.b32.xlu0 %v1188, 48
      %v2475 = vpop.permute.xlu0 %2474
      %2476 = vrot.lane.b32.xlu0 %v1197, 48
      %v2477 = vpop.permute.xlu0 %2476
      %2478 = vrot.lane.b32.xlu0 %v1206, 48
      %v2479 = vpop.permute.xlu0 %2478
      %2480 = vrot.lane.b32.xlu0 %v1215, 48
      %v2481 = vpop.permute.xlu0 %2480
      %2482 = vrot.lane.b32.xlu0 %v1224, 48
      %v2483 = vpop.permute.xlu0 %2482
      %2484 = vrot.lane.b32.xlu0 %v1233, 48
      %v2485 = vpop.permute.xlu0 %2484
      %2486 = vrot.lane.b32.xlu0 %v1242, 48
      %v2487 = vpop.permute.xlu0 %2486
      %2488 = vrot.lane.b32.xlu0 %v1251, 48
      %v2489 = vpop.permute.xlu0 %2488
      %2490 = vrot.lane.b32.xlu0 %v1260, 48
      %v2491 = vpop.permute.xlu0 %2490
      %2492 = vrot.lane.b32.xlu0 %v1269, 48
      %v2493 = vpop.permute.xlu0 %2492
      %2494 = vrot.lane.b32.xlu0 %v1483, 48
      %v2495 = vpop.permute.xlu0 %2494
      %2496 = vrot.lane.b32.xlu0 %v1595, 48
      %v2497 = vpop.permute.xlu0 %2496
      %2498 = vrot.lane.b32.xlu0 %v1667, 48
      %v2499 = vpop.permute.xlu0 %2498
      %2500 = vrot.lane.b32.xlu0 %v1085, 56
      %v2501 = vpop.permute.xlu0 %2500
      %2502 = vrot.lane.b32.xlu0 %v1088, 56
      %v2503 = vpop.permute.xlu0 %2502
      %2504 = vrot.lane.b32.xlu0 %v1091, 56
      %v2505 = vpop.permute.xlu0 %2504
      %2506 = vrot.lane.b32.xlu0 %v1094, 56
      %v2507 = vpop.permute.xlu0 %2506
      %2508 = vrot.lane.b32.xlu0 %v1097, 56
      %v2509 = vpop.permute.xlu0 %2508
      %2510 = vrot.lane.b32.xlu0 %v1100, 56
      %v2511 = vpop.permute.xlu0 %2510
      %2512 = vrot.lane.b32.xlu0 %v1103, 56
      %v2513 = vpop.permute.xlu0 %2512
      %2514 = vrot.lane.b32.xlu0 %v1106, 56
      %v2515 = vpop.permute.xlu0 %2514
      %2516 = vrot.lane.b32.xlu0 %v1109, 56
      %v2517 = vpop.permute.xlu0 %2516
      %2518 = vrot.lane.b32.xlu0 %v1112, 56
      %v2519 = vpop.permute.xlu0 %2518
      %2520 = vrot.lane.b32.xlu0 %v1115, 56
      %v2521 = vpop.permute.xlu0 %2520
      %2522 = vrot.lane.b32.xlu0 %v1118, 56
      %v2523 = vpop.permute.xlu0 %2522
      %2524 = vrot.lane.b32.xlu0 %v1448, 56
      %v2525 = vpop.permute.xlu0 %2524
      %2526 = vrot.lane.b32.xlu0 %v1631, 56
      %v2527 = vpop.permute.xlu0 %2526
      %2528 = vrot.lane.b32.xlu0 %v1630, 56
      %v2529 = vpop.permute.xlu0 %2528
      %2530 = vrot.lane.b32.xlu0 %v1172, 64
      %v2531 = vpop.permute.xlu0 %2530
      %2532 = vrot.lane.b32.xlu0 %v1181, 64
      %v2533 = vpop.permute.xlu0 %2532
      %2534 = vrot.lane.b32.xlu0 %v1190, 64
      %v2535 = vpop.permute.xlu0 %2534
      %2536 = vrot.lane.b32.xlu0 %v1199, 64
      %v2537 = vpop.permute.xlu0 %2536
      %2538 = vrot.lane.b32.xlu0 %v1208, 64
      %v2539 = vpop.permute.xlu0 %2538
      %2540 = vrot.lane.b32.xlu0 %v1217, 64
      %v2541 = vpop.permute.xlu0 %2540
      %2542 = vrot.lane.b32.xlu0 %v1226, 64
      %v2543 = vpop.permute.xlu0 %2542
      %2544 = vrot.lane.b32.xlu0 %v1235, 64
      %v2545 = vpop.permute.xlu0 %2544
      %2546 = vrot.lane.b32.xlu0 %v1244, 64
      %v2547 = vpop.permute.xlu0 %2546
      %2548 = vrot.lane.b32.xlu0 %v1253, 64
      %v2549 = vpop.permute.xlu0 %2548
      %2550 = vrot.lane.b32.xlu0 %v1262, 64
      %v2551 = vpop.permute.xlu0 %2550
      %2552 = vrot.lane.b32.xlu0 %v1271, 64
      %v2553 = vpop.permute.xlu0 %2552
      %2554 = vrot.lane.b32.xlu0 %v1485, 64
      %v2555 = vpop.permute.xlu0 %2554
      %2556 = vrot.lane.b32.xlu0 %v1672, 64
      %v2557 = vpop.permute.xlu0 %2556
      %2558 = vrot.lane.b32.xlu0 %v1669, 64
      %v2559 = vpop.permute.xlu0 %2558
      %v2561 = vsel %vm1770, %v851, %v2255
      %v2563 = vsel %vm1770, %v852, %v2257
      %v2565 = vsel %vm1770, %v853, %v2259
      %v2567 = vsel %vm1770, %v854, %v2261
      %v2569 = vsel %vm1770, %v855, %v2263
      %v2571 = vsel %vm1770, %v856, %v2265
      %v2573 = vsel %vm1770, %v857, %v2267
      %v2575 = vsel %vm1770, %v858, %v2269
      %v2577 = vsel %vm1770, %v859, %v2271
      %v2579 = vsel %vm1770, %v860, %v2273
      %v2581 = vsel %vm1770, %v861, %v2275
      %v2583 = vsel %vm1770, %v862, %v2277
      %v2585 = vsel %vm1770, %v863, %v2279
      %v2587 = vsel %vm1770, %v795, %v2281
      %v2589 = vsel %vm1770, %v864, %v2283
      %v2591 = vsel %vm1770, %v798, %v2285
      %v2593 = vsel %vm1770, %v865, %v2287
      %v2595 = vsel %vm1799, %v2561, %v2289
      %v2597 = vsel %vm1799, %v2563, %v2291
      %v2599 = vsel %vm1799, %v2565, %v2293
      %v2601 = vsel %vm1799, %v2567, %v2295
      %v2603 = vsel %vm1799, %v2569, %v2297
      %v2605 = vsel %vm1799, %v2571, %v2299
      %v2607 = vsel %vm1799, %v2573, %v2301
      %v2609 = vsel %vm1799, %v2575, %v2303
      %v2611 = vsel %vm1799, %v2577, %v2305
      %v2613 = vsel %vm1799, %v2579, %v2307
      %v2615 = vsel %vm1799, %v2581, %v2309
      %v2617 = vsel %vm1799, %v2583, %v2311
      %v2619 = vsel %vm1799, %v2585, %v2313
      %v2621 = vsel %vm1799, %v2587, %v2315
      %v2623 = vsel %vm1799, %v2589, %v2317
      %v2625 = vsel %vm1799, %v2591, %v2319
      %v2627 = vsel %vm1799, %v2593, %v2321
      %v2629 = vsel %vm1828, %v2595, %v2323
      %v2631 = vsel %vm1828, %v2597, %v2325
      %v2633 = vsel %vm1828, %v2599, %v2327
      %v2635 = vsel %vm1828, %v2601, %v2329
      %v2637 = vsel %vm1828, %v2603, %v2331
      %v2639 = vsel %vm1828, %v2605, %v2333
      %v2641 = vsel %vm1828, %v2607, %v2335
      %v2643 = vsel %vm1828, %v2609, %v2337
      %v2645 = vsel %vm1828, %v2611, %v2339
      %v2647 = vsel %vm1828, %v2613, %v2341
      %v2649 = vsel %vm1828, %v2615, %v2343
      %v2651 = vsel %vm1828, %v2617, %v2345
      %v2653 = vsel %vm1828, %v2619, %v2347
      %v2655 = vsel %vm1828, %v2621, %v2349
      %v2657 = vsel %vm1828, %v2623, %v2351
      %v2659 = vsel %vm1828, %v2625, %v2353
      %v2661 = vsel %vm1828, %v2627, %v2355
      %v2663 = vsel %vm1857, %v1832, %v2385
      %v2665 = vsel %vm1857, %v2629, %v2387
      %v2667 = vsel %vm1857, %v1834, %v2389
      %v2669 = vsel %vm1857, %v2631, %v2391
      %v2671 = vsel %vm1857, %v1836, %v2393
      %v2673 = vsel %vm1857, %v2633, %v2395
      %v2675 = vsel %vm1857, %v1838, %v2397
      %v2677 = vsel %vm1857, %v2635, %v2399
      %v2679 = vsel %vm1857, %v1840, %v2401
      %v2681 = vsel %vm1857, %v2637, %v2403
      %v2683 = vsel %vm1857, %v1842, %v2405
      %v2685 = vsel %vm1857, %v2639, %v2407
      %v2687 = vsel %vm1857, %v1844, %v2409
      %v2689 = vsel %vm1857, %v2641, %v2411
      %v2691 = vsel %vm1857, %v1846, %v2413
      %v2693 = vsel %vm1857, %v2643, %v2415
      %v2695 = vsel %vm1857, %v1848, %v2417
      %v2697 = vsel %vm1857, %v2645, %v2419
      %v2699 = vsel %vm1857, %v1850, %v2421
      %v2701 = vsel %vm1857, %v2647, %v2423
      %v2703 = vsel %vm1857, %v1852, %v2425
      %v2705 = vsel %vm1857, %v2649, %v2427
      %v2707 = vsel %vm1857, %v1854, %v2429
      %v2709 = vsel %vm1857, %v2651, %v2431
      %v2711 = vsel %vm1857, %v1856, %v2433
      %v2713 = vsel %vm1857, %v2653, %v2435
      %v2715 = vsel %vm1857, %v2655, %v2437
      %v2717 = vsel %vm1857, %v2657, %v2439
      %v2718 = vsel %vm1857, %v2659, %v2437
      %v2719 = vsel %vm1857, %v2661, %v2439
      %v2720 = vsel %vm1886, %v2663, %v1380
      %v2722 = vsel %vm1886, %v2665, %v2441
      %v2723 = vsel %vm1886, %v2667, %v1382
      %v2725 = vsel %vm1886, %v2669, %v2443
      %v2726 = vsel %vm1886, %v2671, %v1384
      %v2728 = vsel %vm1886, %v2673, %v2445
      %v2729 = vsel %vm1886, %v2675, %v1386
      %v2731 = vsel %vm1886, %v2677, %v2447
      %v2732 = vsel %vm1886, %v2679, %v1388
      %v2734 = vsel %vm1886, %v2681, %v2449
      %v2735 = vsel %vm1886, %v2683, %v1390
      %v2737 = vsel %vm1886, %v2685, %v2451
      %v2738 = vsel %vm1886, %v2687, %v1392
      %v2740 = vsel %vm1886, %v2689, %v2453
      %v2741 = vsel %vm1886, %v2691, %v1394
      %v2743 = vsel %vm1886, %v2693, %v2455
      %v2744 = vsel %vm1886, %v2695, %v1396
      %v2746 = vsel %vm1886, %v2697, %v2457
      %v2747 = vsel %vm1886, %v2699, %v1398
      %v2749 = vsel %vm1886, %v2701, %v2459
      %v2750 = vsel %vm1886, %v2703, %v1400
      %v2752 = vsel %vm1886, %v2705, %v2461
      %v2753 = vsel %vm1886, %v2707, %v1402
      %v2755 = vsel %vm1886, %v2709, %v2463
      %v2756 = vsel %vm1886, %v2711, %v1404
      %v2758 = vsel %vm1886, %v2713, %v2465
      %v2760 = vsel %vm1886, %v2715, %v2467
      %v2762 = vsel %vm1886, %v2717, %v2469
      %v2763 = vsel %vm1886, %v2718, %v2467
      %v2764 = vsel %vm1886, %v2719, %v2469
      %v2765 = vsel %vm1917, %v2720, %v1421
      %v2767 = vsel %vm1917, %v2722, %v2471
      %v2768 = vsel %vm1917, %v2723, %v1423
      %v2770 = vsel %vm1917, %v2725, %v2473
      %v2771 = vsel %vm1917, %v2726, %v1425
      %v2773 = vsel %vm1917, %v2728, %v2475
      %v2774 = vsel %vm1917, %v2729, %v1427
      %v2776 = vsel %vm1917, %v2731, %v2477
      %v2777 = vsel %vm1917, %v2732, %v1429
      %v2779 = vsel %vm1917, %v2734, %v2479
      %v2780 = vsel %vm1917, %v2735, %v1431
      %v2782 = vsel %vm1917, %v2737, %v2481
      %v2783 = vsel %vm1917, %v2738, %v1433
      %v2785 = vsel %vm1917, %v2740, %v2483
      %v2786 = vsel %vm1917, %v2741, %v1435
      %v2788 = vsel %vm1917, %v2743, %v2485
      %v2789 = vsel %vm1917, %v2744, %v1437
      %v2791 = vsel %vm1917, %v2746, %v2487
      %v2792 = vsel %vm1917, %v2747, %v1439
      %v2794 = vsel %vm1917, %v2749, %v2489
      %v2795 = vsel %vm1917, %v2750, %v1441
      %v2797 = vsel %vm1917, %v2752, %v2491
      %v2798 = vsel %vm1917, %v2753, %v1443
      %v2800 = vsel %vm1917, %v2755, %v2493
      %v2801 = vsel %vm1917, %v2756, %v1445
      %v2803 = vsel %vm1917, %v2758, %v2495
      %v2805 = vsel %vm1917, %v2760, %v2497
      %v2807 = vsel %vm1917, %v2762, %v2499
      %v2808 = vsel %vm1917, %v2763, %v2497
      %v2809 = vsel %vm1917, %v2764, %v2499
      %v2810 = vsel %vm1948, %v2765, %v1455
      %v2812 = vsel %vm1948, %v2767, %v2501
      %v2813 = vsel %vm1948, %v2768, %v1457
      %v2815 = vsel %vm1948, %v2770, %v2503
      %v2816 = vsel %vm1948, %v2771, %v1459
      %v2818 = vsel %vm1948, %v2773, %v2505
      %v2819 = vsel %vm1948, %v2774, %v1461
      %v2821 = vsel %vm1948, %v2776, %v2507
      %v2822 = vsel %vm1948, %v2777, %v1463
      %v2824 = vsel %vm1948, %v2779, %v2509
      %v2825 = vsel %vm1948, %v2780, %v1465
      %v2827 = vsel %vm1948, %v2782, %v2511
      %v2828 = vsel %vm1948, %v2783, %v1467
      %v2830 = vsel %vm1948, %v2785, %v2513
      %v2831 = vsel %vm1948, %v2786, %v1469
      %v2833 = vsel %vm1948, %v2788, %v2515
      %v2834 = vsel %vm1948, %v2789, %v1471
      %v2836 = vsel %vm1948, %v2791, %v2517
      %v2837 = vsel %vm1948, %v2792, %v1473
      %v2839 = vsel %vm1948, %v2794, %v2519
      %v2840 = vsel %vm1948, %v2795, %v1475
      %v2842 = vsel %vm1948, %v2797, %v2521
      %v2843 = vsel %vm1948, %v2798, %v1477
      %v2845 = vsel %vm1948, %v2800, %v2523
      %v2846 = vsel %vm1948, %v2801, %v1479
      %v2848 = vsel %vm1948, %v2803, %v2525
      %v2850 = vsel %vm1948, %v2805, %v2527
      %v2852 = vsel %vm1948, %v2807, %v2529
      %v2853 = vsel %vm1948, %v2808, %v2527
      %v2854 = vsel %vm1948, %v2809, %v2529
      %v2855 = vsel %vm1979, %v2810, %v1494
      %v2857 = vsel %vm1979, %v2812, %v2531
      %v2858 = vsel %vm1979, %v2813, %v1496
      %v2860 = vsel %vm1979, %v2815, %v2533
      %v2861 = vsel %vm1979, %v2816, %v1498
      %v2863 = vsel %vm1979, %v2818, %v2535
      %v2864 = vsel %vm1979, %v2819, %v1500
      %v2866 = vsel %vm1979, %v2821, %v2537
      %v2867 = vsel %vm1979, %v2822, %v1502
      %v2869 = vsel %vm1979, %v2824, %v2539
      %v2870 = vsel %vm1979, %v2825, %v1504
      %v2872 = vsel %vm1979, %v2827, %v2541
      %v2873 = vsel %vm1979, %v2828, %v1506
      %v2875 = vsel %vm1979, %v2830, %v2543
      %v2876 = vsel %vm1979, %v2831, %v1508
      %v2878 = vsel %vm1979, %v2833, %v2545
      %v2879 = vsel %vm1979, %v2834, %v1510
      %v2881 = vsel %vm1979, %v2836, %v2547
      %v2882 = vsel %vm1979, %v2837, %v1512
      %v2884 = vsel %vm1979, %v2839, %v2549
      %v2885 = vsel %vm1979, %v2840, %v1514
      %v2887 = vsel %vm1979, %v2842, %v2551
      %v2888 = vsel %vm1979, %v2843, %v1516
      %v2890 = vsel %vm1979, %v2845, %v2553
      %v2891 = vsel %vm1979, %v2846, %v1518
      %v2893 = vsel %vm1979, %v2848, %v2555
      %v2895 = vsel %vm1979, %v2850, %v2557
      %v2897 = vsel %vm1979, %v2852, %v2559
      %v2898 = vsel %vm1979, %v2853, %v2557
      %v2899 = vsel %vm1979, %v2854, %v2559
      %v2901 = vsel %vm2010, %v2855, 0
      %v2902 = vsel %vm2010, %v2857, 0
      %v2903 = vsel %vm2010, %v2858, 0
      %v2904 = vsel %vm2010, %v2860, 0
      %v2905 = vsel %vm2010, %v2861, 0
      %v2906 = vsel %vm2010, %v2863, 0
      %v2907 = vsel %vm2010, %v2864, 0
      %v2908 = vsel %vm2010, %v2866, 0
      %v2909 = vsel %vm2010, %v2867, 0
      %v2910 = vsel %vm2010, %v2869, 0
      %v2911 = vsel %vm2010, %v2870, 0
      %v2912 = vsel %vm2010, %v2872, 0
      %v2913 = vsel %vm2010, %v2873, 0
      %v2914 = vsel %vm2010, %v2875, 0
      %v2915 = vsel %vm2010, %v2876, 0
      %v2916 = vsel %vm2010, %v2878, 0
      %v2917 = vsel %vm2010, %v2879, 0
      %v2918 = vsel %vm2010, %v2881, 0
      %v2919 = vsel %vm2010, %v2882, 0
      %v2920 = vsel %vm2010, %v2884, 0
      %v2921 = vsel %vm2010, %v2885, 0
      %v2922 = vsel %vm2010, %v2887, 0
      %v2923 = vsel %vm2010, %v2888, 0
      %v2924 = vsel %vm2010, %v2890, 0
      %v2925 = vsel %vm2010, %v2891, 0
      %v2926 = vsel %vm2010, %v2893, 0
      %v2927 = vsel %vm2010, %v2895, 0
      %v2928 = vsel %vm2010, %v2897, 0
      %v2929 = vsel %vm2010, %v2898, 0
      %v2930 = vsel %vm2010, %v2899, 0
      %v2931 = vshrl.u32 %v2901, 16
      %v2933 = vshll.u32 %v2901, 16
      %v2935 = vrot.slane %v2933, 1
      %v2936 = vor.u32 %v2931, %v2935
      %v2937 = vshll.u32 %v2902, 16
      %v2939 = vrot.slane %v2937, 1
      %v2940 = vsel %vm866, %v2936, %v2939
      %v2941 = vshrl.u32 %v2903, 16
      %v2943 = vshll.u32 %v2903, 16
      %v2945 = vrot.slane %v2943, 1
      %v2946 = vor.u32 %v2941, %v2945
      %v2947 = vshll.u32 %v2904, 16
      %v2949 = vrot.slane %v2947, 1
      %v2950 = vsel %vm866, %v2946, %v2949
      %v2951 = vshrl.u32 %v2905, 16
      %v2953 = vshll.u32 %v2905, 16
      %v2955 = vrot.slane %v2953, 1
      %v2956 = vor.u32 %v2951, %v2955
      %v2957 = vshll.u32 %v2906, 16
      %v2959 = vrot.slane %v2957, 1
      %v2960 = vsel %vm866, %v2956, %v2959
      %v2961 = vshrl.u32 %v2907, 16
      %v2963 = vshll.u32 %v2907, 16
      %v2965 = vrot.slane %v2963, 1
      %v2966 = vor.u32 %v2961, %v2965
      %v2967 = vshll.u32 %v2908, 16
      %v2969 = vrot.slane %v2967, 1
      %v2970 = vsel %vm866, %v2966, %v2969
      %v2971 = vshrl.u32 %v2909, 16
      %v2973 = vshll.u32 %v2909, 16
      %v2975 = vrot.slane %v2973, 1
      %v2976 = vor.u32 %v2971, %v2975
      %v2977 = vshll.u32 %v2910, 16
      %v2979 = vrot.slane %v2977, 1
      %v2980 = vsel %vm866, %v2976, %v2979
      %v2981 = vshrl.u32 %v2911, 16
      %v2983 = vshll.u32 %v2911, 16
      %v2985 = vrot.slane %v2983, 1
      %v2986 = vor.u32 %v2981, %v2985
      %v2987 = vshll.u32 %v2912, 16
      %v2989 = vrot.slane %v2987, 1
      %v2990 = vsel %vm866, %v2986, %v2989
      %v2991 = vshrl.u32 %v2913, 16
      %v2993 = vshll.u32 %v2913, 16
      %v2995 = vrot.slane %v2993, 1
      %v2996 = vor.u32 %v2991, %v2995
      %v2997 = vshll.u32 %v2914, 16
      %v2999 = vrot.slane %v2997, 1
      %v3000 = vsel %vm866, %v2996, %v2999
      %v3001 = vshrl.u32 %v2915, 16
      %v3003 = vshll.u32 %v2915, 16
      %v3005 = vrot.slane %v3003, 1
      %v3006 = vor.u32 %v3001, %v3005
      %v3007 = vshll.u32 %v2916, 16
      %v3009 = vrot.slane %v3007, 1
      %v3010 = vsel %vm866, %v3006, %v3009
      %v3011 = vshrl.u32 %v2917, 16
      %v3013 = vshll.u32 %v2917, 16
      %v3015 = vrot.slane %v3013, 1
      %v3016 = vor.u32 %v3011, %v3015
      %v3017 = vshll.u32 %v2918, 16
      %v3019 = vrot.slane %v3017, 1
      %v3020 = vsel %vm866, %v3016, %v3019
      %v3021 = vshrl.u32 %v2919, 16
      %v3023 = vshll.u32 %v2919, 16
      %v3025 = vrot.slane %v3023, 1
      %v3026 = vor.u32 %v3021, %v3025
      %v3027 = vshll.u32 %v2920, 16
      %v3029 = vrot.slane %v3027, 1
      %v3030 = vsel %vm866, %v3026, %v3029
      %v3031 = vshrl.u32 %v2921, 16
      %v3033 = vshll.u32 %v2921, 16
      %v3035 = vrot.slane %v3033, 1
      %v3036 = vor.u32 %v3031, %v3035
      %v3037 = vshll.u32 %v2922, 16
      %v3039 = vrot.slane %v3037, 1
      %v3040 = vsel %vm866, %v3036, %v3039
      %v3041 = vshrl.u32 %v2923, 16
      %v3043 = vshll.u32 %v2923, 16
      %v3045 = vrot.slane %v3043, 1
      %v3046 = vor.u32 %v3041, %v3045
      %v3047 = vshll.u32 %v2924, 16
      %v3049 = vrot.slane %v3047, 1
      %v3050 = vsel %vm866, %v3046, %v3049
      %v3051 = vshrl.u32 %v2925, 16
      %v3053 = vshll.u32 %v2925, 16
      %v3055 = vrot.slane %v3053, 1
      %v3056 = vor.u32 %v3051, %v3055
      %v3057 = vshll.u32 %v2926, 16
      %v3059 = vrot.slane %v3057, 1
      %v3060 = vsel %vm866, %v3056, %v3059
      %v3061 = vshrl.u32 %v2927, 16
      %v3063 = vshll.u32 %v2927, 16
      %v3065 = vrot.slane %v3063, 1
      %v3066 = vor.u32 %v3061, %v3065
      %v3067 = vshll.u32 %v2928, 16
      %v3069 = vrot.slane %v3067, 1
      %v3070 = vsel %vm866, %v3066, %v3069
      %v3071 = vshrl.u32 %v2929, 16
      %v3073 = vshll.u32 %v2929, 16
      %v3075 = vrot.slane %v3073, 1
      %v3076 = vor.u32 %v3071, %v3075
      %v3077 = vshll.u32 %v2930, 16
      %v3079 = vrot.slane %v3077, 1
      %v3080 = vsel %vm866, %v3076, %v3079
      %v3096 = vld [vmem:[%s1] sm:$0xf]
      %v3097 = vld [vmem:[%s1 + $0x4] sm:$0xf]
      %v3098 = vld [vmem:[%s1 + $0x8] sm:$0xf]
      %v3099 = vld [vmem:[%s1 + $0xc] sm:$0xf]
      %v3100 = vld [vmem:[%s1 + $0x10] sm:$0xf]
      %v3101 = vld [vmem:[%s1 + $0x14] sm:$0xf]
      %v3102 = vld [vmem:[%s1 + $0x18] sm:$0xf]
      %v3103 = vld [vmem:[%s1 + $0x1c] sm:$0xf]
      %v3104 = vld [vmem:[%s1 + $0x20] sm:$0xf]
      %v3105 = vld [vmem:[%s1 + $0x24] sm:$0xf]
      %v3106 = vld [vmem:[%s1 + $0x28] sm:$0xf]
      %v3107 = vld [vmem:[%s1 + $0x2c] sm:$0xf]
      %v3108 = vld [vmem:[%s1 + $0x30] sm:$0xf]
      %v3109 = vld [vmem:[%s1 + $0x34] sm:$0xf]
      %v3110 = vld [vmem:[%s1 + $0x38] sm:$0xf]
      %v3111 = vld [vmem:[%s1 + $0x3c] sm:$0xf]
      %v3112 = vld [vmem:[%s1 + $0x40] sm:$0xf]
      %v3113 = vld [vmem:[%s1 + $0x44] sm:$0xf]
      %v3114 = vld [vmem:[%s1 + $0x48] sm:$0xf]
      %v3115 = vld [vmem:[%s1 + $0x4c] sm:$0xf]
      %v3116 = vld [vmem:[%s1 + $0x50] sm:$0xf]
      %v3117 = vld [vmem:[%s1 + $0x54] sm:$0xf]
      %v3118 = vld [vmem:[%s1 + $0x58] sm:$0xf]
      %v3119 = vld [vmem:[%s1 + $0x5c] sm:$0xf]
      %v3120 = vld [vmem:[%s1 + $0x60] sm:$0xf]
      %v3121 = vld [vmem:[%s1 + $0x64] sm:$0xf]
      %v3122 = vld [vmem:[%s1 + $0x68] sm:$0xf]
      %v3123 = vld [vmem:[%s1 + $0x6c] sm:$0xf]
      %v3124 = vld [vmem:[%s1 + $0x70] sm:$0xf]
      %v3125 = vld [vmem:[%s1 + $0x74] sm:$0xf]
      %v3126 = vld [vmem:[%s1 + $0x78] sm:$0xf]
      %v3127 = vld [vmem:[%s1 + $0x7c] sm:$0xf]
      %v3160 = vunpack.c.l.b16 %v3096
      %v3161 = vunpack.c.l.b16 %v3097
      %v3162 = vunpack.c.l.b16 %v3098
      %v3163 = vunpack.c.l.b16 %v3099
      %v3164 = vunpack.c.l.b16 %v3100
      %v3165 = vunpack.c.l.b16 %v3101
      %v3166 = vunpack.c.l.b16 %v3102
      %v3167 = vunpack.c.l.b16 %v3103
      %v3168 = vunpack.c.l.b16 %v3104
      %v3169 = vunpack.c.l.b16 %v3105
      %v3170 = vunpack.c.l.b16 %v3106
      %v3171 = vunpack.c.l.b16 %v3107
      %v3172 = vunpack.c.l.b16 %v3108
      %v3173 = vunpack.c.l.b16 %v3109
      %v3174 = vunpack.c.l.b16 %v3110
      %v3175 = vunpack.c.l.b16 %v3111
      %v3176 = vunpack.c.l.b16 %v3112
      %v3177 = vunpack.c.l.b16 %v3113
      %v3178 = vunpack.c.l.b16 %v3114
      %v3179 = vunpack.c.l.b16 %v3115
      %v3180 = vunpack.c.l.b16 %v3116
      %v3181 = vunpack.c.l.b16 %v3117
      %v3182 = vunpack.c.l.b16 %v3118
      %v3183 = vunpack.c.l.b16 %v3119
      %v3184 = vunpack.c.l.b16 %v3120
      %v3185 = vunpack.c.l.b16 %v3121
      %v3186 = vunpack.c.l.b16 %v3122
      %v3187 = vunpack.c.l.b16 %v3123
      %v3188 = vunpack.c.l.b16 %v3124
      %v3189 = vunpack.c.l.b16 %v3125
      %v3190 = vunpack.c.l.b16 %v3126
      %v3191 = vunpack.c.l.b16 %v3127
      %v3192 = vpack.c.b16 %v3161, %v3160
      %v3193 = vpack.c.b16 %v3163, %v3162
      %v3194 = vpack.c.b16 %v3165, %v3164
      %v3195 = vpack.c.b16 %v3167, %v3166
      %v3196 = vpack.c.b16 %v3169, %v3168
      %v3197 = vpack.c.b16 %v3171, %v3170
      %v3198 = vpack.c.b16 %v3173, %v3172
      %v3199 = vpack.c.b16 %v3175, %v3174
      %v3200 = vpack.c.b16 %v3177, %v3176
      %v3201 = vpack.c.b16 %v3179, %v3178
      %v3202 = vpack.c.b16 %v3181, %v3180
      %v3203 = vpack.c.b16 %v3183, %v3182
      %v3204 = vpack.c.b16 %v3185, %v3184
      %v3205 = vpack.c.b16 %v3187, %v3186
      %v3206 = vpack.c.b16 %v3189, %v3188
      %v3207 = vpack.c.b16 %v3191, %v3190
      %3224 = vmatprep.subr.bf16.mxu0 0
      %3225 = vmatpush1.bf16.msra.mxu0 %v3192
      %3226 = vmatprep.subr.bf16.mxu0 0
      %3227 = vmatpush1.bf16.msra.mxu0 %v3193
      %3228 = vmatprep.subr.bf16.mxu0 0
      %3229 = vmatpush1.bf16.msra.mxu0 %v3194
      %3230 = vmatprep.subr.bf16.mxu0 0
      %3231 = vmatpush1.bf16.msra.mxu0 %v3195
      %3232 = vmatprep.subr.bf16.mxu0 0
      %3233 = vmatpush1.bf16.msra.mxu0 %v3196
      %3234 = vmatprep.subr.bf16.mxu0 0
      %3235 = vmatpush1.bf16.msra.mxu0 %v3197
      %3236 = vmatprep.subr.bf16.mxu0 0
      %3237 = vmatpush1.bf16.msra.mxu0 %v3198
      %3238 = vmatprep.subr.bf16.mxu0 0
      %3239 = vmatpush1.bf16.msra.mxu0 %v3199
      %3240 = vmatprep.subr.bf16.mxu0 0
      %3241 = vmatpush1.bf16.msra.mxu0 %v3200
      %3242 = vmatprep.subr.bf16.mxu0 0
      %3243 = vmatpush1.bf16.msra.mxu0 %v3201
      %3244 = vmatprep.subr.bf16.mxu0 0
      %3245 = vmatpush1.bf16.msra.mxu0 %v3202
      %3246 = vmatprep.subr.bf16.mxu0 0
      %3247 = vmatpush1.bf16.msra.mxu0 %v3203
      %3248 = vmatprep.subr.bf16.mxu0 0
      %3249 = vmatpush1.bf16.msra.mxu0 %v3204
      %3250 = vmatprep.subr.bf16.mxu0 0
      %3251 = vmatpush1.bf16.msra.mxu0 %v3205
      %3252 = vmatprep.subr.bf16.mxu0 0
      %3253 = vmatpush1.bf16.msra.mxu0 %v3206
      %3254 = vmatprep.subr.bf16.mxu0 0
      %3255 = vmatpush1.bf16.msra.mxu0 %v3207
      %3256 = vmatprep.mubr.bf16.mxu0 %v2940
      %3257 = vmatmul.mubr.bf16.gmra.mrb[0].mxu0 %v2208
      %v3258 = vpop.f32.mrb[0].mxu0
      %v3259 = vadd.f32 0.0, %v3258
      %v3260 = vpop.f32.mrb[0].mxu0
      %v3261 = vpop.f32.mrb[0].mxu0
      %v3262 = vadd.f32 0.0, %v3261
      %v3263 = vpop.f32.mrb[0].mxu0
      %3264 = vmatprep.mubr.bf16.mxu0 %v2950
      %3265 = vmatmul.mubr.bf16.gmra.mrb[0].mxu0 %v2211
      %v3266 = vpop.f32.mrb[0].mxu0
      %v3267 = vadd.f32 0.0, %v3266
      %v3268 = vpop.f32.mrb[0].mxu0
      %v3269 = vpop.f32.mrb[0].mxu0
      %v3270 = vadd.f32 0.0, %v3269
      %v3271 = vpop.f32.mrb[0].mxu0
      %3272 = vmatprep.mubr.bf16.mxu0 %v2960
      %3273 = vmatmul.mubr.bf16.gmra.mrb[0].mxu0 %v2214
      %v3274 = vpop.f32.mrb[0].mxu0
      %v3275 = vadd.f32 0.0, %v3274
      %v3276 = vpop.f32.mrb[0].mxu0
      %v3277 = vpop.f32.mrb[0].mxu0
      %v3278 = vadd.f32 0.0, %v3277
      %v3279 = vpop.f32.mrb[0].mxu0
      %3280 = vmatprep.mubr.bf16.mxu0 %v2970
      %3281 = vmatmul.mubr.bf16.gmra.mrb[0].mxu0 %v2217
      %v3282 = vpop.f32.mrb[0].mxu0
      %v3283 = vadd.f32 0.0, %v3282
      %v3284 = vpop.f32.mrb[0].mxu0
      %v3285 = vpop.f32.mrb[0].mxu0
      %v3286 = vadd.f32 0.0, %v3285
      %v3287 = vpop.f32.mrb[0].mxu0
      %3288 = vmatprep.mubr.bf16.mxu0 %v2980
      %3289 = vmatmul.mubr.bf16.gmra.mrb[0].mxu0 %v2220
      %v3290 = vpop.f32.mrb[0].mxu0
      %v3291 = vadd.f32 0.0, %v3290
      %v3292 = vpop.f32.mrb[0].mxu0
      %v3293 = vpop.f32.mrb[0].mxu0
      %v3294 = vadd.f32 0.0, %v3293
      %v3295 = vpop.f32.mrb[0].mxu0
      %3296 = vmatprep.mubr.bf16.mxu0 %v2990
      %3297 = vmatmul.mubr.bf16.gmra.mrb[0].mxu0 %v2223
      %v3298 = vpop.f32.mrb[0].mxu0
      %v3299 = vadd.f32 0.0, %v3298
      %v3300 = vpop.f32.mrb[0].mxu0
      %v3301 = vpop.f32.mrb[0].mxu0
      %v3302 = vadd.f32 0.0, %v3301
      %v3303 = vpop.f32.mrb[0].mxu0
      %3304 = vmatprep.mubr.bf16.mxu0 %v3000
      %3305 = vmatmul.mubr.bf16.gmra.mrb[0].mxu0 %v2226
      %v3306 = vpop.f32.mrb[0].mxu0
      %v3307 = vadd.f32 0.0, %v3306
      %v3308 = vpop.f32.mrb[0].mxu0
      %v3309 = vpop.f32.mrb[0].mxu0
      %v3310 = vadd.f32 0.0, %v3309
      %v3311 = vpop.f32.mrb[0].mxu0
      %3312 = vmatprep.mubr.bf16.mxu0 %v3010
      %3313 = vmatmul.mubr.bf16.gmra.mrb[0].mxu0 %v2229
      %v3314 = vpop.f32.mrb[0].mxu0
      %v3315 = vadd.f32 0.0, %v3314
      %v3316 = vpop.f32.mrb[0].mxu0
      %v3317 = vpop.f32.mrb[0].mxu0
      %v3318 = vadd.f32 0.0, %v3317
      %v3319 = vpop.f32.mrb[0].mxu0
      %3320 = vmatprep.mubr.bf16.mxu0 %v3020
      %3321 = vmatmul.mubr.bf16.gmra.mrb[0].mxu0 %v2232
      %v3322 = vpop.f32.mrb[0].mxu0
      %v3323 = vadd.f32 0.0, %v3322
      %v3324 = vpop.f32.mrb[0].mxu0
      %v3325 = vpop.f32.mrb[0].mxu0
      %v3326 = vadd.f32 0.0, %v3325
      %v3327 = vpop.f32.mrb[0].mxu0
      %3328 = vmatprep.mubr.bf16.mxu0 %v3030
      %3329 = vmatmul.mubr.bf16.gmra.mrb[0].mxu0 %v2235
      %v3330 = vpop.f32.mrb[0].mxu0
      %v3331 = vadd.f32 0.0, %v3330
      %v3332 = vpop.f32.mrb[0].mxu0
      %v3333 = vpop.f32.mrb[0].mxu0
      %v3334 = vadd.f32 0.0, %v3333
      %v3335 = vpop.f32.mrb[0].mxu0
      %3336 = vmatprep.mubr.bf16.mxu0 %v3040
      %3337 = vmatmul.mubr.bf16.gmra.mrb[0].mxu0 %v2238
      %v3338 = vpop.f32.mrb[0].mxu0
      %v3339 = vadd.f32 0.0, %v3338
      %v3340 = vpop.f32.mrb[0].mxu0
      %v3341 = vpop.f32.mrb[0].mxu0
      %v3342 = vadd.f32 0.0, %v3341
      %v3343 = vpop.f32.mrb[0].mxu0
      %3344 = vmatprep.mubr.bf16.mxu0 %v3050
      %3345 = vmatmul.mubr.bf16.gmra.mrb[0].mxu0 %v2241
      %v3346 = vpop.f32.mrb[0].mxu0
      %v3347 = vadd.f32 0.0, %v3346
      %v3348 = vpop.f32.mrb[0].mxu0
      %v3349 = vpop.f32.mrb[0].mxu0
      %v3350 = vadd.f32 0.0, %v3349
      %v3351 = vpop.f32.mrb[0].mxu0
      %3352 = vmatprep.mubr.bf16.mxu0 %v3060
      %3353 = vmatmul.mubr.bf16.gmra.mrb[0].mxu0 %v2244
      %v3354 = vpop.f32.mrb[0].mxu0
      %v3355 = vadd.f32 0.0, %v3354
      %v3356 = vpop.f32.mrb[0].mxu0
      %v3357 = vpop.f32.mrb[0].mxu0
      %v3358 = vadd.f32 0.0, %v3357
      %v3359 = vpop.f32.mrb[0].mxu0
      %3360 = vmatprep.mubr.bf16.mxu0 %v3070
      %3361 = vmatmul.mubr.bf16.gmra.mrb[0].mxu0 %v2247
      %v3362 = vpop.f32.mrb[0].mxu0
      %v3363 = vadd.f32 0.0, %v3362
      %v3364 = vpop.f32.mrb[0].mxu0
      %v3365 = vpop.f32.mrb[0].mxu0
      %v3366 = vadd.f32 0.0, %v3365
      %v3367 = vpop.f32.mrb[0].mxu0
      %3368 = vmatprep.mubr.bf16.mxu0 %v3080
      %3369 = vmatmul.mubr.bf16.gmra.mrb[0].mxu0 %v2250
      %v3370 = vpop.f32.mrb[0].mxu0
      %v3371 = vadd.f32 0.0, %v3370
      %v3372 = vpop.f32.mrb[0].mxu0
      %v3373 = vpop.f32.mrb[0].mxu0
      %v3374 = vadd.f32 0.0, %v3373
      %v3375 = vpop.f32.mrb[0].mxu0
      %3376 = vmatprep.mubr.bf16.mxu0 %v3080
      %3377 = vmatmul.mubr.bf16.gmra.mrb[0].mxu0 %v2252
      %v3378 = vpop.f32.mrb[0].mxu0
      %v3379 = vadd.f32 0.0, %v3378
      %v3380 = vpop.f32.mrb[0].mxu0
      %v3381 = vpop.f32.mrb[0].mxu0
      %v3382 = vadd.f32 0.0, %v3381
      %v3383 = vpop.f32.mrb[0].mxu0
      %3384 = vdwg.mxu0
      %v3385 = vld [vmem:[%s2] sm:$0x1]
      %v3387 = vlaneseq
      %v3388 = vshrl.u32 %v3387, 7
      %v3389 = vsub.s32 0, %v3388
      %v3390 = vrot.slane %v3385, %v3389
      %v3392 = vadd.f32 %v3259, %v3390
      %v3393 = vadd.f32 %v3262, %v3390
      %v3394 = vadd.f32 %v3267, %v3390
      %v3395 = vadd.f32 %v3270, %v3390
      %v3396 = vadd.f32 %v3275, %v3390
      %v3397 = vadd.f32 %v3278, %v3390
      %v3398 = vadd.f32 %v3283, %v3390
      %v3399 = vadd.f32 %v3286, %v3390
      %v3400 = vadd.f32 %v3291, %v3390
      %v3401 = vadd.f32 %v3294, %v3390
      %v3402 = vadd.f32 %v3299, %v3390
      %v3403 = vadd.f32 %v3302, %v3390
      %v3404 = vadd.f32 %v3307, %v3390
      %v3405 = vadd.f32 %v3310, %v3390
      %v3406 = vadd.f32 %v3315, %v3390
      %v3407 = vadd.f32 %v3318, %v3390
      %v3408 = vadd.f32 %v3323, %v3390
      %v3409 = vadd.f32 %v3326, %v3390
      %v3410 = vadd.f32 %v3331, %v3390
      %v3411 = vadd.f32 %v3334, %v3390
      %v3412 = vadd.f32 %v3339, %v3390
      %v3413 = vadd.f32 %v3342, %v3390
      %v3414 = vadd.f32 %v3347, %v3390
      %v3415 = vadd.f32 %v3350, %v3390
      %v3416 = vadd.f32 %v3355, %v3390
      %v3417 = vadd.f32 %v3358, %v3390
      %v3418 = vadd.f32 %v3363, %v3390
      %v3419 = vadd.f32 %v3366, %v3390
      %v3420 = vadd.f32 %v3371, %v3390
      %v3421 = vadd.f32 %v3374, %v3390
      %v3422 = vadd.f32 %v3379, %v3390
      %v3423 = vadd.f32 %v3382, %v3390
      %v3424 = vsel %vm1770, %v3392, 0.0
      %v3425 = vsel %vm1770, %v3393, 0.0
      %v3426 = vadd.f32 %v3424, %v3425
      %v3427 = vsel %vm1770, %v3394, 0.0
      %v3428 = vadd.f32 %v3426, %v3427
      %v3429 = vsel %vm1770, %v3395, 0.0
      %v3430 = vadd.f32 %v3428, %v3429
      %v3431 = vsel %vm1770, %v3396, 0.0
      %v3432 = vadd.f32 %v3430, %v3431
      %v3433 = vsel %vm1770, %v3397, 0.0
      %v3434 = vadd.f32 %v3432, %v3433
      %v3435 = vsel %vm1770, %v3398, 0.0
      %v3436 = vadd.f32 %v3434, %v3435
      %v3437 = vsel %vm1770, %v3399, 0.0
      %v3438 = vadd.f32 %v3436, %v3437
      %v3439 = vsel %vm1770, %v3400, 0.0
      %v3440 = vadd.f32 %v3438, %v3439
      %v3441 = vsel %vm1770, %v3401, 0.0
      %v3442 = vadd.f32 %v3440, %v3441
      %v3443 = vsel %vm1770, %v3402, 0.0
      %v3444 = vadd.f32 %v3442, %v3443
      %v3445 = vsel %vm1770, %v3403, 0.0
      %v3446 = vadd.f32 %v3444, %v3445
      %v3447 = vsel %vm1770, %v3404, 0.0
      %v3448 = vadd.f32 %v3446, %v3447
      %v3449 = vsel %vm1770, %v3405, 0.0
      %v3450 = vadd.f32 %v3448, %v3449
      %v3451 = vsel %vm1770, %v3406, 0.0
      %v3452 = vadd.f32 %v3450, %v3451
      %v3453 = vsel %vm1770, %v3407, 0.0
      %v3454 = vadd.f32 %v3452, %v3453
      %v3455 = vsel %vm1770, %v3408, 0.0
      %v3456 = vadd.f32 %v3454, %v3455
      %v3457 = vsel %vm1770, %v3409, 0.0
      %v3458 = vadd.f32 %v3456, %v3457
      %v3459 = vsel %vm1770, %v3410, 0.0
      %v3460 = vadd.f32 %v3458, %v3459
      %v3461 = vsel %vm1770, %v3411, 0.0
      %v3462 = vadd.f32 %v3460, %v3461
      %v3463 = vsel %vm1770, %v3412, 0.0
      %v3464 = vadd.f32 %v3462, %v3463
      %v3465 = vsel %vm1770, %v3413, 0.0
      %v3466 = vadd.f32 %v3464, %v3465
      %v3467 = vsel %vm1770, %v3414, 0.0
      %v3468 = vadd.f32 %v3466, %v3467
      %v3469 = vsel %vm1770, %v3415, 0.0
      %v3470 = vadd.f32 %v3468, %v3469
      %v3471 = vsel %vm1770, %v3416, 0.0
      %v3472 = vadd.f32 %v3470, %v3471
      %v3473 = vsel %vm1770, %v3417, 0.0
      %v3474 = vadd.f32 %v3472, %v3473
      %v3475 = vsel %vm1770, %v3418, 0.0
      %v3476 = vadd.f32 %v3474, %v3475
      %v3477 = vsel %vm1770, %v3419, 0.0
      %v3478 = vadd.f32 %v3476, %v3477
      %v3479 = vsel %vm1770, %v3420, 0.0
      %v3480 = vadd.f32 %v3478, %v3479
      %v3481 = vsel %vm1770, %v3421, 0.0
      %v3482 = vadd.f32 %v3480, %v3481
      %v3483 = vsel %vm1770, %v3422, 0.0
      %v3484 = vadd.f32 %v3482, %v3483
      %v3485 = vsel %vm1770, %v3423, 0.0
      %v3486 = vadd.f32 %v3484, %v3485
      %3487 = vst.msk [vmem:[%s295] sm:$0xff] %vm1770, %v3486
      %v3488 = vmul.f32 %v3392, %v3392
      %v3489 = vmul.f32 %v3393, %v3393
      %v3490 = vmul.f32 %v3394, %v3394
      %v3491 = vmul.f32 %v3395, %v3395
      %v3492 = vmul.f32 %v3396, %v3396
      %v3493 = vmul.f32 %v3397, %v3397
      %v3494 = vmul.f32 %v3398, %v3398
      %v3495 = vmul.f32 %v3399, %v3399
      %v3496 = vmul.f32 %v3400, %v3400
      %v3497 = vmul.f32 %v3401, %v3401
      %v3498 = vmul.f32 %v3402, %v3402
      %v3499 = vmul.f32 %v3403, %v3403
      %v3500 = vmul.f32 %v3404, %v3404
      %v3501 = vmul.f32 %v3405, %v3405
      %v3502 = vmul.f32 %v3406, %v3406
      %v3503 = vmul.f32 %v3407, %v3407
      %v3504 = vmul.f32 %v3408, %v3408
      %v3505 = vmul.f32 %v3409, %v3409
      %v3506 = vmul.f32 %v3410, %v3410
      %v3507 = vmul.f32 %v3411, %v3411
      %v3508 = vmul.f32 %v3412, %v3412
      %v3509 = vmul.f32 %v3413, %v3413
      %v3510 = vmul.f32 %v3414, %v3414
      %v3511 = vmul.f32 %v3415, %v3415
      %v3512 = vmul.f32 %v3416, %v3416
      %v3513 = vmul.f32 %v3417, %v3417
      %v3514 = vmul.f32 %v3418, %v3418
      %v3515 = vmul.f32 %v3419, %v3419
      %v3516 = vmul.f32 %v3420, %v3420
      %v3517 = vmul.f32 %v3421, %v3421
      %v3518 = vmul.f32 %v3422, %v3422
      %v3519 = vmul.f32 %v3423, %v3423
      %v3520 = vsel %vm1770, %v3488, 0.0
      %v3521 = vsel %vm1770, %v3489, 0.0
      %v3522 = vadd.f32 %v3520, %v3521
      %v3523 = vsel %vm1770, %v3490, 0.0
      %v3524 = vadd.f32 %v3522, %v3523
      %v3525 = vsel %vm1770, %v3491, 0.0
      %v3526 = vadd.f32 %v3524, %v3525
      %v3527 = vsel %vm1770, %v3492, 0.0
      %v3528 = vadd.f32 %v3526, %v3527
      %v3529 = vsel %vm1770, %v3493, 0.0
      %v3530 = vadd.f32 %v3528, %v3529
      %v3531 = vsel %vm1770, %v3494, 0.0
      %v3532 = vadd.f32 %v3530, %v3531
      %v3533 = vsel %vm1770, %v3495, 0.0
      %v3534 = vadd.f32 %v3532, %v3533
      %v3535 = vsel %vm1770, %v3496, 0.0
      %v3536 = vadd.f32 %v3534, %v3535
      %v3537 = vsel %vm1770, %v3497, 0.0
      %v3538 = vadd.f32 %v3536, %v3537
      %v3539 = vsel %vm1770, %v3498, 0.0
      %v3540 = vadd.f32 %v3538, %v3539
      %v3541 = vsel %vm1770, %v3499, 0.0
      %v3542 = vadd.f32 %v3540, %v3541
      %v3543 = vsel %vm1770, %v3500, 0.0
      %v3544 = vadd.f32 %v3542, %v3543
      %v3545 = vsel %vm1770, %v3501, 0.0
      %v3546 = vadd.f32 %v3544, %v3545
      %v3547 = vsel %vm1770, %v3502, 0.0
      %v3548 = vadd.f32 %v3546, %v3547
      %v3549 = vsel %vm1770, %v3503, 0.0
      %v3550 = vadd.f32 %v3548, %v3549
      %v3551 = vsel %vm1770, %v3504, 0.0
      %v3552 = vadd.f32 %v3550, %v3551
      %v3553 = vsel %vm1770, %v3505, 0.0
      %v3554 = vadd.f32 %v3552, %v3553
      %v3555 = vsel %vm1770, %v3506, 0.0
      %v3556 = vadd.f32 %v3554, %v3555
      %v3557 = vsel %vm1770, %v3507, 0.0
      %v3558 = vadd.f32 %v3556, %v3557
      %v3559 = vsel %vm1770, %v3508, 0.0
      %v3560 = vadd.f32 %v3558, %v3559
      %v3561 = vsel %vm1770, %v3509, 0.0
      %v3562 = vadd.f32 %v3560, %v3561
      %v3563 = vsel %vm1770, %v3510, 0.0
      %v3564 = vadd.f32 %v3562, %v3563
      %v3565 = vsel %vm1770, %v3511, 0.0
      %v3566 = vadd.f32 %v3564, %v3565
      %v3567 = vsel %vm1770, %v3512, 0.0
      %v3568 = vadd.f32 %v3566, %v3567
      %v3569 = vsel %vm1770, %v3513, 0.0
      %v3570 = vadd.f32 %v3568, %v3569
      %v3571 = vsel %vm1770, %v3514, 0.0
      %v3572 = vadd.f32 %v3570, %v3571
      %v3573 = vsel %vm1770, %v3515, 0.0
      %v3574 = vadd.f32 %v3572, %v3573
      %v3575 = vsel %vm1770, %v3516, 0.0
      %v3576 = vadd.f32 %v3574, %v3575
      %v3577 = vsel %vm1770, %v3517, 0.0
      %v3578 = vadd.f32 %v3576, %v3577
      %v3579 = vsel %vm1770, %v3518, 0.0
      %v3580 = vadd.f32 %v3578, %v3579
      %v3581 = vsel %vm1770, %v3519, 0.0
      %v3582 = vadd.f32 %v3580, %v3581
      %3583 = vst.msk [vmem:[%s299] sm:$0xff] %vm1770, %v3582
      %v3584 = vpack.c.bf16 %v3393, %v3392
      %v3585 = vpack.c.bf16 %v3395, %v3394
      %v3586 = vpack.c.bf16 %v3397, %v3396
      %v3587 = vpack.c.bf16 %v3399, %v3398
      %v3588 = vpack.c.bf16 %v3401, %v3400
      %v3589 = vpack.c.bf16 %v3403, %v3402
      %v3590 = vpack.c.bf16 %v3405, %v3404
      %v3591 = vpack.c.bf16 %v3407, %v3406
      %v3592 = vpack.c.bf16 %v3409, %v3408
      %v3593 = vpack.c.bf16 %v3411, %v3410
      %v3594 = vpack.c.bf16 %v3413, %v3412
      %v3595 = vpack.c.bf16 %v3415, %v3414
      %v3596 = vpack.c.bf16 %v3417, %v3416
      %v3597 = vpack.c.bf16 %v3419, %v3418
      %v3598 = vpack.c.bf16 %v3421, %v3420
      %v3599 = vpack.c.bf16 %v3423, %v3422
      %v3616 = vunpack.c.l.b16 %v3584
      %v3617 = vunpack.c.h.b16 %v3584
      %v3618 = vunpack.c.l.b16 %v3585
      %v3619 = vunpack.c.h.b16 %v3585
      %v3620 = vunpack.c.l.b16 %v3586
      %v3621 = vunpack.c.h.b16 %v3586
      %v3622 = vunpack.c.l.b16 %v3587
      %v3623 = vunpack.c.h.b16 %v3587
      %v3624 = vunpack.c.l.b16 %v3588
      %v3625 = vunpack.c.h.b16 %v3588
      %v3626 = vunpack.c.l.b16 %v3589
      %v3627 = vunpack.c.h.b16 %v3589
      %v3628 = vunpack.c.l.b16 %v3590
      %v3629 = vunpack.c.h.b16 %v3590
      %v3630 = vunpack.c.l.b16 %v3591
      %v3631 = vunpack.c.h.b16 %v3591
      %v3632 = vunpack.c.l.b16 %v3592
      %v3633 = vunpack.c.h.b16 %v3592
      %v3634 = vunpack.c.l.b16 %v3593
      %v3635 = vunpack.c.h.b16 %v3593
      %v3636 = vunpack.c.l.b16 %v3594
      %v3637 = vunpack.c.h.b16 %v3594
      %v3638 = vunpack.c.l.b16 %v3595
      %v3639 = vunpack.c.h.b16 %v3595
      %v3640 = vunpack.c.l.b16 %v3596
      %v3641 = vunpack.c.h.b16 %v3596
      %v3642 = vunpack.c.l.b16 %v3597
      %v3643 = vunpack.c.h.b16 %v3597
      %v3644 = vunpack.c.l.b16 %v3598
      %v3645 = vunpack.c.h.b16 %v3598
      %v3646 = vunpack.c.l.b16 %v3599
      %v3647 = vunpack.c.h.b16 %v3599
      %v3648 = vpack.c.b16 %v3616, %v3616
      %v3649 = vpack.c.b16 %v3617, %v3617
      %v3650 = vpack.c.b16 %v3618, %v3618
      %v3651 = vpack.c.b16 %v3619, %v3619
      %v3652 = vpack.c.b16 %v3620, %v3620
      %v3653 = vpack.c.b16 %v3621, %v3621
      %v3654 = vpack.c.b16 %v3622, %v3622
      %v3655 = vpack.c.b16 %v3623, %v3623
      %v3656 = vpack.c.b16 %v3624, %v3624
      %v3657 = vpack.c.b16 %v3625, %v3625
      %v3658 = vpack.c.b16 %v3626, %v3626
      %v3659 = vpack.c.b16 %v3627, %v3627
      %v3660 = vpack.c.b16 %v3628, %v3628
      %v3661 = vpack.c.b16 %v3629, %v3629
      %v3662 = vpack.c.b16 %v3630, %v3630
      %v3663 = vpack.c.b16 %v3631, %v3631
      %v3664 = vpack.c.b16 %v3632, %v3632
      %v3665 = vpack.c.b16 %v3633, %v3633
      %v3666 = vpack.c.b16 %v3634, %v3634
      %v3667 = vpack.c.b16 %v3635, %v3635
      %v3668 = vpack.c.b16 %v3636, %v3636
      %v3669 = vpack.c.b16 %v3637, %v3637
      %v3670 = vpack.c.b16 %v3638, %v3638
      %v3671 = vpack.c.b16 %v3639, %v3639
      %v3672 = vpack.c.b16 %v3640, %v3640
      %v3673 = vpack.c.b16 %v3641, %v3641
      %v3674 = vpack.c.b16 %v3642, %v3642
      %v3675 = vpack.c.b16 %v3643, %v3643
      %v3676 = vpack.c.b16 %v3644, %v3644
      %v3677 = vpack.c.b16 %v3645, %v3645
      %v3678 = vpack.c.b16 %v3646, %v3646
      %v3679 = vpack.c.b16 %v3647, %v3647
      %vm3712 = vcmask 60416
      %3713 = vst.msk [vmem:[%s291] sm:$0xf] %vm3712, %v3648
      %3714 = vst.msk [vmem:[%s291 + $0x4] sm:$0xf] %vm3712, %v3649
      %3715 = vst.msk [vmem:[%s291 + $0x8] sm:$0xf] %vm3712, %v3650
      %3716 = vst.msk [vmem:[%s291 + $0xc] sm:$0xf] %vm3712, %v3651
      %3717 = vst.msk [vmem:[%s291 + $0x10] sm:$0xf] %vm3712, %v3652
      %3718 = vst.msk [vmem:[%s291 + $0x14] sm:$0xf] %vm3712, %v3653
      %3719 = vst.msk [vmem:[%s291 + $0x18] sm:$0xf] %vm3712, %v3654
      %3720 = vst.msk [vmem:[%s291 + $0x1c] sm:$0xf] %vm3712, %v3655
      %3721 = vst.msk [vmem:[%s291 + $0x20] sm:$0xf] %vm3712, %v3656
      %3722 = vst.msk [vmem:[%s291 + $0x24] sm:$0xf] %vm3712, %v3657
      %3723 = vst.msk [vmem:[%s291 + $0x28] sm:$0xf] %vm3712, %v3658
      %3724 = vst.msk [vmem:[%s291 + $0x2c] sm:$0xf] %vm3712, %v3659
      %3725 = vst.msk [vmem:[%s291 + $0x30] sm:$0xf] %vm3712, %v3660
      %3726 = vst.msk [vmem:[%s291 + $0x34] sm:$0xf] %vm3712, %v3661
      %3727 = vst.msk [vmem:[%s291 + $0x38] sm:$0xf] %vm3712, %v3662
      %3728 = vst.msk [vmem:[%s291 + $0x3c] sm:$0xf] %vm3712, %v3663
      %3729 = vst.msk [vmem:[%s291 + $0x40] sm:$0xf] %vm3712, %v3664
      %3730 = vst.msk [vmem:[%s291 + $0x44] sm:$0xf] %vm3712, %v3665
      %3731 = vst.msk [vmem:[%s291 + $0x48] sm:$0xf] %vm3712, %v3666
      %3732 = vst.msk [vmem:[%s291 + $0x4c] sm:$0xf] %vm3712, %v3667
      %3733 = vst.msk [vmem:[%s291 + $0x50] sm:$0xf] %vm3712, %v3668
      %3734 = vst.msk [vmem:[%s291 + $0x54] sm:$0xf] %vm3712, %v3669
      %3735 = vst.msk [vmem:[%s291 + $0x58] sm:$0xf] %vm3712, %v3670
      %3736 = vst.msk [vmem:[%s291 + $0x5c] sm:$0xf] %vm3712, %v3671
      %3737 = vst.msk [vmem:[%s291 + $0x60] sm:$0xf] %vm3712, %v3672
      %3738 = vst.msk [vmem:[%s291 + $0x64] sm:$0xf] %vm3712, %v3673
      %3739 = vst.msk [vmem:[%s291 + $0x68] sm:$0xf] %vm3712, %v3674
      %3740 = vst.msk [vmem:[%s291 + $0x6c] sm:$0xf] %vm3712, %v3675
      %3741 = vst.msk [vmem:[%s291 + $0x70] sm:$0xf] %vm3712, %v3676
      %3742 = vst.msk [vmem:[%s291 + $0x74] sm:$0xf] %vm3712, %v3677
      %3743 = vst.msk [vmem:[%s291 + $0x78] sm:$0xf] %vm3712, %v3678
      %3744 = vst.msk [vmem:[%s291 + $0x7c] sm:$0xf] %vm3712, %v3679
      %p3745 = scmp.lt.s32.totalorder %s19, 1
      %s3746 = scalar_select %p3745, %s19, 1
      %s3747 = smul.addr %s3746, 32
      %s3748 = smul.addr %s3747, 4
      %s3749 = scalar_lea.vmem %s5, %s3748
      %p3750 = scmp.lt.s32.totalorder %s19, 1
      %s3751 = scalar_select %p3750, %s19, 1
      %s3752 = smul.addr %s3751, 8
      %s3753 = scalar_lea.vmem %s6, %s3752
      %p3754 = scmp.lt.s32.totalorder %s19, 1
      %s3755 = scalar_select %p3754, %s19, 1
      %s3756 = smul.addr %s3755, 8
      %s3757 = scalar_lea.vmem %s7, %s3756
      // Predicated region
      $region41: #{inconv_forward.4} parent=39 // pred_check
        %p3758 = pneg %p147
      $region42: #{inconv_forward.4} parent=39 // pred_check_branch
        %3760 = sbr.rel (%p3758) target = $region44
      $region43: #{inconv_forward.4} parent=39 // pred_region
        _
      $region44: #{inconv_forward.4} parent=39 // pred_fallthru
        _
      // Predicated region
      $region45: #{inconv_forward.4} parent=39 // pred_check
        %p3761 = pneg %p173
      $region46: #{inconv_forward.4} parent=39 // pred_check_branch
        %3763 = sbr.rel (%p3761) target = $region48
      $region47: #{inconv_forward.4} parent=39 // pred_region
        _
      $region48: #{inconv_forward.4} parent=39 // pred_fallthru
        _
      // Predicated region
      $region49: #{inconv_forward.4} parent=39 // pred_check
        %p3764 = pneg %p199
      $region50: #{inconv_forward.4} parent=39 // pred_check_branch
        %3766 = sbr.rel (%p3764) target = $region52
      $region51: #{inconv_forward.4} parent=39 // pred_region
        _
      $region52: #{inconv_forward.4} parent=39 // pred_fallthru
        _
    $region40: #{inconv_forward.4} parent=5 // pred_fallthru
      _
    %p3767 = scmp.le.s32.totalorder 2, %s14
    // Predicated region
    $region53: #{inconv_forward.4} parent=5 // pred_check
      %p3768 = pneg %p3767
    $region54: #{inconv_forward.4} parent=5 // pred_check_branch
      %3770 = sbr.rel (%p3768) target = $region56
    $region55: #{inconv_forward.4} parent=5 // pred_region
      %s3771 = ssub.s32 %s14, 2
      // Predicated region
      $region57: #{inconv_forward.4} parent=55 // pred_check
        %p3772 = pneg %p153
      $region58: #{inconv_forward.4} parent=55 // pred_check_branch
        %3774 = sbr.rel (%p3772) target = $region60
      $region59: #{inconv_forward.4} parent=55 // pred_region
        %p3775 = scmp.lt.s32.totalorder %s20, 1
        %s3776 = scalar_select %p3775, %s20, 1
        %s3777 = smul.addr %s3776, 32
        %s3778 = smul.addr %s3777, 4
        %s3779 = scalar_lea.vmem %s5, %s3778
      $region60: #{inconv_forward.4} parent=55 // pred_fallthru
        _
      // Predicated region
      $region61: #{inconv_forward.4} parent=55 // pred_check
        %p3780 = pneg %p179
      $region62: #{inconv_forward.4} parent=55 // pred_check_branch
        %3782 = sbr.rel (%p3780) target = $region64
      $region63: #{inconv_forward.4} parent=55 // pred_region
        %p3783 = scmp.lt.s32.totalorder %s20, 1
        %s3784 = scalar_select %p3783, %s20, 1
        %s3785 = smul.addr %s3784, 8
        %s3786 = scalar_lea.vmem %s6, %s3785
      $region64: #{inconv_forward.4} parent=55 // pred_fallthru
        _
      // Predicated region
      $region65: #{inconv_forward.4} parent=55 // pred_check
        %p3787 = pneg %p205
      $region66: #{inconv_forward.4} parent=55 // pred_check_branch
        %3789 = sbr.rel (%p3787) target = $region68
      $region67: #{inconv_forward.4} parent=55 // pred_region
        %p3790 = scmp.lt.s32.totalorder %s20, 1
        %s3791 = scalar_select %p3790, %s20, 1
        %s3792 = smul.addr %s3791, 8
        %s3793 = scalar_lea.vmem %s7, %s3792
      $region68: #{inconv_forward.4} parent=55 // pred_fallthru
        _
    $region56: #{inconv_forward.4} parent=5 // pred_fallthru
      _
  $region6: #{inconv_forward.4} parent=0 // loop_footer
    %s18 = sadd.s32 1, %s14
  $region7: #{inconv_forward.4} parent=0 // loop_footer_branch
    %13 = sbr.rel target = $region3
  $region8: #{inconv_forward.4} parent=0 // loop_exit
    _

// kernel: inconv_forward.3
$region0: #{inconv_forward.3}
  #allocation0 [shape = 'u32[]', space=smem, size = 0x4, offset = 0x4, fixed_abs, tag = 'smem constant byte address 0x4 - core index']
  #allocation1 [shape = 'u32[144,128]{1,0:T(1,128)}', space=vmem, size = 0x12000, scoped, tag = 'internal scratch']
  %s0 = inlined_call_operand.vmem [shape: bf16[2,16,16,4], index: 0, kind: input, shape index: {}]
  %s1 = inlined_call_operand.vmem [shape: bf16[128,128], index: 1, kind: input, shape index: {}]
  %s2 = inlined_call_operand.vmem [shape: f32[1,8], index: 2, kind: input, shape index: {}]
  %s3 = inlined_call_operand.vmem [shape: bf16[2,16,16,8], index: 3, kind: output, shape index: {0}]
  %s4 = inlined_call_operand.vmem [shape: f32[2,8,8], index: 4, kind: output, shape index: {1}]
  %s5 = inlined_call_operand.vmem [shape: f32[2,8,8], index: 5, kind: output, shape index: {2}]
  %6 = xla_tuple %s3, %s4, %s5
  %s7 = sld [smem:[#allocation0]]
  $region61: #{inconv_forward.3} parent=0
    _
  %s9 = ssub.s32 1, %s7
  %s10 = scalar_select 0, %s9, %s7
  loop: start=0, step=1, limit=4
  $region2: #{inconv_forward.3} parent=0 // loop_pre_header
    _
  $region3: #{inconv_forward.3} parent=0 // loop_header
    %s12 = sphi 0, %s16
    %p13 = scmp.ge.s32.totalorder %s12, 4
    %s22 = sphi 0, %s24
    %s25 = sphi 0, %s22
    %s26 = sphi 0, %s25
    %s42 = sphi 0, %s26
    %s46 = sphi 0, %s46
    %s48 = sphi 0, %s46
    %s49 = sphi 0, %s48
    %s63 = sphi 0, %s49
    %s67 = sphi 0, %s67
    %s69 = sphi 0, %s67
    %s70 = sphi 0, %s69
    %s84 = sphi 0, %s70
    %s90 = sphi 0, %s92
    %s93 = sphi 0, %s90
    %s94 = sphi 0, %s93
    %s110 = sphi 0, %s94
    %s116 = sphi 0, %s118
    %s119 = sphi 0, %s116
    %s120 = sphi 0, %s119
    %s136 = sphi 0, %s120
    %s142 = sphi 0, %s144
    %s145 = sphi 0, %s142
    %s146 = sphi 0, %s145
    %s162 = sphi 0, %s146
  $region4: #{inconv_forward.3} parent=0 // loop_header_branch
    %15 = sbr.rel (%p13) target = $region8
  $region5: #{inconv_forward.3} parent=0 // loop_body
    %s17 = ssub.s32 %s12, 1
    %s18 = ssub.s32 %s12, 2
    %s19 = sadd.s32 %s12, 1
    %s20 = ssub.s32 %s12, %s19
    %p21 = scmp.eq.s32.totalorder %s20, 0
    %s23 = sadd.s32 %s22, 1
    %s24 = scalar_select %p21, %s22, %s23
    %p27 = pneg %p21
    %p28 = scmp.eq.s32.totalorder %s12, 1
    %p29 = por %p27, %p28
    %p30 = scmp.ne.s32.totalorder %s22, %s25
    %p31 = scmp.eq.s32.totalorder %s12, 0
    %p32 = por %p30, %p31
    %p33 = scmp.ne.s32.totalorder %s22, %s25
    %p34 = scmp.eq.s32.totalorder %s17, 1
    %p35 = por %p33, %p34
    %p36 = scmp.ne.s32.totalorder %s25, %s26
    %p37 = scmp.eq.s32.totalorder %s17, 0
    %p38 = por %p36, %p37
    %p39 = scmp.ne.s32.totalorder %s25, %s26
    %p40 = scmp.eq.s32.totalorder %s18, 1
    %p41 = por %p39, %p40
    %p43 = scmp.ne.s32.totalorder %s26, %s42
    %p44 = scmp.eq.s32.totalorder %s18, 0
    %p45 = por %p43, %p44
    %s47 = sadd.s32 %s46, 1
    %p50 = scmp.eq.s32.totalorder %s12, 1
    %p51 = scmp.ne.s32.totalorder %s46, %s48
    %p52 = scmp.eq.s32.totalorder %s12, 0
    %p53 = por %p51, %p52
    %p54 = scmp.ne.s32.totalorder %s46, %s48
    %p55 = scmp.eq.s32.totalorder %s17, 1
    %p56 = por %p54, %p55
    %p57 = scmp.ne.s32.totalorder %s48, %s49
    %p58 = scmp.eq.s32.totalorder %s17, 0
    %p59 = por %p57, %p58
    %p60 = scmp.ne.s32.totalorder %s48, %s49
    %p61 = scmp.eq.s32.totalorder %s18, 1
    %p62 = por %p60, %p61
    %p64 = scmp.ne.s32.totalorder %s49, %s63
    %p65 = scmp.eq.s32.totalorder %s18, 0
    %p66 = por %p64, %p65
    %s68 = sadd.s32 %s67, 1
    %p71 = scmp.eq.s32.totalorder %s12, 1
    %p72 = scmp.ne.s32.totalorder %s67, %s69
    %p73 = scmp.eq.s32.totalorder %s12, 0
    %p74 = por %p72, %p73
    %p75 = scmp.ne.s32.totalorder %s67, %s69
    %p76 = scmp.eq.s32.totalorder %s17, 1
    %p77 = por %p75, %p76
    %p78 = scmp.ne.s32.totalorder %s69, %s70
    %p79 = scmp.eq.s32.totalorder %s17, 0
    %p80 = por %p78, %p79
    %p81 = scmp.ne.s32.totalorder %s69, %s70
    %p82 = scmp.eq.s32.totalorder %s18, 1
    %p83 = por %p81, %p82
    %p85 = scmp.ne.s32.totalorder %s70, %s84
    %p86 = scmp.eq.s32.totalorder %s18, 0
    %p87 = por %p85, %p86
    %s88 = ssub.s32 %s12, %s19
    %p89 = scmp.eq.s32.totalorder %s88, 0
    %s91 = sadd.s32 %s90, 1
    %s92 = scalar_select %p89, %s90, %s91
    %p95 = pneg %p89
    %p96 = scmp.eq.s32.totalorder %s12, 1
    %p97 = por %p95, %p96
    %p98 = scmp.ne.s32.totalorder %s90, %s93
    %p99 = scmp.eq.s32.totalorder %s12, 0
    %p100 = por %p98, %p99
    %p101 = scmp.ne.s32.totalorder %s90, %s93
    %p102 = scmp.eq.s32.totalorder %s17, 1
    %p103 = por %p101, %p102
    %p104 = scmp.ne.s32.totalorder %s93, %s94
    %p105 = scmp.eq.s32.totalorder %s17, 0
    %p106 = por %p104, %p105
    %p107 = scmp.ne.s32.totalorder %s93, %s94
    %p108 = scmp.eq.s32.totalorder %s18, 1
    %p109 = por %p107, %p108
    %p111 = scmp.ne.s32.totalorder %s94, %s110
    %p112 = scmp.eq.s32.totalorder %s18, 0
    %p113 = por %p111, %p112
    %s114 = ssub.s32 %s12, %s19
    %p115 = scmp.eq.s32.totalorder %s114, 0
    %s117 = sadd.s32 %s116, 1
    %s118 = scalar_select %p115, %s116, %s117
    %p121 = pneg %p115
    %p122 = scmp.eq.s32.totalorder %s12, 1
    %p123 = por %p121, %p122
    %p124 = scmp.ne.s32.totalorder %s116, %s119
    %p125 = scmp.eq.s32.totalorder %s12, 0
    %p126 = por %p124, %p125
    %p127 = scmp.ne.s32.totalorder %s116, %s119
    %p128 = scmp.eq.s32.totalorder %s17, 1
    %p129 = por %p127, %p128
    %p130 = scmp.ne.s32.totalorder %s119, %s120
    %p131 = scmp.eq.s32.totalorder %s17, 0
    %p132 = por %p130, %p131
    %p133 = scmp.ne.s32.totalorder %s119, %s120
    %p134 = scmp.eq.s32.totalorder %s18, 1
    %p135 = por %p133, %p134
    %p137 = scmp.ne.s32.totalorder %s120, %s136
    %p138 = scmp.eq.s32.totalorder %s18, 0
    %p139 = por %p137, %p138
    %s140 = ssub.s32 %s12, %s19
    %p141 = scmp.eq.s32.totalorder %s140, 0
    %s143 = sadd.s32 %s142, 1
    %s144 = scalar_select %p141, %s142, %s143
    %p147 = pneg %p141
    %p148 = scmp.eq.s32.totalorder %s12, 1
    %p149 = por %p147, %p148
    %p150 = scmp.ne.s32.totalorder %s142, %s145
    %p151 = scmp.eq.s32.totalorder %s12, 0
    %p152 = por %p150, %p151
    %p153 = scmp.ne.s32.totalorder %s142, %s145
    %p154 = scmp.eq.s32.totalorder %s17, 1
    %p155 = por %p153, %p154
    %p156 = scmp.ne.s32.totalorder %s145, %s146
    %p157 = scmp.eq.s32.totalorder %s17, 0
    %p158 = por %p156, %p157
    %p159 = scmp.ne.s32.totalorder %s145, %s146
    %p160 = scmp.eq.s32.totalorder %s18, 1
    %p161 = por %p159, %p160
    %p163 = scmp.ne.s32.totalorder %s146, %s162
    %p164 = scmp.eq.s32.totalorder %s18, 0
    %p165 = por %p163, %p164
    %p166 = scmp.le.s32.totalorder 1, %s12
    %p167 = scmp.lt.s32.totalorder %s12, 3
    %p168 = pnand %p166, %p167
    %p169 = pneg %p168
    // Predicated region
    $region9: #{inconv_forward.3} parent=5 // pred_check
      _
    $region10: #{inconv_forward.3} parent=5 // pred_check_branch
      %171 = sbr.rel (%p168) target = $region12
    $region11: #{inconv_forward.3} parent=5 // pred_region
      %s172 = ssub.s32 %s12, 1
      // Predicated region
      $region13: #{inconv_forward.3} parent=11 // pred_check
        %p173 = pneg %p59
      $region14: #{inconv_forward.3} parent=11 // pred_check_branch
        %175 = sbr.rel (%p173) target = $region16
      $region15: #{inconv_forward.3} parent=11 // pred_region
        _
      $region16: #{inconv_forward.3} parent=11 // pred_fallthru
        _
      // Predicated region
      $region17: #{inconv_forward.3} parent=11 // pred_check
        %p176 = pneg %p80
      $region18: #{inconv_forward.3} parent=11 // pred_check_branch
        %178 = sbr.rel (%p176) target = $region20
      $region19: #{inconv_forward.3} parent=11 // pred_region
        _
      $region20: #{inconv_forward.3} parent=11 // pred_fallthru
        _
    $region12: #{inconv_forward.3} parent=5 // pred_fallthru
      _
    %p179 = scmp.lt.s32.totalorder %s12, 2
    // Predicated region
    $region21: #{inconv_forward.3} parent=5 // pred_check
      %p180 = pneg %p179
    $region22: #{inconv_forward.3} parent=5 // pred_check_branch
      %182 = sbr.rel (%p180) target = $region24
    $region23: #{inconv_forward.3} parent=5 // pred_region
      // Predicated region
      $region25: #{inconv_forward.3} parent=23 // pred_check
        %p183 = pneg %p32
      $region26: #{inconv_forward.3} parent=23 // pred_check_branch
        %185 = sbr.rel (%p183) target = $region28
      $region27: #{inconv_forward.3} parent=23 // pred_region
        %p186 = scmp.lt.s32.totalorder %s12, 1
        %s187 = scalar_select %p186, %s12, 1
        %s188 = smul.addr %s187, 32
        %s189 = smul.addr %s188, 4
        %s190 = scalar_lea.vmem %s0, %s189
      $region28: #{inconv_forward.3} parent=23 // pred_fallthru
        _
    $region24: #{inconv_forward.3} parent=5 // pred_fallthru
      _
    %p191 = scmp.le.s32.totalorder 1, %s12
    %p192 = scmp.lt.s32.totalorder %s12, 3
    %p193 = pnand %p191, %p192
    %p194 = pneg %p193
    // Predicated region
    $region29: #{inconv_forward.3} parent=5 // pred_check
      _
    $region30: #{inconv_forward.3} parent=5 // pred_check_branch
      %196 = sbr.rel (%p193) target = $region32
    $region31: #{inconv_forward.3} parent=5 // pred_region
      %s197 = ssub.s32 %s12, 1
      %p198 = scmp.lt.s32.totalorder %s17, 1
      %s199 = scalar_select %p198, %s17, 1
      %s200 = smul.addr %s199, 32
      %s201 = smul.addr %s200, 4
      %s202 = scalar_lea.vmem %s0, %s201
      %p203 = pneg %p38
      %p204 = pneg %p35
      %p205 = pneg %p59
      %p206 = pneg %p56
      %p207 = pneg %p80
      %p208 = pneg %p77
      %p209 = pneg %p106
      %p210 = pneg %p103
      %p211 = scmp.lt.s32.totalorder %s17, 1
      %s212 = scalar_select %p211, %s17, 1
      %s213 = smul.addr %s212, 32
      %s214 = smul.addr %s213, 4
      %s215 = scalar_lea.vmem %s3, %s214
      %p216 = pneg %p132
      %p217 = pneg %p129
      %p218 = scmp.lt.s32.totalorder %s17, 1
      %s219 = scalar_select %p218, %s17, 1
      %s220 = smul.addr %s219, 8
      %s221 = scalar_lea.vmem %s4, %s220
      %p222 = pneg %p158
      %p223 = pneg %p155
      %p224 = scmp.lt.s32.totalorder %s17, 1
      %s225 = scalar_select %p224, %s17, 1
      %s226 = smul.addr %s225, 8
      %s227 = scalar_lea.vmem %s5, %s226
      %p228 = scmp.lt.s32.totalorder %s17, 1
      %s229 = scalar_select %p228, %s17, 1
      %s230 = smul.addr %s229, 32
      %s231 = smul.addr %s230, 4
      %s232 = scalar_lea.vmem %s0, %s231
      %p233 = scmp.lt.s32.totalorder %s17, 1
      %s234 = scalar_select %p233, %s17, 1
      %s235 = smul.addr %s234, 32
      %s236 = smul.addr %s235, 4
      %s237 = scalar_lea.vmem %s3, %s236
      %p238 = scmp.lt.s32.totalorder %s17, 1
      %s239 = scalar_select %p238, %s17, 1
      %s240 = smul.addr %s239, 8
      %s241 = scalar_lea.vmem %s4, %s240
      %p242 = scmp.lt.s32.totalorder %s17, 1
      %s243 = scalar_select %p242, %s17, 1
      %s244 = smul.addr %s243, 8
      %s245 = scalar_lea.vmem %s5, %s244
      %v247 = vld [vmem:[%s232] sm:$0xf]
      %v248 = vld [vmem:[%s232 + $0x4] sm:$0xf]
      %v249 = vld [vmem:[%s232 + $0x8] sm:$0xf]
      %v250 = vld [vmem:[%s232 + $0xc] sm:$0xf]
      %v251 = vld [vmem:[%s232 + $0x10] sm:$0xf]
      %v252 = vld [vmem:[%s232 + $0x14] sm:$0xf]
      %v253 = vld [vmem:[%s232 + $0x18] sm:$0xf]
      %v254 = vld [vmem:[%s232 + $0x1c] sm:$0xf]
      %v255 = vld [vmem:[%s232 + $0x20] sm:$0xf]
      %v256 = vld [vmem:[%s232 + $0x24] sm:$0xf]
      %v257 = vld [vmem:[%s232 + $0x28] sm:$0xf]
      %v258 = vld [vmem:[%s232 + $0x2c] sm:$0xf]
      %v259 = vld [vmem:[%s232 + $0x30] sm:$0xf]
      %v260 = vld [vmem:[%s232 + $0x34] sm:$0xf]
      %v261 = vld [vmem:[%s232 + $0x38] sm:$0xf]
      %v262 = vld [vmem:[%s232 + $0x3c] sm:$0xf]
      %v263 = vld [vmem:[%s232 + $0x40] sm:$0xf]
      %v264 = vld [vmem:[%s232 + $0x44] sm:$0xf]
      %v265 = vld [vmem:[%s232 + $0x48] sm:$0xf]
      %v266 = vld [vmem:[%s232 + $0x4c] sm:$0xf]
      %v267 = vld [vmem:[%s232 + $0x50] sm:$0xf]
      %v268 = vld [vmem:[%s232 + $0x54] sm:$0xf]
      %v269 = vld [vmem:[%s232 + $0x58] sm:$0xf]
      %v270 = vld [vmem:[%s232 + $0x5c] sm:$0xf]
      %v271 = vld [vmem:[%s232 + $0x60] sm:$0xf]
      %v272 = vld [vmem:[%s232 + $0x64] sm:$0xf]
      %v273 = vld [vmem:[%s232 + $0x68] sm:$0xf]
      %v274 = vld [vmem:[%s232 + $0x6c] sm:$0xf]
      %v275 = vld [vmem:[%s232 + $0x70] sm:$0xf]
      %v276 = vld [vmem:[%s232 + $0x74] sm:$0xf]
      %v277 = vld [vmem:[%s232 + $0x78] sm:$0xf]
      %v278 = vld [vmem:[%s232 + $0x7c] sm:$0xf]
      %v295 = vunpack.c.l.b16 %v247
      %v296 = vunpack.c.l.b16 %v249
      %v297 = vunpack.c.l.b16 %v251
      %v298 = vunpack.c.l.b16 %v253
      %v299 = vunpack.c.l.b16 %v255
      %v300 = vunpack.c.l.b16 %v257
      %v301 = vunpack.c.l.b16 %v259
      %v302 = vunpack.c.l.b16 %v261
      %v303 = vunpack.c.l.b16 %v263
      %v304 = vunpack.c.l.b16 %v265
      %v305 = vunpack.c.l.b16 %v267
      %v306 = vunpack.c.l.b16 %v269
      %v307 = vunpack.c.l.b16 %v271
      %v308 = vunpack.c.l.b16 %v273
      %v309 = vunpack.c.l.b16 %v275
      %v310 = vunpack.c.l.b16 %v277
      %v311 = vpack.c.b16 %v295, %v295
      %v312 = vpack.c.b16 %v296, %v296
      %v313 = vpack.c.b16 %v297, %v297
      %v314 = vpack.c.b16 %v298, %v298
      %v315 = vpack.c.b16 %v299, %v299
      %v316 = vpack.c.b16 %v300, %v300
      %v317 = vpack.c.b16 %v301, %v301
      %v318 = vpack.c.b16 %v302, %v302
      %v319 = vpack.c.b16 %v303, %v303
      %v320 = vpack.c.b16 %v304, %v304
      %v321 = vpack.c.b16 %v305, %v305
      %v322 = vpack.c.b16 %v306, %v306
      %v323 = vpack.c.b16 %v307, %v307
      %v324 = vpack.c.b16 %v308, %v308
      %v325 = vpack.c.b16 %v309, %v309
      %v326 = vpack.c.b16 %v310, %v310
      %v328 = vshll.u32 %v311, 16
      %v331 = vshll.u32 %v312, 16
      %v334 = vshll.u32 %v313, 16
      %v337 = vshll.u32 %v314, 16
      %v340 = vshll.u32 %v315, 16
      %v343 = vshll.u32 %v316, 16
      %v346 = vshll.u32 %v317, 16
      %v349 = vshll.u32 %v318, 16
      %v352 = vshll.u32 %v319, 16
      %v355 = vshll.u32 %v320, 16
      %v358 = vshll.u32 %v321, 16
      %v361 = vshll.u32 %v322, 16
      %v364 = vshll.u32 %v323, 16
      %v367 = vshll.u32 %v324, 16
      %v370 = vshll.u32 %v325, 16
      %v373 = vshll.u32 %v326, 16
      %v407 = vunpack.c.l.b16 %v248
      %v408 = vunpack.c.l.b16 %v250
      %v409 = vunpack.c.l.b16 %v252
      %v410 = vunpack.c.l.b16 %v254
      %v411 = vunpack.c.l.b16 %v256
      %v412 = vunpack.c.l.b16 %v258
      %v413 = vunpack.c.l.b16 %v260
      %v414 = vunpack.c.l.b16 %v262
      %v415 = vunpack.c.l.b16 %v264
      %v416 = vunpack.c.l.b16 %v266
      %v417 = vunpack.c.l.b16 %v268
      %v418 = vunpack.c.l.b16 %v270
      %v419 = vunpack.c.l.b16 %v272
      %v420 = vunpack.c.l.b16 %v274
      %v421 = vunpack.c.l.b16 %v276
      %v422 = vunpack.c.l.b16 %v278
      %v423 = vpack.c.b16 %v407, %v295
      %v424 = vpack.c.b16 %v408, %v296
      %v425 = vpack.c.b16 %v409, %v297
      %v426 = vpack.c.b16 %v410, %v298
      %v427 = vpack.c.b16 %v411, %v299
      %v428 = vpack.c.b16 %v412, %v300
      %v429 = vpack.c.b16 %v413, %v301
      %v430 = vpack.c.b16 %v414, %v302
      %v431 = vpack.c.b16 %v415, %v303
      %v432 = vpack.c.b16 %v416, %v304
      %v433 = vpack.c.b16 %v417, %v305
      %v434 = vpack.c.b16 %v418, %v306
      %v435 = vpack.c.b16 %v419, %v307
      %v436 = vpack.c.b16 %v420, %v308
      %v437 = vpack.c.b16 %v421, %v309
      %v438 = vpack.c.b16 %v422, %v310
      %v439 = vrot.slane %v423, 7
      %v440 = vrot.slane %v424, 7
      %v441 = vrot.slane %v425, 7
      %v442 = vrot.slane %v426, 7
      %v443 = vrot.slane %v427, 7
      %v444 = vrot.slane %v428, 7
      %v445 = vrot.slane %v429, 7
      %v446 = vrot.slane %v430, 7
      %v447 = vrot.slane %v431, 7
      %v448 = vrot.slane %v432, 7
      %v449 = vrot.slane %v433, 7
      %v450 = vrot.slane %v434, 7
      %v451 = vrot.slane %v435, 7
      %v452 = vrot.slane %v436, 7
      %v453 = vrot.slane %v437, 7
      %v454 = vrot.slane %v438, 7
      %v455 = vpack.c.b16 %v407, %v407
      %v456 = vpack.c.b16 %v408, %v408
      %v457 = vpack.c.b16 %v409, %v409
      %v458 = vpack.c.b16 %v410, %v410
      %v459 = vpack.c.b16 %v411, %v411
      %v460 = vpack.c.b16 %v412, %v412
      %v461 = vpack.c.b16 %v413, %v413
      %v462 = vpack.c.b16 %v414, %v414
      %v463 = vpack.c.b16 %v415, %v415
      %v464 = vpack.c.b16 %v416, %v416
      %v465 = vpack.c.b16 %v417, %v417
      %v466 = vpack.c.b16 %v418, %v418
      %v467 = vpack.c.b16 %v419, %v419
      %v468 = vpack.c.b16 %v420, %v420
      %v469 = vpack.c.b16 %v421, %v421
      %v470 = vpack.c.b16 %v422, %v422
      %v472 = vshrl.u32 %v455, 16
      %v474 = vrot.slane %v472, 2
      %v476 = vshrl.u32 %v456, 16
      %v478 = vrot.slane %v476, 2
      %v480 = vshrl.u32 %v457, 16
      %v482 = vrot.slane %v480, 2
      %v484 = vshrl.u32 %v458, 16
      %v486 = vrot.slane %v484, 2
      %v488 = vshrl.u32 %v459, 16
      %v490 = vrot.slane %v488, 2
      %v492 = vshrl.u32 %v460, 16
      %v494 = vrot.slane %v492, 2
      %v496 = vshrl.u32 %v461, 16
      %v498 = vrot.slane %v496, 2
      %v500 = vshrl.u32 %v462, 16
      %v502 = vrot.slane %v500, 2
      %v504 = vshrl.u32 %v463, 16
      %v506 = vrot.slane %v504, 2
      %v508 = vshrl.u32 %v464, 16
      %v510 = vrot.slane %v508, 2
      %v512 = vshrl.u32 %v465, 16
      %v514 = vrot.slane %v512, 2
      %v516 = vshrl.u32 %v466, 16
      %v518 = vrot.slane %v516, 2
      %v520 = vshrl.u32 %v467, 16
      %v522 = vrot.slane %v520, 2
      %v524 = vshrl.u32 %v468, 16
      %v526 = vrot.slane %v524, 2
      %v528 = vshrl.u32 %v469, 16
      %v530 = vrot.slane %v528, 2
      %v532 = vshrl.u32 %v470, 16
      %v534 = vrot.slane %v532, 2
      %v535 = vrot.slane %v455, 2
      %v536 = vrot.slane %v456, 2
      %v537 = vrot.slane %v457, 2
      %v538 = vrot.slane %v458, 2
      %v539 = vrot.slane %v459, 2
      %v540 = vrot.slane %v460, 2
      %v541 = vrot.slane %v461, 2
      %v542 = vrot.slane %v462, 2
      %v543 = vrot.slane %v463, 2
      %v544 = vrot.slane %v464, 2
      %v545 = vrot.slane %v465, 2
      %v546 = vrot.slane %v466, 2
      %v547 = vrot.slane %v467, 2
      %v548 = vrot.slane %v468, 2
      %v549 = vrot.slane %v469, 2
      %v550 = vrot.slane %v470, 2
      %vm567 = vcmask 1040384
      %vm568 = vsmask.f32 256
      %vm569 = vmand %vm567, %vm568
      %v570 = vsel %vm569, %v247, %v328
      %v571 = vsel %vm569, %v249, %v331
      %v572 = vsel %vm569, %v251, %v334
      %v573 = vsel %vm569, %v253, %v337
      %v574 = vsel %vm569, %v255, %v340
      %v575 = vsel %vm569, %v257, %v343
      %v576 = vsel %vm569, %v259, %v346
      %v577 = vsel %vm569, %v261, %v349
      %v578 = vsel %vm569, %v263, %v352
      %v579 = vsel %vm569, %v265, %v355
      %v580 = vsel %vm569, %v267, %v358
      %v581 = vsel %vm569, %v269, %v361
      %v582 = vsel %vm569, %v271, %v364
      %v583 = vsel %vm569, %v273, %v367
      %v584 = vsel %vm569, %v275, %v370
      %v585 = vsel %vm569, %v277, %v373
      %vm586 = vcmask 1040384
      %v589 = vsel %vm586, %v570, %v439
      %v592 = vsel %vm586, %v571, %v440
      %v595 = vsel %vm586, %v572, %v441
      %v598 = vsel %vm586, %v573, %v442
      %v601 = vsel %vm586, %v574, %v443
      %v604 = vsel %vm586, %v575, %v444
      %v607 = vsel %vm586, %v576, %v445
      %v610 = vsel %vm586, %v577, %v446
      %v613 = vsel %vm586, %v578, %v447
      %v616 = vsel %vm586, %v579, %v448
      %v619 = vsel %vm586, %v580, %v449
      %v622 = vsel %vm586, %v581, %v450
      %v625 = vsel %vm586, %v582, %v451
      %v628 = vsel %vm586, %v583, %v452
      %v631 = vsel %vm586, %v584, %v453
      %v634 = vsel %vm586, %v585, %v454
      %v636 = vsel %vm586, %v439, %v474
      %v639 = vsel %vm586, %v440, %v478
      %v642 = vsel %vm586, %v441, %v482
      %v645 = vsel %vm586, %v442, %v486
      %v648 = vsel %vm586, %v443, %v490
      %v651 = vsel %vm586, %v444, %v494
      %v654 = vsel %vm586, %v445, %v498
      %v657 = vsel %vm586, %v446, %v502
      %v660 = vsel %vm586, %v447, %v506
      %v663 = vsel %vm586, %v448, %v510
      %v666 = vsel %vm586, %v449, %v514
      %v669 = vsel %vm586, %v450, %v518
      %v672 = vsel %vm586, %v451, %v522
      %v675 = vsel %vm586, %v452, %v526
      %v678 = vsel %vm586, %v453, %v530
      %v681 = vsel %vm586, %v454, %v534
      %vm683 = vcmask 1041408
      %vm684 = vsmask.f32 1280
      %vm685 = vmand %vm683, %vm684
      %v686 = vsel %vm685, %v636, %v535
      %v687 = vsel %vm685, %v639, %v536
      %v688 = vsel %vm685, %v642, %v537
      %v689 = vsel %vm685, %v645, %v538
      %v690 = vsel %vm685, %v648, %v539
      %v691 = vsel %vm685, %v651, %v540
      %v692 = vsel %vm685, %v654, %v541
      %v693 = vsel %vm685, %v657, %v542
      %v694 = vsel %vm685, %v660, %v543
      %v695 = vsel %vm685, %v663, %v544
      %v696 = vsel %vm685, %v666, %v545
      %v697 = vsel %vm685, %v669, %v546
      %v698 = vsel %vm685, %v672, %v547
      %v699 = vsel %vm685, %v675, %v548
      %v700 = vsel %vm685, %v678, %v549
      %v701 = vsel %vm685, %v681, %v550
      %vm702 = vsmask.f32 7424
      %v703 = vshrl.u32 %v589, 16
      %v705 = vshll.u32 %v589, 16
      %v707 = vrot.slane %v705, 1
      %v708 = vor.u32 %v703, %v707
      %v710 = vshll.u32 %v686, 16
      %v712 = vrot.slane %v710, 1
      %v713 = vsel %vm702, %v708, %v712
      %v714 = vshrl.u32 %v592, 16
      %v716 = vshll.u32 %v592, 16
      %v718 = vrot.slane %v716, 1
      %v719 = vor.u32 %v714, %v718
      %v721 = vshll.u32 %v687, 16
      %v723 = vrot.slane %v721, 1
      %v724 = vsel %vm702, %v719, %v723
      %v725 = vshrl.u32 %v595, 16
      %v727 = vshll.u32 %v595, 16
      %v729 = vrot.slane %v727, 1
      %v730 = vor.u32 %v725, %v729
      %v732 = vshll.u32 %v688, 16
      %v734 = vrot.slane %v732, 1
      %v735 = vsel %vm702, %v730, %v734
      %v736 = vshrl.u32 %v598, 16
      %v738 = vshll.u32 %v598, 16
      %v740 = vrot.slane %v738, 1
      %v741 = vor.u32 %v736, %v740
      %v743 = vshll.u32 %v689, 16
      %v745 = vrot.slane %v743, 1
      %v746 = vsel %vm702, %v741, %v745
      %v747 = vshrl.u32 %v601, 16
      %v749 = vshll.u32 %v601, 16
      %v751 = vrot.slane %v749, 1
      %v752 = vor.u32 %v747, %v751
      %v754 = vshll.u32 %v690, 16
      %v756 = vrot.slane %v754, 1
      %v757 = vsel %vm702, %v752, %v756
      %v758 = vshrl.u32 %v604, 16
      %v760 = vshll.u32 %v604, 16
      %v762 = vrot.slane %v760, 1
      %v763 = vor.u32 %v758, %v762
      %v765 = vshll.u32 %v691, 16
      %v767 = vrot.slane %v765, 1
      %v768 = vsel %vm702, %v763, %v767
      %v769 = vshrl.u32 %v607, 16
      %v771 = vshll.u32 %v607, 16
      %v773 = vrot.slane %v771, 1
      %v774 = vor.u32 %v769, %v773
      %v776 = vshll.u32 %v692, 16
      %v778 = vrot.slane %v776, 1
      %v779 = vsel %vm702, %v774, %v778
      %v780 = vshrl.u32 %v610, 16
      %v782 = vshll.u32 %v610, 16
      %v784 = vrot.slane %v782, 1
      %v785 = vor.u32 %v780, %v784
      %v787 = vshll.u32 %v693, 16
      %v789 = vrot.slane %v787, 1
      %v790 = vsel %vm702, %v785, %v789
      %v791 = vshrl.u32 %v613, 16
      %v793 = vshll.u32 %v613, 16
      %v795 = vrot.slane %v793, 1
      %v796 = vor.u32 %v791, %v795
      %v798 = vshll.u32 %v694, 16
      %v800 = vrot.slane %v798, 1
      %v801 = vsel %vm702, %v796, %v800
      %v802 = vshrl.u32 %v616, 16
      %v804 = vshll.u32 %v616, 16
      %v806 = vrot.slane %v804, 1
      %v807 = vor.u32 %v802, %v806
      %v809 = vshll.u32 %v695, 16
      %v811 = vrot.slane %v809, 1
      %v812 = vsel %vm702, %v807, %v811
      %v813 = vshrl.u32 %v619, 16
      %v815 = vshll.u32 %v619, 16
      %v817 = vrot.slane %v815, 1
      %v818 = vor.u32 %v813, %v817
      %v820 = vshll.u32 %v696, 16
      %v822 = vrot.slane %v820, 1
      %v823 = vsel %vm702, %v818, %v822
      %v824 = vshrl.u32 %v622, 16
      %v826 = vshll.u32 %v622, 16
      %v828 = vrot.slane %v826, 1
      %v829 = vor.u32 %v824, %v828
      %v831 = vshll.u32 %v697, 16
      %v833 = vrot.slane %v831, 1
      %v834 = vsel %vm702, %v829, %v833
      %v835 = vshrl.u32 %v625, 16
      %v837 = vshll.u32 %v625, 16
      %v839 = vrot.slane %v837, 1
      %v840 = vor.u32 %v835, %v839
      %v842 = vshll.u32 %v698, 16
      %v844 = vrot.slane %v842, 1
      %v845 = vsel %vm702, %v840, %v844
      %v846 = vshrl.u32 %v628, 16
      %v848 = vshll.u32 %v628, 16
      %v850 = vrot.slane %v848, 1
      %v851 = vor.u32 %v846, %v850
      %v853 = vshll.u32 %v699, 16
      %v855 = vrot.slane %v853, 1
      %v856 = vsel %vm702, %v851, %v855
      %857 = vrot.lane.b32.xlu0 %v713, 4
      %v858 = vpop.permute.xlu0 %857
      %859 = vrot.lane.b32.xlu0 %v724, 4
      %v860 = vpop.permute.xlu0 %859
      %861 = vrot.lane.b32.xlu0 %v735, 4
      %v862 = vpop.permute.xlu0 %861
      %863 = vrot.lane.b32.xlu0 %v746, 4
      %v864 = vpop.permute.xlu0 %863
      %865 = vrot.lane.b32.xlu0 %v757, 4
      %v866 = vpop.permute.xlu0 %865
      %867 = vrot.lane.b32.xlu0 %v768, 4
      %v868 = vpop.permute.xlu0 %867
      %869 = vrot.lane.b32.xlu0 %v779, 4
      %v870 = vpop.permute.xlu0 %869
      %871 = vrot.lane.b32.xlu0 %v790, 4
      %v872 = vpop.permute.xlu0 %871
      %873 = vrot.lane.b32.xlu0 %v801, 4
      %v874 = vpop.permute.xlu0 %873
      %875 = vrot.lane.b32.xlu0 %v812, 4
      %v876 = vpop.permute.xlu0 %875
      %877 = vrot.lane.b32.xlu0 %v823, 4
      %v878 = vpop.permute.xlu0 %877
      %879 = vrot.lane.b32.xlu0 %v834, 4
      %v880 = vpop.permute.xlu0 %879
      %881 = vrot.lane.b32.xlu0 %v845, 4
      %v882 = vpop.permute.xlu0 %881
      %883 = vrot.lane.b32.xlu0 %v856, 4
      %v884 = vpop.permute.xlu0 %883
      %vm913 = vcmask 1046528
      %v914 = vrot.slane %v589, 1
      %v915 = vrot.slane %v686, 1
      %v916 = vsel %vm913, %v914, %v915
      %v917 = vrot.slane %v592, 1
      %v918 = vrot.slane %v687, 1
      %v919 = vsel %vm913, %v917, %v918
      %v920 = vrot.slane %v595, 1
      %v921 = vrot.slane %v688, 1
      %v922 = vsel %vm913, %v920, %v921
      %v923 = vrot.slane %v598, 1
      %v924 = vrot.slane %v689, 1
      %v925 = vsel %vm913, %v923, %v924
      %v926 = vrot.slane %v601, 1
      %v927 = vrot.slane %v690, 1
      %v928 = vsel %vm913, %v926, %v927
      %v929 = vrot.slane %v604, 1
      %v930 = vrot.slane %v691, 1
      %v931 = vsel %vm913, %v929, %v930
      %v932 = vrot.slane %v607, 1
      %v933 = vrot.slane %v692, 1
      %v934 = vsel %vm913, %v932, %v933
      %v935 = vrot.slane %v610, 1
      %v936 = vrot.slane %v693, 1
      %v937 = vsel %vm913, %v935, %v936
      %v938 = vrot.slane %v613, 1
      %v939 = vrot.slane %v694, 1
      %v940 = vsel %vm913, %v938, %v939
      %v941 = vrot.slane %v616, 1
      %v942 = vrot.slane %v695, 1
      %v943 = vsel %vm913, %v941, %v942
      %v944 = vrot.slane %v619, 1
      %v945 = vrot.slane %v696, 1
      %v946 = vsel %vm913, %v944, %v945
      %v947 = vrot.slane %v622, 1
      %v948 = vrot.slane %v697, 1
      %v949 = vsel %vm913, %v947, %v948
      %v950 = vrot.slane %v625, 1
      %v951 = vrot.slane %v698, 1
      %v952 = vsel %vm913, %v950, %v951
      %v953 = vrot.slane %v628, 1
      %v954 = vrot.slane %v699, 1
      %v955 = vsel %vm913, %v953, %v954
      %956 = vrot.lane.b32.xlu0 %v916, 8
      %v957 = vpop.permute.xlu0 %956
      %958 = vrot.lane.b32.xlu0 %v919, 8
      %v959 = vpop.permute.xlu0 %958
      %960 = vrot.lane.b32.xlu0 %v922, 8
      %v961 = vpop.permute.xlu0 %960
      %962 = vrot.lane.b32.xlu0 %v925, 8
      %v963 = vpop.permute.xlu0 %962
      %964 = vrot.lane.b32.xlu0 %v928, 8
      %v965 = vpop.permute.xlu0 %964
      %966 = vrot.lane.b32.xlu0 %v931, 8
      %v967 = vpop.permute.xlu0 %966
      %968 = vrot.lane.b32.xlu0 %v934, 8
      %v969 = vpop.permute.xlu0 %968
      %970 = vrot.lane.b32.xlu0 %v937, 8
      %v971 = vpop.permute.xlu0 %970
      %972 = vrot.lane.b32.xlu0 %v940, 8
      %v973 = vpop.permute.xlu0 %972
      %974 = vrot.lane.b32.xlu0 %v943, 8
      %v975 = vpop.permute.xlu0 %974
      %976 = vrot.lane.b32.xlu0 %v946, 8
      %v977 = vpop.permute.xlu0 %976
      %978 = vrot.lane.b32.xlu0 %v949, 8
      %v979 = vpop.permute.xlu0 %978
      %980 = vrot.lane.b32.xlu0 %v952, 8
      %v981 = vpop.permute.xlu0 %980
      %982 = vrot.lane.b32.xlu0 %v955, 8
      %v983 = vpop.permute.xlu0 %982
      %vm984 = vsmask.f32 6400
      %v985 = vrot.slane %v703, 1
      %v986 = vrot.slane %v705, 2
      %v987 = vor.u32 %v985, %v986
      %v988 = vshrl.u32 %v686, 16
      %v990 = vrot.slane %v988, 1
      %v991 = vrot.slane %v710, 2
      %v992 = vor.u32 %v990, %v991
      %v993 = vsel %vm984, %v987, %v992
      %v994 = vrot.slane %v714, 1
      %v995 = vrot.slane %v716, 2
      %v996 = vor.u32 %v994, %v995
      %v997 = vshrl.u32 %v687, 16
      %v999 = vrot.slane %v997, 1
      %v1000 = vrot.slane %v721, 2
      %v1001 = vor.u32 %v999, %v1000
      %v1002 = vsel %vm984, %v996, %v1001
      %v1003 = vrot.slane %v725, 1
      %v1004 = vrot.slane %v727, 2
      %v1005 = vor.u32 %v1003, %v1004
      %v1006 = vshrl.u32 %v688, 16
      %v1008 = vrot.slane %v1006, 1
      %v1009 = vrot.slane %v732, 2
      %v1010 = vor.u32 %v1008, %v1009
      %v1011 = vsel %vm984, %v1005, %v1010
      %v1012 = vrot.slane %v736, 1
      %v1013 = vrot.slane %v738, 2
      %v1014 = vor.u32 %v1012, %v1013
      %v1015 = vshrl.u32 %v689, 16
      %v1017 = vrot.slane %v1015, 1
      %v1018 = vrot.slane %v743, 2
      %v1019 = vor.u32 %v1017, %v1018
      %v1020 = vsel %vm984, %v1014, %v1019
      %v1021 = vrot.slane %v747, 1
      %v1022 = vrot.slane %v749, 2
      %v1023 = vor.u32 %v1021, %v1022
      %v1024 = vshrl.u32 %v690, 16
      %v1026 = vrot.slane %v1024, 1
      %v1027 = vrot.slane %v754, 2
      %v1028 = vor.u32 %v1026, %v1027
      %v1029 = vsel %vm984, %v1023, %v1028
      %v1030 = vrot.slane %v758, 1
      %v1031 = vrot.slane %v760, 2
      %v1032 = vor.u32 %v1030, %v1031
      %v1033 = vshrl.u32 %v691, 16
      %v1035 = vrot.slane %v1033, 1
      %v1036 = vrot.slane %v765, 2
      %v1037 = vor.u32 %v1035, %v1036
      %v1038 = vsel %vm984, %v1032, %v1037
      %v1039 = vrot.slane %v769, 1
      %v1040 = vrot.slane %v771, 2
      %v1041 = vor.u32 %v1039, %v1040
      %v1042 = vshrl.u32 %v692, 16
      %v1044 = vrot.slane %v1042, 1
      %v1045 = vrot.slane %v776, 2
      %v1046 = vor.u32 %v1044, %v1045
      %v1047 = vsel %vm984, %v1041, %v1046
      %v1048 = vrot.slane %v780, 1
      %v1049 = vrot.slane %v782, 2
      %v1050 = vor.u32 %v1048, %v1049
      %v1051 = vshrl.u32 %v693, 16
      %v1053 = vrot.slane %v1051, 1
      %v1054 = vrot.slane %v787, 2
      %v1055 = vor.u32 %v1053, %v1054
      %v1056 = vsel %vm984, %v1050, %v1055
      %v1057 = vrot.slane %v791, 1
      %v1058 = vrot.slane %v793, 2
      %v1059 = vor.u32 %v1057, %v1058
      %v1060 = vshrl.u32 %v694, 16
      %v1062 = vrot.slane %v1060, 1
      %v1063 = vrot.slane %v798, 2
      %v1064 = vor.u32 %v1062, %v1063
      %v1065 = vsel %vm984, %v1059, %v1064
      %v1066 = vrot.slane %v802, 1
      %v1067 = vrot.slane %v804, 2
      %v1068 = vor.u32 %v1066, %v1067
      %v1069 = vshrl.u32 %v695, 16
      %v1071 = vrot.slane %v1069, 1
      %v1072 = vrot.slane %v809, 2
      %v1073 = vor.u32 %v1071, %v1072
      %v1074 = vsel %vm984, %v1068, %v1073
      %v1075 = vrot.slane %v813, 1
      %v1076 = vrot.slane %v815, 2
      %v1077 = vor.u32 %v1075, %v1076
      %v1078 = vshrl.u32 %v696, 16
      %v1080 = vrot.slane %v1078, 1
      %v1081 = vrot.slane %v820, 2
      %v1082 = vor.u32 %v1080, %v1081
      %v1083 = vsel %vm984, %v1077, %v1082
      %v1084 = vrot.slane %v824, 1
      %v1085 = vrot.slane %v826, 2
      %v1086 = vor.u32 %v1084, %v1085
      %v1087 = vshrl.u32 %v697, 16
      %v1089 = vrot.slane %v1087, 1
      %v1090 = vrot.slane %v831, 2
      %v1091 = vor.u32 %v1089, %v1090
      %v1092 = vsel %vm984, %v1086, %v1091
      %v1093 = vrot.slane %v835, 1
      %v1094 = vrot.slane %v837, 2
      %v1095 = vor.u32 %v1093, %v1094
      %v1096 = vshrl.u32 %v698, 16
      %v1098 = vrot.slane %v1096, 1
      %v1099 = vrot.slane %v842, 2
      %v1100 = vor.u32 %v1098, %v1099
      %v1101 = vsel %vm984, %v1095, %v1100
      %v1102 = vrot.slane %v846, 1
      %v1103 = vrot.slane %v848, 2
      %v1104 = vor.u32 %v1102, %v1103
      %v1105 = vshrl.u32 %v699, 16
      %v1107 = vrot.slane %v1105, 1
      %v1108 = vrot.slane %v853, 2
      %v1109 = vor.u32 %v1107, %v1108
      %v1110 = vsel %vm984, %v1104, %v1109
      %1111 = vrot.lane.b32.xlu0 %v993, 12
      %v1112 = vpop.permute.xlu0 %1111
      %1113 = vrot.lane.b32.xlu0 %v1002, 12
      %v1114 = vpop.permute.xlu0 %1113
      %1115 = vrot.lane.b32.xlu0 %v1011, 12
      %v1116 = vpop.permute.xlu0 %1115
      %1117 = vrot.lane.b32.xlu0 %v1020, 12
      %v1118 = vpop.permute.xlu0 %1117
      %1119 = vrot.lane.b32.xlu0 %v1029, 12
      %v1120 = vpop.permute.xlu0 %1119
      %1121 = vrot.lane.b32.xlu0 %v1038, 12
      %v1122 = vpop.permute.xlu0 %1121
      %1123 = vrot.lane.b32.xlu0 %v1047, 12
      %v1124 = vpop.permute.xlu0 %1123
      %1125 = vrot.lane.b32.xlu0 %v1056, 12
      %v1126 = vpop.permute.xlu0 %1125
      %1127 = vrot.lane.b32.xlu0 %v1065, 12
      %v1128 = vpop.permute.xlu0 %1127
      %1129 = vrot.lane.b32.xlu0 %v1074, 12
      %v1130 = vpop.permute.xlu0 %1129
      %1131 = vrot.lane.b32.xlu0 %v1083, 12
      %v1132 = vpop.permute.xlu0 %1131
      %1133 = vrot.lane.b32.xlu0 %v1092, 12
      %v1134 = vpop.permute.xlu0 %1133
      %1135 = vrot.lane.b32.xlu0 %v1101, 12
      %v1136 = vpop.permute.xlu0 %1135
      %1137 = vrot.lane.b32.xlu0 %v1110, 12
      %v1138 = vpop.permute.xlu0 %1137
      %vm1139 = vcmask 1045504
      %v1140 = vrot.slane %v589, 2
      %v1141 = vrot.slane %v686, 2
      %v1142 = vsel %vm1139, %v1140, %v1141
      %v1143 = vrot.slane %v592, 2
      %v1144 = vrot.slane %v687, 2
      %v1145 = vsel %vm1139, %v1143, %v1144
      %v1146 = vrot.slane %v595, 2
      %v1147 = vrot.slane %v688, 2
      %v1148 = vsel %vm1139, %v1146, %v1147
      %v1149 = vrot.slane %v598, 2
      %v1150 = vrot.slane %v689, 2
      %v1151 = vsel %vm1139, %v1149, %v1150
      %v1152 = vrot.slane %v601, 2
      %v1153 = vrot.slane %v690, 2
      %v1154 = vsel %vm1139, %v1152, %v1153
      %v1155 = vrot.slane %v604, 2
      %v1156 = vrot.slane %v691, 2
      %v1157 = vsel %vm1139, %v1155, %v1156
      %v1158 = vrot.slane %v607, 2
      %v1159 = vrot.slane %v692, 2
      %v1160 = vsel %vm1139, %v1158, %v1159
      %v1161 = vrot.slane %v610, 2
      %v1162 = vrot.slane %v693, 2
      %v1163 = vsel %vm1139, %v1161, %v1162
      %v1164 = vrot.slane %v613, 2
      %v1165 = vrot.slane %v694, 2
      %v1166 = vsel %vm1139, %v1164, %v1165
      %v1167 = vrot.slane %v616, 2
      %v1168 = vrot.slane %v695, 2
      %v1169 = vsel %vm1139, %v1167, %v1168
      %v1170 = vrot.slane %v619, 2
      %v1171 = vrot.slane %v696, 2
      %v1172 = vsel %vm1139, %v1170, %v1171
      %v1173 = vrot.slane %v622, 2
      %v1174 = vrot.slane %v697, 2
      %v1175 = vsel %vm1139, %v1173, %v1174
      %v1176 = vrot.slane %v625, 2
      %v1177 = vrot.slane %v698, 2
      %v1178 = vsel %vm1139, %v1176, %v1177
      %v1179 = vrot.slane %v628, 2
      %v1180 = vrot.slane %v699, 2
      %v1181 = vsel %vm1139, %v1179, %v1180
      %1182 = vrot.lane.b32.xlu0 %v1142, 16
      %v1183 = vpop.permute.xlu0 %1182
      %1184 = vrot.lane.b32.xlu0 %v1145, 16
      %v1185 = vpop.permute.xlu0 %1184
      %1186 = vrot.lane.b32.xlu0 %v1148, 16
      %v1187 = vpop.permute.xlu0 %1186
      %1188 = vrot.lane.b32.xlu0 %v1151, 16
      %v1189 = vpop.permute.xlu0 %1188
      %1190 = vrot.lane.b32.xlu0 %v1154, 16
      %v1191 = vpop.permute.xlu0 %1190
      %1192 = vrot.lane.b32.xlu0 %v1157, 16
      %v1193 = vpop.permute.xlu0 %1192
      %1194 = vrot.lane.b32.xlu0 %v1160, 16
      %v1195 = vpop.permute.xlu0 %1194
      %1196 = vrot.lane.b32.xlu0 %v1163, 16
      %v1197 = vpop.permute.xlu0 %1196
      %1198 = vrot.lane.b32.xlu0 %v1166, 16
      %v1199 = vpop.permute.xlu0 %1198
      %1200 = vrot.lane.b32.xlu0 %v1169, 16
      %v1201 = vpop.permute.xlu0 %1200
      %1202 = vrot.lane.b32.xlu0 %v1172, 16
      %v1203 = vpop.permute.xlu0 %1202
      %1204 = vrot.lane.b32.xlu0 %v1175, 16
      %v1205 = vpop.permute.xlu0 %1204
      %1206 = vrot.lane.b32.xlu0 %v1178, 16
      %v1207 = vpop.permute.xlu0 %1206
      %1208 = vrot.lane.b32.xlu0 %v1181, 16
      %v1209 = vpop.permute.xlu0 %1208
      %1211 = vrot.lane.b32.xlu0 %v589, 20
      %v1212 = vpop.permute.xlu0 %1211
      %1213 = vrot.lane.b32.xlu0 %v592, 20
      %v1214 = vpop.permute.xlu0 %1213
      %1215 = vrot.lane.b32.xlu0 %v595, 20
      %v1216 = vpop.permute.xlu0 %1215
      %1217 = vrot.lane.b32.xlu0 %v598, 20
      %v1218 = vpop.permute.xlu0 %1217
      %1219 = vrot.lane.b32.xlu0 %v601, 20
      %v1220 = vpop.permute.xlu0 %1219
      %1221 = vrot.lane.b32.xlu0 %v604, 20
      %v1222 = vpop.permute.xlu0 %1221
      %1223 = vrot.lane.b32.xlu0 %v607, 20
      %v1224 = vpop.permute.xlu0 %1223
      %1225 = vrot.lane.b32.xlu0 %v610, 20
      %v1226 = vpop.permute.xlu0 %1225
      %1227 = vrot.lane.b32.xlu0 %v613, 20
      %v1228 = vpop.permute.xlu0 %1227
      %1229 = vrot.lane.b32.xlu0 %v616, 20
      %v1230 = vpop.permute.xlu0 %1229
      %1231 = vrot.lane.b32.xlu0 %v619, 20
      %v1232 = vpop.permute.xlu0 %1231
      %1233 = vrot.lane.b32.xlu0 %v622, 20
      %v1234 = vpop.permute.xlu0 %1233
      %1235 = vrot.lane.b32.xlu0 %v625, 20
      %v1236 = vpop.permute.xlu0 %1235
      %1237 = vrot.lane.b32.xlu0 %v628, 20
      %v1238 = vpop.permute.xlu0 %1237
      %1239 = vrot.lane.b32.xlu0 %v631, 20
      %v1240 = vpop.permute.xlu0 %1239
      %v1241 = vshrl.u32 %v631, 16
      %v1243 = vshll.u32 %v631, 16
      %v1245 = vrot.slane %v1243, 1
      %v1246 = vor.u32 %v1241, %v1245
      %v1248 = vshll.u32 %v700, 16
      %v1250 = vrot.slane %v1248, 1
      %v1251 = vsel %vm702, %v1246, %v1250
      %1252 = vrot.lane.b32.xlu0 %v713, 24
      %v1253 = vpop.permute.xlu0 %1252
      %1254 = vrot.lane.b32.xlu0 %v724, 24
      %v1255 = vpop.permute.xlu0 %1254
      %1256 = vrot.lane.b32.xlu0 %v735, 24
      %v1257 = vpop.permute.xlu0 %1256
      %1258 = vrot.lane.b32.xlu0 %v746, 24
      %v1259 = vpop.permute.xlu0 %1258
      %1260 = vrot.lane.b32.xlu0 %v757, 24
      %v1261 = vpop.permute.xlu0 %1260
      %1262 = vrot.lane.b32.xlu0 %v768, 24
      %v1263 = vpop.permute.xlu0 %1262
      %1264 = vrot.lane.b32.xlu0 %v779, 24
      %v1265 = vpop.permute.xlu0 %1264
      %1266 = vrot.lane.b32.xlu0 %v790, 24
      %v1267 = vpop.permute.xlu0 %1266
      %1268 = vrot.lane.b32.xlu0 %v801, 24
      %v1269 = vpop.permute.xlu0 %1268
      %1270 = vrot.lane.b32.xlu0 %v812, 24
      %v1271 = vpop.permute.xlu0 %1270
      %1272 = vrot.lane.b32.xlu0 %v823, 24
      %v1273 = vpop.permute.xlu0 %1272
      %1274 = vrot.lane.b32.xlu0 %v834, 24
      %v1275 = vpop.permute.xlu0 %1274
      %1276 = vrot.lane.b32.xlu0 %v845, 24
      %v1277 = vpop.permute.xlu0 %1276
      %1278 = vrot.lane.b32.xlu0 %v856, 24
      %v1279 = vpop.permute.xlu0 %1278
      %1280 = vrot.lane.b32.xlu0 %v1251, 24
      %v1281 = vpop.permute.xlu0 %1280
      %v1283 = vrot.slane %v631, 1
      %v1284 = vrot.slane %v700, 1
      %v1285 = vsel %vm913, %v1283, %v1284
      %1286 = vrot.lane.b32.xlu0 %v916, 28
      %v1287 = vpop.permute.xlu0 %1286
      %1288 = vrot.lane.b32.xlu0 %v919, 28
      %v1289 = vpop.permute.xlu0 %1288
      %1290 = vrot.lane.b32.xlu0 %v922, 28
      %v1291 = vpop.permute.xlu0 %1290
      %1292 = vrot.lane.b32.xlu0 %v925, 28
      %v1293 = vpop.permute.xlu0 %1292
      %1294 = vrot.lane.b32.xlu0 %v928, 28
      %v1295 = vpop.permute.xlu0 %1294
      %1296 = vrot.lane.b32.xlu0 %v931, 28
      %v1297 = vpop.permute.xlu0 %1296
      %1298 = vrot.lane.b32.xlu0 %v934, 28
      %v1299 = vpop.permute.xlu0 %1298
      %1300 = vrot.lane.b32.xlu0 %v937, 28
      %v1301 = vpop.permute.xlu0 %1300
      %1302 = vrot.lane.b32.xlu0 %v940, 28
      %v1303 = vpop.permute.xlu0 %1302
      %1304 = vrot.lane.b32.xlu0 %v943, 28
      %v1305 = vpop.permute.xlu0 %1304
      %1306 = vrot.lane.b32.xlu0 %v946, 28
      %v1307 = vpop.permute.xlu0 %1306
      %1308 = vrot.lane.b32.xlu0 %v949, 28
      %v1309 = vpop.permute.xlu0 %1308
      %1310 = vrot.lane.b32.xlu0 %v952, 28
      %v1311 = vpop.permute.xlu0 %1310
      %1312 = vrot.lane.b32.xlu0 %v955, 28
      %v1313 = vpop.permute.xlu0 %1312
      %1314 = vrot.lane.b32.xlu0 %v1285, 28
      %v1315 = vpop.permute.xlu0 %1314
      %v1316 = vrot.slane %v1241, 1
      %v1317 = vrot.slane %v1243, 2
      %v1318 = vor.u32 %v1316, %v1317
      %v1319 = vshrl.u32 %v700, 16
      %v1321 = vrot.slane %v1319, 1
      %v1322 = vrot.slane %v1248, 2
      %v1323 = vor.u32 %v1321, %v1322
      %v1324 = vsel %vm984, %v1318, %v1323
      %1325 = vrot.lane.b32.xlu0 %v993, 32
      %v1326 = vpop.permute.xlu0 %1325
      %1327 = vrot.lane.b32.xlu0 %v1002, 32
      %v1328 = vpop.permute.xlu0 %1327
      %1329 = vrot.lane.b32.xlu0 %v1011, 32
      %v1330 = vpop.permute.xlu0 %1329
      %1331 = vrot.lane.b32.xlu0 %v1020, 32
      %v1332 = vpop.permute.xlu0 %1331
      %1333 = vrot.lane.b32.xlu0 %v1029, 32
      %v1334 = vpop.permute.xlu0 %1333
      %1335 = vrot.lane.b32.xlu0 %v1038, 32
      %v1336 = vpop.permute.xlu0 %1335
      %1337 = vrot.lane.b32.xlu0 %v1047, 32
      %v1338 = vpop.permute.xlu0 %1337
      %1339 = vrot.lane.b32.xlu0 %v1056, 32
      %v1340 = vpop.permute.xlu0 %1339
      %1341 = vrot.lane.b32.xlu0 %v1065, 32
      %v1342 = vpop.permute.xlu0 %1341
      %1343 = vrot.lane.b32.xlu0 %v1074, 32
      %v1344 = vpop.permute.xlu0 %1343
      %1345 = vrot.lane.b32.xlu0 %v1083, 32
      %v1346 = vpop.permute.xlu0 %1345
      %1347 = vrot.lane.b32.xlu0 %v1092, 32
      %v1348 = vpop.permute.xlu0 %1347
      %1349 = vrot.lane.b32.xlu0 %v1101, 32
      %v1350 = vpop.permute.xlu0 %1349
      %1351 = vrot.lane.b32.xlu0 %v1110, 32
      %v1352 = vpop.permute.xlu0 %1351
      %1353 = vrot.lane.b32.xlu0 %v1324, 32
      %v1354 = vpop.permute.xlu0 %1353
      %v1355 = vrot.slane %v631, 2
      %v1356 = vrot.slane %v700, 2
      %v1357 = vsel %vm1139, %v1355, %v1356
      %1358 = vrot.lane.b32.xlu0 %v1142, 36
      %v1359 = vpop.permute.xlu0 %1358
      %1360 = vrot.lane.b32.xlu0 %v1145, 36
      %v1361 = vpop.permute.xlu0 %1360
      %1362 = vrot.lane.b32.xlu0 %v1148, 36
      %v1363 = vpop.permute.xlu0 %1362
      %1364 = vrot.lane.b32.xlu0 %v1151, 36
      %v1365 = vpop.permute.xlu0 %1364
      %1366 = vrot.lane.b32.xlu0 %v1154, 36
      %v1367 = vpop.permute.xlu0 %1366
      %1368 = vrot.lane.b32.xlu0 %v1157, 36
      %v1369 = vpop.permute.xlu0 %1368
      %1370 = vrot.lane.b32.xlu0 %v1160, 36
      %v1371 = vpop.permute.xlu0 %1370
      %1372 = vrot.lane.b32.xlu0 %v1163, 36
      %v1373 = vpop.permute.xlu0 %1372
      %1374 = vrot.lane.b32.xlu0 %v1166, 36
      %v1375 = vpop.permute.xlu0 %1374
      %1376 = vrot.lane.b32.xlu0 %v1169, 36
      %v1377 = vpop.permute.xlu0 %1376
      %1378 = vrot.lane.b32.xlu0 %v1172, 36
      %v1379 = vpop.permute.xlu0 %1378
      %1380 = vrot.lane.b32.xlu0 %v1175, 36
      %v1381 = vpop.permute.xlu0 %1380
      %1382 = vrot.lane.b32.xlu0 %v1178, 36
      %v1383 = vpop.permute.xlu0 %1382
      %1384 = vrot.lane.b32.xlu0 %v1181, 36
      %v1385 = vpop.permute.xlu0 %1384
      %1386 = vrot.lane.b32.xlu0 %v1357, 36
      %v1387 = vpop.permute.xlu0 %1386
      %1389 = vrot.lane.b32.xlu0 %v589, 40
      %v1390 = vpop.permute.xlu0 %1389
      %1391 = vrot.lane.b32.xlu0 %v592, 40
      %v1392 = vpop.permute.xlu0 %1391
      %1393 = vrot.lane.b32.xlu0 %v595, 40
      %v1394 = vpop.permute.xlu0 %1393
      %1395 = vrot.lane.b32.xlu0 %v598, 40
      %v1396 = vpop.permute.xlu0 %1395
      %1397 = vrot.lane.b32.xlu0 %v601, 40
      %v1398 = vpop.permute.xlu0 %1397
      %1399 = vrot.lane.b32.xlu0 %v604, 40
      %v1400 = vpop.permute.xlu0 %1399
      %1401 = vrot.lane.b32.xlu0 %v607, 40
      %v1402 = vpop.permute.xlu0 %1401
      %1403 = vrot.lane.b32.xlu0 %v610, 40
      %v1404 = vpop.permute.xlu0 %1403
      %1405 = vrot.lane.b32.xlu0 %v613, 40
      %v1406 = vpop.permute.xlu0 %1405
      %1407 = vrot.lane.b32.xlu0 %v616, 40
      %v1408 = vpop.permute.xlu0 %1407
      %1409 = vrot.lane.b32.xlu0 %v619, 40
      %v1410 = vpop.permute.xlu0 %1409
      %1411 = vrot.lane.b32.xlu0 %v622, 40
      %v1412 = vpop.permute.xlu0 %1411
      %1413 = vrot.lane.b32.xlu0 %v625, 40
      %v1414 = vpop.permute.xlu0 %1413
      %1415 = vrot.lane.b32.xlu0 %v628, 40
      %v1416 = vpop.permute.xlu0 %1415
      %1417 = vrot.lane.b32.xlu0 %v631, 40
      %v1418 = vpop.permute.xlu0 %1417
      %1419 = vrot.lane.b32.xlu0 %v634, 40
      %v1420 = vpop.permute.xlu0 %1419
      %v1421 = vshrl.u32 %v634, 16
      %v1423 = vshll.u32 %v634, 16
      %v1425 = vrot.slane %v1423, 1
      %v1426 = vor.u32 %v1421, %v1425
      %v1428 = vshll.u32 %v701, 16
      %v1430 = vrot.slane %v1428, 1
      %v1431 = vsel %vm702, %v1426, %v1430
      %1432 = vrot.lane.b32.xlu0 %v713, 44
      %v1433 = vpop.permute.xlu0 %1432
      %1434 = vrot.lane.b32.xlu0 %v724, 44
      %v1435 = vpop.permute.xlu0 %1434
      %1436 = vrot.lane.b32.xlu0 %v735, 44
      %v1437 = vpop.permute.xlu0 %1436
      %1438 = vrot.lane.b32.xlu0 %v746, 44
      %v1439 = vpop.permute.xlu0 %1438
      %1440 = vrot.lane.b32.xlu0 %v757, 44
      %v1441 = vpop.permute.xlu0 %1440
      %1442 = vrot.lane.b32.xlu0 %v768, 44
      %v1443 = vpop.permute.xlu0 %1442
      %1444 = vrot.lane.b32.xlu0 %v779, 44
      %v1445 = vpop.permute.xlu0 %1444
      %1446 = vrot.lane.b32.xlu0 %v790, 44
      %v1447 = vpop.permute.xlu0 %1446
      %1448 = vrot.lane.b32.xlu0 %v801, 44
      %v1449 = vpop.permute.xlu0 %1448
      %1450 = vrot.lane.b32.xlu0 %v812, 44
      %v1451 = vpop.permute.xlu0 %1450
      %1452 = vrot.lane.b32.xlu0 %v823, 44
      %v1453 = vpop.permute.xlu0 %1452
      %1454 = vrot.lane.b32.xlu0 %v834, 44
      %v1455 = vpop.permute.xlu0 %1454
      %1456 = vrot.lane.b32.xlu0 %v845, 44
      %v1457 = vpop.permute.xlu0 %1456
      %1458 = vrot.lane.b32.xlu0 %v856, 44
      %v1459 = vpop.permute.xlu0 %1458
      %1460 = vrot.lane.b32.xlu0 %v1251, 44
      %v1461 = vpop.permute.xlu0 %1460
      %1462 = vrot.lane.b32.xlu0 %v1431, 44
      %v1463 = vpop.permute.xlu0 %1462
      %v1465 = vrot.slane %v634, 1
      %v1466 = vrot.slane %v701, 1
      %v1467 = vsel %vm913, %v1465, %v1466
      %1468 = vrot.lane.b32.xlu0 %v916, 48
      %v1469 = vpop.permute.xlu0 %1468
      %1470 = vrot.lane.b32.xlu0 %v919, 48
      %v1471 = vpop.permute.xlu0 %1470
      %1472 = vrot.lane.b32.xlu0 %v922, 48
      %v1473 = vpop.permute.xlu0 %1472
      %1474 = vrot.lane.b32.xlu0 %v925, 48
      %v1475 = vpop.permute.xlu0 %1474
      %1476 = vrot.lane.b32.xlu0 %v928, 48
      %v1477 = vpop.permute.xlu0 %1476
      %1478 = vrot.lane.b32.xlu0 %v931, 48
      %v1479 = vpop.permute.xlu0 %1478
      %1480 = vrot.lane.b32.xlu0 %v934, 48
      %v1481 = vpop.permute.xlu0 %1480
      %1482 = vrot.lane.b32.xlu0 %v937, 48
      %v1483 = vpop.permute.xlu0 %1482
      %1484 = vrot.lane.b32.xlu0 %v940, 48
      %v1485 = vpop.permute.xlu0 %1484
      %1486 = vrot.lane.b32.xlu0 %v943, 48
      %v1487 = vpop.permute.xlu0 %1486
      %1488 = vrot.lane.b32.xlu0 %v946, 48
      %v1489 = vpop.permute.xlu0 %1488
      %1490 = vrot.lane.b32.xlu0 %v949, 48
      %v1491 = vpop.permute.xlu0 %1490
      %1492 = vrot.lane.b32.xlu0 %v952, 48
      %v1493 = vpop.permute.xlu0 %1492
      %1494 = vrot.lane.b32.xlu0 %v955, 48
      %v1495 = vpop.permute.xlu0 %1494
      %1496 = vrot.lane.b32.xlu0 %v1285, 48
      %v1497 = vpop.permute.xlu0 %1496
      %1498 = vrot.lane.b32.xlu0 %v1467, 48
      %v1499 = vpop.permute.xlu0 %1498
      %v1500 = vrot.slane %v1421, 1
      %v1501 = vrot.slane %v1423, 2
      %v1502 = vor.u32 %v1500, %v1501
      %v1503 = vshrl.u32 %v701, 16
      %v1505 = vrot.slane %v1503, 1
      %v1506 = vrot.slane %v1428, 2
      %v1507 = vor.u32 %v1505, %v1506
      %v1508 = vsel %vm984, %v1502, %v1507
      %1509 = vrot.lane.b32.xlu0 %v993, 52
      %v1510 = vpop.permute.xlu0 %1509
      %1511 = vrot.lane.b32.xlu0 %v1002, 52
      %v1512 = vpop.permute.xlu0 %1511
      %1513 = vrot.lane.b32.xlu0 %v1011, 52
      %v1514 = vpop.permute.xlu0 %1513
      %1515 = vrot.lane.b32.xlu0 %v1020, 52
      %v1516 = vpop.permute.xlu0 %1515
      %1517 = vrot.lane.b32.xlu0 %v1029, 52
      %v1518 = vpop.permute.xlu0 %1517
      %1519 = vrot.lane.b32.xlu0 %v1038, 52
      %v1520 = vpop.permute.xlu0 %1519
      %1521 = vrot.lane.b32.xlu0 %v1047, 52
      %v1522 = vpop.permute.xlu0 %1521
      %1523 = vrot.lane.b32.xlu0 %v1056, 52
      %v1524 = vpop.permute.xlu0 %1523
      %1525 = vrot.lane.b32.xlu0 %v1065, 52
      %v1526 = vpop.permute.xlu0 %1525
      %1527 = vrot.lane.b32.xlu0 %v1074, 52
      %v1528 = vpop.permute.xlu0 %1527
      %1529 = vrot.lane.b32.xlu0 %v1083, 52
      %v1530 = vpop.permute.xlu0 %1529
      %1531 = vrot.lane.b32.xlu0 %v1092, 52
      %v1532 = vpop.permute.xlu0 %1531
      %1533 = vrot.lane.b32.xlu0 %v1101, 52
      %v1534 = vpop.permute.xlu0 %1533
      %1535 = vrot.lane.b32.xlu0 %v1110, 52
      %v1536 = vpop.permute.xlu0 %1535
      %1537 = vrot.lane.b32.xlu0 %v1324, 52
      %v1538 = vpop.permute.xlu0 %1537
      %1539 = vrot.lane.b32.xlu0 %v1508, 52
      %v1540 = vpop.permute.xlu0 %1539
      %v1541 = vrot.slane %v634, 2
      %v1542 = vrot.slane %v701, 2
      %v1543 = vsel %vm1139, %v1541, %v1542
      %1544 = vrot.lane.b32.xlu0 %v1142, 56
      %v1545 = vpop.permute.xlu0 %1544
      %1546 = vrot.lane.b32.xlu0 %v1145, 56
      %v1547 = vpop.permute.xlu0 %1546
      %1548 = vrot.lane.b32.xlu0 %v1148, 56
      %v1549 = vpop.permute.xlu0 %1548
      %1550 = vrot.lane.b32.xlu0 %v1151, 56
      %v1551 = vpop.permute.xlu0 %1550
      %1552 = vrot.lane.b32.xlu0 %v1154, 56
      %v1553 = vpop.permute.xlu0 %1552
      %1554 = vrot.lane.b32.xlu0 %v1157, 56
      %v1555 = vpop.permute.xlu0 %1554
      %1556 = vrot.lane.b32.xlu0 %v1160, 56
      %v1557 = vpop.permute.xlu0 %1556
      %1558 = vrot.lane.b32.xlu0 %v1163, 56
      %v1559 = vpop.permute.xlu0 %1558
      %1560 = vrot.lane.b32.xlu0 %v1166, 56
      %v1561 = vpop.permute.xlu0 %1560
      %1562 = vrot.lane.b32.xlu0 %v1169, 56
      %v1563 = vpop.permute.xlu0 %1562
      %1564 = vrot.lane.b32.xlu0 %v1172, 56
      %v1565 = vpop.permute.xlu0 %1564
      %1566 = vrot.lane.b32.xlu0 %v1175, 56
      %v1567 = vpop.permute.xlu0 %1566
      %1568 = vrot.lane.b32.xlu0 %v1178, 56
      %v1569 = vpop.permute.xlu0 %1568
      %1570 = vrot.lane.b32.xlu0 %v1181, 56
      %v1571 = vpop.permute.xlu0 %1570
      %1572 = vrot.lane.b32.xlu0 %v1357, 56
      %v1573 = vpop.permute.xlu0 %1572
      %1574 = vrot.lane.b32.xlu0 %v1543, 56
      %v1575 = vpop.permute.xlu0 %1574
      %1576 = vrot.lane.b32.xlu0 %v592, 60
      %v1577 = vpop.permute.xlu0 %1576
      %1578 = vrot.lane.b32.xlu0 %v595, 60
      %v1579 = vpop.permute.xlu0 %1578
      %1580 = vrot.lane.b32.xlu0 %v598, 60
      %v1581 = vpop.permute.xlu0 %1580
      %1582 = vrot.lane.b32.xlu0 %v601, 60
      %v1583 = vpop.permute.xlu0 %1582
      %1584 = vrot.lane.b32.xlu0 %v604, 60
      %v1585 = vpop.permute.xlu0 %1584
      %1586 = vrot.lane.b32.xlu0 %v607, 60
      %v1587 = vpop.permute.xlu0 %1586
      %1588 = vrot.lane.b32.xlu0 %v610, 60
      %v1589 = vpop.permute.xlu0 %1588
      %1590 = vrot.lane.b32.xlu0 %v613, 60
      %v1591 = vpop.permute.xlu0 %1590
      %1592 = vrot.lane.b32.xlu0 %v616, 60
      %v1593 = vpop.permute.xlu0 %1592
      %1594 = vrot.lane.b32.xlu0 %v619, 60
      %v1595 = vpop.permute.xlu0 %1594
      %1596 = vrot.lane.b32.xlu0 %v622, 60
      %v1597 = vpop.permute.xlu0 %1596
      %1598 = vrot.lane.b32.xlu0 %v625, 60
      %v1599 = vpop.permute.xlu0 %1598
      %1600 = vrot.lane.b32.xlu0 %v628, 60
      %v1601 = vpop.permute.xlu0 %1600
      %1602 = vrot.lane.b32.xlu0 %v631, 60
      %v1603 = vpop.permute.xlu0 %1602
      %1604 = vrot.lane.b32.xlu0 %v634, 60
      %v1605 = vpop.permute.xlu0 %1604
      %vm1606 = vcmask 31744
      %v1608 = vsel %vm1606, %v589, %v858
      %v1610 = vsel %vm1606, %v592, %v860
      %v1612 = vsel %vm1606, %v595, %v862
      %v1614 = vsel %vm1606, %v598, %v864
      %v1616 = vsel %vm1606, %v601, %v866
      %v1618 = vsel %vm1606, %v604, %v868
      %v1620 = vsel %vm1606, %v607, %v870
      %v1622 = vsel %vm1606, %v610, %v872
      %v1624 = vsel %vm1606, %v613, %v874
      %v1626 = vsel %vm1606, %v616, %v876
      %v1628 = vsel %vm1606, %v619, %v878
      %v1630 = vsel %vm1606, %v622, %v880
      %v1632 = vsel %vm1606, %v625, %v882
      %v1634 = vsel %vm1606, %v628, %v884
      %vm1635 = vcmask 64512
      %v1637 = vsel %vm1635, %v1608, %v957
      %v1639 = vsel %vm1635, %v1610, %v959
      %v1641 = vsel %vm1635, %v1612, %v961
      %v1643 = vsel %vm1635, %v1614, %v963
      %v1645 = vsel %vm1635, %v1616, %v965
      %v1647 = vsel %vm1635, %v1618, %v967
      %v1649 = vsel %vm1635, %v1620, %v969
      %v1651 = vsel %vm1635, %v1622, %v971
      %v1653 = vsel %vm1635, %v1624, %v973
      %v1655 = vsel %vm1635, %v1626, %v975
      %v1657 = vsel %vm1635, %v1628, %v977
      %v1659 = vsel %vm1635, %v1630, %v979
      %v1661 = vsel %vm1635, %v1632, %v981
      %v1663 = vsel %vm1635, %v1634, %v983
      %vm1664 = vcmask 97280
      %v1666 = vsel %vm1664, %v1637, %v1112
      %v1668 = vsel %vm1664, %v1639, %v1114
      %v1670 = vsel %vm1664, %v1641, %v1116
      %v1672 = vsel %vm1664, %v1643, %v1118
      %v1674 = vsel %vm1664, %v1645, %v1120
      %v1676 = vsel %vm1664, %v1647, %v1122
      %v1678 = vsel %vm1664, %v1649, %v1124
      %v1680 = vsel %vm1664, %v1651, %v1126
      %v1682 = vsel %vm1664, %v1653, %v1128
      %v1684 = vsel %vm1664, %v1655, %v1130
      %v1686 = vsel %vm1664, %v1657, %v1132
      %v1688 = vsel %vm1664, %v1659, %v1134
      %v1690 = vsel %vm1664, %v1661, %v1136
      %v1692 = vsel %vm1664, %v1663, %v1138
      %vm1693 = vcmask 130048
      %v1695 = vsel %vm1693, %v1666, %v1183
      %v1697 = vsel %vm1693, %v1668, %v1185
      %v1699 = vsel %vm1693, %v1670, %v1187
      %v1701 = vsel %vm1693, %v1672, %v1189
      %v1703 = vsel %vm1693, %v1674, %v1191
      %v1705 = vsel %vm1693, %v1676, %v1193
      %v1707 = vsel %vm1693, %v1678, %v1195
      %v1709 = vsel %vm1693, %v1680, %v1197
      %v1711 = vsel %vm1693, %v1682, %v1199
      %v1713 = vsel %vm1693, %v1684, %v1201
      %v1715 = vsel %vm1693, %v1686, %v1203
      %v1717 = vsel %vm1693, %v1688, %v1205
      %v1719 = vsel %vm1693, %v1690, %v1207
      %v1721 = vsel %vm1693, %v1692, %v1209
      %vm1722 = vcmask 162816
      %v1724 = vsel %vm1722, %v1695, %v1212
      %v1726 = vsel %vm1722, %v1695, %v1214
      %v1728 = vsel %vm1722, %v1697, %v1216
      %v1730 = vsel %vm1722, %v1699, %v1218
      %v1732 = vsel %vm1722, %v1701, %v1220
      %v1734 = vsel %vm1722, %v1703, %v1222
      %v1736 = vsel %vm1722, %v1705, %v1224
      %v1738 = vsel %vm1722, %v1707, %v1226
      %v1740 = vsel %vm1722, %v1709, %v1228
      %v1742 = vsel %vm1722, %v1711, %v1230
      %v1744 = vsel %vm1722, %v1713, %v1232
      %v1746 = vsel %vm1722, %v1715, %v1234
      %v1748 = vsel %vm1722, %v1717, %v1236
      %v1750 = vsel %vm1722, %v1719, %v1238
      %v1752 = vsel %vm1722, %v1721, %v1240
      %vm1753 = vcmask 195584
      %v1755 = vsel %vm1753, %v1724, %v1253
      %v1757 = vsel %vm1753, %v1726, %v1255
      %v1759 = vsel %vm1753, %v1728, %v1257
      %v1761 = vsel %vm1753, %v1730, %v1259
      %v1763 = vsel %vm1753, %v1732, %v1261
      %v1765 = vsel %vm1753, %v1734, %v1263
      %v1767 = vsel %vm1753, %v1736, %v1265
      %v1769 = vsel %vm1753, %v1738, %v1267
      %v1771 = vsel %vm1753, %v1740, %v1269
      %v1773 = vsel %vm1753, %v1742, %v1271
      %v1775 = vsel %vm1753, %v1744, %v1273
      %v1777 = vsel %vm1753, %v1746, %v1275
      %v1779 = vsel %vm1753, %v1748, %v1277
      %v1781 = vsel %vm1753, %v1750, %v1279
      %v1783 = vsel %vm1753, %v1752, %v1281
      %vm1784 = vcmask 228352
      %v1786 = vsel %vm1784, %v1755, %v1287
      %v1788 = vsel %vm1784, %v1757, %v1289
      %v1790 = vsel %vm1784, %v1759, %v1291
      %v1792 = vsel %vm1784, %v1761, %v1293
      %v1794 = vsel %vm1784, %v1763, %v1295
      %v1796 = vsel %vm1784, %v1765, %v1297
      %v1798 = vsel %vm1784, %v1767, %v1299
      %v1800 = vsel %vm1784, %v1769, %v1301
      %v1802 = vsel %vm1784, %v1771, %v1303
      %v1804 = vsel %vm1784, %v1773, %v1305
      %v1806 = vsel %vm1784, %v1775, %v1307
      %v1808 = vsel %vm1784, %v1777, %v1309
      %v1810 = vsel %vm1784, %v1779, %v1311
      %v1812 = vsel %vm1784, %v1781, %v1313
      %v1814 = vsel %vm1784, %v1783, %v1315
      %vm1815 = vcmask 261120
      %v1817 = vsel %vm1815, %v1786, %v1326
      %v1819 = vsel %vm1815, %v1788, %v1328
      %v1821 = vsel %vm1815, %v1790, %v1330
      %v1823 = vsel %vm1815, %v1792, %v1332
      %v1825 = vsel %vm1815, %v1794, %v1334
      %v1827 = vsel %vm1815, %v1796, %v1336
      %v1829 = vsel %vm1815, %v1798, %v1338
      %v1831 = vsel %vm1815, %v1800, %v1340
      %v1833 = vsel %vm1815, %v1802, %v1342
      %v1835 = vsel %vm1815, %v1804, %v1344
      %v1837 = vsel %vm1815, %v1806, %v1346
      %v1839 = vsel %vm1815, %v1808, %v1348
      %v1841 = vsel %vm1815, %v1810, %v1350
      %v1843 = vsel %vm1815, %v1812, %v1352
      %v1845 = vsel %vm1815, %v1814, %v1354
      %vm1846 = vcmask 293888
      %v1848 = vsel %vm1846, %v1817, %v1359
      %v1850 = vsel %vm1846, %v1819, %v1361
      %v1852 = vsel %vm1846, %v1821, %v1363
      %v1854 = vsel %vm1846, %v1823, %v1365
      %v1856 = vsel %vm1846, %v1825, %v1367
      %v1858 = vsel %vm1846, %v1827, %v1369
      %v1860 = vsel %vm1846, %v1829, %v1371
      %v1862 = vsel %vm1846, %v1831, %v1373
      %v1864 = vsel %vm1846, %v1833, %v1375
      %v1866 = vsel %vm1846, %v1835, %v1377
      %v1868 = vsel %vm1846, %v1837, %v1379
      %v1870 = vsel %vm1846, %v1839, %v1381
      %v1872 = vsel %vm1846, %v1841, %v1383
      %v1874 = vsel %vm1846, %v1843, %v1385
      %v1876 = vsel %vm1846, %v1845, %v1387
      %vm1877 = vcmask 326656
      %v1879 = vsel %vm1877, %v1848, %v1390
      %v1881 = vsel %vm1877, %v1848, %v1392
      %v1883 = vsel %vm1877, %v1850, %v1394
      %v1885 = vsel %vm1877, %v1852, %v1396
      %v1887 = vsel %vm1877, %v1854, %v1398
      %v1889 = vsel %vm1877, %v1856, %v1400
      %v1891 = vsel %vm1877, %v1858, %v1402
      %v1893 = vsel %vm1877, %v1860, %v1404
      %v1895 = vsel %vm1877, %v1862, %v1406
      %v1897 = vsel %vm1877, %v1864, %v1408
      %v1899 = vsel %vm1877, %v1866, %v1410
      %v1901 = vsel %vm1877, %v1868, %v1412
      %v1903 = vsel %vm1877, %v1870, %v1414
      %v1905 = vsel %vm1877, %v1872, %v1416
      %v1907 = vsel %vm1877, %v1874, %v1418
      %v1909 = vsel %vm1877, %v1876, %v1420
      %vm1910 = vcmask 359424
      %v1912 = vsel %vm1910, %v1879, %v1433
      %v1914 = vsel %vm1910, %v1881, %v1435
      %v1916 = vsel %vm1910, %v1883, %v1437
      %v1918 = vsel %vm1910, %v1885, %v1439
      %v1920 = vsel %vm1910, %v1887, %v1441
      %v1922 = vsel %vm1910, %v1889, %v1443
      %v1924 = vsel %vm1910, %v1891, %v1445
      %v1926 = vsel %vm1910, %v1893, %v1447
      %v1928 = vsel %vm1910, %v1895, %v1449
      %v1930 = vsel %vm1910, %v1897, %v1451
      %v1932 = vsel %vm1910, %v1899, %v1453
      %v1934 = vsel %vm1910, %v1901, %v1455
      %v1936 = vsel %vm1910, %v1903, %v1457
      %v1938 = vsel %vm1910, %v1905, %v1459
      %v1940 = vsel %vm1910, %v1907, %v1461
      %v1942 = vsel %vm1910, %v1909, %v1463
      %vm1943 = vcmask 392192
      %v1945 = vsel %vm1943, %v1912, %v1469
      %v1947 = vsel %vm1943, %v1914, %v1471
      %v1949 = vsel %vm1943, %v1916, %v1473
      %v1951 = vsel %vm1943, %v1918, %v1475
      %v1953 = vsel %vm1943, %v1920, %v1477
      %v1955 = vsel %vm1943, %v1922, %v1479
      %v1957 = vsel %vm1943, %v1924, %v1481
      %v1959 = vsel %vm1943, %v1926, %v1483
      %v1961 = vsel %vm1943, %v1928, %v1485
      %v1963 = vsel %vm1943, %v1930, %v1487
      %v1965 = vsel %vm1943, %v1932, %v1489
      %v1967 = vsel %vm1943, %v1934, %v1491
      %v1969 = vsel %vm1943, %v1936, %v1493
      %v1971 = vsel %vm1943, %v1938, %v1495
      %v1973 = vsel %vm1943, %v1940, %v1497
      %v1975 = vsel %vm1943, %v1942, %v1499
      %vm1976 = vcmask 424960
      %v1978 = vsel %vm1976, %v1945, %v1510
      %v1980 = vsel %vm1976, %v1947, %v1512
      %v1982 = vsel %vm1976, %v1949, %v1514
      %v1984 = vsel %vm1976, %v1951, %v1516
      %v1986 = vsel %vm1976, %v1953, %v1518
      %v1988 = vsel %vm1976, %v1955, %v1520
      %v1990 = vsel %vm1976, %v1957, %v1522
      %v1992 = vsel %vm1976, %v1959, %v1524
      %v1994 = vsel %vm1976, %v1961, %v1526
      %v1996 = vsel %vm1976, %v1963, %v1528
      %v1998 = vsel %vm1976, %v1965, %v1530
      %v2000 = vsel %vm1976, %v1967, %v1532
      %v2002 = vsel %vm1976, %v1969, %v1534
      %v2004 = vsel %vm1976, %v1971, %v1536
      %v2006 = vsel %vm1976, %v1973, %v1538
      %v2008 = vsel %vm1976, %v1975, %v1540
      %vm2009 = vcmask 457728
      %v2011 = vsel %vm2009, %v1978, %v1545
      %v2013 = vsel %vm2009, %v1980, %v1547
      %v2015 = vsel %vm2009, %v1982, %v1549
      %v2017 = vsel %vm2009, %v1984, %v1551
      %v2019 = vsel %vm2009, %v1986, %v1553
      %v2021 = vsel %vm2009, %v1988, %v1555
      %v2023 = vsel %vm2009, %v1990, %v1557
      %v2025 = vsel %vm2009, %v1992, %v1559
      %v2027 = vsel %vm2009, %v1994, %v1561
      %v2029 = vsel %vm2009, %v1996, %v1563
      %v2031 = vsel %vm2009, %v1998, %v1565
      %v2033 = vsel %vm2009, %v2000, %v1567
      %v2035 = vsel %vm2009, %v2002, %v1569
      %v2037 = vsel %vm2009, %v2004, %v1571
      %v2039 = vsel %vm2009, %v2006, %v1573
      %v2041 = vsel %vm2009, %v2008, %v1575
      %vm2042 = vcmask 490496
      %v2044 = vsel %vm2042, %v2011, %v1577
      %v2046 = vsel %vm2042, %v2013, %v1579
      %v2048 = vsel %vm2042, %v2015, %v1581
      %v2050 = vsel %vm2042, %v2017, %v1583
      %v2052 = vsel %vm2042, %v2019, %v1585
      %v2054 = vsel %vm2042, %v2021, %v1587
      %v2056 = vsel %vm2042, %v2023, %v1589
      %v2058 = vsel %vm2042, %v2025, %v1591
      %v2060 = vsel %vm2042, %v2027, %v1593
      %v2062 = vsel %vm2042, %v2029, %v1595
      %v2064 = vsel %vm2042, %v2031, %v1597
      %v2066 = vsel %vm2042, %v2033, %v1599
      %v2068 = vsel %vm2042, %v2035, %v1601
      %v2070 = vsel %vm2042, %v2037, %v1603
      %v2072 = vsel %vm2042, %v2039, %v1605
      %v2073 = vsel %vm2042, %v2041, %v1605
      %2074 = vrot.lane.b32.xlu0 %v997, 4
      %v2075 = vpop.permute.xlu0 %2074
      %2076 = vrot.lane.b32.xlu0 %v1006, 4
      %v2077 = vpop.permute.xlu0 %2076
      %2078 = vrot.lane.b32.xlu0 %v1015, 4
      %v2079 = vpop.permute.xlu0 %2078
      %2080 = vrot.lane.b32.xlu0 %v1024, 4
      %v2081 = vpop.permute.xlu0 %2080
      %2082 = vrot.lane.b32.xlu0 %v1033, 4
      %v2083 = vpop.permute.xlu0 %2082
      %2084 = vrot.lane.b32.xlu0 %v1042, 4
      %v2085 = vpop.permute.xlu0 %2084
      %2086 = vrot.lane.b32.xlu0 %v1051, 4
      %v2087 = vpop.permute.xlu0 %2086
      %2088 = vrot.lane.b32.xlu0 %v1060, 4
      %v2089 = vpop.permute.xlu0 %2088
      %2090 = vrot.lane.b32.xlu0 %v1069, 4
      %v2091 = vpop.permute.xlu0 %2090
      %2092 = vrot.lane.b32.xlu0 %v1078, 4
      %v2093 = vpop.permute.xlu0 %2092
      %2094 = vrot.lane.b32.xlu0 %v1087, 4
      %v2095 = vpop.permute.xlu0 %2094
      %2096 = vrot.lane.b32.xlu0 %v1096, 4
      %v2097 = vpop.permute.xlu0 %2096
      %2098 = vrot.lane.b32.xlu0 %v1105, 4
      %v2099 = vpop.permute.xlu0 %2098
      %2100 = vrot.lane.b32.xlu0 %v1251, 4
      %v2101 = vpop.permute.xlu0 %2100
      %2102 = vrot.lane.b32.xlu0 %v1319, 4
      %v2103 = vpop.permute.xlu0 %2102
      %2104 = vrot.lane.b32.xlu0 %v1431, 4
      %v2105 = vpop.permute.xlu0 %2104
      %2106 = vrot.lane.b32.xlu0 %v1503, 4
      %v2107 = vpop.permute.xlu0 %2106
      %2108 = vrot.lane.b32.xlu0 %v918, 8
      %v2109 = vpop.permute.xlu0 %2108
      %2110 = vrot.lane.b32.xlu0 %v921, 8
      %v2111 = vpop.permute.xlu0 %2110
      %2112 = vrot.lane.b32.xlu0 %v924, 8
      %v2113 = vpop.permute.xlu0 %2112
      %2114 = vrot.lane.b32.xlu0 %v927, 8
      %v2115 = vpop.permute.xlu0 %2114
      %2116 = vrot.lane.b32.xlu0 %v930, 8
      %v2117 = vpop.permute.xlu0 %2116
      %2118 = vrot.lane.b32.xlu0 %v933, 8
      %v2119 = vpop.permute.xlu0 %2118
      %2120 = vrot.lane.b32.xlu0 %v936, 8
      %v2121 = vpop.permute.xlu0 %2120
      %2122 = vrot.lane.b32.xlu0 %v939, 8
      %v2123 = vpop.permute.xlu0 %2122
      %2124 = vrot.lane.b32.xlu0 %v942, 8
      %v2125 = vpop.permute.xlu0 %2124
      %2126 = vrot.lane.b32.xlu0 %v945, 8
      %v2127 = vpop.permute.xlu0 %2126
      %2128 = vrot.lane.b32.xlu0 %v948, 8
      %v2129 = vpop.permute.xlu0 %2128
      %2130 = vrot.lane.b32.xlu0 %v951, 8
      %v2131 = vpop.permute.xlu0 %2130
      %2132 = vrot.lane.b32.xlu0 %v954, 8
      %v2133 = vpop.permute.xlu0 %2132
      %2134 = vrot.lane.b32.xlu0 %v1285, 8
      %v2135 = vpop.permute.xlu0 %2134
      %2136 = vrot.lane.b32.xlu0 %v1284, 8
      %v2137 = vpop.permute.xlu0 %2136
      %2138 = vrot.lane.b32.xlu0 %v1467, 8
      %v2139 = vpop.permute.xlu0 %2138
      %2140 = vrot.lane.b32.xlu0 %v1466, 8
      %v2141 = vpop.permute.xlu0 %2140
      %2142 = vrot.lane.b32.xlu0 %v999, 12
      %v2143 = vpop.permute.xlu0 %2142
      %2144 = vrot.lane.b32.xlu0 %v1008, 12
      %v2145 = vpop.permute.xlu0 %2144
      %2146 = vrot.lane.b32.xlu0 %v1017, 12
      %v2147 = vpop.permute.xlu0 %2146
      %2148 = vrot.lane.b32.xlu0 %v1026, 12
      %v2149 = vpop.permute.xlu0 %2148
      %2150 = vrot.lane.b32.xlu0 %v1035, 12
      %v2151 = vpop.permute.xlu0 %2150
      %2152 = vrot.lane.b32.xlu0 %v1044, 12
      %v2153 = vpop.permute.xlu0 %2152
      %2154 = vrot.lane.b32.xlu0 %v1053, 12
      %v2155 = vpop.permute.xlu0 %2154
      %2156 = vrot.lane.b32.xlu0 %v1062, 12
      %v2157 = vpop.permute.xlu0 %2156
      %2158 = vrot.lane.b32.xlu0 %v1071, 12
      %v2159 = vpop.permute.xlu0 %2158
      %2160 = vrot.lane.b32.xlu0 %v1080, 12
      %v2161 = vpop.permute.xlu0 %2160
      %2162 = vrot.lane.b32.xlu0 %v1089, 12
      %v2163 = vpop.permute.xlu0 %2162
      %2164 = vrot.lane.b32.xlu0 %v1098, 12
      %v2165 = vpop.permute.xlu0 %2164
      %2166 = vrot.lane.b32.xlu0 %v1107, 12
      %v2167 = vpop.permute.xlu0 %2166
      %2168 = vrot.lane.b32.xlu0 %v1324, 12
      %v2169 = vpop.permute.xlu0 %2168
      %2170 = vrot.lane.b32.xlu0 %v1321, 12
      %v2171 = vpop.permute.xlu0 %2170
      %2172 = vrot.lane.b32.xlu0 %v1508, 12
      %v2173 = vpop.permute.xlu0 %2172
      %2174 = vrot.lane.b32.xlu0 %v1505, 12
      %v2175 = vpop.permute.xlu0 %2174
      %v2176 = vrot.slane %v725, 7
      %v2177 = vor.u32 %v2176, %v727
      %v2178 = vrot.slane %v736, 7
      %v2179 = vor.u32 %v2178, %v738
      %v2180 = vrot.slane %v747, 7
      %v2181 = vor.u32 %v2180, %v749
      %v2182 = vrot.slane %v758, 7
      %v2183 = vor.u32 %v2182, %v760
      %v2184 = vrot.slane %v769, 7
      %v2185 = vor.u32 %v2184, %v771
      %v2186 = vrot.slane %v780, 7
      %v2187 = vor.u32 %v2186, %v782
      %v2188 = vrot.slane %v791, 7
      %v2189 = vor.u32 %v2188, %v793
      %v2190 = vrot.slane %v802, 7
      %v2191 = vor.u32 %v2190, %v804
      %v2192 = vrot.slane %v813, 7
      %v2193 = vor.u32 %v2192, %v815
      %v2194 = vrot.slane %v824, 7
      %v2195 = vor.u32 %v2194, %v826
      %v2196 = vrot.slane %v835, 7
      %v2197 = vor.u32 %v2196, %v837
      %v2198 = vrot.slane %v846, 7
      %v2199 = vor.u32 %v2198, %v848
      %v2200 = vrot.slane %v1241, 7
      %v2201 = vor.u32 %v2200, %v1243
      %v2202 = vrot.slane %v1421, 7
      %v2203 = vor.u32 %v2202, %v1423
      %2204 = vrot.lane.b32.xlu0 %v2177, 16
      %v2205 = vpop.permute.xlu0 %2204
      %2206 = vrot.lane.b32.xlu0 %v2176, 16
      %v2207 = vpop.permute.xlu0 %2206
      %2208 = vrot.lane.b32.xlu0 %v2179, 16
      %v2209 = vpop.permute.xlu0 %2208
      %2210 = vrot.lane.b32.xlu0 %v2178, 16
      %v2211 = vpop.permute.xlu0 %2210
      %2212 = vrot.lane.b32.xlu0 %v2181, 16
      %v2213 = vpop.permute.xlu0 %2212
      %2214 = vrot.lane.b32.xlu0 %v2180, 16
      %v2215 = vpop.permute.xlu0 %2214
      %2216 = vrot.lane.b32.xlu0 %v2183, 16
      %v2217 = vpop.permute.xlu0 %2216
      %2218 = vrot.lane.b32.xlu0 %v2182, 16
      %v2219 = vpop.permute.xlu0 %2218
      %2220 = vrot.lane.b32.xlu0 %v2185, 16
      %v2221 = vpop.permute.xlu0 %2220
      %2222 = vrot.lane.b32.xlu0 %v2184, 16
      %v2223 = vpop.permute.xlu0 %2222
      %2224 = vrot.lane.b32.xlu0 %v2187, 16
      %v2225 = vpop.permute.xlu0 %2224
      %2226 = vrot.lane.b32.xlu0 %v2186, 16
      %v2227 = vpop.permute.xlu0 %2226
      %2228 = vrot.lane.b32.xlu0 %v2189, 16
      %v2229 = vpop.permute.xlu0 %2228
      %2230 = vrot.lane.b32.xlu0 %v2188, 16
      %v2231 = vpop.permute.xlu0 %2230
      %2232 = vrot.lane.b32.xlu0 %v2191, 16
      %v2233 = vpop.permute.xlu0 %2232
      %2234 = vrot.lane.b32.xlu0 %v2190, 16
      %v2235 = vpop.permute.xlu0 %2234
      %2236 = vrot.lane.b32.xlu0 %v2193, 16
      %v2237 = vpop.permute.xlu0 %2236
      %2238 = vrot.lane.b32.xlu0 %v2192, 16
      %v2239 = vpop.permute.xlu0 %2238
      %2240 = vrot.lane.b32.xlu0 %v2195, 16
      %v2241 = vpop.permute.xlu0 %2240
      %2242 = vrot.lane.b32.xlu0 %v2194, 16
      %v2243 = vpop.permute.xlu0 %2242
      %2244 = vrot.lane.b32.xlu0 %v2197, 16
      %v2245 = vpop.permute.xlu0 %2244
      %2246 = vrot.lane.b32.xlu0 %v2196, 16
      %v2247 = vpop.permute.xlu0 %2246
      %2248 = vrot.lane.b32.xlu0 %v2199, 16
      %v2249 = vpop.permute.xlu0 %2248
      %2250 = vrot.lane.b32.xlu0 %v2198, 16
      %v2251 = vpop.permute.xlu0 %2250
      %2252 = vrot.lane.b32.xlu0 %v2201, 16
      %v2253 = vpop.permute.xlu0 %2252
      %2254 = vrot.lane.b32.xlu0 %v2200, 16
      %v2255 = vpop.permute.xlu0 %2254
      %2256 = vrot.lane.b32.xlu0 %v2203, 16
      %v2257 = vpop.permute.xlu0 %2256
      %2258 = vrot.lane.b32.xlu0 %v2202, 16
      %v2259 = vpop.permute.xlu0 %2258
      %2260 = vrot.lane.b32.xlu0 %v688, 20
      %v2261 = vpop.permute.xlu0 %2260
      %2262 = vrot.lane.b32.xlu0 %v689, 20
      %v2263 = vpop.permute.xlu0 %2262
      %2264 = vrot.lane.b32.xlu0 %v690, 20
      %v2265 = vpop.permute.xlu0 %2264
      %2266 = vrot.lane.b32.xlu0 %v691, 20
      %v2267 = vpop.permute.xlu0 %2266
      %2268 = vrot.lane.b32.xlu0 %v692, 20
      %v2269 = vpop.permute.xlu0 %2268
      %2270 = vrot.lane.b32.xlu0 %v693, 20
      %v2271 = vpop.permute.xlu0 %2270
      %2272 = vrot.lane.b32.xlu0 %v694, 20
      %v2273 = vpop.permute.xlu0 %2272
      %2274 = vrot.lane.b32.xlu0 %v695, 20
      %v2275 = vpop.permute.xlu0 %2274
      %2276 = vrot.lane.b32.xlu0 %v696, 20
      %v2277 = vpop.permute.xlu0 %2276
      %2278 = vrot.lane.b32.xlu0 %v697, 20
      %v2279 = vpop.permute.xlu0 %2278
      %2280 = vrot.lane.b32.xlu0 %v698, 20
      %v2281 = vpop.permute.xlu0 %2280
      %2282 = vrot.lane.b32.xlu0 %v699, 20
      %v2283 = vpop.permute.xlu0 %2282
      %2284 = vrot.lane.b32.xlu0 %v700, 20
      %v2285 = vpop.permute.xlu0 %2284
      %2286 = vrot.lane.b32.xlu0 %v634, 20
      %v2287 = vpop.permute.xlu0 %2286
      %2288 = vrot.lane.b32.xlu0 %v701, 20
      %v2289 = vpop.permute.xlu0 %2288
      %2290 = vrot.lane.b32.xlu0 %v1006, 24
      %v2291 = vpop.permute.xlu0 %2290
      %2292 = vrot.lane.b32.xlu0 %v1015, 24
      %v2293 = vpop.permute.xlu0 %2292
      %2294 = vrot.lane.b32.xlu0 %v1024, 24
      %v2295 = vpop.permute.xlu0 %2294
      %2296 = vrot.lane.b32.xlu0 %v1033, 24
      %v2297 = vpop.permute.xlu0 %2296
      %2298 = vrot.lane.b32.xlu0 %v1042, 24
      %v2299 = vpop.permute.xlu0 %2298
      %2300 = vrot.lane.b32.xlu0 %v1051, 24
      %v2301 = vpop.permute.xlu0 %2300
      %2302 = vrot.lane.b32.xlu0 %v1060, 24
      %v2303 = vpop.permute.xlu0 %2302
      %2304 = vrot.lane.b32.xlu0 %v1069, 24
      %v2305 = vpop.permute.xlu0 %2304
      %2306 = vrot.lane.b32.xlu0 %v1078, 24
      %v2307 = vpop.permute.xlu0 %2306
      %2308 = vrot.lane.b32.xlu0 %v1087, 24
      %v2309 = vpop.permute.xlu0 %2308
      %2310 = vrot.lane.b32.xlu0 %v1096, 24
      %v2311 = vpop.permute.xlu0 %2310
      %2312 = vrot.lane.b32.xlu0 %v1105, 24
      %v2313 = vpop.permute.xlu0 %2312
      %2314 = vrot.lane.b32.xlu0 %v1319, 24
      %v2315 = vpop.permute.xlu0 %2314
      %2316 = vrot.lane.b32.xlu0 %v1431, 24
      %v2317 = vpop.permute.xlu0 %2316
      %2318 = vrot.lane.b32.xlu0 %v1503, 24
      %v2319 = vpop.permute.xlu0 %2318
      %2320 = vrot.lane.b32.xlu0 %v921, 28
      %v2321 = vpop.permute.xlu0 %2320
      %2322 = vrot.lane.b32.xlu0 %v924, 28
      %v2323 = vpop.permute.xlu0 %2322
      %2324 = vrot.lane.b32.xlu0 %v927, 28
      %v2325 = vpop.permute.xlu0 %2324
      %2326 = vrot.lane.b32.xlu0 %v930, 28
      %v2327 = vpop.permute.xlu0 %2326
      %2328 = vrot.lane.b32.xlu0 %v933, 28
      %v2329 = vpop.permute.xlu0 %2328
      %2330 = vrot.lane.b32.xlu0 %v936, 28
      %v2331 = vpop.permute.xlu0 %2330
      %2332 = vrot.lane.b32.xlu0 %v939, 28
      %v2333 = vpop.permute.xlu0 %2332
      %2334 = vrot.lane.b32.xlu0 %v942, 28
      %v2335 = vpop.permute.xlu0 %2334
      %2336 = vrot.lane.b32.xlu0 %v945, 28
      %v2337 = vpop.permute.xlu0 %2336
      %2338 = vrot.lane.b32.xlu0 %v948, 28
      %v2339 = vpop.permute.xlu0 %2338
      %2340 = vrot.lane.b32.xlu0 %v951, 28
      %v2341 = vpop.permute.xlu0 %2340
      %2342 = vrot.lane.b32.xlu0 %v954, 28
      %v2343 = vpop.permute.xlu0 %2342
      %2344 = vrot.lane.b32.xlu0 %v1284, 28
      %v2345 = vpop.permute.xlu0 %2344
      %2346 = vrot.lane.b32.xlu0 %v1467, 28
      %v2347 = vpop.permute.xlu0 %2346
      %2348 = vrot.lane.b32.xlu0 %v1466, 28
      %v2349 = vpop.permute.xlu0 %2348
      %2350 = vrot.lane.b32.xlu0 %v1008, 32
      %v2351 = vpop.permute.xlu0 %2350
      %2352 = vrot.lane.b32.xlu0 %v1017, 32
      %v2353 = vpop.permute.xlu0 %2352
      %2354 = vrot.lane.b32.xlu0 %v1026, 32
      %v2355 = vpop.permute.xlu0 %2354
      %2356 = vrot.lane.b32.xlu0 %v1035, 32
      %v2357 = vpop.permute.xlu0 %2356
      %2358 = vrot.lane.b32.xlu0 %v1044, 32
      %v2359 = vpop.permute.xlu0 %2358
      %2360 = vrot.lane.b32.xlu0 %v1053, 32
      %v2361 = vpop.permute.xlu0 %2360
      %2362 = vrot.lane.b32.xlu0 %v1062, 32
      %v2363 = vpop.permute.xlu0 %2362
      %2364 = vrot.lane.b32.xlu0 %v1071, 32
      %v2365 = vpop.permute.xlu0 %2364
      %2366 = vrot.lane.b32.xlu0 %v1080, 32
      %v2367 = vpop.permute.xlu0 %2366
      %2368 = vrot.lane.b32.xlu0 %v1089, 32
      %v2369 = vpop.permute.xlu0 %2368
      %2370 = vrot.lane.b32.xlu0 %v1098, 32
      %v2371 = vpop.permute.xlu0 %2370
      %2372 = vrot.lane.b32.xlu0 %v1107, 32
      %v2373 = vpop.permute.xlu0 %2372
      %2374 = vrot.lane.b32.xlu0 %v1321, 32
      %v2375 = vpop.permute.xlu0 %2374
      %2376 = vrot.lane.b32.xlu0 %v1508, 32
      %v2377 = vpop.permute.xlu0 %2376
      %2378 = vrot.lane.b32.xlu0 %v1505, 32
      %v2379 = vpop.permute.xlu0 %2378
      %v2381 = vsel %vm1606, %v687, %v2075
      %v2383 = vsel %vm1606, %v688, %v2077
      %v2385 = vsel %vm1606, %v689, %v2079
      %v2387 = vsel %vm1606, %v690, %v2081
      %v2389 = vsel %vm1606, %v691, %v2083
      %v2391 = vsel %vm1606, %v692, %v2085
      %v2393 = vsel %vm1606, %v693, %v2087
      %v2395 = vsel %vm1606, %v694, %v2089
      %v2397 = vsel %vm1606, %v695, %v2091
      %v2399 = vsel %vm1606, %v696, %v2093
      %v2401 = vsel %vm1606, %v697, %v2095
      %v2403 = vsel %vm1606, %v698, %v2097
      %v2405 = vsel %vm1606, %v699, %v2099
      %v2407 = vsel %vm1606, %v631, %v2101
      %v2409 = vsel %vm1606, %v700, %v2103
      %v2411 = vsel %vm1606, %v634, %v2105
      %v2413 = vsel %vm1606, %v701, %v2107
      %v2415 = vsel %vm1635, %v2381, %v2109
      %v2417 = vsel %vm1635, %v2383, %v2111
      %v2419 = vsel %vm1635, %v2385, %v2113
      %v2421 = vsel %vm1635, %v2387, %v2115
      %v2423 = vsel %vm1635, %v2389, %v2117
      %v2425 = vsel %vm1635, %v2391, %v2119
      %v2427 = vsel %vm1635, %v2393, %v2121
      %v2429 = vsel %vm1635, %v2395, %v2123
      %v2431 = vsel %vm1635, %v2397, %v2125
      %v2433 = vsel %vm1635, %v2399, %v2127
      %v2435 = vsel %vm1635, %v2401, %v2129
      %v2437 = vsel %vm1635, %v2403, %v2131
      %v2439 = vsel %vm1635, %v2405, %v2133
      %v2441 = vsel %vm1635, %v2407, %v2135
      %v2443 = vsel %vm1635, %v2409, %v2137
      %v2445 = vsel %vm1635, %v2411, %v2139
      %v2447 = vsel %vm1635, %v2413, %v2141
      %v2449 = vsel %vm1664, %v2415, %v2143
      %v2451 = vsel %vm1664, %v2417, %v2145
      %v2453 = vsel %vm1664, %v2419, %v2147
      %v2455 = vsel %vm1664, %v2421, %v2149
      %v2457 = vsel %vm1664, %v2423, %v2151
      %v2459 = vsel %vm1664, %v2425, %v2153
      %v2461 = vsel %vm1664, %v2427, %v2155
      %v2463 = vsel %vm1664, %v2429, %v2157
      %v2465 = vsel %vm1664, %v2431, %v2159
      %v2467 = vsel %vm1664, %v2433, %v2161
      %v2469 = vsel %vm1664, %v2435, %v2163
      %v2471 = vsel %vm1664, %v2437, %v2165
      %v2473 = vsel %vm1664, %v2439, %v2167
      %v2475 = vsel %vm1664, %v2441, %v2169
      %v2477 = vsel %vm1664, %v2443, %v2171
      %v2479 = vsel %vm1664, %v2445, %v2173
      %v2481 = vsel %vm1664, %v2447, %v2175
      %v2483 = vsel %vm1693, %v1668, %v2205
      %v2485 = vsel %vm1693, %v2449, %v2207
      %v2487 = vsel %vm1693, %v1670, %v2209
      %v2489 = vsel %vm1693, %v2451, %v2211
      %v2491 = vsel %vm1693, %v1672, %v2213
      %v2493 = vsel %vm1693, %v2453, %v2215
      %v2495 = vsel %vm1693, %v1674, %v2217
      %v2497 = vsel %vm1693, %v2455, %v2219
      %v2499 = vsel %vm1693, %v1676, %v2221
      %v2501 = vsel %vm1693, %v2457, %v2223
      %v2503 = vsel %vm1693, %v1678, %v2225
      %v2505 = vsel %vm1693, %v2459, %v2227
      %v2507 = vsel %vm1693, %v1680, %v2229
      %v2509 = vsel %vm1693, %v2461, %v2231
      %v2511 = vsel %vm1693, %v1682, %v2233
      %v2513 = vsel %vm1693, %v2463, %v2235
      %v2515 = vsel %vm1693, %v1684, %v2237
      %v2517 = vsel %vm1693, %v2465, %v2239
      %v2519 = vsel %vm1693, %v1686, %v2241
      %v2521 = vsel %vm1693, %v2467, %v2243
      %v2523 = vsel %vm1693, %v1688, %v2245
      %v2525 = vsel %vm1693, %v2469, %v2247
      %v2527 = vsel %vm1693, %v1690, %v2249
      %v2529 = vsel %vm1693, %v2471, %v2251
      %v2531 = vsel %vm1693, %v1692, %v2253
      %v2533 = vsel %vm1693, %v2473, %v2255
      %v2535 = vsel %vm1693, %v2475, %v2257
      %v2537 = vsel %vm1693, %v2477, %v2259
      %v2538 = vsel %vm1693, %v2479, %v2257
      %v2539 = vsel %vm1693, %v2481, %v2259
      %v2540 = vsel %vm1722, %v2483, %v1216
      %v2542 = vsel %vm1722, %v2485, %v2261
      %v2543 = vsel %vm1722, %v2487, %v1218
      %v2545 = vsel %vm1722, %v2489, %v2263
      %v2546 = vsel %vm1722, %v2491, %v1220
      %v2548 = vsel %vm1722, %v2493, %v2265
      %v2549 = vsel %vm1722, %v2495, %v1222
      %v2551 = vsel %vm1722, %v2497, %v2267
      %v2552 = vsel %vm1722, %v2499, %v1224
      %v2554 = vsel %vm1722, %v2501, %v2269
      %v2555 = vsel %vm1722, %v2503, %v1226
      %v2557 = vsel %vm1722, %v2505, %v2271
      %v2558 = vsel %vm1722, %v2507, %v1228
      %v2560 = vsel %vm1722, %v2509, %v2273
      %v2561 = vsel %vm1722, %v2511, %v1230
      %v2563 = vsel %vm1722, %v2513, %v2275
      %v2564 = vsel %vm1722, %v2515, %v1232
      %v2566 = vsel %vm1722, %v2517, %v2277
      %v2567 = vsel %vm1722, %v2519, %v1234
      %v2569 = vsel %vm1722, %v2521, %v2279
      %v2570 = vsel %vm1722, %v2523, %v1236
      %v2572 = vsel %vm1722, %v2525, %v2281
      %v2573 = vsel %vm1722, %v2527, %v1238
      %v2575 = vsel %vm1722, %v2529, %v2283
      %v2576 = vsel %vm1722, %v2531, %v1240
      %v2578 = vsel %vm1722, %v2533, %v2285
      %v2580 = vsel %vm1722, %v2535, %v2287
      %v2582 = vsel %vm1722, %v2537, %v2289
      %v2583 = vsel %vm1722, %v2538, %v2287
      %v2584 = vsel %vm1722, %v2539, %v2289
      %v2585 = vsel %vm1753, %v2540, %v1257
      %v2587 = vsel %vm1753, %v2542, %v2291
      %v2588 = vsel %vm1753, %v2543, %v1259
      %v2590 = vsel %vm1753, %v2545, %v2293
      %v2591 = vsel %vm1753, %v2546, %v1261
      %v2593 = vsel %vm1753, %v2548, %v2295
      %v2594 = vsel %vm1753, %v2549, %v1263
      %v2596 = vsel %vm1753, %v2551, %v2297
      %v2597 = vsel %vm1753, %v2552, %v1265
      %v2599 = vsel %vm1753, %v2554, %v2299
      %v2600 = vsel %vm1753, %v2555, %v1267
      %v2602 = vsel %vm1753, %v2557, %v2301
      %v2603 = vsel %vm1753, %v2558, %v1269
      %v2605 = vsel %vm1753, %v2560, %v2303
      %v2606 = vsel %vm1753, %v2561, %v1271
      %v2608 = vsel %vm1753, %v2563, %v2305
      %v2609 = vsel %vm1753, %v2564, %v1273
      %v2611 = vsel %vm1753, %v2566, %v2307
      %v2612 = vsel %vm1753, %v2567, %v1275
      %v2614 = vsel %vm1753, %v2569, %v2309
      %v2615 = vsel %vm1753, %v2570, %v1277
      %v2617 = vsel %vm1753, %v2572, %v2311
      %v2618 = vsel %vm1753, %v2573, %v1279
      %v2620 = vsel %vm1753, %v2575, %v2313
      %v2621 = vsel %vm1753, %v2576, %v1281
      %v2623 = vsel %vm1753, %v2578, %v2315
      %v2625 = vsel %vm1753, %v2580, %v2317
      %v2627 = vsel %vm1753, %v2582, %v2319
      %v2628 = vsel %vm1753, %v2583, %v2317
      %v2629 = vsel %vm1753, %v2584, %v2319
      %v2630 = vsel %vm1784, %v2585, %v1291
      %v2632 = vsel %vm1784, %v2587, %v2321
      %v2633 = vsel %vm1784, %v2588, %v1293
      %v2635 = vsel %vm1784, %v2590, %v2323
      %v2636 = vsel %vm1784, %v2591, %v1295
      %v2638 = vsel %vm1784, %v2593, %v2325
      %v2639 = vsel %vm1784, %v2594, %v1297
      %v2641 = vsel %vm1784, %v2596, %v2327
      %v2642 = vsel %vm1784, %v2597, %v1299
      %v2644 = vsel %vm1784, %v2599, %v2329
      %v2645 = vsel %vm1784, %v2600, %v1301
      %v2647 = vsel %vm1784, %v2602, %v2331
      %v2648 = vsel %vm1784, %v2603, %v1303
      %v2650 = vsel %vm1784, %v2605, %v2333
      %v2651 = vsel %vm1784, %v2606, %v1305
      %v2653 = vsel %vm1784, %v2608, %v2335
      %v2654 = vsel %vm1784, %v2609, %v1307
      %v2656 = vsel %vm1784, %v2611, %v2337
      %v2657 = vsel %vm1784, %v2612, %v1309
      %v2659 = vsel %vm1784, %v2614, %v2339
      %v2660 = vsel %vm1784, %v2615, %v1311
      %v2662 = vsel %vm1784, %v2617, %v2341
      %v2663 = vsel %vm1784, %v2618, %v1313
      %v2665 = vsel %vm1784, %v2620, %v2343
      %v2666 = vsel %vm1784, %v2621, %v1315
      %v2668 = vsel %vm1784, %v2623, %v2345
      %v2670 = vsel %vm1784, %v2625, %v2347
      %v2672 = vsel %vm1784, %v2627, %v2349
      %v2673 = vsel %vm1784, %v2628, %v2347
      %v2674 = vsel %vm1784, %v2629, %v2349
      %v2675 = vsel %vm1815, %v2630, %v1330
      %v2677 = vsel %vm1815, %v2632, %v2351
      %v2678 = vsel %vm1815, %v2633, %v1332
      %v2680 = vsel %vm1815, %v2635, %v2353
      %v2681 = vsel %vm1815, %v2636, %v1334
      %v2683 = vsel %vm1815, %v2638, %v2355
      %v2684 = vsel %vm1815, %v2639, %v1336
      %v2686 = vsel %vm1815, %v2641, %v2357
      %v2687 = vsel %vm1815, %v2642, %v1338
      %v2689 = vsel %vm1815, %v2644, %v2359
      %v2690 = vsel %vm1815, %v2645, %v1340
      %v2692 = vsel %vm1815, %v2647, %v2361
      %v2693 = vsel %vm1815, %v2648, %v1342
      %v2695 = vsel %vm1815, %v2650, %v2363
      %v2696 = vsel %vm1815, %v2651, %v1344
      %v2698 = vsel %vm1815, %v2653, %v2365
      %v2699 = vsel %vm1815, %v2654, %v1346
      %v2701 = vsel %vm1815, %v2656, %v2367
      %v2702 = vsel %vm1815, %v2657, %v1348
      %v2704 = vsel %vm1815, %v2659, %v2369
      %v2705 = vsel %vm1815, %v2660, %v1350
      %v2707 = vsel %vm1815, %v2662, %v2371
      %v2708 = vsel %vm1815, %v2663, %v1352
      %v2710 = vsel %vm1815, %v2665, %v2373
      %v2711 = vsel %vm1815, %v2666, %v1354
      %v2713 = vsel %vm1815, %v2668, %v2375
      %v2715 = vsel %vm1815, %v2670, %v2377
      %v2717 = vsel %vm1815, %v2672, %v2379
      %v2718 = vsel %vm1815, %v2673, %v2377
      %v2719 = vsel %vm1815, %v2674, %v2379
      %v2721 = vsel %vm1846, %v2675, 0
      %v2722 = vsel %vm1846, %v2677, 0
      %v2723 = vsel %vm1846, %v2678, 0
      %v2724 = vsel %vm1846, %v2680, 0
      %v2725 = vsel %vm1846, %v2681, 0
      %v2726 = vsel %vm1846, %v2683, 0
      %v2727 = vsel %vm1846, %v2684, 0
      %v2728 = vsel %vm1846, %v2686, 0
      %v2729 = vsel %vm1846, %v2687, 0
      %v2730 = vsel %vm1846, %v2689, 0
      %v2731 = vsel %vm1846, %v2690, 0
      %v2732 = vsel %vm1846, %v2692, 0
      %v2733 = vsel %vm1846, %v2693, 0
      %v2734 = vsel %vm1846, %v2695, 0
      %v2735 = vsel %vm1846, %v2696, 0
      %v2736 = vsel %vm1846, %v2698, 0
      %v2737 = vsel %vm1846, %v2699, 0
      %v2738 = vsel %vm1846, %v2701, 0
      %v2739 = vsel %vm1846, %v2702, 0
      %v2740 = vsel %vm1846, %v2704, 0
      %v2741 = vsel %vm1846, %v2705, 0
      %v2742 = vsel %vm1846, %v2707, 0
      %v2743 = vsel %vm1846, %v2708, 0
      %v2744 = vsel %vm1846, %v2710, 0
      %v2745 = vsel %vm1846, %v2711, 0
      %v2746 = vsel %vm1846, %v2713, 0
      %v2747 = vsel %vm1846, %v2715, 0
      %v2748 = vsel %vm1846, %v2717, 0
      %v2749 = vsel %vm1846, %v2718, 0
      %v2750 = vsel %vm1846, %v2719, 0
      %v2751 = vshrl.u32 %v2721, 16
      %v2753 = vshll.u32 %v2721, 16
      %v2755 = vrot.slane %v2753, 1
      %v2756 = vor.u32 %v2751, %v2755
      %v2757 = vshll.u32 %v2722, 16
      %v2759 = vrot.slane %v2757, 1
      %v2760 = vsel %vm702, %v2756, %v2759
      %v2761 = vshrl.u32 %v2723, 16
      %v2763 = vshll.u32 %v2723, 16
      %v2765 = vrot.slane %v2763, 1
      %v2766 = vor.u32 %v2761, %v2765
      %v2767 = vshll.u32 %v2724, 16
      %v2769 = vrot.slane %v2767, 1
      %v2770 = vsel %vm702, %v2766, %v2769
      %v2771 = vshrl.u32 %v2725, 16
      %v2773 = vshll.u32 %v2725, 16
      %v2775 = vrot.slane %v2773, 1
      %v2776 = vor.u32 %v2771, %v2775
      %v2777 = vshll.u32 %v2726, 16
      %v2779 = vrot.slane %v2777, 1
      %v2780 = vsel %vm702, %v2776, %v2779
      %v2781 = vshrl.u32 %v2727, 16
      %v2783 = vshll.u32 %v2727, 16
      %v2785 = vrot.slane %v2783, 1
      %v2786 = vor.u32 %v2781, %v2785
      %v2787 = vshll.u32 %v2728, 16
      %v2789 = vrot.slane %v2787, 1
      %v2790 = vsel %vm702, %v2786, %v2789
      %v2791 = vshrl.u32 %v2729, 16
      %v2793 = vshll.u32 %v2729, 16
      %v2795 = vrot.slane %v2793, 1
      %v2796 = vor.u32 %v2791, %v2795
      %v2797 = vshll.u32 %v2730, 16
      %v2799 = vrot.slane %v2797, 1
      %v2800 = vsel %vm702, %v2796, %v2799
      %v2801 = vshrl.u32 %v2731, 16
      %v2803 = vshll.u32 %v2731, 16
      %v2805 = vrot.slane %v2803, 1
      %v2806 = vor.u32 %v2801, %v2805
      %v2807 = vshll.u32 %v2732, 16
      %v2809 = vrot.slane %v2807, 1
      %v2810 = vsel %vm702, %v2806, %v2809
      %v2811 = vshrl.u32 %v2733, 16
      %v2813 = vshll.u32 %v2733, 16
      %v2815 = vrot.slane %v2813, 1
      %v2816 = vor.u32 %v2811, %v2815
      %v2817 = vshll.u32 %v2734, 16
      %v2819 = vrot.slane %v2817, 1
      %v2820 = vsel %vm702, %v2816, %v2819
      %v2821 = vshrl.u32 %v2735, 16
      %v2823 = vshll.u32 %v2735, 16
      %v2825 = vrot.slane %v2823, 1
      %v2826 = vor.u32 %v2821, %v2825
      %v2827 = vshll.u32 %v2736, 16
      %v2829 = vrot.slane %v2827, 1
      %v2830 = vsel %vm702, %v2826, %v2829
      %v2831 = vshrl.u32 %v2737, 16
      %v2833 = vshll.u32 %v2737, 16
      %v2835 = vrot.slane %v2833, 1
      %v2836 = vor.u32 %v2831, %v2835
      %v2837 = vshll.u32 %v2738, 16
      %v2839 = vrot.slane %v2837, 1
      %v2840 = vsel %vm702, %v2836, %v2839
      %v2841 = vshrl.u32 %v2739, 16
      %v2843 = vshll.u32 %v2739, 16
      %v2845 = vrot.slane %v2843, 1
      %v2846 = vor.u32 %v2841, %v2845
      %v2847 = vshll.u32 %v2740, 16
      %v2849 = vrot.slane %v2847, 1
      %v2850 = vsel %vm702, %v2846, %v2849
      %v2851 = vshrl.u32 %v2741, 16
      %v2853 = vshll.u32 %v2741, 16
      %v2855 = vrot.slane %v2853, 1
      %v2856 = vor.u32 %v2851, %v2855
      %v2857 = vshll.u32 %v2742, 16
      %v2859 = vrot.slane %v2857, 1
      %v2860 = vsel %vm702, %v2856, %v2859
      %v2861 = vshrl.u32 %v2743, 16
      %v2863 = vshll.u32 %v2743, 16
      %v2865 = vrot.slane %v2863, 1
      %v2866 = vor.u32 %v2861, %v2865
      %v2867 = vshll.u32 %v2744, 16
      %v2869 = vrot.slane %v2867, 1
      %v2870 = vsel %vm702, %v2866, %v2869
      %v2871 = vshrl.u32 %v2745, 16
      %v2873 = vshll.u32 %v2745, 16
      %v2875 = vrot.slane %v2873, 1
      %v2876 = vor.u32 %v2871, %v2875
      %v2877 = vshll.u32 %v2746, 16
      %v2879 = vrot.slane %v2877, 1
      %v2880 = vsel %vm702, %v2876, %v2879
      %v2881 = vshrl.u32 %v2747, 16
      %v2883 = vshll.u32 %v2747, 16
      %v2885 = vrot.slane %v2883, 1
      %v2886 = vor.u32 %v2881, %v2885
      %v2887 = vshll.u32 %v2748, 16
      %v2889 = vrot.slane %v2887, 1
      %v2890 = vsel %vm702, %v2886, %v2889
      %v2891 = vshrl.u32 %v2749, 16
      %v2893 = vshll.u32 %v2749, 16
      %v2895 = vrot.slane %v2893, 1
      %v2896 = vor.u32 %v2891, %v2895
      %v2897 = vshll.u32 %v2750, 16
      %v2899 = vrot.slane %v2897, 1
      %v2900 = vsel %vm702, %v2896, %v2899
      %2901 = vrot.lane.b32.xlu0 %v2760, 64
      %v2902 = vpop.permute.xlu0 %2901
      %2903 = vrot.lane.b32.xlu0 %v2770, 64
      %v2904 = vpop.permute.xlu0 %2903
      %2905 = vrot.lane.b32.xlu0 %v2780, 64
      %v2906 = vpop.permute.xlu0 %2905
      %2907 = vrot.lane.b32.xlu0 %v2790, 64
      %v2908 = vpop.permute.xlu0 %2907
      %2909 = vrot.lane.b32.xlu0 %v2800, 64
      %v2910 = vpop.permute.xlu0 %2909
      %2911 = vrot.lane.b32.xlu0 %v2810, 64
      %v2912 = vpop.permute.xlu0 %2911
      %2913 = vrot.lane.b32.xlu0 %v2820, 64
      %v2914 = vpop.permute.xlu0 %2913
      %2915 = vrot.lane.b32.xlu0 %v2830, 64
      %v2916 = vpop.permute.xlu0 %2915
      %2917 = vrot.lane.b32.xlu0 %v2840, 64
      %v2918 = vpop.permute.xlu0 %2917
      %2919 = vrot.lane.b32.xlu0 %v2850, 64
      %v2920 = vpop.permute.xlu0 %2919
      %2921 = vrot.lane.b32.xlu0 %v2860, 64
      %v2922 = vpop.permute.xlu0 %2921
      %2923 = vrot.lane.b32.xlu0 %v2870, 64
      %v2924 = vpop.permute.xlu0 %2923
      %2925 = vrot.lane.b32.xlu0 %v2880, 64
      %v2926 = vpop.permute.xlu0 %2925
      %2927 = vrot.lane.b32.xlu0 %v2890, 64
      %v2928 = vpop.permute.xlu0 %2927
      %2929 = vrot.lane.b32.xlu0 %v2900, 64
      %v2930 = vpop.permute.xlu0 %2929
      %vm2931 = vcmask 523264
      %v2933 = vsel %vm2931, %v2044, %v2902
      %v2936 = vsel %vm2931, %v2046, %v2904
      %v2939 = vsel %vm2931, %v2048, %v2906
      %v2942 = vsel %vm2931, %v2050, %v2908
      %v2945 = vsel %vm2931, %v2052, %v2910
      %v2948 = vsel %vm2931, %v2054, %v2912
      %v2951 = vsel %vm2931, %v2056, %v2914
      %v2954 = vsel %vm2931, %v2058, %v2916
      %v2957 = vsel %vm2931, %v2060, %v2918
      %v2960 = vsel %vm2931, %v2062, %v2920
      %v2963 = vsel %vm2931, %v2064, %v2922
      %v2966 = vsel %vm2931, %v2066, %v2924
      %v2969 = vsel %vm2931, %v2068, %v2926
      %v2972 = vsel %vm2931, %v2070, %v2928
      %v2975 = vsel %vm2931, %v2072, %v2930
      %v2977 = vsel %vm2931, %v2073, %v2930
      %v2979 = vld [vmem:[%s1] sm:$0xf]
      %v2980 = vld [vmem:[%s1 + $0x4] sm:$0xf]
      %v2981 = vld [vmem:[%s1 + $0x8] sm:$0xf]
      %v2982 = vld [vmem:[%s1 + $0xc] sm:$0xf]
      %v2983 = vld [vmem:[%s1 + $0x10] sm:$0xf]
      %v2984 = vld [vmem:[%s1 + $0x14] sm:$0xf]
      %v2985 = vld [vmem:[%s1 + $0x18] sm:$0xf]
      %v2986 = vld [vmem:[%s1 + $0x1c] sm:$0xf]
      %v2987 = vld [vmem:[%s1 + $0x20] sm:$0xf]
      %v2988 = vld [vmem:[%s1 + $0x24] sm:$0xf]
      %v2989 = vld [vmem:[%s1 + $0x28] sm:$0xf]
      %v2990 = vld [vmem:[%s1 + $0x2c] sm:$0xf]
      %v2991 = vld [vmem:[%s1 + $0x30] sm:$0xf]
      %v2992 = vld [vmem:[%s1 + $0x34] sm:$0xf]
      %v2993 = vld [vmem:[%s1 + $0x38] sm:$0xf]
      %v2994 = vld [vmem:[%s1 + $0x3c] sm:$0xf]
      %v3011 = vunpack.c.l.b16 %v2979
      %v3012 = vunpack.c.l.b16 %v2980
      %v3013 = vunpack.c.l.b16 %v2981
      %v3014 = vunpack.c.l.b16 %v2982
      %v3015 = vunpack.c.l.b16 %v2983
      %v3016 = vunpack.c.l.b16 %v2984
      %v3017 = vunpack.c.l.b16 %v2985
      %v3018 = vunpack.c.l.b16 %v2986
      %v3019 = vunpack.c.l.b16 %v2987
      %v3020 = vunpack.c.l.b16 %v2988
      %v3021 = vunpack.c.l.b16 %v2989
      %v3022 = vunpack.c.l.b16 %v2990
      %v3023 = vunpack.c.l.b16 %v2991
      %v3024 = vunpack.c.l.b16 %v2992
      %v3025 = vunpack.c.l.b16 %v2993
      %v3026 = vunpack.c.l.b16 %v2994
      %v3027 = vpack.c.b16 %v3012, %v3011
      %v3028 = vpack.c.b16 %v3014, %v3013
      %v3029 = vpack.c.b16 %v3016, %v3015
      %v3030 = vpack.c.b16 %v3018, %v3017
      %v3031 = vpack.c.b16 %v3020, %v3019
      %v3032 = vpack.c.b16 %v3022, %v3021
      %v3033 = vpack.c.b16 %v3024, %v3023
      %v3034 = vpack.c.b16 %v3026, %v3025
      %3043 = vmatprep.subr.bf16.mxu0 0
      %3044 = vmatpush1.bf16.msra.mxu0 %v3027
      %3045 = vmatprep.subr.bf16.mxu0 0
      %3046 = vmatpush1.bf16.msra.mxu0 %v3028
      %3047 = vmatprep.subr.bf16.mxu0 0
      %3048 = vmatpush1.bf16.msra.mxu0 %v3029
      %3049 = vmatprep.subr.bf16.mxu0 0
      %3050 = vmatpush1.bf16.msra.mxu0 %v3030
      %3051 = vmatprep.subr.bf16.mxu0 0
      %3052 = vmatpush1.bf16.msra.mxu0 %v3031
      %3053 = vmatprep.subr.bf16.mxu0 0
      %3054 = vmatpush1.bf16.msra.mxu0 %v3032
      %3055 = vmatprep.subr.bf16.mxu0 0
      %3056 = vmatpush1.bf16.msra.mxu0 %v3033
      %3057 = vmatprep.subr.bf16.mxu0 0
      %3058 = vmatpush1.bf16.msra.mxu0 %v3034
      %3059 = vmatprep.subr.bf16.mxu0 0
      %3060 = vmatpush1.bf16.msra.mxu0 0
      %3061 = vmatprep.subr.bf16.mxu0 0
      %3062 = vmatpush1.bf16.msra.mxu0 0
      %3063 = vmatprep.subr.bf16.mxu0 0
      %3064 = vmatpush1.bf16.msra.mxu0 0
      %3065 = vmatprep.subr.bf16.mxu0 0
      %3066 = vmatpush1.bf16.msra.mxu0 0
      %3067 = vmatprep.subr.bf16.mxu0 0
      %3068 = vmatpush1.bf16.msra.mxu0 0
      %3069 = vmatprep.subr.bf16.mxu0 0
      %3070 = vmatpush1.bf16.msra.mxu0 0
      %3071 = vmatprep.subr.bf16.mxu0 0
      %3072 = vmatpush1.bf16.msra.mxu0 0
      %3073 = vmatprep.subr.bf16.mxu0 0
      %3074 = vmatpush1.bf16.msra.mxu0 0
      %3075 = vmatprep.mubr.bf16.mxu0 0
      %3076 = vmatmul.mubr.bf16.gmra.mrb[0].mxu0 %v2933
      %v3077 = vpop.f32.mrb[0].mxu0
      %v3078 = vadd.f32 0.0, %v3077
      %v3079 = vpop.f32.mrb[0].mxu0
      %v3080 = vpop.f32.mrb[0].mxu0
      %v3081 = vadd.f32 0.0, %v3080
      %v3082 = vpop.f32.mrb[0].mxu0
      %3083 = vmatprep.mubr.bf16.mxu0 0
      %3084 = vmatmul.mubr.bf16.gmra.mrb[0].mxu0 %v2936
      %v3085 = vpop.f32.mrb[0].mxu0
      %v3086 = vadd.f32 0.0, %v3085
      %v3087 = vpop.f32.mrb[0].mxu0
      %v3088 = vpop.f32.mrb[0].mxu0
      %v3089 = vadd.f32 0.0, %v3088
      %v3090 = vpop.f32.mrb[0].mxu0
      %3091 = vmatprep.mubr.bf16.mxu0 0
      %3092 = vmatmul.mubr.bf16.gmra.mrb[0].mxu0 %v2939
      %v3093 = vpop.f32.mrb[0].mxu0
      %v3094 = vadd.f32 0.0, %v3093
      %v3095 = vpop.f32.mrb[0].mxu0
      %v3096 = vpop.f32.mrb[0].mxu0
      %v3097 = vadd.f32 0.0, %v3096
      %v3098 = vpop.f32.mrb[0].mxu0
      %3099 = vmatprep.mubr.bf16.mxu0 0
      %3100 = vmatmul.mubr.bf16.gmra.mrb[0].mxu0 %v2942
      %v3101 = vpop.f32.mrb[0].mxu0
      %v3102 = vadd.f32 0.0, %v3101
      %v3103 = vpop.f32.mrb[0].mxu0
      %v3104 = vpop.f32.mrb[0].mxu0
      %v3105 = vadd.f32 0.0, %v3104
      %v3106 = vpop.f32.mrb[0].mxu0
      %3107 = vmatprep.mubr.bf16.mxu0 0
      %3108 = vmatmul.mubr.bf16.gmra.mrb[0].mxu0 %v2945
      %v3109 = vpop.f32.mrb[0].mxu0
      %v3110 = vadd.f32 0.0, %v3109
      %v3111 = vpop.f32.mrb[0].mxu0
      %v3112 = vpop.f32.mrb[0].mxu0
      %v3113 = vadd.f32 0.0, %v3112
      %v3114 = vpop.f32.mrb[0].mxu0
      %3115 = vmatprep.mubr.bf16.mxu0 0
      %3116 = vmatmul.mubr.bf16.gmra.mrb[0].mxu0 %v2948
      %v3117 = vpop.f32.mrb[0].mxu0
      %v3118 = vadd.f32 0.0, %v3117
      %v3119 = vpop.f32.mrb[0].mxu0
      %v3120 = vpop.f32.mrb[0].mxu0
      %v3121 = vadd.f32 0.0, %v3120
      %v3122 = vpop.f32.mrb[0].mxu0
      %3123 = vmatprep.mubr.bf16.mxu0 0
      %3124 = vmatmul.mubr.bf16.gmra.mrb[0].mxu0 %v2951
      %v3125 = vpop.f32.mrb[0].mxu0
      %v3126 = vadd.f32 0.0, %v3125
      %v3127 = vpop.f32.mrb[0].mxu0
      %v3128 = vpop.f32.mrb[0].mxu0
      %v3129 = vadd.f32 0.0, %v3128
      %v3130 = vpop.f32.mrb[0].mxu0
      %3131 = vmatprep.mubr.bf16.mxu0 0
      %3132 = vmatmul.mubr.bf16.gmra.mrb[0].mxu0 %v2954
      %v3133 = vpop.f32.mrb[0].mxu0
      %v3134 = vadd.f32 0.0, %v3133
      %v3135 = vpop.f32.mrb[0].mxu0
      %v3136 = vpop.f32.mrb[0].mxu0
      %v3137 = vadd.f32 0.0, %v3136
      %v3138 = vpop.f32.mrb[0].mxu0
      %3139 = vmatprep.mubr.bf16.mxu0 0
      %3140 = vmatmul.mubr.bf16.gmra.mrb[0].mxu0 %v2957
      %v3141 = vpop.f32.mrb[0].mxu0
      %v3142 = vadd.f32 0.0, %v3141
      %v3143 = vpop.f32.mrb[0].mxu0
      %v3144 = vpop.f32.mrb[0].mxu0
      %v3145 = vadd.f32 0.0, %v3144
      %v3146 = vpop.f32.mrb[0].mxu0
      %3147 = vmatprep.mubr.bf16.mxu0 0
      %3148 = vmatmul.mubr.bf16.gmra.mrb[0].mxu0 %v2960
      %v3149 = vpop.f32.mrb[0].mxu0
      %v3150 = vadd.f32 0.0, %v3149
      %v3151 = vpop.f32.mrb[0].mxu0
      %v3152 = vpop.f32.mrb[0].mxu0
      %v3153 = vadd.f32 0.0, %v3152
      %v3154 = vpop.f32.mrb[0].mxu0
      %3155 = vmatprep.mubr.bf16.mxu0 0
      %3156 = vmatmul.mubr.bf16.gmra.mrb[0].mxu0 %v2963
      %v3157 = vpop.f32.mrb[0].mxu0
      %v3158 = vadd.f32 0.0, %v3157
      %v3159 = vpop.f32.mrb[0].mxu0
      %v3160 = vpop.f32.mrb[0].mxu0
      %v3161 = vadd.f32 0.0, %v3160
      %v3162 = vpop.f32.mrb[0].mxu0
      %3163 = vmatprep.mubr.bf16.mxu0 0
      %3164 = vmatmul.mubr.bf16.gmra.mrb[0].mxu0 %v2966
      %v3165 = vpop.f32.mrb[0].mxu0
      %v3166 = vadd.f32 0.0, %v3165
      %v3167 = vpop.f32.mrb[0].mxu0
      %v3168 = vpop.f32.mrb[0].mxu0
      %v3169 = vadd.f32 0.0, %v3168
      %v3170 = vpop.f32.mrb[0].mxu0
      %3171 = vmatprep.mubr.bf16.mxu0 0
      %3172 = vmatmul.mubr.bf16.gmra.mrb[0].mxu0 %v2969
      %v3173 = vpop.f32.mrb[0].mxu0
      %v3174 = vadd.f32 0.0, %v3173
      %v3175 = vpop.f32.mrb[0].mxu0
      %v3176 = vpop.f32.mrb[0].mxu0
      %v3177 = vadd.f32 0.0, %v3176
      %v3178 = vpop.f32.mrb[0].mxu0
      %3179 = vmatprep.mubr.bf16.mxu0 0
      %3180 = vmatmul.mubr.bf16.gmra.mrb[0].mxu0 %v2972
      %v3181 = vpop.f32.mrb[0].mxu0
      %v3182 = vadd.f32 0.0, %v3181
      %v3183 = vpop.f32.mrb[0].mxu0
      %v3184 = vpop.f32.mrb[0].mxu0
      %v3185 = vadd.f32 0.0, %v3184
      %v3186 = vpop.f32.mrb[0].mxu0
      %3187 = vmatprep.mubr.bf16.mxu0 0
      %3188 = vmatmul.mubr.bf16.gmra.mrb[0].mxu0 %v2975
      %v3189 = vpop.f32.mrb[0].mxu0
      %v3190 = vadd.f32 0.0, %v3189
      %v3191 = vpop.f32.mrb[0].mxu0
      %v3192 = vpop.f32.mrb[0].mxu0
      %v3193 = vadd.f32 0.0, %v3192
      %v3194 = vpop.f32.mrb[0].mxu0
      %3195 = vmatprep.mubr.bf16.mxu0 0
      %3196 = vmatmul.mubr.bf16.gmra.mrb[0].mxu0 %v2977
      %v3197 = vpop.f32.mrb[0].mxu0
      %v3198 = vadd.f32 0.0, %v3197
      %v3199 = vpop.f32.mrb[0].mxu0
      %v3200 = vpop.f32.mrb[0].mxu0
      %v3201 = vadd.f32 0.0, %v3200
      %v3202 = vpop.f32.mrb[0].mxu0
      %3203 = vdwg.mxu0
      %v3204 = vld [vmem:[%s2] sm:$0x1]
      %v3206 = vlaneseq
      %v3207 = vshrl.u32 %v3206, 7
      %v3208 = vsub.s32 0, %v3207
      %v3209 = vrot.slane %v3204, %v3208
      %v3211 = vadd.f32 %v3078, %v3209
      %v3212 = vadd.f32 %v3081, %v3209
      %v3213 = vadd.f32 %v3086, %v3209
      %v3214 = vadd.f32 %v3089, %v3209
      %v3215 = vadd.f32 %v3094, %v3209
      %v3216 = vadd.f32 %v3097, %v3209
      %v3217 = vadd.f32 %v3102, %v3209
      %v3218 = vadd.f32 %v3105, %v3209
      %v3219 = vadd.f32 %v3110, %v3209
      %v3220 = vadd.f32 %v3113, %v3209
      %v3221 = vadd.f32 %v3118, %v3209
      %v3222 = vadd.f32 %v3121, %v3209
      %v3223 = vadd.f32 %v3126, %v3209
      %v3224 = vadd.f32 %v3129, %v3209
      %v3225 = vadd.f32 %v3134, %v3209
      %v3226 = vadd.f32 %v3137, %v3209
      %v3227 = vadd.f32 %v3142, %v3209
      %v3228 = vadd.f32 %v3145, %v3209
      %v3229 = vadd.f32 %v3150, %v3209
      %v3230 = vadd.f32 %v3153, %v3209
      %v3231 = vadd.f32 %v3158, %v3209
      %v3232 = vadd.f32 %v3161, %v3209
      %v3233 = vadd.f32 %v3166, %v3209
      %v3234 = vadd.f32 %v3169, %v3209
      %v3235 = vadd.f32 %v3174, %v3209
      %v3236 = vadd.f32 %v3177, %v3209
      %v3237 = vadd.f32 %v3182, %v3209
      %v3238 = vadd.f32 %v3185, %v3209
      %v3239 = vadd.f32 %v3190, %v3209
      %v3240 = vadd.f32 %v3193, %v3209
      %v3241 = vadd.f32 %v3198, %v3209
      %v3242 = vadd.f32 %v3201, %v3209
      %v3243 = vsel %vm1635, %v3211, 0.0
      %v3244 = vsel %vm1635, %v3212, 0.0
      %v3245 = vadd.f32 %v3243, %v3244
      %v3246 = vsel %vm1635, %v3213, 0.0
      %v3247 = vadd.f32 %v3245, %v3246
      %v3248 = vsel %vm1635, %v3214, 0.0
      %v3249 = vadd.f32 %v3247, %v3248
      %v3250 = vsel %vm1635, %v3215, 0.0
      %v3251 = vadd.f32 %v3249, %v3250
      %v3252 = vsel %vm1635, %v3216, 0.0
      %v3253 = vadd.f32 %v3251, %v3252
      %v3254 = vsel %vm1635, %v3217, 0.0
      %v3255 = vadd.f32 %v3253, %v3254
      %v3256 = vsel %vm1635, %v3218, 0.0
      %v3257 = vadd.f32 %v3255, %v3256
      %v3258 = vsel %vm1635, %v3219, 0.0
      %v3259 = vadd.f32 %v3257, %v3258
      %v3260 = vsel %vm1635, %v3220, 0.0
      %v3261 = vadd.f32 %v3259, %v3260
      %v3262 = vsel %vm1635, %v3221, 0.0
      %v3263 = vadd.f32 %v3261, %v3262
      %v3264 = vsel %vm1635, %v3222, 0.0
      %v3265 = vadd.f32 %v3263, %v3264
      %v3266 = vsel %vm1635, %v3223, 0.0
      %v3267 = vadd.f32 %v3265, %v3266
      %v3268 = vsel %vm1635, %v3224, 0.0
      %v3269 = vadd.f32 %v3267, %v3268
      %v3270 = vsel %vm1635, %v3225, 0.0
      %v3271 = vadd.f32 %v3269, %v3270
      %v3272 = vsel %vm1635, %v3226, 0.0
      %v3273 = vadd.f32 %v3271, %v3272
      %v3274 = vsel %vm1635, %v3227, 0.0
      %v3275 = vadd.f32 %v3273, %v3274
      %v3276 = vsel %vm1635, %v3228, 0.0
      %v3277 = vadd.f32 %v3275, %v3276
      %v3278 = vsel %vm1635, %v3229, 0.0
      %v3279 = vadd.f32 %v3277, %v3278
      %v3280 = vsel %vm1635, %v3230, 0.0
      %v3281 = vadd.f32 %v3279, %v3280
      %v3282 = vsel %vm1635, %v3231, 0.0
      %v3283 = vadd.f32 %v3281, %v3282
      %v3284 = vsel %vm1635, %v3232, 0.0
      %v3285 = vadd.f32 %v3283, %v3284
      %v3286 = vsel %vm1635, %v3233, 0.0
      %v3287 = vadd.f32 %v3285, %v3286
      %v3288 = vsel %vm1635, %v3234, 0.0
      %v3289 = vadd.f32 %v3287, %v3288
      %v3290 = vsel %vm1635, %v3235, 0.0
      %v3291 = vadd.f32 %v3289, %v3290
      %v3292 = vsel %vm1635, %v3236, 0.0
      %v3293 = vadd.f32 %v3291, %v3292
      %v3294 = vsel %vm1635, %v3237, 0.0
      %v3295 = vadd.f32 %v3293, %v3294
      %v3296 = vsel %vm1635, %v3238, 0.0
      %v3297 = vadd.f32 %v3295, %v3296
      %v3298 = vsel %vm1635, %v3239, 0.0
      %v3299 = vadd.f32 %v3297, %v3298
      %v3300 = vsel %vm1635, %v3240, 0.0
      %v3301 = vadd.f32 %v3299, %v3300
      %v3302 = vsel %vm1635, %v3241, 0.0
      %v3303 = vadd.f32 %v3301, %v3302
      %v3304 = vsel %vm1635, %v3242, 0.0
      %v3305 = vadd.f32 %v3303, %v3304
      %3306 = vst.msk [vmem:[%s241] sm:$0xff] %vm1635, %v3305
      %v3307 = vmul.f32 %v3211, %v3211
      %v3308 = vmul.f32 %v3212, %v3212
      %v3309 = vmul.f32 %v3213, %v3213
      %v3310 = vmul.f32 %v3214, %v3214
      %v3311 = vmul.f32 %v3215, %v3215
      %v3312 = vmul.f32 %v3216, %v3216
      %v3313 = vmul.f32 %v3217, %v3217
      %v3314 = vmul.f32 %v3218, %v3218
      %v3315 = vmul.f32 %v3219, %v3219
      %v3316 = vmul.f32 %v3220, %v3220
      %v3317 = vmul.f32 %v3221, %v3221
      %v3318 = vmul.f32 %v3222, %v3222
      %v3319 = vmul.f32 %v3223, %v3223
      %v3320 = vmul.f32 %v3224, %v3224
      %v3321 = vmul.f32 %v3225, %v3225
      %v3322 = vmul.f32 %v3226, %v3226
      %v3323 = vmul.f32 %v3227, %v3227
      %v3324 = vmul.f32 %v3228, %v3228
      %v3325 = vmul.f32 %v3229, %v3229
      %v3326 = vmul.f32 %v3230, %v3230
      %v3327 = vmul.f32 %v3231, %v3231
      %v3328 = vmul.f32 %v3232, %v3232
      %v3329 = vmul.f32 %v3233, %v3233
      %v3330 = vmul.f32 %v3234, %v3234
      %v3331 = vmul.f32 %v3235, %v3235
      %v3332 = vmul.f32 %v3236, %v3236
      %v3333 = vmul.f32 %v3237, %v3237
      %v3334 = vmul.f32 %v3238, %v3238
      %v3335 = vmul.f32 %v3239, %v3239
      %v3336 = vmul.f32 %v3240, %v3240
      %v3337 = vmul.f32 %v3241, %v3241
      %v3338 = vmul.f32 %v3242, %v3242
      %v3339 = vsel %vm1635, %v3307, 0.0
      %v3340 = vsel %vm1635, %v3308, 0.0
      %v3341 = vadd.f32 %v3339, %v3340
      %v3342 = vsel %vm1635, %v3309, 0.0
      %v3343 = vadd.f32 %v3341, %v3342
      %v3344 = vsel %vm1635, %v3310, 0.0
      %v3345 = vadd.f32 %v3343, %v3344
      %v3346 = vsel %vm1635, %v3311, 0.0
      %v3347 = vadd.f32 %v3345, %v3346
      %v3348 = vsel %vm1635, %v3312, 0.0
      %v3349 = vadd.f32 %v3347, %v3348
      %v3350 = vsel %vm1635, %v3313, 0.0
      %v3351 = vadd.f32 %v3349, %v3350
      %v3352 = vsel %vm1635, %v3314, 0.0
      %v3353 = vadd.f32 %v3351, %v3352
      %v3354 = vsel %vm1635, %v3315, 0.0
      %v3355 = vadd.f32 %v3353, %v3354
      %v3356 = vsel %vm1635, %v3316, 0.0
      %v3357 = vadd.f32 %v3355, %v3356
      %v3358 = vsel %vm1635, %v3317, 0.0
      %v3359 = vadd.f32 %v3357, %v3358
      %v3360 = vsel %vm1635, %v3318, 0.0
      %v3361 = vadd.f32 %v3359, %v3360
      %v3362 = vsel %vm1635, %v3319, 0.0
      %v3363 = vadd.f32 %v3361, %v3362
      %v3364 = vsel %vm1635, %v3320, 0.0
      %v3365 = vadd.f32 %v3363, %v3364
      %v3366 = vsel %vm1635, %v3321, 0.0
      %v3367 = vadd.f32 %v3365, %v3366
      %v3368 = vsel %vm1635, %v3322, 0.0
      %v3369 = vadd.f32 %v3367, %v3368
      %v3370 = vsel %vm1635, %v3323, 0.0
      %v3371 = vadd.f32 %v3369, %v3370
      %v3372 = vsel %vm1635, %v3324, 0.0
      %v3373 = vadd.f32 %v3371, %v3372
      %v3374 = vsel %vm1635, %v3325, 0.0
      %v3375 = vadd.f32 %v3373, %v3374
      %v3376 = vsel %vm1635, %v3326, 0.0
      %v3377 = vadd.f32 %v3375, %v3376
      %v3378 = vsel %vm1635, %v3327, 0.0
      %v3379 = vadd.f32 %v3377, %v3378
      %v3380 = vsel %vm1635, %v3328, 0.0
      %v3381 = vadd.f32 %v3379, %v3380
      %v3382 = vsel %vm1635, %v3329, 0.0
      %v3383 = vadd.f32 %v3381, %v3382
      %v3384 = vsel %vm1635, %v3330, 0.0
      %v3385 = vadd.f32 %v3383, %v3384
      %v3386 = vsel %vm1635, %v3331, 0.0
      %v3387 = vadd.f32 %v3385, %v3386
      %v3388 = vsel %vm1635, %v3332, 0.0
      %v3389 = vadd.f32 %v3387, %v3388
      %v3390 = vsel %vm1635, %v3333, 0.0
      %v3391 = vadd.f32 %v3389, %v3390
      %v3392 = vsel %vm1635, %v3334, 0.0
      %v3393 = vadd.f32 %v3391, %v3392
      %v3394 = vsel %vm1635, %v3335, 0.0
      %v3395 = vadd.f32 %v3393, %v3394
      %v3396 = vsel %vm1635, %v3336, 0.0
      %v3397 = vadd.f32 %v3395, %v3396
      %v3398 = vsel %vm1635, %v3337, 0.0
      %v3399 = vadd.f32 %v3397, %v3398
      %v3400 = vsel %vm1635, %v3338, 0.0
      %v3401 = vadd.f32 %v3399, %v3400
      %3402 = vst.msk [vmem:[%s245] sm:$0xff] %vm1635, %v3401
      %v3403 = vpack.c.bf16 %v3212, %v3211
      %v3404 = vpack.c.bf16 %v3214, %v3213
      %v3405 = vpack.c.bf16 %v3216, %v3215
      %v3406 = vpack.c.bf16 %v3218, %v3217
      %v3407 = vpack.c.bf16 %v3220, %v3219
      %v3408 = vpack.c.bf16 %v3222, %v3221
      %v3409 = vpack.c.bf16 %v3224, %v3223
      %v3410 = vpack.c.bf16 %v3226, %v3225
      %v3411 = vpack.c.bf16 %v3228, %v3227
      %v3412 = vpack.c.bf16 %v3230, %v3229
      %v3413 = vpack.c.bf16 %v3232, %v3231
      %v3414 = vpack.c.bf16 %v3234, %v3233
      %v3415 = vpack.c.bf16 %v3236, %v3235
      %v3416 = vpack.c.bf16 %v3238, %v3237
      %v3417 = vpack.c.bf16 %v3240, %v3239
      %v3418 = vpack.c.bf16 %v3242, %v3241
      %v3435 = vunpack.c.l.b16 %v3403
      %v3436 = vunpack.c.h.b16 %v3403
      %v3437 = vunpack.c.l.b16 %v3404
      %v3438 = vunpack.c.h.b16 %v3404
      %v3439 = vunpack.c.l.b16 %v3405
      %v3440 = vunpack.c.h.b16 %v3405
      %v3441 = vunpack.c.l.b16 %v3406
      %v3442 = vunpack.c.h.b16 %v3406
      %v3443 = vunpack.c.l.b16 %v3407
      %v3444 = vunpack.c.h.b16 %v3407
      %v3445 = vunpack.c.l.b16 %v3408
      %v3446 = vunpack.c.h.b16 %v3408
      %v3447 = vunpack.c.l.b16 %v3409
      %v3448 = vunpack.c.h.b16 %v3409
      %v3449 = vunpack.c.l.b16 %v3410
      %v3450 = vunpack.c.h.b16 %v3410
      %v3451 = vunpack.c.l.b16 %v3411
      %v3452 = vunpack.c.h.b16 %v3411
      %v3453 = vunpack.c.l.b16 %v3412
      %v3454 = vunpack.c.h.b16 %v3412
      %v3455 = vunpack.c.l.b16 %v3413
      %v3456 = vunpack.c.h.b16 %v3413
      %v3457 = vunpack.c.l.b16 %v3414
      %v3458 = vunpack.c.h.b16 %v3414
      %v3459 = vunpack.c.l.b16 %v3415
      %v3460 = vunpack.c.h.b16 %v3415
      %v3461 = vunpack.c.l.b16 %v3416
      %v3462 = vunpack.c.h.b16 %v3416
      %v3463 = vunpack.c.l.b16 %v3417
      %v3464 = vunpack.c.h.b16 %v3417
      %v3465 = vunpack.c.l.b16 %v3418
      %v3466 = vunpack.c.h.b16 %v3418
      %v3467 = vpack.c.b16 %v3435, %v3435
      %v3468 = vpack.c.b16 %v3436, %v3436
      %v3469 = vpack.c.b16 %v3437, %v3437
      %v3470 = vpack.c.b16 %v3438, %v3438
      %v3471 = vpack.c.b16 %v3439, %v3439
      %v3472 = vpack.c.b16 %v3440, %v3440
      %v3473 = vpack.c.b16 %v3441, %v3441
      %v3474 = vpack.c.b16 %v3442, %v3442
      %v3475 = vpack.c.b16 %v3443, %v3443
      %v3476 = vpack.c.b16 %v3444, %v3444
      %v3477 = vpack.c.b16 %v3445, %v3445
      %v3478 = vpack.c.b16 %v3446, %v3446
      %v3479 = vpack.c.b16 %v3447, %v3447
      %v3480 = vpack.c.b16 %v3448, %v3448
      %v3481 = vpack.c.b16 %v3449, %v3449
      %v3482 = vpack.c.b16 %v3450, %v3450
      %v3483 = vpack.c.b16 %v3451, %v3451
      %v3484 = vpack.c.b16 %v3452, %v3452
      %v3485 = vpack.c.b16 %v3453, %v3453
      %v3486 = vpack.c.b16 %v3454, %v3454
      %v3487 = vpack.c.b16 %v3455, %v3455
      %v3488 = vpack.c.b16 %v3456, %v3456
      %v3489 = vpack.c.b16 %v3457, %v3457
      %v3490 = vpack.c.b16 %v3458, %v3458
      %v3491 = vpack.c.b16 %v3459, %v3459
      %v3492 = vpack.c.b16 %v3460, %v3460
      %v3493 = vpack.c.b16 %v3461, %v3461
      %v3494 = vpack.c.b16 %v3462, %v3462
      %v3495 = vpack.c.b16 %v3463, %v3463
      %v3496 = vpack.c.b16 %v3464, %v3464
      %v3497 = vpack.c.b16 %v3465, %v3465
      %v3498 = vpack.c.b16 %v3466, %v3466
      %vm3531 = vcmask 60416
      %3532 = vst.msk [vmem:[%s237] sm:$0xf] %vm3531, %v3467
      %3533 = vst.msk [vmem:[%s237 + $0x4] sm:$0xf] %vm3531, %v3468
      %3534 = vst.msk [vmem:[%s237 + $0x8] sm:$0xf] %vm3531, %v3469
      %3535 = vst.msk [vmem:[%s237 + $0xc] sm:$0xf] %vm3531, %v3470
      %3536 = vst.msk [vmem:[%s237 + $0x10] sm:$0xf] %vm3531, %v3471
      %3537 = vst.msk [vmem:[%s237 + $0x14] sm:$0xf] %vm3531, %v3472
      %3538 = vst.msk [vmem:[%s237 + $0x18] sm:$0xf] %vm3531, %v3473
      %3539 = vst.msk [vmem:[%s237 + $0x1c] sm:$0xf] %vm3531, %v3474
      %3540 = vst.msk [vmem:[%s237 + $0x20] sm:$0xf] %vm3531, %v3475
      %3541 = vst.msk [vmem:[%s237 + $0x24] sm:$0xf] %vm3531, %v3476
      %3542 = vst.msk [vmem:[%s237 + $0x28] sm:$0xf] %vm3531, %v3477
      %3543 = vst.msk [vmem:[%s237 + $0x2c] sm:$0xf] %vm3531, %v3478
      %3544 = vst.msk [vmem:[%s237 + $0x30] sm:$0xf] %vm3531, %v3479
      %3545 = vst.msk [vmem:[%s237 + $0x34] sm:$0xf] %vm3531, %v3480
      %3546 = vst.msk [vmem:[%s237 + $0x38] sm:$0xf] %vm3531, %v3481
      %3547 = vst.msk [vmem:[%s237 + $0x3c] sm:$0xf] %vm3531, %v3482
      %3548 = vst.msk [vmem:[%s237 + $0x40] sm:$0xf] %vm3531, %v3483
      %3549 = vst.msk [vmem:[%s237 + $0x44] sm:$0xf] %vm3531, %v3484
      %3550 = vst.msk [vmem:[%s237 + $0x48] sm:$0xf] %vm3531, %v3485
      %3551 = vst.msk [vmem:[%s237 + $0x4c] sm:$0xf] %vm3531, %v3486
      %3552 = vst.msk [vmem:[%s237 + $0x50] sm:$0xf] %vm3531, %v3487
      %3553 = vst.msk [vmem:[%s237 + $0x54] sm:$0xf] %vm3531, %v3488
      %3554 = vst.msk [vmem:[%s237 + $0x58] sm:$0xf] %vm3531, %v3489
      %3555 = vst.msk [vmem:[%s237 + $0x5c] sm:$0xf] %vm3531, %v3490
      %3556 = vst.msk [vmem:[%s237 + $0x60] sm:$0xf] %vm3531, %v3491
      %3557 = vst.msk [vmem:[%s237 + $0x64] sm:$0xf] %vm3531, %v3492
      %3558 = vst.msk [vmem:[%s237 + $0x68] sm:$0xf] %vm3531, %v3493
      %3559 = vst.msk [vmem:[%s237 + $0x6c] sm:$0xf] %vm3531, %v3494
      %3560 = vst.msk [vmem:[%s237 + $0x70] sm:$0xf] %vm3531, %v3495
      %3561 = vst.msk [vmem:[%s237 + $0x74] sm:$0xf] %vm3531, %v3496
      %3562 = vst.msk [vmem:[%s237 + $0x78] sm:$0xf] %vm3531, %v3497
      %3563 = vst.msk [vmem:[%s237 + $0x7c] sm:$0xf] %vm3531, %v3498
      %p3564 = scmp.lt.s32.totalorder %s17, 1
      %s3565 = scalar_select %p3564, %s17, 1
      %s3566 = smul.addr %s3565, 32
      %s3567 = smul.addr %s3566, 4
      %s3568 = scalar_lea.vmem %s3, %s3567
      %p3569 = scmp.lt.s32.totalorder %s17, 1
      %s3570 = scalar_select %p3569, %s17, 1
      %s3571 = smul.addr %s3570, 8
      %s3572 = scalar_lea.vmem %s4, %s3571
      %p3573 = scmp.lt.s32.totalorder %s17, 1
      %s3574 = scalar_select %p3573, %s17, 1
      %s3575 = smul.addr %s3574, 8
      %s3576 = scalar_lea.vmem %s5, %s3575
      // Predicated region
      $region33: #{inconv_forward.3} parent=31 // pred_check
        %p3577 = pneg %p103
      $region34: #{inconv_forward.3} parent=31 // pred_check_branch
        %3579 = sbr.rel (%p3577) target = $region36
      $region35: #{inconv_forward.3} parent=31 // pred_region
        _
      $region36: #{inconv_forward.3} parent=31 // pred_fallthru
        _
      // Predicated region
      $region37: #{inconv_forward.3} parent=31 // pred_check
        %p3580 = pneg %p129
      $region38: #{inconv_forward.3} parent=31 // pred_check_branch
        %3582 = sbr.rel (%p3580) target = $region40
      $region39: #{inconv_forward.3} parent=31 // pred_region
        _
      $region40: #{inconv_forward.3} parent=31 // pred_fallthru
        _
      // Predicated region
      $region41: #{inconv_forward.3} parent=31 // pred_check
        %p3583 = pneg %p155
      $region42: #{inconv_forward.3} parent=31 // pred_check_branch
        %3585 = sbr.rel (%p3583) target = $region44
      $region43: #{inconv_forward.3} parent=31 // pred_region
        _
      $region44: #{inconv_forward.3} parent=31 // pred_fallthru
        _
    $region32: #{inconv_forward.3} parent=5 // pred_fallthru
      _
    %p3586 = scmp.le.s32.totalorder 2, %s12
    // Predicated region
    $region45: #{inconv_forward.3} parent=5 // pred_check
      %p3587 = pneg %p3586
    $region46: #{inconv_forward.3} parent=5 // pred_check_branch
      %3589 = sbr.rel (%p3587) target = $region48
    $region47: #{inconv_forward.3} parent=5 // pred_region
      %s3590 = ssub.s32 %s12, 2
      // Predicated region
      $region49: #{inconv_forward.3} parent=47 // pred_check
        %p3591 = pneg %p109
      $region50: #{inconv_forward.3} parent=47 // pred_check_branch
        %3593 = sbr.rel (%p3591) target = $region52
      $region51: #{inconv_forward.3} parent=47 // pred_region
        %p3594 = scmp.lt.s32.totalorder %s18, 1
        %s3595 = scalar_select %p3594, %s18, 1
        %s3596 = smul.addr %s3595, 32
        %s3597 = smul.addr %s3596, 4
        %s3598 = scalar_lea.vmem %s3, %s3597
      $region52: #{inconv_forward.3} parent=47 // pred_fallthru
        _
      // Predicated region
      $region53: #{inconv_forward.3} parent=47 // pred_check
        %p3599 = pneg %p135
      $region54: #{inconv_forward.3} parent=47 // pred_check_branch
        %3601 = sbr.rel (%p3599) target = $region56
      $region55: #{inconv_forward.3} parent=47 // pred_region
        %p3602 = scmp.lt.s32.totalorder %s18, 1
        %s3603 = scalar_select %p3602, %s18, 1
        %s3604 = smul.addr %s3603, 8
        %s3605 = scalar_lea.vmem %s4, %s3604
      $region56: #{inconv_forward.3} parent=47 // pred_fallthru
        _
      // Predicated region
      $region57: #{inconv_forward.3} parent=47 // pred_check
        %p3606 = pneg %p161
      $region58: #{inconv_forward.3} parent=47 // pred_check_branch
        %3608 = sbr.rel (%p3606) target = $region60
      $region59: #{inconv_forward.3} parent=47 // pred_region
        %p3609 = scmp.lt.s32.totalorder %s18, 1
        %s3610 = scalar_select %p3609, %s18, 1
        %s3611 = smul.addr %s3610, 8
        %s3612 = scalar_lea.vmem %s5, %s3611
      $region60: #{inconv_forward.3} parent=47 // pred_fallthru
        _
    $region48: #{inconv_forward.3} parent=5 // pred_fallthru
      _
  $region6: #{inconv_forward.3} parent=0 // loop_footer
    %s16 = sadd.s32 1, %s12
  $region7: #{inconv_forward.3} parent=0 // loop_footer_branch
    %11 = sbr.rel target = $region3
  $region8: #{inconv_forward.3} parent=0 // loop_exit
    _

</llo_original>
